<compile_context>
chip_gen: v7x
topology: tpu7x:2x2x1
jax: 0.10.0
libtpu: 0.0.40
codegen_flags: <defaults>
</compile_context>

<pallas_src>
import functools
import math

import numpy as np
import jax
import jax.numpy as jnp
from jax import lax
from jax.experimental import pallas as pl
from jax.experimental.pallas import tpu as pltpu

_SQRT2_INV = 0.7071067811865476


def _gelu(x):
    # exact (erf-based) GELU, matching torch.nn.functional.gelu default
    return 0.5 * x * (1.0 + lax.erf(x * _SQRT2_INV))


def _pick_tile(m_rows, max_tm=512):
    """Largest multiple-of-8 divisor of m_rows <= max_tm that still leaves
    >= 2 grid steps (so both v7x TensorCores get work).  Falls back to one
    full block (always layout-legal) if no such divisor exists."""
    best = None
    t = 8
    lim = min(m_rows, max_tm)
    while t <= lim:
        if m_rows % t == 0 and (m_rows // t) >= 2:
            best = t
        t += 8
    return best if best is not None else m_rows


_CPARAMS_1D = pltpu.CompilerParams(
    dimension_semantics=("parallel",),
    vmem_limit_bytes=32 * 1024 * 1024,
)


# ---------------------------------------------------------------------------
# Pallas kernel 1: fused  y = act(x @ W + b [+ residual])   (lane-packed)
# ---------------------------------------------------------------------------
def _linear_kernel(x_ref, w_ref, b_ref, o_ref, *, act):
    y = jnp.dot(x_ref[...], w_ref[...], preferred_element_type=jnp.float32)
    y = y + b_ref[...]
    if act:
        y = _gelu(y)
    o_ref[...] = y


def _linear_res_kernel(x_ref, w_ref, b_ref, r_ref, o_ref, *, act):
    y = jnp.dot(x_ref[...], w_ref[...], preferred_element_type=jnp.float32)
    y = y + b_ref[...] + r_ref[...]
    if act:
        y = _gelu(y)
    o_ref[...] = y


def pallas_linear(x, w, b, res=None, act=False, pack=8):
    """x: (M, K) f32, w: (K, N), b: (N,), optional res: (M, N) -> (M, N).

    Folds `pack` consecutive rows into the lane axis and uses a block-diagonal
    kron(I_pack, W) weight so matmuls and stores are lane-dense.
    Requires M % pack == 0 (caller guarantees)."""
    M, K = x.shape
    N = w.shape[1]
    Mr = M // pack
    Kp, Np = pack * K, pack * N

    xp = x.reshape(Mr, Kp)                                    # free (contiguous)
    wp = jnp.kron(jnp.eye(pack, dtype=w.dtype), w)            # (Kp, Np) block-diag
    bp = jnp.tile(b.astype(jnp.float32), pack).reshape(1, Np)

    tm = _pick_tile(Mr)
    grid = (Mr // tm,)
    x_spec = pl.BlockSpec((tm, Kp), lambda i: (i, 0))
    w_spec = pl.BlockSpec((Kp, Np), lambda i: (0, 0))
    b_spec = pl.BlockSpec((1, Np), lambda i: (0, 0))
    o_spec = pl.BlockSpec((tm, Np), lambda i: (i, 0))

    cost = pl.CostEstimate(
        flops=2 * Mr * Kp * Np,
        transcendentals=(Mr * Np) if act else 0,
        bytes_accessed=4 * (Mr * Kp + Kp * Np + Np + Mr * Np
                            + (Mr * Np if res is not None else 0)),
    )

    if res is None:
        out = pl.pallas_call(
            functools.partial(_linear_kernel, act=act),
            out_shape=jax.ShapeDtypeStruct((Mr, Np), jnp.float32),
            grid=grid,
            in_specs=[x_spec, w_spec, b_spec],
            out_specs=o_spec,
            compiler_params=_CPARAMS_1D,
            cost_estimate=cost,
        )(xp, wp, bp)
    else:
        rp = res.reshape(Mr, Np)
        r_spec = pl.BlockSpec((tm, Np), lambda i: (i, 0))
        out = pl.pallas_call(
            functools.partial(_linear_res_kernel, act=act),
            out_shape=jax.ShapeDtypeStruct((Mr, Np), jnp.float32),
            grid=grid,
            in_specs=[x_spec, w_spec, b_spec, r_spec],
            out_specs=o_spec,
            compiler_params=_CPARAMS_1D,
            cost_estimate=cost,
        )(xp, wp, bp, rp)
    return out.reshape(M, N)


# ---------------------------------------------------------------------------
# Pallas kernel 2: fused MLP head  y = gelu(x @ W1 + b1) @ W2 + b2
#   (the (M, fc_dim) intermediate never leaves VMEM)
# ---------------------------------------------------------------------------
def _mlp_kernel(x_ref, w1_ref, b1_ref, w2_ref, b2_ref, o_ref):
    t = jnp.dot(x_ref[...], w1_ref[...], preferred_element_type=jnp.float32)
    t = _gelu(t + b1_ref[...])
    y = jnp.dot(t, w2_ref[...], preferred_element_type=jnp.float32)
    o_ref[...] = y + b2_ref[...]


def pallas_mlp(x, w1, b1, w2, b2, pack=8):
    M, C = x.shape
    Fd = w1.shape[1]
    O = w2.shape[1]
    Mr = M // pack
    Cp, Fp, Op = pack * C, pack * Fd, pack * O

    xp = x.reshape(Mr, Cp)
    w1p = jnp.kron(jnp.eye(pack, dtype=w1.dtype), w1)
    w2p = jnp.kron(jnp.eye(pack, dtype=w2.dtype), w2)
    b1p = jnp.tile(b1.astype(jnp.float32), pack).reshape(1, Fp)
    b2p = jnp.tile(b2.astype(jnp.float32), pack).reshape(1, Op)

    tm = _pick_tile(Mr)
    grid = (Mr // tm,)
    cost = pl.CostEstimate(
        flops=2 * Mr * (Cp * Fp + Fp * Op),
        transcendentals=Mr * Fp,
        bytes_accessed=4 * (Mr * Cp + Cp * Fp + Fp * Op + Mr * Op),
    )
    out = pl.pallas_call(
        _mlp_kernel,
        out_shape=jax.ShapeDtypeStruct((Mr, Op), jnp.float32),
        grid=grid,
        in_specs=[pl.BlockSpec((tm, Cp), lambda i: (i, 0)),
                  pl.BlockSpec((Cp, Fp), lambda i: (0, 0)),
                  pl.BlockSpec((1, Fp), lambda i: (0, 0)),
                  pl.BlockSpec((Fp, Op), lambda i: (0, 0)),
                  pl.BlockSpec((1, Op), lambda i: (0, 0))],
        out_specs=pl.BlockSpec((tm, Op), lambda i: (i, 0)),
        compiler_params=_CPARAMS_1D,
        cost_estimate=cost,
    )(xp, w1p, b1p, w2p, b2p)
    return out.reshape(M, O)


# ---------------------------------------------------------------------------
# Pallas kernel 3: per-Fourier-mode complex channel contraction (mode-packed)
#   out[m, b, o] = sum_i x[m, b, i] * w[m, i, o]   (complex, split re/im)
#   3-multiply complex trick: k1=xr@wr, k2=xi@wi, k3=(xr+xi)@(wr+wi).
#   `group` consecutive modes are folded into the lane axis; the per-group
#   weight is the block-diagonal of the per-mode (C,C) matrices, so operands
#   are 128 lanes wide and output stores are unmasked.
# ---------------------------------------------------------------------------
def _spectral_kernel(xr_ref, xi_ref, wr_ref, wi_ref, or_ref, oi_ref):
    xr, xi = xr_ref[...], xi_ref[...]
    wr, wi = wr_ref[...], wi_ref[...]
    k1 = jnp.einsum("gbk,gkn->gbn", xr, wr, preferred_element_type=jnp.float32)
    k2 = jnp.einsum("gbk,gkn->gbn", xi, wi, preferred_element_type=jnp.float32)
    k3 = jnp.einsum("gbk,gkn->gbn", xr + xi, wr + wi,
                    preferred_element_type=jnp.float32)
    or_ref[...] = k1 - k2
    oi_ref[...] = k3 - k1 - k2


def pallas_spectral_contract(xr, xi, wr, wi):
    NM, B, C = xr.shape
    # pick the mode-packing so group*C aims at 128 lanes
    if C <= 128 and 128 % C == 0:
        group = math.gcd(NM, 128 // C)
    else:
        group = math.gcd(NM, 8)
    group = max(group, 1)
    G = NM // group
    GC = group * C

    def pack_x(x):                      # (NM,B,C) -> (G,B,group*C)
        return (x.reshape(G, group, B, C)
                 .transpose(0, 2, 1, 3)
                 .reshape(G, B, GC))

    def pack_w(w):                      # (NM,C,C) -> (G,group*C,group*C) block-diag
        eye = jnp.eye(group, dtype=w.dtype)
        bd = jnp.einsum("gpio,pq->gpiqo", w.reshape(G, group, C, C), eye)
        return bd.reshape(G, GC, GC)

    def unpack(y):                      # (G,B,group*C) -> (NM,B,C)
        return (y.reshape(G, B, group, C)
                 .transpose(0, 2, 1, 3)
                 .reshape(NM, B, C))

    xrp, xip = pack_x(xr), pack_x(xi)
    wrp, wip = pack_w(wr), pack_w(wi)

    # group-block per grid step: keep >=2 steps for v7x megacore, and keep the
    # per-step (double-buffered) footprint well inside v7x's 64 MiB VMEM.
    gblk = G
    while gblk % 2 == 0 and (G // gblk) < 2:
        gblk //= 2
    while gblk % 2 == 0 and \
            8 * (2 * gblk * GC * GC + 6 * gblk * max(B, 8) * GC) > (16 << 20):
        gblk //= 2
    grid = (G // gblk,)

    x_spec = pl.BlockSpec((gblk, B, GC), lambda g: (g, 0, 0))
    w_spec = pl.BlockSpec((gblk, GC, GC), lambda g: (g, 0, 0))
    o_spec = pl.BlockSpec((gblk, B, GC), lambda g: (g, 0, 0))
    cost = pl.CostEstimate(
        flops=3 * 2 * G * B * GC * GC,
        transcendentals=0,
        bytes_accessed=4 * (4 * G * B * GC + 2 * G * GC * GC),
    )
    or_p, oi_p = pl.pallas_call(
        _spectral_kernel,
        out_shape=(jax.ShapeDtypeStruct((G, B, GC), jnp.float32),
                   jax.ShapeDtypeStruct((G, B, GC), jnp.float32)),
        grid=grid,
        in_specs=[x_spec, x_spec, w_spec, w_spec],
        out_specs=(o_spec, o_spec),
        compiler_params=_CPARAMS_1D,
        cost_estimate=cost,
    )(xrp, xip, wrp, wip)
    return unpack(or_p), unpack(oi_p)


# ---------------------------------------------------------------------------
# Spectral conv block (FactorizedSpectralConv3d semantics, dense weights):
# rfftn over spatial dims, complex channel-mix on the 4 low-mode corners,
# irfftn back.  FFTs are plain JAX (no Pallas FFT primitive).
# ---------------------------------------------------------------------------
def spectral_conv3d(h_flat, wr, wi, B, X, Y, Z, C, m1, m2, m3, use_pallas):
    x = h_flat.reshape(B, X, Y, Z, C).transpose(0, 4, 1, 2, 3)  # (B,C,X,Y,Z)
    # TODO(synk): rfftn/irfftn have no Pallas equivalent; computed in plain JAX.
    x_ft = jnp.fft.rfftn(x, axes=(-3, -2, -1))                   # fft_norm='backward'
    corners = [
        x_ft[:, :, :m1, :m2, :m3],
        x_ft[:, :, -m1:, :m2, :m3],
        x_ft[:, :, :m1, -m2:, :m3],
        x_ft[:, :, -m1:, -m2:, :m3],
    ]
    xc = jnp.stack(corners, axis=0)                               # (4,B,C,m1,m2,m3)
    xc = xc.transpose(0, 3, 4, 5, 1, 2).reshape(4 * m1 * m2 * m3, B, C)
    xr = jnp.real(xc).astype(jnp.float32)
    xi = jnp.imag(xc).astype(jnp.float32)

    if use_pallas:
        or_, oi_ = pallas_spectral_contract(xr, xi, wr, wi)
    else:  # pure-JAX reference path (4-multiply form)
        or_ = jnp.einsum("mbi,mio->mbo", xr, wr) - jnp.einsum("mbi,mio->mbo", xi, wi)
        oi_ = jnp.einsum("mbi,mio->mbo", xr, wi) + jnp.einsum("mbi,mio->mbo", xi, wr)

    oc = (or_ + 1j * oi_).reshape(4, m1, m2, m3, B, C).transpose(0, 4, 5, 1, 2, 3)
    Zr = Z // 2 + 1
    out_ft = jnp.zeros((B, C, X, Y, Zr), dtype=jnp.complex64)
    out_ft = out_ft.at[:, :, :m1, :m2, :m3].set(oc[0])
    out_ft = out_ft.at[:, :, -m1:, :m2, :m3].set(oc[1])
    out_ft = out_ft.at[:, :, :m1, -m2:, :m3].set(oc[2])
    out_ft = out_ft.at[:, :, -m1:, -m2:, :m3].set(oc[3])
    y = jnp.fft.irfftn(out_ft, s=(X, Y, Z), axes=(-3, -2, -1))    # 'backward' norm
    y = y.transpose(0, 2, 3, 4, 1).reshape(B * X * Y * Z, C)
    return y.astype(jnp.float32)


# ---------------------------------------------------------------------------
# Full forward pass
# ---------------------------------------------------------------------------
def fno3d_forward(x, params, cfg, use_pallas=True):
    B, nx, ny, nz, in_dim = x.shape
    px, py, pz = cfg["pad_x"], cfg["pad_y"], cfg["pad_z"]
    x = jnp.pad(x, ((0, 0), (0, px), (0, py), (0, pz), (0, 0)))   # F.pad(..., 0)
    X, Y, Z = nx + px, ny + py, nz + pz
    C = cfg["width"]
    M = B * X * Y * Z
    m1, m2, m3 = cfg["m1"], cfg["m2"], cfg["m3"]
    L = cfg["n_layers"]

    # lane-packing factor (8 rows -> 128 lanes for C=16); no per-call padding.
    pack = math.gcd(M, 8)

    h = x.reshape(M, in_dim).astype(jnp.float32)

    if use_pallas:
        h = pallas_linear(h, params["fc0_w"], params["fc0_b"], pack=pack)     # fc0
    else:
        h = h @ params["fc0_w"] + params["fc0_b"]

    for l in range(L):
        x1 = spectral_conv3d(h, params["spec_wr"][l], params["spec_wi"][l],
                             B, X, Y, Z, C, m1, m2, m3, use_pallas)
        act = l < L - 1
        if use_pallas:
            # 1x1 Conv3d (channel matmul) fused with spectral residual + GELU
            h = pallas_linear(h, params["lin_w"][l], params["lin_b"][l],
                              res=x1, act=act, pack=pack)
        else:
            y = h @ params["lin_w"][l] + params["lin_b"][l] + x1
            h = _gelu(y) if act else y

    if use_pallas:
        h = pallas_mlp(h, params["fc1_w"], params["fc1_b"],
                       params["fc2_w"], params["fc2_b"], pack=pack)  # fc1+gelu+fc2
    else:
        h = _gelu(h @ params["fc1_w"] + params["fc1_b"])
        h = h @ params["fc2_w"] + params["fc2_b"]

    out = h.reshape(B, X, Y, Z, cfg["out_dim"])
    return out[:, :nx, :ny, :nz, :]


def init_params(key, cfg):
    C, fc_dim, in_dim, out_dim, L = (cfg["width"], cfg["fc_dim"], cfg["in_dim"],
                                     cfg["out_dim"], cfg["n_layers"])
    m1, m2, m3 = cfg["m1"], cfg["m2"], cfg["m3"]
    NM = 4 * m1 * m2 * m3
    ks = jax.random.split(key, 9)

    def nrm(k, shape, scale):
        return scale * jax.random.normal(k, shape, jnp.float32)

    spec_scale = 1.0 / (C * C)
    return {
        "fc0_w": nrm(ks[0], (in_dim, C), 1.0 / np.sqrt(in_dim)),
        "fc0_b": nrm(ks[1], (C,), 0.01),
        "lin_w": nrm(ks[2], (L, C, C), 1.0 / np.sqrt(C)),
        "lin_b": nrm(ks[3], (L, C), 0.01),
        # dense spectral weights, pre-laid-out as (L, 4*m1*m2*m3, C_in, C_out)
        "spec_wr": nrm(ks[4], (L, NM, C, C), spec_scale),
        "spec_wi": nrm(ks[5], (L, NM, C, C), spec_scale),
        "fc1_w": nrm(ks[6], (C, fc_dim), 1.0 / np.sqrt(C)),
        "fc1_b": nrm(ks[7], (fc_dim,), 0.01),
        "fc2_w": nrm(ks[8], (fc_dim, out_dim), 1.0 / np.sqrt(fc_dim)),
        "fc2_b": jnp.zeros((out_dim,), jnp.float32),
    }


if __name__ == "__main__":
    cfg = dict(m1=4, m2=4, m3=4, width=16, fc_dim=32, n_layers=2,
               in_dim=4, out_dim=1, pad_x=0, pad_y=0, pad_z=0)

    key = jax.random.PRNGKey(0)
    k_param, k_x = jax.random.split(key)
    params = init_params(k_param, cfg)

    # input: (B, nx, ny, nz, in_dim) — channels-last, as fed to fc0 in PyTorch
    x = jax.random.normal(k_x, (2, 8, 8, 8, cfg["in_dim"]), jnp.float32)

    fwd = jax.jit(functools.partial(fno3d_forward, cfg=cfg, use_pallas=True))
    ref_fwd = jax.jit(functools.partial(fno3d_forward, cfg=cfg, use_pallas=False))

    out = jax.block_until_ready(fwd(x, params))
    ref = jax.block_until_ready(ref_fwd(x, params))

    assert out.shape == (2, 8, 8, 8, cfg["out_dim"]), out.shape
    assert np.all(np.isfinite(np.asarray(out)))
    np.testing.assert_allclose(np.asarray(out), np.asarray(ref),
                               rtol=5e-3, atol=5e-3)
    print("KERNEL_OK")
</pallas_src>

<mosaic_0001>
module attributes {stable_mosaic.version = 11 : i64} {
  func.func @_linear_kernel(%arg0: i32, %arg1: memref<64x32xf32, #tpu.memory_space<vmem>>, %arg2: memref<32x128xf32, #tpu.memory_space<vmem>>, %arg3: memref<1x128xf32, #tpu.memory_space<vmem>>, %arg4: memref<64x128xf32, #tpu.memory_space<vmem>>) attributes {dimension_semantics = [#tpu.dimension_semantics<parallel>], iteration_bounds = array<i64: 2>, scalar_prefetch = 0 : i64, scratch_operands = 0 : i64, tpu.core_type = #tpu.core_type<tc>, window_params = [{transform_indices = @transform_0, window_bounds = array<i64: 64, 32>}, {pipeline_mode = #tpu.pipeline_mode<synchronous>, transform_indices = @transform_1, window_bounds = array<i64: 32, 128>}, {pipeline_mode = #tpu.pipeline_mode<synchronous>, transform_indices = @transform_2, window_bounds = array<i64: 1, 128>}, {transform_indices = @transform_3, window_bounds = array<i64: 64, 128>}]} {
    %c0 = arith.constant 0 : index
    %c0_0 = arith.constant 0 : index
    %0 = vector.load %arg1[%c0, %c0_0] : memref<64x32xf32, #tpu.memory_space<vmem>>, vector<64x32xf32>
    %c0_1 = arith.constant 0 : index
    %c0_2 = arith.constant 0 : index
    %1 = vector.load %arg2[%c0_1, %c0_2] : memref<32x128xf32, #tpu.memory_space<vmem>>, vector<32x128xf32>
    %cst = arith.constant dense<0.000000e+00> : vector<64x128xf32>
    %2 = tpu.matmul %0, %1, %cst {dimension_numbers = #tpu.dot_dimension_numbers<[1], [0], [0], [1], [0, 0, 1, 1], [], []>} : vector<64x32xf32>, vector<32x128xf32>, vector<64x128xf32> -> vector<64x128xf32>
    %c0_3 = arith.constant 0 : index
    %c0_4 = arith.constant 0 : index
    %3 = vector.load %arg3[%c0_3, %c0_4] : memref<1x128xf32, #tpu.memory_space<vmem>>, vector<1x128xf32>
    %4 = vector.broadcast %3 : vector<1x128xf32> to vector<64x128xf32>
    %5 = arith.addf %2, %4 : vector<64x128xf32>
    %c0_5 = arith.constant 0 : index
    %c0_6 = arith.constant 0 : index
    %6 = vector.load %arg4[%c0_5, %c0_6] : memref<64x128xf32, #tpu.memory_space<vmem>>, vector<64x128xf32>
    tpu.vector_store %arg4[%c0_5, %c0_6], %5 {strides = array<i32>} : memref<64x128xf32, #tpu.memory_space<vmem>>, vector<64x128xf32>,
    return
  }
  func.func @transform_0(%arg0: i32) -> (i32, i32) {
    %c0_i32 = arith.constant 0 : i32
    %c0_i32_0 = arith.constant 0 : i32
    return %arg0, %c0_i32 : i32, i32
  }
  func.func @transform_1(%arg0: i32) -> (i32, i32) {
    %c0_i32 = arith.constant 0 : i32
    %c0_i32_0 = arith.constant 0 : i32
    %c0_i32_1 = arith.constant 0 : i32
    return %c0_i32, %c0_i32_0 : i32, i32
  }
  func.func @transform_2(%arg0: i32) -> (i32, i32) {
    %c0_i32 = arith.constant 0 : i32
    %c0_i32_0 = arith.constant 0 : i32
    %c0_i32_1 = arith.constant 0 : i32
    return %c0_i32, %c0_i32_0 : i32, i32
  }
  func.func @transform_3(%arg0: i32) -> (i32, i32) {
    %c0_i32 = arith.constant 0 : i32
    %c0_i32_0 = arith.constant 0 : i32
    return %arg0, %c0_i32 : i32, i32
  }
}

module attributes {stable_mosaic.version = 11 : i64} {
  func.func @_spectral_kernel(%arg0: i32, %arg1: memref<16x2x128xf32, #tpu.memory_space<vmem>>, %arg2: memref<16x2x128xf32, #tpu.memory_space<vmem>>, %arg3: memref<16x128x128xf32, #tpu.memory_space<vmem>>, %arg4: memref<16x128x128xf32, #tpu.memory_space<vmem>>, %arg5: memref<16x2x128xf32, #tpu.memory_space<vmem>>, %arg6: memref<16x2x128xf32, #tpu.memory_space<vmem>>) attributes {dimension_semantics = [#tpu.dimension_semantics<parallel>], iteration_bounds = array<i64: 2>, scalar_prefetch = 0 : i64, scratch_operands = 0 : i64, tpu.core_type = #tpu.core_type<tc>, window_params = [{transform_indices = @transform_0, window_bounds = array<i64: 16, 2, 128>}, {transform_indices = @transform_1, window_bounds = array<i64: 16, 2, 128>}, {transform_indices = @transform_2, window_bounds = array<i64: 16, 128, 128>}, {transform_indices = @transform_3, window_bounds = array<i64: 16, 128, 128>}, {transform_indices = @transform_4, window_bounds = array<i64: 16, 2, 128>}, {transform_indices = @transform_5, window_bounds = array<i64: 16, 2, 128>}]} {
    %c0 = arith.constant 0 : index
    %c0_0 = arith.constant 0 : index
    %c0_1 = arith.constant 0 : index
    %0 = vector.load %arg1[%c0, %c0_0, %c0_1] : memref<16x2x128xf32, #tpu.memory_space<vmem>>, vector<16x2x128xf32>
    %c0_2 = arith.constant 0 : index
    %c0_3 = arith.constant 0 : index
    %c0_4 = arith.constant 0 : index
    %1 = vector.load %arg2[%c0_2, %c0_3, %c0_4] : memref<16x2x128xf32, #tpu.memory_space<vmem>>, vector<16x2x128xf32>
    %c0_5 = arith.constant 0 : index
    %c0_6 = arith.constant 0 : index
    %c0_7 = arith.constant 0 : index
    %2 = vector.load %arg3[%c0_5, %c0_6, %c0_7] : memref<16x128x128xf32, #tpu.memory_space<vmem>>, vector<16x128x128xf32>
    %c0_8 = arith.constant 0 : index
    %c0_9 = arith.constant 0 : index
    %c0_10 = arith.constant 0 : index
    %3 = vector.load %arg4[%c0_8, %c0_9, %c0_10] : memref<16x128x128xf32, #tpu.memory_space<vmem>>, vector<16x128x128xf32>
    "tpu.trace_start"() <{level = 10 : i32, message = "gbk,gkn->gbn"}> : () -> ()
    %cst = arith.constant dense<0.000000e+00> : vector<16x2x128xf32>
    %4 = tpu.matmul %0, %2, %cst {dimension_numbers = #tpu.dot_dimension_numbers<[2], [1], [1], [2], [0, 0, 0, 1, 1, 2], [0], [0]>} : vector<16x2x128xf32>, vector<16x128x128xf32>, vector<16x2x128xf32> -> vector<16x2x128xf32>
    %cst_11 = arith.constant dense<0.000000e+00> : vector<16x2x128xf32>
    %5 = tpu.matmul %1, %3, %cst_11 {dimension_numbers = #tpu.dot_dimension_numbers<[2], [1], [1], [2], [0, 0, 0, 1, 1, 2], [0], [0]>} : vector<16x2x128xf32>, vector<16x128x128xf32>, vector<16x2x128xf32> -> vector<16x2x128xf32>
    "tpu.trace_stop"() : () -> ()
    %6 = arith.addf %0, %1 : vector<16x2x128xf32>
    %7 = arith.addf %2, %3 : vector<16x128x128xf32>
    "tpu.trace_start"() <{level = 10 : i32, message = "gbk,gkn->gbn"}> : () -> ()
    %cst_12 = arith.constant dense<0.000000e+00> : vector<16x2x128xf32>
    %8 = tpu.matmul %6, %7, %cst_12 {dimension_numbers = #tpu.dot_dimension_numbers<[2], [1], [1], [2], [0, 0, 0, 1, 1, 2], [0], [0]>} : vector<16x2x128xf32>, vector<16x128x128xf32>, vector<16x2x128xf32> -> vector<16x2x128xf32>
    "tpu.trace_stop"() : () -> ()
    %9 = arith.subf %4, %5 : vector<16x2x128xf32>
    %c0_13 = arith.constant 0 : index
    %c0_14 = arith.constant 0 : index
    %c0_15 = arith.constant 0 : index
    %10 = vector.load %arg5[%c0_13, %c0_14, %c0_15] : memref<16x2x128xf32, #tpu.memory_space<vmem>>, vector<16x2x128xf32>
    tpu.vector_store %arg5[%c0_13, %c0_14, %c0_15], %9 {strides = array<i32>} : memref<16x2x128xf32, #tpu.memory_space<vmem>>, vector<16x2x128xf32>,
    %11 = arith.subf %8, %4 : vector<16x2x128xf32>
    %12 = arith.subf %11, %5 : vector<16x2x128xf32>
    %c0_16 = arith.constant 0 : index
    %c0_17 = arith.constant 0 : index
    %c0_18 = arith.constant 0 : index
    %13 = vector.load %arg6[%c0_16, %c0_17, %c0_18] : memref<16x2x128xf32, #tpu.memory_space<vmem>>, vector<16x2x128xf32>
    tpu.vector_store %arg6[%c0_16, %c0_17, %c0_18], %12 {strides = array<i32>} : memref<16x2x128xf32, #tpu.memory_space<vmem>>, vector<16x2x128xf32>,
    return
  }
  func.func @transform_0(%arg0: i32) -> (i32, i32, i32) {
    %c0_i32 = arith.constant 0 : i32
    %c0_i32_0 = arith.constant 0 : i32
    %c0_i32_1 = arith.constant 0 : i32
    return %arg0, %c0_i32, %c0_i32_0 : i32, i32, i32
  }
  func.func @transform_1(%arg0: i32) -> (i32, i32, i32) {
    %c0_i32 = arith.constant 0 : i32
    %c0_i32_0 = arith.constant 0 : i32
    %c0_i32_1 = arith.constant 0 : i32
    return %arg0, %c0_i32, %c0_i32_0 : i32, i32, i32
  }
  func.func @transform_2(%arg0: i32) -> (i32, i32, i32) {
    %c0_i32 = arith.constant 0 : i32
    %c0_i32_0 = arith.constant 0 : i32
    %c0_i32_1 = arith.constant 0 : i32
    return %arg0, %c0_i32, %c0_i32_0 : i32, i32, i32
  }
  func.func @transform_3(%arg0: i32) -> (i32, i32, i32) {
    %c0_i32 = arith.constant 0 : i32
    %c0_i32_0 = arith.constant 0 : i32
    %c0_i32_1 = arith.constant 0 : i32
    return %arg0, %c0_i32, %c0_i32_0 : i32, i32, i32
  }
  func.func @transform_4(%arg0: i32) -> (i32, i32, i32) {
    %c0_i32 = arith.constant 0 : i32
    %c0_i32_0 = arith.constant 0 : i32
    %c0_i32_1 = arith.constant 0 : i32
    return %arg0, %c0_i32, %c0_i32_0 : i32, i32, i32
  }
  func.func @transform_5(%arg0: i32) -> (i32, i32, i32) {
    %c0_i32 = arith.constant 0 : i32
    %c0_i32_0 = arith.constant 0 : i32
    %c0_i32_1 = arith.constant 0 : i32
    return %arg0, %c0_i32, %c0_i32_0 : i32, i32, i32
  }
}

module attributes {stable_mosaic.version = 11 : i64} {
  func.func @_linear_res_kernel(%arg0: i32, %arg1: memref<64x128xf32, #tpu.memory_space<vmem>>, %arg2: memref<128x128xf32, #tpu.memory_space<vmem>>, %arg3: memref<1x128xf32, #tpu.memory_space<vmem>>, %arg4: memref<64x128xf32, #tpu.memory_space<vmem>>, %arg5: memref<64x128xf32, #tpu.memory_space<vmem>>) attributes {dimension_semantics = [#tpu.dimension_semantics<parallel>], iteration_bounds = array<i64: 2>, scalar_prefetch = 0 : i64, scratch_operands = 0 : i64, tpu.core_type = #tpu.core_type<tc>, window_params = [{transform_indices = @transform_0, window_bounds = array<i64: 64, 128>}, {pipeline_mode = #tpu.pipeline_mode<synchronous>, transform_indices = @transform_1, window_bounds = array<i64: 128, 128>}, {pipeline_mode = #tpu.pipeline_mode<synchronous>, transform_indices = @transform_2, window_bounds = array<i64: 1, 128>}, {transform_indices = @transform_3, window_bounds = array<i64: 64, 128>}, {transform_indices = @transform_4, window_bounds = array<i64: 64, 128>}]} {
    %c0 = arith.constant 0 : index
    %c0_0 = arith.constant 0 : index
    %0 = vector.load %arg1[%c0, %c0_0] : memref<64x128xf32, #tpu.memory_space<vmem>>, vector<64x128xf32>
    %c0_1 = arith.constant 0 : index
    %c0_2 = arith.constant 0 : index
    %1 = vector.load %arg2[%c0_1, %c0_2] : memref<128x128xf32, #tpu.memory_space<vmem>>, vector<128x128xf32>
    %cst = arith.constant dense<0.000000e+00> : vector<64x128xf32>
    %2 = tpu.matmul %0, %1, %cst {dimension_numbers = #tpu.dot_dimension_numbers<[1], [0], [0], [1], [0, 0, 1, 1], [], []>} : vector<64x128xf32>, vector<128x128xf32>, vector<64x128xf32> -> vector<64x128xf32>
    %c0_3 = arith.constant 0 : index
    %c0_4 = arith.constant 0 : index
    %3 = vector.load %arg3[%c0_3, %c0_4] : memref<1x128xf32, #tpu.memory_space<vmem>>, vector<1x128xf32>
    %4 = vector.broadcast %3 : vector<1x128xf32> to vector<64x128xf32>
    %5 = arith.addf %2, %4 : vector<64x128xf32>
    %c0_5 = arith.constant 0 : index
    %c0_6 = arith.constant 0 : index
    %6 = vector.load %arg4[%c0_5, %c0_6] : memref<64x128xf32, #tpu.memory_space<vmem>>, vector<64x128xf32>
    %7 = arith.addf %5, %6 : vector<64x128xf32>
    %cst_7 = arith.constant 5.000000e-01 : f32
    %8 = vector.broadcast %cst_7 : f32 to vector<64x128xf32>
    %9 = arith.mulf %8, %7 : vector<64x128xf32>
    %cst_8 = arith.constant 0.707106769 : f32
    %10 = vector.broadcast %cst_8 : f32 to vector<64x128xf32>
    %11 = arith.mulf %7, %10 : vector<64x128xf32>
    %12 = math.erf %11 : vector<64x128xf32>
    %cst_9 = arith.constant 1.000000e+00 : f32
    %13 = vector.broadcast %cst_9 : f32 to vector<64x128xf32>
    %14 = arith.addf %13, %12 : vector<64x128xf32>
    %15 = arith.mulf %9, %14 : vector<64x128xf32>
    %c0_10 = arith.constant 0 : index
    %c0_11 = arith.constant 0 : index
    %16 = vector.load %arg5[%c0_10, %c0_11] : memref<64x128xf32, #tpu.memory_space<vmem>>, vector<64x128xf32>
    tpu.vector_store %arg5[%c0_10, %c0_11], %15 {strides = array<i32>} : memref<64x128xf32, #tpu.memory_space<vmem>>, vector<64x128xf32>,
    return
  }
  func.func @transform_0(%arg0: i32) -> (i32, i32) {
    %c0_i32 = arith.constant 0 : i32
    %c0_i32_0 = arith.constant 0 : i32
    return %arg0, %c0_i32 : i32, i32
  }
  func.func @transform_1(%arg0: i32) -> (i32, i32) {
    %c0_i32 = arith.constant 0 : i32
    %c0_i32_0 = arith.constant 0 : i32
    %c0_i32_1 = arith.constant 0 : i32
    return %c0_i32, %c0_i32_0 : i32, i32
  }
  func.func @transform_2(%arg0: i32) -> (i32, i32) {
    %c0_i32 = arith.constant 0 : i32
    %c0_i32_0 = arith.constant 0 : i32
    %c0_i32_1 = arith.constant 0 : i32
    return %c0_i32, %c0_i32_0 : i32, i32
  }
  func.func @transform_3(%arg0: i32) -> (i32, i32) {
    %c0_i32 = arith.constant 0 : i32
    %c0_i32_0 = arith.constant 0 : i32
    return %arg0, %c0_i32 : i32, i32
  }
  func.func @transform_4(%arg0: i32) -> (i32, i32) {
    %c0_i32 = arith.constant 0 : i32
    %c0_i32_0 = arith.constant 0 : i32
    return %arg0, %c0_i32 : i32, i32
  }
}

module attributes {stable_mosaic.version = 11 : i64} {
  func.func @_linear_res_kernel(%arg0: i32, %arg1: memref<64x128xf32, #tpu.memory_space<vmem>>, %arg2: memref<128x128xf32, #tpu.memory_space<vmem>>, %arg3: memref<1x128xf32, #tpu.memory_space<vmem>>, %arg4: memref<64x128xf32, #tpu.memory_space<vmem>>, %arg5: memref<64x128xf32, #tpu.memory_space<vmem>>) attributes {dimension_semantics = [#tpu.dimension_semantics<parallel>], iteration_bounds = array<i64: 2>, scalar_prefetch = 0 : i64, scratch_operands = 0 : i64, tpu.core_type = #tpu.core_type<tc>, window_params = [{transform_indices = @transform_0, window_bounds = array<i64: 64, 128>}, {pipeline_mode = #tpu.pipeline_mode<synchronous>, transform_indices = @transform_1, window_bounds = array<i64: 128, 128>}, {pipeline_mode = #tpu.pipeline_mode<synchronous>, transform_indices = @transform_2, window_bounds = array<i64: 1, 128>}, {transform_indices = @transform_3, window_bounds = array<i64: 64, 128>}, {transform_indices = @transform_4, window_bounds = array<i64: 64, 128>}]} {
    %c0 = arith.constant 0 : index
    %c0_0 = arith.constant 0 : index
    %0 = vector.load %arg1[%c0, %c0_0] : memref<64x128xf32, #tpu.memory_space<vmem>>, vector<64x128xf32>
    %c0_1 = arith.constant 0 : index
    %c0_2 = arith.constant 0 : index
    %1 = vector.load %arg2[%c0_1, %c0_2] : memref<128x128xf32, #tpu.memory_space<vmem>>, vector<128x128xf32>
    %cst = arith.constant dense<0.000000e+00> : vector<64x128xf32>
    %2 = tpu.matmul %0, %1, %cst {dimension_numbers = #tpu.dot_dimension_numbers<[1], [0], [0], [1], [0, 0, 1, 1], [], []>} : vector<64x128xf32>, vector<128x128xf32>, vector<64x128xf32> -> vector<64x128xf32>
    %c0_3 = arith.constant 0 : index
    %c0_4 = arith.constant 0 : index
    %3 = vector.load %arg3[%c0_3, %c0_4] : memref<1x128xf32, #tpu.memory_space<vmem>>, vector<1x128xf32>
    %4 = vector.broadcast %3 : vector<1x128xf32> to vector<64x128xf32>
    %5 = arith.addf %2, %4 : vector<64x128xf32>
    %c0_5 = arith.constant 0 : index
    %c0_6 = arith.constant 0 : index
    %6 = vector.load %arg4[%c0_5, %c0_6] : memref<64x128xf32, #tpu.memory_space<vmem>>, vector<64x128xf32>
    %7 = arith.addf %5, %6 : vector<64x128xf32>
    %c0_7 = arith.constant 0 : index
    %c0_8 = arith.constant 0 : index
    %8 = vector.load %arg5[%c0_7, %c0_8] : memref<64x128xf32, #tpu.memory_space<vmem>>, vector<64x128xf32>
    tpu.vector_store %arg5[%c0_7, %c0_8], %7 {strides = array<i32>} : memref<64x128xf32, #tpu.memory_space<vmem>>, vector<64x128xf32>,
    return
  }
  func.func @transform_0(%arg0: i32) -> (i32, i32) {
    %c0_i32 = arith.constant 0 : i32
    %c0_i32_0 = arith.constant 0 : i32
    return %arg0, %c0_i32 : i32, i32
  }
  func.func @transform_1(%arg0: i32) -> (i32, i32) {
    %c0_i32 = arith.constant 0 : i32
    %c0_i32_0 = arith.constant 0 : i32
    %c0_i32_1 = arith.constant 0 : i32
    return %c0_i32, %c0_i32_0 : i32, i32
  }
  func.func @transform_2(%arg0: i32) -> (i32, i32) {
    %c0_i32 = arith.constant 0 : i32
    %c0_i32_0 = arith.constant 0 : i32
    %c0_i32_1 = arith.constant 0 : i32
    return %c0_i32, %c0_i32_0 : i32, i32
  }
  func.func @transform_3(%arg0: i32) -> (i32, i32) {
    %c0_i32 = arith.constant 0 : i32
    %c0_i32_0 = arith.constant 0 : i32
    return %arg0, %c0_i32 : i32, i32
  }
  func.func @transform_4(%arg0: i32) -> (i32, i32) {
    %c0_i32 = arith.constant 0 : i32
    %c0_i32_0 = arith.constant 0 : i32
    return %arg0, %c0_i32 : i32, i32
  }
}

module attributes {stable_mosaic.version = 11 : i64} {
  func.func @_mlp_kernel(%arg0: i32, %arg1: memref<64x128xf32, #tpu.memory_space<vmem>>, %arg2: memref<128x256xf32, #tpu.memory_space<vmem>>, %arg3: memref<1x256xf32, #tpu.memory_space<vmem>>, %arg4: memref<256x8xf32, #tpu.memory_space<vmem>>, %arg5: memref<1x8xf32, #tpu.memory_space<vmem>>, %arg6: memref<64x8xf32, #tpu.memory_space<vmem>>) attributes {dimension_semantics = [#tpu.dimension_semantics<parallel>], iteration_bounds = array<i64: 2>, scalar_prefetch = 0 : i64, scratch_operands = 0 : i64, tpu.core_type = #tpu.core_type<tc>, window_params = [{transform_indices = @transform_0, window_bounds = array<i64: 64, 128>}, {pipeline_mode = #tpu.pipeline_mode<synchronous>, transform_indices = @transform_1, window_bounds = array<i64: 128, 256>}, {pipeline_mode = #tpu.pipeline_mode<synchronous>, transform_indices = @transform_2, window_bounds = array<i64: 1, 256>}, {pipeline_mode = #tpu.pipeline_mode<synchronous>, transform_indices = @transform_3, window_bounds = array<i64: 256, 8>}, {pipeline_mode = #tpu.pipeline_mode<synchronous>, transform_indices = @transform_4, window_bounds = array<i64: 1, 8>}, {transform_indices = @transform_5, window_bounds = array<i64: 64, 8>}]} {
    %c0 = arith.constant 0 : index
    %c0_0 = arith.constant 0 : index
    %0 = vector.load %arg1[%c0, %c0_0] : memref<64x128xf32, #tpu.memory_space<vmem>>, vector<64x128xf32>
    %c0_1 = arith.constant 0 : index
    %c0_2 = arith.constant 0 : index
    %1 = vector.load %arg2[%c0_1, %c0_2] : memref<128x256xf32, #tpu.memory_space<vmem>>, vector<128x256xf32>
    %cst = arith.constant dense<0.000000e+00> : vector<64x256xf32>
    %2 = tpu.matmul %0, %1, %cst {dimension_numbers = #tpu.dot_dimension_numbers<[1], [0], [0], [1], [0, 0, 1, 1], [], []>} : vector<64x128xf32>, vector<128x256xf32>, vector<64x256xf32> -> vector<64x256xf32>
    %c0_3 = arith.constant 0 : index
    %c0_4 = arith.constant 0 : index
    %3 = vector.load %arg3[%c0_3, %c0_4] : memref<1x256xf32, #tpu.memory_space<vmem>>, vector<1x256xf32>
    %4 = vector.broadcast %3 : vector<1x256xf32> to vector<64x256xf32>
    %5 = arith.addf %2, %4 : vector<64x256xf32>
    %cst_5 = arith.constant 5.000000e-01 : f32
    %6 = vector.broadcast %cst_5 : f32 to vector<64x256xf32>
    %7 = arith.mulf %6, %5 : vector<64x256xf32>
    %cst_6 = arith.constant 0.707106769 : f32
    %8 = vector.broadcast %cst_6 : f32 to vector<64x256xf32>
    %9 = arith.mulf %5, %8 : vector<64x256xf32>
    %10 = math.erf %9 : vector<64x256xf32>
    %cst_7 = arith.constant 1.000000e+00 : f32
    %11 = vector.broadcast %cst_7 : f32 to vector<64x256xf32>
    %12 = arith.addf %11, %10 : vector<64x256xf32>
    %13 = arith.mulf %7, %12 : vector<64x256xf32>
    %c0_8 = arith.constant 0 : index
    %c0_9 = arith.constant 0 : index
    %14 = vector.load %arg4[%c0_8, %c0_9] : memref<256x8xf32, #tpu.memory_space<vmem>>, vector<256x8xf32>
    %cst_10 = arith.constant dense<0.000000e+00> : vector<64x8xf32>
    %15 = tpu.matmul %13, %14, %cst_10 {dimension_numbers = #tpu.dot_dimension_numbers<[1], [0], [0], [1], [0, 0, 1, 1], [], []>} : vector<64x256xf32>, vector<256x8xf32>, vector<64x8xf32> -> vector<64x8xf32>
    %c0_11 = arith.constant 0 : index
    %c0_12 = arith.constant 0 : index
    %16 = vector.load %arg5[%c0_11, %c0_12] : memref<1x8xf32, #tpu.memory_space<vmem>>, vector<1x8xf32>
    %17 = vector.broadcast %16 : vector<1x8xf32> to vector<64x8xf32>
    %18 = arith.addf %15, %17 : vector<64x8xf32>
    %c0_13 = arith.constant 0 : index
    %c0_14 = arith.constant 0 : index
    %19 = vector.load %arg6[%c0_13, %c0_14] : memref<64x8xf32, #tpu.memory_space<vmem>>, vector<64x8xf32>
    tpu.vector_store %arg6[%c0_13, %c0_14], %18 {strides = array<i32>} : memref<64x8xf32, #tpu.memory_space<vmem>>, vector<64x8xf32>,
    return
  }
  func.func @transform_0(%arg0: i32) -> (i32, i32) {
    %c0_i32 = arith.constant 0 : i32
    %c0_i32_0 = arith.constant 0 : i32
    return %arg0, %c0_i32 : i32, i32
  }
  func.func @transform_1(%arg0: i32) -> (i32, i32) {
    %c0_i32 = arith.constant 0 : i32
    %c0_i32_0 = arith.constant 0 : i32
    %c0_i32_1 = arith.constant 0 : i32
    return %c0_i32, %c0_i32_0 : i32, i32
  }
  func.func @transform_2(%arg0: i32) -> (i32, i32) {
    %c0_i32 = arith.constant 0 : i32
    %c0_i32_0 = arith.constant 0 : i32
    %c0_i32_1 = arith.constant 0 : i32
    return %c0_i32, %c0_i32_0 : i32, i32
  }
  func.func @transform_3(%arg0: i32) -> (i32, i32) {
    %c0_i32 = arith.constant 0 : i32
    %c0_i32_0 = arith.constant 0 : i32
    %c0_i32_1 = arith.constant 0 : i32
    return %c0_i32, %c0_i32_0 : i32, i32
  }
  func.func @transform_4(%arg0: i32) -> (i32, i32) {
    %c0_i32 = arith.constant 0 : i32
    %c0_i32_0 = arith.constant 0 : i32
    %c0_i32_1 = arith.constant 0 : i32
    return %c0_i32, %c0_i32_0 : i32, i32
  }
  func.func @transform_5(%arg0: i32) -> (i32, i32) {
    %c0_i32 = arith.constant 0 : i32
    %c0_i32_0 = arith.constant 0 : i32
    return %arg0, %c0_i32 : i32, i32
  }
}

</mosaic_0001>

<llo_original>
// kernel: tile.26
$region0: #{tile.26}
  #allocation2 [shape = 's32[1]{0}', space=sflag, size = 0x4, scoped, tag = 'scoped memory for tile.26']
  %s0 = inlined_call_operand.hbm [shape: f32[16], index: 0, kind: input, shape index: {}]
  %s1 = inlined_call_operand.vmem [shape: f32[8,16], index: 1, kind: output, shape index: {}]
  $region1: #{tile.26} parent=0
    #allocation0 [shape = 'u8[512]{0}', space=vmem, size = 0x400, scoped, tag = 'operand span for operand 0']
    #allocation1 [shape = 's32[1]{0}', space=sflag, size = 0x4, scoped, tag = 'scoped memory for tile.26']
    %2 = vsyncpa [#allocation1], 0
    // Predicated region
    $region2: #{tile.26} parent=1 // pred_check
      _
    $region3: #{tile.26} parent=1 // pred_check_branch
      %4 = sbr.rel (0) target = $region5
    $region4: #{tile.26} parent=1 // pred_region
      %s6 = ssub.s32 16, 16
      %7 = vsyncadd [#allocation1], %s6
      %s9 = sshll.u32 [#allocation0], 4
      %s10 = int_to_ptr.vmem [resolvable:$true] %s9
      %12 = dma.hbm_to_vmem [thread:$0]  %s0, 16, %s10, [#allocation1]
    $region5: #{tile.26} parent=1 // pred_fallthru
      _
    // Predicated region
    $region6: #{tile.26} parent=1 // pred_check
      _
    $region7: #{tile.26} parent=1 // pred_check_branch
      %14 = sbr.rel (0) target = $region9
    $region8: #{tile.26} parent=1 // pred_region
      %15 = dma.done [#allocation1], 16
    $region9: #{tile.26} parent=1 // pred_fallthru
      _
    %v16 = vld [vmem:[#allocation0] ss:$0 sm:$0xff]
    %17 = vst [vmem:[%s1] sm:$0xff] %v16
    %18 = vsyncpa [#allocation1], 1

// kernel: tile.27
$region0: #{tile.27}
  %s0 = inlined_call_operand.vmem [shape: f32[8,16], index: 0, kind: input, shape index: {}]
  %s1 = inlined_call_operand.vmem [shape: f32[1,128], index: 1, kind: output, shape index: {}]
  $region1: #{tile.27} parent=0
    #allocation0 [shape = 'u8[4096]{0}', space=vmem, size = 0x1000, scoped, tag = 'scoped mem for output reshape']
    %v2 = vld [vmem:[%s0] sm:$0x1]
    %vm3 = vcmask 130048
    %4 = vst.msk [vmem:[#allocation0] sm:$0x1] %vm3, %v2
    %s5 = scalar_lea.vmem %s0, 7
    %v6 = vld [vmem:[%s5] sm:$0x1]
    %7 = vrot.lane.b32.xlu0 %v6, 112
    %v8 = vpop.permute.xlu0 %7
    %vm9 = vcmask 1048448
    %10 = vst.msk [vmem:[#allocation0] sm:$0x1] %vm9, %v8
    %s11 = scalar_lea.vmem %s0, 6
    %v12 = vld [vmem:[%s11] sm:$0x1]
    %13 = vrot.lane.b32.xlu0 %v12, 96
    %v14 = vpop.permute.xlu0 %13
    %vm15 = vcmask 917248
    %16 = vst.msk [vmem:[#allocation0] sm:$0x1] %vm15, %v14
    %s17 = scalar_lea.vmem %s0, 5
    %v18 = vld [vmem:[%s17] sm:$0x1]
    %19 = vrot.lane.b32.xlu0 %v18, 80
    %v20 = vpop.permute.xlu0 %19
    %vm21 = vcmask 786048
    %22 = vst.msk [vmem:[#allocation0] sm:$0x1] %vm21, %v20
    %s23 = scalar_lea.vmem %s0, 4
    %v24 = vld [vmem:[%s23] sm:$0x1]
    %25 = vrot.lane.b32.xlu0 %v24, 64
    %v26 = vpop.permute.xlu0 %25
    %vm27 = vcmask 654848
    %28 = vst.msk [vmem:[#allocation0] sm:$0x1] %vm27, %v26
    %s29 = scalar_lea.vmem %s0, 3
    %v30 = vld [vmem:[%s29] sm:$0x1]
    %31 = vrot.lane.b32.xlu0 %v30, 48
    %v32 = vpop.permute.xlu0 %31
    %vm33 = vcmask 523648
    %34 = vst.msk [vmem:[#allocation0] sm:$0x1] %vm33, %v32
    %s35 = scalar_lea.vmem %s0, 2
    %v36 = vld [vmem:[%s35] sm:$0x1]
    %37 = vrot.lane.b32.xlu0 %v36, 32
    %v38 = vpop.permute.xlu0 %37
    %vm39 = vcmask 392448
    %40 = vst.msk [vmem:[#allocation0] sm:$0x1] %vm39, %v38
    %s41 = scalar_lea.vmem %s0, 1
    %v42 = vld [vmem:[%s41] sm:$0x1]
    %43 = vrot.lane.b32.xlu0 %v42, 16
    %v44 = vpop.permute.xlu0 %43
    %vm45 = vcmask 261248
    %46 = vst.msk [vmem:[#allocation0] sm:$0x1] %vm45, %v44
    %s48 = sshllo.u32 0, 1
    %v50 = vld [vmem:[#allocation0] sm:%s48]
    %s51 = sshllo.u32 0, 1
    %52 = vst [vmem:[%s1] sm:%s51] %v50

// kernel: fno3d_forward.6
$region0: #{fno3d_forward.6}
  #allocation0 [shape = 'u32[]', space=smem, size = 0x4, offset = 0x4, fixed_abs, tag = 'smem constant byte address 0x4 - core index']
  #allocation1 [shape = 'u32[144,128]{1,0:T(1,128)}', space=vmem, size = 0x12000, scoped, tag = 'internal scratch']
  %s0 = inlined_call_operand.vmem [shape: f32[128,32], index: 0, kind: input, shape index: {}]
  %s1 = inlined_call_operand.vmem [shape: f32[32,128], index: 1, kind: input, shape index: {}]
  %s2 = inlined_call_operand.vmem [shape: f32[1,128], index: 2, kind: input, shape index: {}]
  %s3 = inlined_call_operand.vmem [shape: f32[128,128], index: 3, kind: output, shape index: {}]
  %s4 = sld [smem:[#allocation0]]
  $region45: #{fno3d_forward.6} parent=0
    _
  %s6 = ssub.s32 1, %s4
  %s7 = scalar_select 0, %s6, %s4
  loop: start=0, step=1, limit=4
  $region2: #{fno3d_forward.6} parent=0 // loop_pre_header
    _
  $region3: #{fno3d_forward.6} parent=0 // loop_header
    %s9 = sphi 0, %s13
    %p10 = scmp.ge.s32.totalorder %s9, 4
    %s19 = sphi 0, %s21
    %s22 = sphi 0, %s19
    %s23 = sphi 0, %s22
    %s39 = sphi 0, %s23
    %s43 = sphi 0, %s43
    %s45 = sphi 0, %s43
    %s46 = sphi 0, %s45
    %s60 = sphi 0, %s46
    %s64 = sphi 0, %s64
    %s66 = sphi 0, %s64
    %s67 = sphi 0, %s66
    %s81 = sphi 0, %s67
    %s87 = sphi 0, %s89
    %s90 = sphi 0, %s87
    %s91 = sphi 0, %s90
    %s107 = sphi 0, %s91
  $region4: #{fno3d_forward.6} parent=0 // loop_header_branch
    %12 = sbr.rel (%p10) target = $region8
  $region5: #{fno3d_forward.6} parent=0 // loop_body
    %s14 = ssub.s32 %s9, 1
    %s15 = ssub.s32 %s9, 2
    %s16 = sadd.s32 %s9, 1
    %s17 = ssub.s32 %s9, %s16
    %p18 = scmp.eq.s32.totalorder %s17, 0
    %s20 = sadd.s32 %s19, 1
    %s21 = scalar_select %p18, %s19, %s20
    %p24 = pneg %p18
    %p25 = scmp.eq.s32.totalorder %s9, 1
    %p26 = por %p24, %p25
    %p27 = scmp.ne.s32.totalorder %s19, %s22
    %p28 = scmp.eq.s32.totalorder %s9, 0
    %p29 = por %p27, %p28
    %p30 = scmp.ne.s32.totalorder %s19, %s22
    %p31 = scmp.eq.s32.totalorder %s14, 1
    %p32 = por %p30, %p31
    %p33 = scmp.ne.s32.totalorder %s22, %s23
    %p34 = scmp.eq.s32.totalorder %s14, 0
    %p35 = por %p33, %p34
    %p36 = scmp.ne.s32.totalorder %s22, %s23
    %p37 = scmp.eq.s32.totalorder %s15, 1
    %p38 = por %p36, %p37
    %p40 = scmp.ne.s32.totalorder %s23, %s39
    %p41 = scmp.eq.s32.totalorder %s15, 0
    %p42 = por %p40, %p41
    %s44 = sadd.s32 %s43, 1
    %p47 = scmp.eq.s32.totalorder %s9, 1
    %p48 = scmp.ne.s32.totalorder %s43, %s45
    %p49 = scmp.eq.s32.totalorder %s9, 0
    %p50 = por %p48, %p49
    %p51 = scmp.ne.s32.totalorder %s43, %s45
    %p52 = scmp.eq.s32.totalorder %s14, 1
    %p53 = por %p51, %p52
    %p54 = scmp.ne.s32.totalorder %s45, %s46
    %p55 = scmp.eq.s32.totalorder %s14, 0
    %p56 = por %p54, %p55
    %p57 = scmp.ne.s32.totalorder %s45, %s46
    %p58 = scmp.eq.s32.totalorder %s15, 1
    %p59 = por %p57, %p58
    %p61 = scmp.ne.s32.totalorder %s46, %s60
    %p62 = scmp.eq.s32.totalorder %s15, 0
    %p63 = por %p61, %p62
    %s65 = sadd.s32 %s64, 1
    %p68 = scmp.eq.s32.totalorder %s9, 1
    %p69 = scmp.ne.s32.totalorder %s64, %s66
    %p70 = scmp.eq.s32.totalorder %s9, 0
    %p71 = por %p69, %p70
    %p72 = scmp.ne.s32.totalorder %s64, %s66
    %p73 = scmp.eq.s32.totalorder %s14, 1
    %p74 = por %p72, %p73
    %p75 = scmp.ne.s32.totalorder %s66, %s67
    %p76 = scmp.eq.s32.totalorder %s14, 0
    %p77 = por %p75, %p76
    %p78 = scmp.ne.s32.totalorder %s66, %s67
    %p79 = scmp.eq.s32.totalorder %s15, 1
    %p80 = por %p78, %p79
    %p82 = scmp.ne.s32.totalorder %s67, %s81
    %p83 = scmp.eq.s32.totalorder %s15, 0
    %p84 = por %p82, %p83
    %s85 = ssub.s32 %s9, %s16
    %p86 = scmp.eq.s32.totalorder %s85, 0
    %s88 = sadd.s32 %s87, 1
    %s89 = scalar_select %p86, %s87, %s88
    %p92 = pneg %p86
    %p93 = scmp.eq.s32.totalorder %s9, 1
    %p94 = por %p92, %p93
    %p95 = scmp.ne.s32.totalorder %s87, %s90
    %p96 = scmp.eq.s32.totalorder %s9, 0
    %p97 = por %p95, %p96
    %p98 = scmp.ne.s32.totalorder %s87, %s90
    %p99 = scmp.eq.s32.totalorder %s14, 1
    %p100 = por %p98, %p99
    %p101 = scmp.ne.s32.totalorder %s90, %s91
    %p102 = scmp.eq.s32.totalorder %s14, 0
    %p103 = por %p101, %p102
    %p104 = scmp.ne.s32.totalorder %s90, %s91
    %p105 = scmp.eq.s32.totalorder %s15, 1
    %p106 = por %p104, %p105
    %p108 = scmp.ne.s32.totalorder %s91, %s107
    %p109 = scmp.eq.s32.totalorder %s15, 0
    %p110 = por %p108, %p109
    %p111 = scmp.le.s32.totalorder 1, %s9
    %p112 = scmp.lt.s32.totalorder %s9, 3
    %p113 = pnand %p111, %p112
    %p114 = pneg %p113
    // Predicated region
    $region9: #{fno3d_forward.6} parent=5 // pred_check
      _
    $region10: #{fno3d_forward.6} parent=5 // pred_check_branch
      %116 = sbr.rel (%p113) target = $region12
    $region11: #{fno3d_forward.6} parent=5 // pred_region
      %s117 = ssub.s32 %s9, 1
      // Predicated region
      $region13: #{fno3d_forward.6} parent=11 // pred_check
        %p118 = pneg %p56
      $region14: #{fno3d_forward.6} parent=11 // pred_check_branch
        %120 = sbr.rel (%p118) target = $region16
      $region15: #{fno3d_forward.6} parent=11 // pred_region
        _
      $region16: #{fno3d_forward.6} parent=11 // pred_fallthru
        _
      // Predicated region
      $region17: #{fno3d_forward.6} parent=11 // pred_check
        %p121 = pneg %p77
      $region18: #{fno3d_forward.6} parent=11 // pred_check_branch
        %123 = sbr.rel (%p121) target = $region20
      $region19: #{fno3d_forward.6} parent=11 // pred_region
        _
      $region20: #{fno3d_forward.6} parent=11 // pred_fallthru
        _
    $region12: #{fno3d_forward.6} parent=5 // pred_fallthru
      _
    %p124 = scmp.lt.s32.totalorder %s9, 2
    // Predicated region
    $region21: #{fno3d_forward.6} parent=5 // pred_check
      %p125 = pneg %p124
    $region22: #{fno3d_forward.6} parent=5 // pred_check_branch
      %127 = sbr.rel (%p125) target = $region24
    $region23: #{fno3d_forward.6} parent=5 // pred_region
      // Predicated region
      $region25: #{fno3d_forward.6} parent=23 // pred_check
        %p128 = pneg %p29
      $region26: #{fno3d_forward.6} parent=23 // pred_check_branch
        %130 = sbr.rel (%p128) target = $region28
      $region27: #{fno3d_forward.6} parent=23 // pred_region
        %s131 = smul.u32 8, %s9
        %p132 = scmp.lt.s32.totalorder %s131, 15
        %s133 = scalar_select %p132, %s131, 15
        %s134 = smul.addr %s133, 8
        %s135 = scalar_lea.vmem %s0, %s134
        %s136 = smul.u32 8, %s9
      $region28: #{fno3d_forward.6} parent=23 // pred_fallthru
        _
    $region24: #{fno3d_forward.6} parent=5 // pred_fallthru
      _
    %p137 = scmp.le.s32.totalorder 1, %s9
    %p138 = scmp.lt.s32.totalorder %s9, 3
    %p139 = pnand %p137, %p138
    %p140 = pneg %p139
    // Predicated region
    $region29: #{fno3d_forward.6} parent=5 // pred_check
      _
    $region30: #{fno3d_forward.6} parent=5 // pred_check_branch
      %142 = sbr.rel (%p139) target = $region32
    $region31: #{fno3d_forward.6} parent=5 // pred_region
      %s143 = ssub.s32 %s9, 1
      %s144 = smul.u32 8, %s14
      %p145 = scmp.lt.s32.totalorder %s144, 15
      %s146 = scalar_select %p145, %s144, 15
      %s147 = smul.addr %s146, 8
      %s148 = scalar_lea.vmem %s0, %s147
      %p149 = pneg %p35
      %p150 = pneg %p32
      %p151 = pneg %p56
      %p152 = pneg %p53
      %p153 = pneg %p77
      %p154 = pneg %p74
      %p155 = pneg %p103
      %p156 = pneg %p100
      %s157 = smul.u32 8, %s14
      %p158 = scmp.lt.s32.totalorder %s157, 15
      %s159 = scalar_select %p158, %s157, 15
      %s160 = smul.addr %s159, 8
      %s161 = scalar_lea.vmem %s3, %s160
      %s162 = smul.u32 8, %s14
      %p163 = scmp.lt.s32.totalorder %s162, 15
      %s164 = scalar_select %p163, %s162, 15
      %s165 = smul.addr %s164, 8
      %s166 = scalar_lea.vmem %s0, %s165
      %s167 = smul.u32 8, %s14
      %s168 = smul.u32 8, %s14
      %p169 = scmp.lt.s32.totalorder %s168, 15
      %s170 = scalar_select %p169, %s168, 15
      %s171 = smul.addr %s170, 8
      %s172 = scalar_lea.vmem %s3, %s171
      %s173 = smul.u32 8, %s14
      %v174 = vld [vmem:[%s166] sm:$0xff]
      %v175 = vld [vmem:[%s166 + $0x8] sm:$0xff]
      %v176 = vld [vmem:[%s166 + $0x10] sm:$0xff]
      %v177 = vld [vmem:[%s166 + $0x18] sm:$0xff]
      %v178 = vld [vmem:[%s166 + $0x20] sm:$0xff]
      %v179 = vld [vmem:[%s166 + $0x28] sm:$0xff]
      %v180 = vld [vmem:[%s166 + $0x30] sm:$0xff]
      %v181 = vld [vmem:[%s166 + $0x38] sm:$0xff]
      %v182 = vld [vmem:[%s1] sm:$0xff]
      %v183 = vld [vmem:[%s1 + $0x8] sm:$0xff]
      %v184 = vld [vmem:[%s1 + $0x10] sm:$0xff]
      %v185 = vld [vmem:[%s1 + $0x18] sm:$0xff]
      %v186 = vld [vmem:[%s2] sm:$0x1]
      %v188 = vlaneseq
      %v189 = vshrl.u32 %v188, 7
      %v190 = vsub.s32 0, %v189
      %v191 = vrot.slane %v186, %v190
      %vm193 = vcmask 261120
      %v195 = vsel %vm193, %v174, 0
      %v198 = vsel %vm193, %v175, 0
      %v201 = vsel %vm193, %v176, 0
      %v204 = vsel %vm193, %v177, 0
      %v207 = vsel %vm193, %v178, 0
      %v210 = vsel %vm193, %v179, 0
      %v213 = vsel %vm193, %v180, 0
      %v216 = vsel %vm193, %v181, 0
      %218 = vmatprep.subr.mxu0 0.0
      %219 = vmatpush1.msra.mxu0 %v182
      %220 = vmatprep.subr.mxu0 0.0
      %221 = vmatpush1.msra.mxu0 %v183
      %222 = vmatprep.subr.mxu0 0.0
      %223 = vmatpush1.msra.mxu0 %v184
      %224 = vmatprep.subr.mxu0 0.0
      %225 = vmatpush1.msra.mxu0 %v185
      %226 = vmatprep.subr.mxu0 0.0
      %227 = vmatpush1.msra.mxu0 0.0
      %228 = vmatprep.subr.mxu0 0.0
      %229 = vmatpush1.msra.mxu0 0.0
      %230 = vmatprep.subr.mxu0 0.0
      %231 = vmatpush1.msra.mxu0 0.0
      %232 = vmatprep.subr.mxu0 0.0
      %233 = vmatpush1.msra.mxu0 0.0
      %234 = vmatprep.subr.mxu0 0.0
      %235 = vmatpush1.msra.mxu0 0.0
      %236 = vmatprep.subr.mxu0 0.0
      %237 = vmatpush1.msra.mxu0 0.0
      %238 = vmatprep.subr.mxu0 0.0
      %239 = vmatpush1.msra.mxu0 0.0
      %240 = vmatprep.subr.mxu0 0.0
      %241 = vmatpush1.msra.mxu0 0.0
      %242 = vmatprep.subr.mxu0 0.0
      %243 = vmatpush1.msra.mxu0 0.0
      %244 = vmatprep.subr.mxu0 0.0
      %245 = vmatpush1.msra.mxu0 0.0
      %246 = vmatprep.subr.mxu0 0.0
      %247 = vmatpush1.msra.mxu0 0.0
      %248 = vmatprep.subr.mxu0 0.0
      %249 = vmatpush1.msra.mxu0 0.0
      %250 = vmatprep.subr.mxu0 0.0
      %251 = vmatpush1.msra.mxu0 0.0
      %252 = vmatprep.subr.mxu0 0.0
      %253 = vmatpush1.msra.mxu0 0.0
      %254 = vmatprep.subr.mxu0 0.0
      %255 = vmatpush1.msra.mxu0 0.0
      %256 = vmatprep.subr.mxu0 0.0
      %257 = vmatpush1.msra.mxu0 0.0
      %258 = vmatprep.subr.mxu0 0.0
      %259 = vmatpush1.msra.mxu0 0.0
      %260 = vmatprep.subr.mxu0 0.0
      %261 = vmatpush1.msra.mxu0 0.0
      %262 = vmatprep.subr.mxu0 0.0
      %263 = vmatpush1.msra.mxu0 0.0
      %264 = vmatprep.subr.mxu0 0.0
      %265 = vmatpush1.msra.mxu0 0.0
      %266 = vmatprep.subr.mxu0 0.0
      %267 = vmatpush1.msra.mxu0 0.0
      %268 = vmatprep.subr.mxu0 0.0
      %269 = vmatpush1.msra.mxu0 0.0
      %270 = vmatprep.subr.mxu0 0.0
      %271 = vmatpush1.msra.mxu0 0.0
      %272 = vmatprep.subr.mxu0 0.0
      %273 = vmatpush1.msra.mxu0 0.0
      %274 = vmatprep.subr.mxu0 0.0
      %275 = vmatpush1.msra.mxu0 0.0
      %276 = vmatprep.subr.mxu0 0.0
      %277 = vmatpush1.msra.mxu0 0.0
      %278 = vmatprep.subr.mxu0 0.0
      %279 = vmatpush1.msra.mxu0 0.0
      %280 = vmatprep.subr.mxu0 0.0
      %281 = vmatpush1.msra.mxu0 0.0
      %282 = vmatprep.mubr.f32.mxu0 0.0
      %283 = vmatmul.mubr.f32.gmra.mrb[0].mxu0 %v195
      %v284 = vpop.f32.mrb[0].mxu0
      %v285 = vadd.f32 %v191, %v284
      %v286 = vpop.f32.mrb[0].mxu0
      %287 = vmatprep.mubr.f32.mxu0 0.0
      %288 = vmatmul.mubr.f32.gmra.mrb[0].mxu0 %v198
      %v289 = vpop.f32.mrb[0].mxu0
      %v290 = vadd.f32 %v191, %v289
      %v291 = vpop.f32.mrb[0].mxu0
      %292 = vmatprep.mubr.f32.mxu0 0.0
      %293 = vmatmul.mubr.f32.gmra.mrb[0].mxu0 %v201
      %v294 = vpop.f32.mrb[0].mxu0
      %v295 = vadd.f32 %v191, %v294
      %v296 = vpop.f32.mrb[0].mxu0
      %297 = vmatprep.mubr.f32.mxu0 0.0
      %298 = vmatmul.mubr.f32.gmra.mrb[0].mxu0 %v204
      %v299 = vpop.f32.mrb[0].mxu0
      %v300 = vadd.f32 %v191, %v299
      %v301 = vpop.f32.mrb[0].mxu0
      %302 = vmatprep.mubr.f32.mxu0 0.0
      %303 = vmatmul.mubr.f32.gmra.mrb[0].mxu0 %v207
      %v304 = vpop.f32.mrb[0].mxu0
      %v305 = vadd.f32 %v191, %v304
      %v306 = vpop.f32.mrb[0].mxu0
      %307 = vmatprep.mubr.f32.mxu0 0.0
      %308 = vmatmul.mubr.f32.gmra.mrb[0].mxu0 %v210
      %v309 = vpop.f32.mrb[0].mxu0
      %v310 = vadd.f32 %v191, %v309
      %v311 = vpop.f32.mrb[0].mxu0
      %312 = vmatprep.mubr.f32.mxu0 0.0
      %313 = vmatmul.mubr.f32.gmra.mrb[0].mxu0 %v213
      %v314 = vpop.f32.mrb[0].mxu0
      %v315 = vadd.f32 %v191, %v314
      %v316 = vpop.f32.mrb[0].mxu0
      %317 = vmatprep.mubr.f32.mxu0 0.0
      %318 = vmatmul.mubr.f32.gmra.mrb[0].mxu0 %v216
      %v319 = vpop.f32.mrb[0].mxu0
      %v320 = vadd.f32 %v191, %v319
      %v321 = vpop.f32.mrb[0].mxu0
      %322 = vdwg.mxu0
      %323 = vst [vmem:[%s172] sm:$0xff] %v285
      %324 = vst [vmem:[%s172 + $0x8] sm:$0xff] %v290
      %325 = vst [vmem:[%s172 + $0x10] sm:$0xff] %v295
      %326 = vst [vmem:[%s172 + $0x18] sm:$0xff] %v300
      %327 = vst [vmem:[%s172 + $0x20] sm:$0xff] %v305
      %328 = vst [vmem:[%s172 + $0x28] sm:$0xff] %v310
      %329 = vst [vmem:[%s172 + $0x30] sm:$0xff] %v315
      %330 = vst [vmem:[%s172 + $0x38] sm:$0xff] %v320
      %s331 = smul.u32 8, %s14
      %p332 = scmp.lt.s32.totalorder %s331, 15
      %s333 = scalar_select %p332, %s331, 15
      %s334 = smul.addr %s333, 8
      %s335 = scalar_lea.vmem %s3, %s334
      // Predicated region
      $region33: #{fno3d_forward.6} parent=31 // pred_check
        %p336 = pneg %p100
      $region34: #{fno3d_forward.6} parent=31 // pred_check_branch
        %338 = sbr.rel (%p336) target = $region36
      $region35: #{fno3d_forward.6} parent=31 // pred_region
        %s339 = smul.u32 8, %s14
      $region36: #{fno3d_forward.6} parent=31 // pred_fallthru
        _
    $region32: #{fno3d_forward.6} parent=5 // pred_fallthru
      _
    %p340 = scmp.le.s32.totalorder 2, %s9
    // Predicated region
    $region37: #{fno3d_forward.6} parent=5 // pred_check
      %p341 = pneg %p340
    $region38: #{fno3d_forward.6} parent=5 // pred_check_branch
      %343 = sbr.rel (%p341) target = $region40
    $region39: #{fno3d_forward.6} parent=5 // pred_region
      %s344 = ssub.s32 %s9, 2
      // Predicated region
      $region41: #{fno3d_forward.6} parent=39 // pred_check
        %p345 = pneg %p106
      $region42: #{fno3d_forward.6} parent=39 // pred_check_branch
        %347 = sbr.rel (%p345) target = $region44
      $region43: #{fno3d_forward.6} parent=39 // pred_region
        %s348 = smul.u32 8, %s15
        %p349 = scmp.lt.s32.totalorder %s348, 15
        %s350 = scalar_select %p349, %s348, 15
        %s351 = smul.addr %s350, 8
        %s352 = scalar_lea.vmem %s3, %s351
      $region44: #{fno3d_forward.6} parent=39 // pred_fallthru
        _
    $region40: #{fno3d_forward.6} parent=5 // pred_fallthru
      _
  $region6: #{fno3d_forward.6} parent=0 // loop_footer
    %s13 = sadd.s32 1, %s9
  $region7: #{fno3d_forward.6} parent=0 // loop_footer_branch
    %8 = sbr.rel target = $region3
  $region8: #{fno3d_forward.6} parent=0 // loop_exit
    _

// kernel: fno3d_forward.7
$region0: #{fno3d_forward.7}
  #allocation0 [shape = 'u32[]', space=smem, size = 0x4, offset = 0x4, fixed_abs, tag = 'smem constant byte address 0x4 - core index']
  #allocation1 [shape = 'u32[144,128]{1,0:T(1,128)}', space=vmem, size = 0x12000, scoped, tag = 'internal scratch']
  %s0 = inlined_call_operand.vmem [shape: f32[32,2,128], index: 0, kind: input, shape index: {}]
  %s1 = inlined_call_operand.vmem [shape: f32[32,2,128], index: 1, kind: input, shape index: {}]
  %s2 = inlined_call_operand.vmem [shape: f32[32,128,128], index: 2, kind: input, shape index: {}]
  %s3 = inlined_call_operand.vmem [shape: f32[32,128,128], index: 3, kind: input, shape index: {}]
  %s4 = inlined_call_operand.vmem [shape: f32[32,2,128], index: 4, kind: output, shape index: {0}]
  %s5 = inlined_call_operand.vmem [shape: f32[32,2,128], index: 5, kind: output, shape index: {1}]
  %6 = xla_tuple %s4, %s5
  %s7 = sld [smem:[#allocation0]]
  $region57: #{fno3d_forward.7} parent=0
    _
  %s9 = ssub.s32 1, %s7
  %s10 = scalar_select 0, %s9, %s7
  loop: start=0, step=1, limit=4
  $region2: #{fno3d_forward.7} parent=0 // loop_pre_header
    _
  $region3: #{fno3d_forward.7} parent=0 // loop_header
    %s12 = sphi 0, %s16
    %p13 = scmp.ge.s32.totalorder %s12, 4
    %s22 = sphi 0, %s24
    %s25 = sphi 0, %s22
    %s26 = sphi 0, %s25
    %s42 = sphi 0, %s26
    %s48 = sphi 0, %s50
    %s51 = sphi 0, %s48
    %s52 = sphi 0, %s51
    %s68 = sphi 0, %s52
    %s74 = sphi 0, %s76
    %s77 = sphi 0, %s74
    %s78 = sphi 0, %s77
    %s94 = sphi 0, %s78
    %s100 = sphi 0, %s102
    %s103 = sphi 0, %s100
    %s104 = sphi 0, %s103
    %s120 = sphi 0, %s104
    %s126 = sphi 0, %s128
    %s129 = sphi 0, %s126
    %s130 = sphi 0, %s129
    %s146 = sphi 0, %s130
    %s152 = sphi 0, %s154
    %s155 = sphi 0, %s152
    %s156 = sphi 0, %s155
    %s172 = sphi 0, %s156
  $region4: #{fno3d_forward.7} parent=0 // loop_header_branch
    %15 = sbr.rel (%p13) target = $region8
  $region5: #{fno3d_forward.7} parent=0 // loop_body
    %s17 = ssub.s32 %s12, 1
    %s18 = ssub.s32 %s12, 2
    %s19 = sadd.s32 %s12, 1
    %s20 = ssub.s32 %s12, %s19
    %p21 = scmp.eq.s32.totalorder %s20, 0
    %s23 = sadd.s32 %s22, 1
    %s24 = scalar_select %p21, %s22, %s23
    %p27 = pneg %p21
    %p28 = scmp.eq.s32.totalorder %s12, 1
    %p29 = por %p27, %p28
    %p30 = scmp.ne.s32.totalorder %s22, %s25
    %p31 = scmp.eq.s32.totalorder %s12, 0
    %p32 = por %p30, %p31
    %p33 = scmp.ne.s32.totalorder %s22, %s25
    %p34 = scmp.eq.s32.totalorder %s17, 1
    %p35 = por %p33, %p34
    %p36 = scmp.ne.s32.totalorder %s25, %s26
    %p37 = scmp.eq.s32.totalorder %s17, 0
    %p38 = por %p36, %p37
    %p39 = scmp.ne.s32.totalorder %s25, %s26
    %p40 = scmp.eq.s32.totalorder %s18, 1
    %p41 = por %p39, %p40
    %p43 = scmp.ne.s32.totalorder %s26, %s42
    %p44 = scmp.eq.s32.totalorder %s18, 0
    %p45 = por %p43, %p44
    %s46 = ssub.s32 %s12, %s19
    %p47 = scmp.eq.s32.totalorder %s46, 0
    %s49 = sadd.s32 %s48, 1
    %s50 = scalar_select %p47, %s48, %s49
    %p53 = pneg %p47
    %p54 = scmp.eq.s32.totalorder %s12, 1
    %p55 = por %p53, %p54
    %p56 = scmp.ne.s32.totalorder %s48, %s51
    %p57 = scmp.eq.s32.totalorder %s12, 0
    %p58 = por %p56, %p57
    %p59 = scmp.ne.s32.totalorder %s48, %s51
    %p60 = scmp.eq.s32.totalorder %s17, 1
    %p61 = por %p59, %p60
    %p62 = scmp.ne.s32.totalorder %s51, %s52
    %p63 = scmp.eq.s32.totalorder %s17, 0
    %p64 = por %p62, %p63
    %p65 = scmp.ne.s32.totalorder %s51, %s52
    %p66 = scmp.eq.s32.totalorder %s18, 1
    %p67 = por %p65, %p66
    %p69 = scmp.ne.s32.totalorder %s52, %s68
    %p70 = scmp.eq.s32.totalorder %s18, 0
    %p71 = por %p69, %p70
    %s72 = ssub.s32 %s12, %s19
    %p73 = scmp.eq.s32.totalorder %s72, 0
    %s75 = sadd.s32 %s74, 1
    %s76 = scalar_select %p73, %s74, %s75
    %p79 = pneg %p73
    %p80 = scmp.eq.s32.totalorder %s12, 1
    %p81 = por %p79, %p80
    %p82 = scmp.ne.s32.totalorder %s74, %s77
    %p83 = scmp.eq.s32.totalorder %s12, 0
    %p84 = por %p82, %p83
    %p85 = scmp.ne.s32.totalorder %s74, %s77
    %p86 = scmp.eq.s32.totalorder %s17, 1
    %p87 = por %p85, %p86
    %p88 = scmp.ne.s32.totalorder %s77, %s78
    %p89 = scmp.eq.s32.totalorder %s17, 0
    %p90 = por %p88, %p89
    %p91 = scmp.ne.s32.totalorder %s77, %s78
    %p92 = scmp.eq.s32.totalorder %s18, 1
    %p93 = por %p91, %p92
    %p95 = scmp.ne.s32.totalorder %s78, %s94
    %p96 = scmp.eq.s32.totalorder %s18, 0
    %p97 = por %p95, %p96
    %s98 = ssub.s32 %s12, %s19
    %p99 = scmp.eq.s32.totalorder %s98, 0
    %s101 = sadd.s32 %s100, 1
    %s102 = scalar_select %p99, %s100, %s101
    %p105 = pneg %p99
    %p106 = scmp.eq.s32.totalorder %s12, 1
    %p107 = por %p105, %p106
    %p108 = scmp.ne.s32.totalorder %s100, %s103
    %p109 = scmp.eq.s32.totalorder %s12, 0
    %p110 = por %p108, %p109
    %p111 = scmp.ne.s32.totalorder %s100, %s103
    %p112 = scmp.eq.s32.totalorder %s17, 1
    %p113 = por %p111, %p112
    %p114 = scmp.ne.s32.totalorder %s103, %s104
    %p115 = scmp.eq.s32.totalorder %s17, 0
    %p116 = por %p114, %p115
    %p117 = scmp.ne.s32.totalorder %s103, %s104
    %p118 = scmp.eq.s32.totalorder %s18, 1
    %p119 = por %p117, %p118
    %p121 = scmp.ne.s32.totalorder %s104, %s120
    %p122 = scmp.eq.s32.totalorder %s18, 0
    %p123 = por %p121, %p122
    %s124 = ssub.s32 %s12, %s19
    %p125 = scmp.eq.s32.totalorder %s124, 0
    %s127 = sadd.s32 %s126, 1
    %s128 = scalar_select %p125, %s126, %s127
    %p131 = pneg %p125
    %p132 = scmp.eq.s32.totalorder %s12, 1
    %p133 = por %p131, %p132
    %p134 = scmp.ne.s32.totalorder %s126, %s129
    %p135 = scmp.eq.s32.totalorder %s12, 0
    %p136 = por %p134, %p135
    %p137 = scmp.ne.s32.totalorder %s126, %s129
    %p138 = scmp.eq.s32.totalorder %s17, 1
    %p139 = por %p137, %p138
    %p140 = scmp.ne.s32.totalorder %s129, %s130
    %p141 = scmp.eq.s32.totalorder %s17, 0
    %p142 = por %p140, %p141
    %p143 = scmp.ne.s32.totalorder %s129, %s130
    %p144 = scmp.eq.s32.totalorder %s18, 1
    %p145 = por %p143, %p144
    %p147 = scmp.ne.s32.totalorder %s130, %s146
    %p148 = scmp.eq.s32.totalorder %s18, 0
    %p149 = por %p147, %p148
    %s150 = ssub.s32 %s12, %s19
    %p151 = scmp.eq.s32.totalorder %s150, 0
    %s153 = sadd.s32 %s152, 1
    %s154 = scalar_select %p151, %s152, %s153
    %p157 = pneg %p151
    %p158 = scmp.eq.s32.totalorder %s12, 1
    %p159 = por %p157, %p158
    %p160 = scmp.ne.s32.totalorder %s152, %s155
    %p161 = scmp.eq.s32.totalorder %s12, 0
    %p162 = por %p160, %p161
    %p163 = scmp.ne.s32.totalorder %s152, %s155
    %p164 = scmp.eq.s32.totalorder %s17, 1
    %p165 = por %p163, %p164
    %p166 = scmp.ne.s32.totalorder %s155, %s156
    %p167 = scmp.eq.s32.totalorder %s17, 0
    %p168 = por %p166, %p167
    %p169 = scmp.ne.s32.totalorder %s155, %s156
    %p170 = scmp.eq.s32.totalorder %s18, 1
    %p171 = por %p169, %p170
    %p173 = scmp.ne.s32.totalorder %s156, %s172
    %p174 = scmp.eq.s32.totalorder %s18, 0
    %p175 = por %p173, %p174
    %p176 = scmp.le.s32.totalorder 1, %s12
    %p177 = scmp.lt.s32.totalorder %s12, 3
    %p178 = pnand %p176, %p177
    %p179 = pneg %p178
    // Predicated region
    $region9: #{fno3d_forward.7} parent=5 // pred_check
      _
    $region10: #{fno3d_forward.7} parent=5 // pred_check_branch
      %181 = sbr.rel (%p178) target = $region12
    $region11: #{fno3d_forward.7} parent=5 // pred_region
      %s182 = ssub.s32 %s12, 1
    $region12: #{fno3d_forward.7} parent=5 // pred_fallthru
      _
    %p183 = scmp.lt.s32.totalorder %s12, 2
    // Predicated region
    $region13: #{fno3d_forward.7} parent=5 // pred_check
      %p184 = pneg %p183
    $region14: #{fno3d_forward.7} parent=5 // pred_check_branch
      %186 = sbr.rel (%p184) target = $region16
    $region15: #{fno3d_forward.7} parent=5 // pred_region
      // Predicated region
      $region17: #{fno3d_forward.7} parent=15 // pred_check
        %p187 = pneg %p32
      $region18: #{fno3d_forward.7} parent=15 // pred_check_branch
        %189 = sbr.rel (%p187) target = $region20
      $region19: #{fno3d_forward.7} parent=15 // pred_region
        %s190 = smul.u32 16, %s12
        %p191 = scmp.lt.s32.totalorder %s190, 31
        %s192 = scalar_select %p191, %s190, 31
        %s193 = smul.addr %s192, 2
        %s194 = scalar_lea.vmem %s0, %s193
        %s195 = smul.u32 16, %s12
      $region20: #{fno3d_forward.7} parent=15 // pred_fallthru
        _
      // Predicated region
      $region21: #{fno3d_forward.7} parent=15 // pred_check
        %p196 = pneg %p58
      $region22: #{fno3d_forward.7} parent=15 // pred_check_branch
        %198 = sbr.rel (%p196) target = $region24
      $region23: #{fno3d_forward.7} parent=15 // pred_region
        %s199 = smul.u32 16, %s12
        %p200 = scmp.lt.s32.totalorder %s199, 31
        %s201 = scalar_select %p200, %s199, 31
        %s202 = smul.addr %s201, 2
        %s203 = scalar_lea.vmem %s1, %s202
        %s204 = smul.u32 16, %s12
      $region24: #{fno3d_forward.7} parent=15 // pred_fallthru
        _
      // Predicated region
      $region25: #{fno3d_forward.7} parent=15 // pred_check
        %p205 = pneg %p84
      $region26: #{fno3d_forward.7} parent=15 // pred_check_branch
        %207 = sbr.rel (%p205) target = $region28
      $region27: #{fno3d_forward.7} parent=15 // pred_region
        %s208 = smul.u32 16, %s12
        %p209 = scmp.lt.s32.totalorder %s208, 31
        %s210 = scalar_select %p209, %s208, 31
        %s211 = smul.addr %s210, 16
        %s212 = smul.addr %s211, 8
        %s213 = scalar_lea.vmem %s2, %s212
        %s214 = smul.u32 16, %s12
      $region28: #{fno3d_forward.7} parent=15 // pred_fallthru
        _
      // Predicated region
      $region29: #{fno3d_forward.7} parent=15 // pred_check
        %p215 = pneg %p110
      $region30: #{fno3d_forward.7} parent=15 // pred_check_branch
        %217 = sbr.rel (%p215) target = $region32
      $region31: #{fno3d_forward.7} parent=15 // pred_region
        %s218 = smul.u32 16, %s12
        %p219 = scmp.lt.s32.totalorder %s218, 31
        %s220 = scalar_select %p219, %s218, 31
        %s221 = smul.addr %s220, 16
        %s222 = smul.addr %s221, 8
        %s223 = scalar_lea.vmem %s3, %s222
        %s224 = smul.u32 16, %s12
      $region32: #{fno3d_forward.7} parent=15 // pred_fallthru
        _
    $region16: #{fno3d_forward.7} parent=5 // pred_fallthru
      _
    %p225 = scmp.le.s32.totalorder 1, %s12
    %p226 = scmp.lt.s32.totalorder %s12, 3
    %p227 = pnand %p225, %p226
    %p228 = pneg %p227
    // Predicated region
    $region33: #{fno3d_forward.7} parent=5 // pred_check
      _
    $region34: #{fno3d_forward.7} parent=5 // pred_check_branch
      %230 = sbr.rel (%p227) target = $region36
    $region35: #{fno3d_forward.7} parent=5 // pred_region
      %s231 = ssub.s32 %s12, 1
      %s232 = smul.u32 16, %s17
      %p233 = scmp.lt.s32.totalorder %s232, 31
      %s234 = scalar_select %p233, %s232, 31
      %s235 = smul.addr %s234, 2
      %s236 = scalar_lea.vmem %s0, %s235
      %p237 = pneg %p38
      %p238 = pneg %p35
      %s239 = smul.u32 16, %s17
      %p240 = scmp.lt.s32.totalorder %s239, 31
      %s241 = scalar_select %p240, %s239, 31
      %s242 = smul.addr %s241, 2
      %s243 = scalar_lea.vmem %s1, %s242
      %p244 = pneg %p64
      %p245 = pneg %p61
      %s246 = smul.u32 16, %s17
      %p247 = scmp.lt.s32.totalorder %s246, 31
      %s248 = scalar_select %p247, %s246, 31
      %s249 = smul.addr %s248, 16
      %s250 = smul.addr %s249, 8
      %s251 = scalar_lea.vmem %s2, %s250
      %p252 = pneg %p90
      %p253 = pneg %p87
      %s254 = smul.u32 16, %s17
      %p255 = scmp.lt.s32.totalorder %s254, 31
      %s256 = scalar_select %p255, %s254, 31
      %s257 = smul.addr %s256, 16
      %s258 = smul.addr %s257, 8
      %s259 = scalar_lea.vmem %s3, %s258
      %p260 = pneg %p116
      %p261 = pneg %p113
      %p262 = pneg %p142
      %p263 = pneg %p139
      %s264 = smul.u32 16, %s17
      %p265 = scmp.lt.s32.totalorder %s264, 31
      %s266 = scalar_select %p265, %s264, 31
      %s267 = smul.addr %s266, 2
      %s268 = scalar_lea.vmem %s4, %s267
      %p269 = pneg %p168
      %p270 = pneg %p165
      %s271 = smul.u32 16, %s17
      %p272 = scmp.lt.s32.totalorder %s271, 31
      %s273 = scalar_select %p272, %s271, 31
      %s274 = smul.addr %s273, 2
      %s275 = scalar_lea.vmem %s5, %s274
      %s276 = smul.u32 16, %s17
      %p277 = scmp.lt.s32.totalorder %s276, 31
      %s278 = scalar_select %p277, %s276, 31
      %s279 = smul.addr %s278, 2
      %s280 = scalar_lea.vmem %s0, %s279
      %s281 = smul.u32 16, %s17
      %s282 = smul.u32 16, %s17
      %p283 = scmp.lt.s32.totalorder %s282, 31
      %s284 = scalar_select %p283, %s282, 31
      %s285 = smul.addr %s284, 2
      %s286 = scalar_lea.vmem %s1, %s285
      %s287 = smul.u32 16, %s17
      %s288 = smul.u32 16, %s17
      %p289 = scmp.lt.s32.totalorder %s288, 31
      %s290 = scalar_select %p289, %s288, 31
      %s291 = smul.addr %s290, 16
      %s292 = smul.addr %s291, 8
      %s293 = scalar_lea.vmem %s2, %s292
      %s294 = smul.u32 16, %s17
      %s295 = smul.u32 16, %s17
      %p296 = scmp.lt.s32.totalorder %s295, 31
      %s297 = scalar_select %p296, %s295, 31
      %s298 = smul.addr %s297, 16
      %s299 = smul.addr %s298, 8
      %s300 = scalar_lea.vmem %s3, %s299
      %s301 = smul.u32 16, %s17
      %s302 = smul.u32 16, %s17
      %p303 = scmp.lt.s32.totalorder %s302, 31
      %s304 = scalar_select %p303, %s302, 31
      %s305 = smul.addr %s304, 2
      %s306 = scalar_lea.vmem %s4, %s305
      %s307 = smul.u32 16, %s17
      %s308 = smul.u32 16, %s17
      %p309 = scmp.lt.s32.totalorder %s308, 31
      %s310 = scalar_select %p309, %s308, 31
      %s311 = smul.addr %s310, 2
      %s312 = scalar_lea.vmem %s5, %s311
      %s313 = smul.u32 16, %s17
      %v314 = vld [vmem:[%s280] sm:$0x3]
      %v315 = vld [vmem:[%s280 + $0x2] sm:$0x3]
      %v316 = vld [vmem:[%s280 + $0x4] sm:$0x3]
      %v317 = vld [vmem:[%s280 + $0x6] sm:$0x3]
      %v318 = vld [vmem:[%s280 + $0x8] sm:$0x3]
      %v319 = vld [vmem:[%s280 + $0xa] sm:$0x3]
      %v320 = vld [vmem:[%s280 + $0xc] sm:$0x3]
      %v321 = vld [vmem:[%s280 + $0xe] sm:$0x3]
      %v322 = vld [vmem:[%s280 + $0x10] sm:$0x3]
      %v323 = vld [vmem:[%s280 + $0x12] sm:$0x3]
      %v324 = vld [vmem:[%s280 + $0x14] sm:$0x3]
      %v325 = vld [vmem:[%s280 + $0x16] sm:$0x3]
      %v326 = vld [vmem:[%s280 + $0x18] sm:$0x3]
      %v327 = vld [vmem:[%s280 + $0x1a] sm:$0x3]
      %v328 = vld [vmem:[%s280 + $0x1c] sm:$0x3]
      %v329 = vld [vmem:[%s280 + $0x1e] sm:$0x3]
      %v330 = vld [vmem:[%s286] sm:$0x3]
      %v331 = vld [vmem:[%s286 + $0x2] sm:$0x3]
      %v332 = vld [vmem:[%s286 + $0x4] sm:$0x3]
      %v333 = vld [vmem:[%s286 + $0x6] sm:$0x3]
      %v334 = vld [vmem:[%s286 + $0x8] sm:$0x3]
      %v335 = vld [vmem:[%s286 + $0xa] sm:$0x3]
      %v336 = vld [vmem:[%s286 + $0xc] sm:$0x3]
      %v337 = vld [vmem:[%s286 + $0xe] sm:$0x3]
      %v338 = vld [vmem:[%s286 + $0x10] sm:$0x3]
      %v339 = vld [vmem:[%s286 + $0x12] sm:$0x3]
      %v340 = vld [vmem:[%s286 + $0x14] sm:$0x3]
      %v341 = vld [vmem:[%s286 + $0x16] sm:$0x3]
      %v342 = vld [vmem:[%s286 + $0x18] sm:$0x3]
      %v343 = vld [vmem:[%s286 + $0x1a] sm:$0x3]
      %v344 = vld [vmem:[%s286 + $0x1c] sm:$0x3]
      %v345 = vld [vmem:[%s286 + $0x1e] sm:$0x3]
      %v346 = vld [vmem:[%s293] sm:$0xff]
      %v347 = vld [vmem:[%s293 + $0x8] sm:$0xff]
      %v348 = vld [vmem:[%s293 + $0x10] sm:$0xff]
      %v349 = vld [vmem:[%s293 + $0x18] sm:$0xff]
      %v350 = vld [vmem:[%s293 + $0x20] sm:$0xff]
      %v351 = vld [vmem:[%s293 + $0x28] sm:$0xff]
      %v352 = vld [vmem:[%s293 + $0x30] sm:$0xff]
      %v353 = vld [vmem:[%s293 + $0x38] sm:$0xff]
      %v354 = vld [vmem:[%s293 + $0x40] sm:$0xff]
      %v355 = vld [vmem:[%s293 + $0x48] sm:$0xff]
      %v356 = vld [vmem:[%s293 + $0x50] sm:$0xff]
      %v357 = vld [vmem:[%s293 + $0x58] sm:$0xff]
      %v358 = vld [vmem:[%s293 + $0x60] sm:$0xff]
      %v359 = vld [vmem:[%s293 + $0x68] sm:$0xff]
      %v360 = vld [vmem:[%s293 + $0x70] sm:$0xff]
      %v361 = vld [vmem:[%s293 + $0x78] sm:$0xff]
      %v362 = vld [vmem:[%s293 + $0x80] sm:$0xff]
      %v363 = vld [vmem:[%s293 + $0x88] sm:$0xff]
      %v364 = vld [vmem:[%s293 + $0x90] sm:$0xff]
      %v365 = vld [vmem:[%s293 + $0x98] sm:$0xff]
      %v366 = vld [vmem:[%s293 + $0xa0] sm:$0xff]
      %v367 = vld [vmem:[%s293 + $0xa8] sm:$0xff]
      %v368 = vld [vmem:[%s293 + $0xb0] sm:$0xff]
      %v369 = vld [vmem:[%s293 + $0xb8] sm:$0xff]
      %v370 = vld [vmem:[%s293 + $0xc0] sm:$0xff]
      %v371 = vld [vmem:[%s293 + $0xc8] sm:$0xff]
      %v372 = vld [vmem:[%s293 + $0xd0] sm:$0xff]
      %v373 = vld [vmem:[%s293 + $0xd8] sm:$0xff]
      %v374 = vld [vmem:[%s293 + $0xe0] sm:$0xff]
      %v375 = vld [vmem:[%s293 + $0xe8] sm:$0xff]
      %v376 = vld [vmem:[%s293 + $0xf0] sm:$0xff]
      %v377 = vld [vmem:[%s293 + $0xf8] sm:$0xff]
      %v378 = vld [vmem:[%s293 + $0x100] sm:$0xff]
      %v379 = vld [vmem:[%s293 + $0x108] sm:$0xff]
      %v380 = vld [vmem:[%s293 + $0x110] sm:$0xff]
      %v381 = vld [vmem:[%s293 + $0x118] sm:$0xff]
      %v382 = vld [vmem:[%s293 + $0x120] sm:$0xff]
      %v383 = vld [vmem:[%s293 + $0x128] sm:$0xff]
      %v384 = vld [vmem:[%s293 + $0x130] sm:$0xff]
      %v385 = vld [vmem:[%s293 + $0x138] sm:$0xff]
      %v386 = vld [vmem:[%s293 + $0x140] sm:$0xff]
      %v387 = vld [vmem:[%s293 + $0x148] sm:$0xff]
      %v388 = vld [vmem:[%s293 + $0x150] sm:$0xff]
      %v389 = vld [vmem:[%s293 + $0x158] sm:$0xff]
      %v390 = vld [vmem:[%s293 + $0x160] sm:$0xff]
      %v391 = vld [vmem:[%s293 + $0x168] sm:$0xff]
      %v392 = vld [vmem:[%s293 + $0x170] sm:$0xff]
      %v393 = vld [vmem:[%s293 + $0x178] sm:$0xff]
      %v394 = vld [vmem:[%s293 + $0x180] sm:$0xff]
      %v395 = vld [vmem:[%s293 + $0x188] sm:$0xff]
      %v396 = vld [vmem:[%s293 + $0x190] sm:$0xff]
      %v397 = vld [vmem:[%s293 + $0x198] sm:$0xff]
      %v398 = vld [vmem:[%s293 + $0x1a0] sm:$0xff]
      %v399 = vld [vmem:[%s293 + $0x1a8] sm:$0xff]
      %v400 = vld [vmem:[%s293 + $0x1b0] sm:$0xff]
      %v401 = vld [vmem:[%s293 + $0x1b8] sm:$0xff]
      %v402 = vld [vmem:[%s293 + $0x1c0] sm:$0xff]
      %v403 = vld [vmem:[%s293 + $0x1c8] sm:$0xff]
      %v404 = vld [vmem:[%s293 + $0x1d0] sm:$0xff]
      %v405 = vld [vmem:[%s293 + $0x1d8] sm:$0xff]
      %v406 = vld [vmem:[%s293 + $0x1e0] sm:$0xff]
      %v407 = vld [vmem:[%s293 + $0x1e8] sm:$0xff]
      %v408 = vld [vmem:[%s293 + $0x1f0] sm:$0xff]
      %v409 = vld [vmem:[%s293 + $0x1f8] sm:$0xff]
      %v410 = vld [vmem:[%s293 + $0x200] sm:$0xff]
      %v411 = vld [vmem:[%s293 + $0x208] sm:$0xff]
      %v412 = vld [vmem:[%s293 + $0x210] sm:$0xff]
      %v413 = vld [vmem:[%s293 + $0x218] sm:$0xff]
      %v414 = vld [vmem:[%s293 + $0x220] sm:$0xff]
      %v415 = vld [vmem:[%s293 + $0x228] sm:$0xff]
      %v416 = vld [vmem:[%s293 + $0x230] sm:$0xff]
      %v417 = vld [vmem:[%s293 + $0x238] sm:$0xff]
      %v418 = vld [vmem:[%s293 + $0x240] sm:$0xff]
      %v419 = vld [vmem:[%s293 + $0x248] sm:$0xff]
      %v420 = vld [vmem:[%s293 + $0x250] sm:$0xff]
      %v421 = vld [vmem:[%s293 + $0x258] sm:$0xff]
      %v422 = vld [vmem:[%s293 + $0x260] sm:$0xff]
      %v423 = vld [vmem:[%s293 + $0x268] sm:$0xff]
      %v424 = vld [vmem:[%s293 + $0x270] sm:$0xff]
      %v425 = vld [vmem:[%s293 + $0x278] sm:$0xff]
      %v426 = vld [vmem:[%s293 + $0x280] sm:$0xff]
      %v427 = vld [vmem:[%s293 + $0x288] sm:$0xff]
      %v428 = vld [vmem:[%s293 + $0x290] sm:$0xff]
      %v429 = vld [vmem:[%s293 + $0x298] sm:$0xff]
      %v430 = vld [vmem:[%s293 + $0x2a0] sm:$0xff]
      %v431 = vld [vmem:[%s293 + $0x2a8] sm:$0xff]
      %v432 = vld [vmem:[%s293 + $0x2b0] sm:$0xff]
      %v433 = vld [vmem:[%s293 + $0x2b8] sm:$0xff]
      %v434 = vld [vmem:[%s293 + $0x2c0] sm:$0xff]
      %v435 = vld [vmem:[%s293 + $0x2c8] sm:$0xff]
      %v436 = vld [vmem:[%s293 + $0x2d0] sm:$0xff]
      %v437 = vld [vmem:[%s293 + $0x2d8] sm:$0xff]
      %v438 = vld [vmem:[%s293 + $0x2e0] sm:$0xff]
      %v439 = vld [vmem:[%s293 + $0x2e8] sm:$0xff]
      %v440 = vld [vmem:[%s293 + $0x2f0] sm:$0xff]
      %v441 = vld [vmem:[%s293 + $0x2f8] sm:$0xff]
      %v442 = vld [vmem:[%s293 + $0x300] sm:$0xff]
      %v443 = vld [vmem:[%s293 + $0x308] sm:$0xff]
      %v444 = vld [vmem:[%s293 + $0x310] sm:$0xff]
      %v445 = vld [vmem:[%s293 + $0x318] sm:$0xff]
      %v446 = vld [vmem:[%s293 + $0x320] sm:$0xff]
      %v447 = vld [vmem:[%s293 + $0x328] sm:$0xff]
      %v448 = vld [vmem:[%s293 + $0x330] sm:$0xff]
      %v449 = vld [vmem:[%s293 + $0x338] sm:$0xff]
      %v450 = vld [vmem:[%s293 + $0x340] sm:$0xff]
      %v451 = vld [vmem:[%s293 + $0x348] sm:$0xff]
      %v452 = vld [vmem:[%s293 + $0x350] sm:$0xff]
      %v453 = vld [vmem:[%s293 + $0x358] sm:$0xff]
      %v454 = vld [vmem:[%s293 + $0x360] sm:$0xff]
      %v455 = vld [vmem:[%s293 + $0x368] sm:$0xff]
      %v456 = vld [vmem:[%s293 + $0x370] sm:$0xff]
      %v457 = vld [vmem:[%s293 + $0x378] sm:$0xff]
      %v458 = vld [vmem:[%s293 + $0x380] sm:$0xff]
      %v459 = vld [vmem:[%s293 + $0x388] sm:$0xff]
      %v460 = vld [vmem:[%s293 + $0x390] sm:$0xff]
      %v461 = vld [vmem:[%s293 + $0x398] sm:$0xff]
      %v462 = vld [vmem:[%s293 + $0x3a0] sm:$0xff]
      %v463 = vld [vmem:[%s293 + $0x3a8] sm:$0xff]
      %v464 = vld [vmem:[%s293 + $0x3b0] sm:$0xff]
      %v465 = vld [vmem:[%s293 + $0x3b8] sm:$0xff]
      %v466 = vld [vmem:[%s293 + $0x3c0] sm:$0xff]
      %v467 = vld [vmem:[%s293 + $0x3c8] sm:$0xff]
      %v468 = vld [vmem:[%s293 + $0x3d0] sm:$0xff]
      %v469 = vld [vmem:[%s293 + $0x3d8] sm:$0xff]
      %v470 = vld [vmem:[%s293 + $0x3e0] sm:$0xff]
      %v471 = vld [vmem:[%s293 + $0x3e8] sm:$0xff]
      %v472 = vld [vmem:[%s293 + $0x3f0] sm:$0xff]
      %v473 = vld [vmem:[%s293 + $0x3f8] sm:$0xff]
      %v474 = vld [vmem:[%s293 + $0x400] sm:$0xff]
      %v475 = vld [vmem:[%s293 + $0x408] sm:$0xff]
      %v476 = vld [vmem:[%s293 + $0x410] sm:$0xff]
      %v477 = vld [vmem:[%s293 + $0x418] sm:$0xff]
      %v478 = vld [vmem:[%s293 + $0x420] sm:$0xff]
      %v479 = vld [vmem:[%s293 + $0x428] sm:$0xff]
      %v480 = vld [vmem:[%s293 + $0x430] sm:$0xff]
      %v481 = vld [vmem:[%s293 + $0x438] sm:$0xff]
      %v482 = vld [vmem:[%s293 + $0x440] sm:$0xff]
      %v483 = vld [vmem:[%s293 + $0x448] sm:$0xff]
      %v484 = vld [vmem:[%s293 + $0x450] sm:$0xff]
      %v485 = vld [vmem:[%s293 + $0x458] sm:$0xff]
      %v486 = vld [vmem:[%s293 + $0x460] sm:$0xff]
      %v487 = vld [vmem:[%s293 + $0x468] sm:$0xff]
      %v488 = vld [vmem:[%s293 + $0x470] sm:$0xff]
      %v489 = vld [vmem:[%s293 + $0x478] sm:$0xff]
      %v490 = vld [vmem:[%s293 + $0x480] sm:$0xff]
      %v491 = vld [vmem:[%s293 + $0x488] sm:$0xff]
      %v492 = vld [vmem:[%s293 + $0x490] sm:$0xff]
      %v493 = vld [vmem:[%s293 + $0x498] sm:$0xff]
      %v494 = vld [vmem:[%s293 + $0x4a0] sm:$0xff]
      %v495 = vld [vmem:[%s293 + $0x4a8] sm:$0xff]
      %v496 = vld [vmem:[%s293 + $0x4b0] sm:$0xff]
      %v497 = vld [vmem:[%s293 + $0x4b8] sm:$0xff]
      %v498 = vld [vmem:[%s293 + $0x4c0] sm:$0xff]
      %v499 = vld [vmem:[%s293 + $0x4c8] sm:$0xff]
      %v500 = vld [vmem:[%s293 + $0x4d0] sm:$0xff]
      %v501 = vld [vmem:[%s293 + $0x4d8] sm:$0xff]
      %v502 = vld [vmem:[%s293 + $0x4e0] sm:$0xff]
      %v503 = vld [vmem:[%s293 + $0x4e8] sm:$0xff]
      %v504 = vld [vmem:[%s293 + $0x4f0] sm:$0xff]
      %v505 = vld [vmem:[%s293 + $0x4f8] sm:$0xff]
      %v506 = vld [vmem:[%s293 + $0x500] sm:$0xff]
      %v507 = vld [vmem:[%s293 + $0x508] sm:$0xff]
      %v508 = vld [vmem:[%s293 + $0x510] sm:$0xff]
      %v509 = vld [vmem:[%s293 + $0x518] sm:$0xff]
      %v510 = vld [vmem:[%s293 + $0x520] sm:$0xff]
      %v511 = vld [vmem:[%s293 + $0x528] sm:$0xff]
      %v512 = vld [vmem:[%s293 + $0x530] sm:$0xff]
      %v513 = vld [vmem:[%s293 + $0x538] sm:$0xff]
      %v514 = vld [vmem:[%s293 + $0x540] sm:$0xff]
      %v515 = vld [vmem:[%s293 + $0x548] sm:$0xff]
      %v516 = vld [vmem:[%s293 + $0x550] sm:$0xff]
      %v517 = vld [vmem:[%s293 + $0x558] sm:$0xff]
      %v518 = vld [vmem:[%s293 + $0x560] sm:$0xff]
      %v519 = vld [vmem:[%s293 + $0x568] sm:$0xff]
      %v520 = vld [vmem:[%s293 + $0x570] sm:$0xff]
      %v521 = vld [vmem:[%s293 + $0x578] sm:$0xff]
      %v522 = vld [vmem:[%s293 + $0x580] sm:$0xff]
      %v523 = vld [vmem:[%s293 + $0x588] sm:$0xff]
      %v524 = vld [vmem:[%s293 + $0x590] sm:$0xff]
      %v525 = vld [vmem:[%s293 + $0x598] sm:$0xff]
      %v526 = vld [vmem:[%s293 + $0x5a0] sm:$0xff]
      %v527 = vld [vmem:[%s293 + $0x5a8] sm:$0xff]
      %v528 = vld [vmem:[%s293 + $0x5b0] sm:$0xff]
      %v529 = vld [vmem:[%s293 + $0x5b8] sm:$0xff]
      %v530 = vld [vmem:[%s293 + $0x5c0] sm:$0xff]
      %v531 = vld [vmem:[%s293 + $0x5c8] sm:$0xff]
      %v532 = vld [vmem:[%s293 + $0x5d0] sm:$0xff]
      %v533 = vld [vmem:[%s293 + $0x5d8] sm:$0xff]
      %v534 = vld [vmem:[%s293 + $0x5e0] sm:$0xff]
      %v535 = vld [vmem:[%s293 + $0x5e8] sm:$0xff]
      %v536 = vld [vmem:[%s293 + $0x5f0] sm:$0xff]
      %v537 = vld [vmem:[%s293 + $0x5f8] sm:$0xff]
      %v538 = vld [vmem:[%s293 + $0x600] sm:$0xff]
      %v539 = vld [vmem:[%s293 + $0x608] sm:$0xff]
      %v540 = vld [vmem:[%s293 + $0x610] sm:$0xff]
      %v541 = vld [vmem:[%s293 + $0x618] sm:$0xff]
      %v542 = vld [vmem:[%s293 + $0x620] sm:$0xff]
      %v543 = vld [vmem:[%s293 + $0x628] sm:$0xff]
      %v544 = vld [vmem:[%s293 + $0x630] sm:$0xff]
      %v545 = vld [vmem:[%s293 + $0x638] sm:$0xff]
      %v546 = vld [vmem:[%s293 + $0x640] sm:$0xff]
      %v547 = vld [vmem:[%s293 + $0x648] sm:$0xff]
      %v548 = vld [vmem:[%s293 + $0x650] sm:$0xff]
      %v549 = vld [vmem:[%s293 + $0x658] sm:$0xff]
      %v550 = vld [vmem:[%s293 + $0x660] sm:$0xff]
      %v551 = vld [vmem:[%s293 + $0x668] sm:$0xff]
      %v552 = vld [vmem:[%s293 + $0x670] sm:$0xff]
      %v553 = vld [vmem:[%s293 + $0x678] sm:$0xff]
      %v554 = vld [vmem:[%s293 + $0x680] sm:$0xff]
      %v555 = vld [vmem:[%s293 + $0x688] sm:$0xff]
      %v556 = vld [vmem:[%s293 + $0x690] sm:$0xff]
      %v557 = vld [vmem:[%s293 + $0x698] sm:$0xff]
      %v558 = vld [vmem:[%s293 + $0x6a0] sm:$0xff]
      %v559 = vld [vmem:[%s293 + $0x6a8] sm:$0xff]
      %v560 = vld [vmem:[%s293 + $0x6b0] sm:$0xff]
      %v561 = vld [vmem:[%s293 + $0x6b8] sm:$0xff]
      %v562 = vld [vmem:[%s293 + $0x6c0] sm:$0xff]
      %v563 = vld [vmem:[%s293 + $0x6c8] sm:$0xff]
      %v564 = vld [vmem:[%s293 + $0x6d0] sm:$0xff]
      %v565 = vld [vmem:[%s293 + $0x6d8] sm:$0xff]
      %v566 = vld [vmem:[%s293 + $0x6e0] sm:$0xff]
      %v567 = vld [vmem:[%s293 + $0x6e8] sm:$0xff]
      %v568 = vld [vmem:[%s293 + $0x6f0] sm:$0xff]
      %v569 = vld [vmem:[%s293 + $0x6f8] sm:$0xff]
      %v570 = vld [vmem:[%s293 + $0x700] sm:$0xff]
      %v571 = vld [vmem:[%s293 + $0x708] sm:$0xff]
      %v572 = vld [vmem:[%s293 + $0x710] sm:$0xff]
      %v573 = vld [vmem:[%s293 + $0x718] sm:$0xff]
      %v574 = vld [vmem:[%s293 + $0x720] sm:$0xff]
      %v575 = vld [vmem:[%s293 + $0x728] sm:$0xff]
      %v576 = vld [vmem:[%s293 + $0x730] sm:$0xff]
      %v577 = vld [vmem:[%s293 + $0x738] sm:$0xff]
      %v578 = vld [vmem:[%s293 + $0x740] sm:$0xff]
      %v579 = vld [vmem:[%s293 + $0x748] sm:$0xff]
      %v580 = vld [vmem:[%s293 + $0x750] sm:$0xff]
      %v581 = vld [vmem:[%s293 + $0x758] sm:$0xff]
      %v582 = vld [vmem:[%s293 + $0x760] sm:$0xff]
      %v583 = vld [vmem:[%s293 + $0x768] sm:$0xff]
      %v584 = vld [vmem:[%s293 + $0x770] sm:$0xff]
      %v585 = vld [vmem:[%s293 + $0x778] sm:$0xff]
      %v586 = vld [vmem:[%s293 + $0x780] sm:$0xff]
      %v587 = vld [vmem:[%s293 + $0x788] sm:$0xff]
      %v588 = vld [vmem:[%s293 + $0x790] sm:$0xff]
      %v589 = vld [vmem:[%s293 + $0x798] sm:$0xff]
      %v590 = vld [vmem:[%s293 + $0x7a0] sm:$0xff]
      %v591 = vld [vmem:[%s293 + $0x7a8] sm:$0xff]
      %v592 = vld [vmem:[%s293 + $0x7b0] sm:$0xff]
      %v593 = vld [vmem:[%s293 + $0x7b8] sm:$0xff]
      %v594 = vld [vmem:[%s293 + $0x7c0] sm:$0xff]
      %v595 = vld [vmem:[%s293 + $0x7c8] sm:$0xff]
      %v596 = vld [vmem:[%s293 + $0x7d0] sm:$0xff]
      %v597 = vld [vmem:[%s293 + $0x7d8] sm:$0xff]
      %v598 = vld [vmem:[%s293 + $0x7e0] sm:$0xff]
      %v599 = vld [vmem:[%s293 + $0x7e8] sm:$0xff]
      %v600 = vld [vmem:[%s293 + $0x7f0] sm:$0xff]
      %v601 = vld [vmem:[%s293 + $0x7f8] sm:$0xff]
      %v602 = vld [vmem:[%s300] sm:$0xff]
      %v603 = vld [vmem:[%s300 + $0x8] sm:$0xff]
      %v604 = vld [vmem:[%s300 + $0x10] sm:$0xff]
      %v605 = vld [vmem:[%s300 + $0x18] sm:$0xff]
      %v606 = vld [vmem:[%s300 + $0x20] sm:$0xff]
      %v607 = vld [vmem:[%s300 + $0x28] sm:$0xff]
      %v608 = vld [vmem:[%s300 + $0x30] sm:$0xff]
      %v609 = vld [vmem:[%s300 + $0x38] sm:$0xff]
      %v610 = vld [vmem:[%s300 + $0x40] sm:$0xff]
      %v611 = vld [vmem:[%s300 + $0x48] sm:$0xff]
      %v612 = vld [vmem:[%s300 + $0x50] sm:$0xff]
      %v613 = vld [vmem:[%s300 + $0x58] sm:$0xff]
      %v614 = vld [vmem:[%s300 + $0x60] sm:$0xff]
      %v615 = vld [vmem:[%s300 + $0x68] sm:$0xff]
      %v616 = vld [vmem:[%s300 + $0x70] sm:$0xff]
      %v617 = vld [vmem:[%s300 + $0x78] sm:$0xff]
      %v618 = vld [vmem:[%s300 + $0x80] sm:$0xff]
      %v619 = vld [vmem:[%s300 + $0x88] sm:$0xff]
      %v620 = vld [vmem:[%s300 + $0x90] sm:$0xff]
      %v621 = vld [vmem:[%s300 + $0x98] sm:$0xff]
      %v622 = vld [vmem:[%s300 + $0xa0] sm:$0xff]
      %v623 = vld [vmem:[%s300 + $0xa8] sm:$0xff]
      %v624 = vld [vmem:[%s300 + $0xb0] sm:$0xff]
      %v625 = vld [vmem:[%s300 + $0xb8] sm:$0xff]
      %v626 = vld [vmem:[%s300 + $0xc0] sm:$0xff]
      %v627 = vld [vmem:[%s300 + $0xc8] sm:$0xff]
      %v628 = vld [vmem:[%s300 + $0xd0] sm:$0xff]
      %v629 = vld [vmem:[%s300 + $0xd8] sm:$0xff]
      %v630 = vld [vmem:[%s300 + $0xe0] sm:$0xff]
      %v631 = vld [vmem:[%s300 + $0xe8] sm:$0xff]
      %v632 = vld [vmem:[%s300 + $0xf0] sm:$0xff]
      %v633 = vld [vmem:[%s300 + $0xf8] sm:$0xff]
      %v634 = vld [vmem:[%s300 + $0x100] sm:$0xff]
      %v635 = vld [vmem:[%s300 + $0x108] sm:$0xff]
      %v636 = vld [vmem:[%s300 + $0x110] sm:$0xff]
      %v637 = vld [vmem:[%s300 + $0x118] sm:$0xff]
      %v638 = vld [vmem:[%s300 + $0x120] sm:$0xff]
      %v639 = vld [vmem:[%s300 + $0x128] sm:$0xff]
      %v640 = vld [vmem:[%s300 + $0x130] sm:$0xff]
      %v641 = vld [vmem:[%s300 + $0x138] sm:$0xff]
      %v642 = vld [vmem:[%s300 + $0x140] sm:$0xff]
      %v643 = vld [vmem:[%s300 + $0x148] sm:$0xff]
      %v644 = vld [vmem:[%s300 + $0x150] sm:$0xff]
      %v645 = vld [vmem:[%s300 + $0x158] sm:$0xff]
      %v646 = vld [vmem:[%s300 + $0x160] sm:$0xff]
      %v647 = vld [vmem:[%s300 + $0x168] sm:$0xff]
      %v648 = vld [vmem:[%s300 + $0x170] sm:$0xff]
      %v649 = vld [vmem:[%s300 + $0x178] sm:$0xff]
      %v650 = vld [vmem:[%s300 + $0x180] sm:$0xff]
      %v651 = vld [vmem:[%s300 + $0x188] sm:$0xff]
      %v652 = vld [vmem:[%s300 + $0x190] sm:$0xff]
      %v653 = vld [vmem:[%s300 + $0x198] sm:$0xff]
      %v654 = vld [vmem:[%s300 + $0x1a0] sm:$0xff]
      %v655 = vld [vmem:[%s300 + $0x1a8] sm:$0xff]
      %v656 = vld [vmem:[%s300 + $0x1b0] sm:$0xff]
      %v657 = vld [vmem:[%s300 + $0x1b8] sm:$0xff]
      %v658 = vld [vmem:[%s300 + $0x1c0] sm:$0xff]
      %v659 = vld [vmem:[%s300 + $0x1c8] sm:$0xff]
      %v660 = vld [vmem:[%s300 + $0x1d0] sm:$0xff]
      %v661 = vld [vmem:[%s300 + $0x1d8] sm:$0xff]
      %v662 = vld [vmem:[%s300 + $0x1e0] sm:$0xff]
      %v663 = vld [vmem:[%s300 + $0x1e8] sm:$0xff]
      %v664 = vld [vmem:[%s300 + $0x1f0] sm:$0xff]
      %v665 = vld [vmem:[%s300 + $0x1f8] sm:$0xff]
      %v666 = vld [vmem:[%s300 + $0x200] sm:$0xff]
      %v667 = vld [vmem:[%s300 + $0x208] sm:$0xff]
      %v668 = vld [vmem:[%s300 + $0x210] sm:$0xff]
      %v669 = vld [vmem:[%s300 + $0x218] sm:$0xff]
      %v670 = vld [vmem:[%s300 + $0x220] sm:$0xff]
      %v671 = vld [vmem:[%s300 + $0x228] sm:$0xff]
      %v672 = vld [vmem:[%s300 + $0x230] sm:$0xff]
      %v673 = vld [vmem:[%s300 + $0x238] sm:$0xff]
      %v674 = vld [vmem:[%s300 + $0x240] sm:$0xff]
      %v675 = vld [vmem:[%s300 + $0x248] sm:$0xff]
      %v676 = vld [vmem:[%s300 + $0x250] sm:$0xff]
      %v677 = vld [vmem:[%s300 + $0x258] sm:$0xff]
      %v678 = vld [vmem:[%s300 + $0x260] sm:$0xff]
      %v679 = vld [vmem:[%s300 + $0x268] sm:$0xff]
      %v680 = vld [vmem:[%s300 + $0x270] sm:$0xff]
      %v681 = vld [vmem:[%s300 + $0x278] sm:$0xff]
      %v682 = vld [vmem:[%s300 + $0x280] sm:$0xff]
      %v683 = vld [vmem:[%s300 + $0x288] sm:$0xff]
      %v684 = vld [vmem:[%s300 + $0x290] sm:$0xff]
      %v685 = vld [vmem:[%s300 + $0x298] sm:$0xff]
      %v686 = vld [vmem:[%s300 + $0x2a0] sm:$0xff]
      %v687 = vld [vmem:[%s300 + $0x2a8] sm:$0xff]
      %v688 = vld [vmem:[%s300 + $0x2b0] sm:$0xff]
      %v689 = vld [vmem:[%s300 + $0x2b8] sm:$0xff]
      %v690 = vld [vmem:[%s300 + $0x2c0] sm:$0xff]
      %v691 = vld [vmem:[%s300 + $0x2c8] sm:$0xff]
      %v692 = vld [vmem:[%s300 + $0x2d0] sm:$0xff]
      %v693 = vld [vmem:[%s300 + $0x2d8] sm:$0xff]
      %v694 = vld [vmem:[%s300 + $0x2e0] sm:$0xff]
      %v695 = vld [vmem:[%s300 + $0x2e8] sm:$0xff]
      %v696 = vld [vmem:[%s300 + $0x2f0] sm:$0xff]
      %v697 = vld [vmem:[%s300 + $0x2f8] sm:$0xff]
      %v698 = vld [vmem:[%s300 + $0x300] sm:$0xff]
      %v699 = vld [vmem:[%s300 + $0x308] sm:$0xff]
      %v700 = vld [vmem:[%s300 + $0x310] sm:$0xff]
      %v701 = vld [vmem:[%s300 + $0x318] sm:$0xff]
      %v702 = vld [vmem:[%s300 + $0x320] sm:$0xff]
      %v703 = vld [vmem:[%s300 + $0x328] sm:$0xff]
      %v704 = vld [vmem:[%s300 + $0x330] sm:$0xff]
      %v705 = vld [vmem:[%s300 + $0x338] sm:$0xff]
      %v706 = vld [vmem:[%s300 + $0x340] sm:$0xff]
      %v707 = vld [vmem:[%s300 + $0x348] sm:$0xff]
      %v708 = vld [vmem:[%s300 + $0x350] sm:$0xff]
      %v709 = vld [vmem:[%s300 + $0x358] sm:$0xff]
      %v710 = vld [vmem:[%s300 + $0x360] sm:$0xff]
      %v711 = vld [vmem:[%s300 + $0x368] sm:$0xff]
      %v712 = vld [vmem:[%s300 + $0x370] sm:$0xff]
      %v713 = vld [vmem:[%s300 + $0x378] sm:$0xff]
      %v714 = vld [vmem:[%s300 + $0x380] sm:$0xff]
      %v715 = vld [vmem:[%s300 + $0x388] sm:$0xff]
      %v716 = vld [vmem:[%s300 + $0x390] sm:$0xff]
      %v717 = vld [vmem:[%s300 + $0x398] sm:$0xff]
      %v718 = vld [vmem:[%s300 + $0x3a0] sm:$0xff]
      %v719 = vld [vmem:[%s300 + $0x3a8] sm:$0xff]
      %v720 = vld [vmem:[%s300 + $0x3b0] sm:$0xff]
      %v721 = vld [vmem:[%s300 + $0x3b8] sm:$0xff]
      %v722 = vld [vmem:[%s300 + $0x3c0] sm:$0xff]
      %v723 = vld [vmem:[%s300 + $0x3c8] sm:$0xff]
      %v724 = vld [vmem:[%s300 + $0x3d0] sm:$0xff]
      %v725 = vld [vmem:[%s300 + $0x3d8] sm:$0xff]
      %v726 = vld [vmem:[%s300 + $0x3e0] sm:$0xff]
      %v727 = vld [vmem:[%s300 + $0x3e8] sm:$0xff]
      %v728 = vld [vmem:[%s300 + $0x3f0] sm:$0xff]
      %v729 = vld [vmem:[%s300 + $0x3f8] sm:$0xff]
      %v730 = vld [vmem:[%s300 + $0x400] sm:$0xff]
      %v731 = vld [vmem:[%s300 + $0x408] sm:$0xff]
      %v732 = vld [vmem:[%s300 + $0x410] sm:$0xff]
      %v733 = vld [vmem:[%s300 + $0x418] sm:$0xff]
      %v734 = vld [vmem:[%s300 + $0x420] sm:$0xff]
      %v735 = vld [vmem:[%s300 + $0x428] sm:$0xff]
      %v736 = vld [vmem:[%s300 + $0x430] sm:$0xff]
      %v737 = vld [vmem:[%s300 + $0x438] sm:$0xff]
      %v738 = vld [vmem:[%s300 + $0x440] sm:$0xff]
      %v739 = vld [vmem:[%s300 + $0x448] sm:$0xff]
      %v740 = vld [vmem:[%s300 + $0x450] sm:$0xff]
      %v741 = vld [vmem:[%s300 + $0x458] sm:$0xff]
      %v742 = vld [vmem:[%s300 + $0x460] sm:$0xff]
      %v743 = vld [vmem:[%s300 + $0x468] sm:$0xff]
      %v744 = vld [vmem:[%s300 + $0x470] sm:$0xff]
      %v745 = vld [vmem:[%s300 + $0x478] sm:$0xff]
      %v746 = vld [vmem:[%s300 + $0x480] sm:$0xff]
      %v747 = vld [vmem:[%s300 + $0x488] sm:$0xff]
      %v748 = vld [vmem:[%s300 + $0x490] sm:$0xff]
      %v749 = vld [vmem:[%s300 + $0x498] sm:$0xff]
      %v750 = vld [vmem:[%s300 + $0x4a0] sm:$0xff]
      %v751 = vld [vmem:[%s300 + $0x4a8] sm:$0xff]
      %v752 = vld [vmem:[%s300 + $0x4b0] sm:$0xff]
      %v753 = vld [vmem:[%s300 + $0x4b8] sm:$0xff]
      %v754 = vld [vmem:[%s300 + $0x4c0] sm:$0xff]
      %v755 = vld [vmem:[%s300 + $0x4c8] sm:$0xff]
      %v756 = vld [vmem:[%s300 + $0x4d0] sm:$0xff]
      %v757 = vld [vmem:[%s300 + $0x4d8] sm:$0xff]
      %v758 = vld [vmem:[%s300 + $0x4e0] sm:$0xff]
      %v759 = vld [vmem:[%s300 + $0x4e8] sm:$0xff]
      %v760 = vld [vmem:[%s300 + $0x4f0] sm:$0xff]
      %v761 = vld [vmem:[%s300 + $0x4f8] sm:$0xff]
      %v762 = vld [vmem:[%s300 + $0x500] sm:$0xff]
      %v763 = vld [vmem:[%s300 + $0x508] sm:$0xff]
      %v764 = vld [vmem:[%s300 + $0x510] sm:$0xff]
      %v765 = vld [vmem:[%s300 + $0x518] sm:$0xff]
      %v766 = vld [vmem:[%s300 + $0x520] sm:$0xff]
      %v767 = vld [vmem:[%s300 + $0x528] sm:$0xff]
      %v768 = vld [vmem:[%s300 + $0x530] sm:$0xff]
      %v769 = vld [vmem:[%s300 + $0x538] sm:$0xff]
      %v770 = vld [vmem:[%s300 + $0x540] sm:$0xff]
      %v771 = vld [vmem:[%s300 + $0x548] sm:$0xff]
      %v772 = vld [vmem:[%s300 + $0x550] sm:$0xff]
      %v773 = vld [vmem:[%s300 + $0x558] sm:$0xff]
      %v774 = vld [vmem:[%s300 + $0x560] sm:$0xff]
      %v775 = vld [vmem:[%s300 + $0x568] sm:$0xff]
      %v776 = vld [vmem:[%s300 + $0x570] sm:$0xff]
      %v777 = vld [vmem:[%s300 + $0x578] sm:$0xff]
      %v778 = vld [vmem:[%s300 + $0x580] sm:$0xff]
      %v779 = vld [vmem:[%s300 + $0x588] sm:$0xff]
      %v780 = vld [vmem:[%s300 + $0x590] sm:$0xff]
      %v781 = vld [vmem:[%s300 + $0x598] sm:$0xff]
      %v782 = vld [vmem:[%s300 + $0x5a0] sm:$0xff]
      %v783 = vld [vmem:[%s300 + $0x5a8] sm:$0xff]
      %v784 = vld [vmem:[%s300 + $0x5b0] sm:$0xff]
      %v785 = vld [vmem:[%s300 + $0x5b8] sm:$0xff]
      %v786 = vld [vmem:[%s300 + $0x5c0] sm:$0xff]
      %v787 = vld [vmem:[%s300 + $0x5c8] sm:$0xff]
      %v788 = vld [vmem:[%s300 + $0x5d0] sm:$0xff]
      %v789 = vld [vmem:[%s300 + $0x5d8] sm:$0xff]
      %v790 = vld [vmem:[%s300 + $0x5e0] sm:$0xff]
      %v791 = vld [vmem:[%s300 + $0x5e8] sm:$0xff]
      %v792 = vld [vmem:[%s300 + $0x5f0] sm:$0xff]
      %v793 = vld [vmem:[%s300 + $0x5f8] sm:$0xff]
      %v794 = vld [vmem:[%s300 + $0x600] sm:$0xff]
      %v795 = vld [vmem:[%s300 + $0x608] sm:$0xff]
      %v796 = vld [vmem:[%s300 + $0x610] sm:$0xff]
      %v797 = vld [vmem:[%s300 + $0x618] sm:$0xff]
      %v798 = vld [vmem:[%s300 + $0x620] sm:$0xff]
      %v799 = vld [vmem:[%s300 + $0x628] sm:$0xff]
      %v800 = vld [vmem:[%s300 + $0x630] sm:$0xff]
      %v801 = vld [vmem:[%s300 + $0x638] sm:$0xff]
      %v802 = vld [vmem:[%s300 + $0x640] sm:$0xff]
      %v803 = vld [vmem:[%s300 + $0x648] sm:$0xff]
      %v804 = vld [vmem:[%s300 + $0x650] sm:$0xff]
      %v805 = vld [vmem:[%s300 + $0x658] sm:$0xff]
      %v806 = vld [vmem:[%s300 + $0x660] sm:$0xff]
      %v807 = vld [vmem:[%s300 + $0x668] sm:$0xff]
      %v808 = vld [vmem:[%s300 + $0x670] sm:$0xff]
      %v809 = vld [vmem:[%s300 + $0x678] sm:$0xff]
      %v810 = vld [vmem:[%s300 + $0x680] sm:$0xff]
      %v811 = vld [vmem:[%s300 + $0x688] sm:$0xff]
      %v812 = vld [vmem:[%s300 + $0x690] sm:$0xff]
      %v813 = vld [vmem:[%s300 + $0x698] sm:$0xff]
      %v814 = vld [vmem:[%s300 + $0x6a0] sm:$0xff]
      %v815 = vld [vmem:[%s300 + $0x6a8] sm:$0xff]
      %v816 = vld [vmem:[%s300 + $0x6b0] sm:$0xff]
      %v817 = vld [vmem:[%s300 + $0x6b8] sm:$0xff]
      %v818 = vld [vmem:[%s300 + $0x6c0] sm:$0xff]
      %v819 = vld [vmem:[%s300 + $0x6c8] sm:$0xff]
      %v820 = vld [vmem:[%s300 + $0x6d0] sm:$0xff]
      %v821 = vld [vmem:[%s300 + $0x6d8] sm:$0xff]
      %v822 = vld [vmem:[%s300 + $0x6e0] sm:$0xff]
      %v823 = vld [vmem:[%s300 + $0x6e8] sm:$0xff]
      %v824 = vld [vmem:[%s300 + $0x6f0] sm:$0xff]
      %v825 = vld [vmem:[%s300 + $0x6f8] sm:$0xff]
      %v826 = vld [vmem:[%s300 + $0x700] sm:$0xff]
      %v827 = vld [vmem:[%s300 + $0x708] sm:$0xff]
      %v828 = vld [vmem:[%s300 + $0x710] sm:$0xff]
      %v829 = vld [vmem:[%s300 + $0x718] sm:$0xff]
      %v830 = vld [vmem:[%s300 + $0x720] sm:$0xff]
      %v831 = vld [vmem:[%s300 + $0x728] sm:$0xff]
      %v832 = vld [vmem:[%s300 + $0x730] sm:$0xff]
      %v833 = vld [vmem:[%s300 + $0x738] sm:$0xff]
      %v834 = vld [vmem:[%s300 + $0x740] sm:$0xff]
      %v835 = vld [vmem:[%s300 + $0x748] sm:$0xff]
      %v836 = vld [vmem:[%s300 + $0x750] sm:$0xff]
      %v837 = vld [vmem:[%s300 + $0x758] sm:$0xff]
      %v838 = vld [vmem:[%s300 + $0x760] sm:$0xff]
      %v839 = vld [vmem:[%s300 + $0x768] sm:$0xff]
      %v840 = vld [vmem:[%s300 + $0x770] sm:$0xff]
      %v841 = vld [vmem:[%s300 + $0x778] sm:$0xff]
      %v842 = vld [vmem:[%s300 + $0x780] sm:$0xff]
      %v843 = vld [vmem:[%s300 + $0x788] sm:$0xff]
      %v844 = vld [vmem:[%s300 + $0x790] sm:$0xff]
      %v845 = vld [vmem:[%s300 + $0x798] sm:$0xff]
      %v846 = vld [vmem:[%s300 + $0x7a0] sm:$0xff]
      %v847 = vld [vmem:[%s300 + $0x7a8] sm:$0xff]
      %v848 = vld [vmem:[%s300 + $0x7b0] sm:$0xff]
      %v849 = vld [vmem:[%s300 + $0x7b8] sm:$0xff]
      %v850 = vld [vmem:[%s300 + $0x7c0] sm:$0xff]
      %v851 = vld [vmem:[%s300 + $0x7c8] sm:$0xff]
      %v852 = vld [vmem:[%s300 + $0x7d0] sm:$0xff]
      %v853 = vld [vmem:[%s300 + $0x7d8] sm:$0xff]
      %v854 = vld [vmem:[%s300 + $0x7e0] sm:$0xff]
      %v855 = vld [vmem:[%s300 + $0x7e8] sm:$0xff]
      %v856 = vld [vmem:[%s300 + $0x7f0] sm:$0xff]
      %v857 = vld [vmem:[%s300 + $0x7f8] sm:$0xff]
      %858 = vmatprep.subr.mxu0 0.0
      %859 = vmatpush1.msra.mxu0 %v346
      %860 = vmatprep.subr.mxu0 0.0
      %861 = vmatpush1.msra.mxu0 %v347
      %862 = vmatprep.subr.mxu0 0.0
      %863 = vmatpush1.msra.mxu0 %v348
      %864 = vmatprep.subr.mxu0 0.0
      %865 = vmatpush1.msra.mxu0 %v349
      %866 = vmatprep.subr.mxu0 0.0
      %867 = vmatpush1.msra.mxu0 %v350
      %868 = vmatprep.subr.mxu0 0.0
      %869 = vmatpush1.msra.mxu0 %v351
      %870 = vmatprep.subr.mxu0 0.0
      %871 = vmatpush1.msra.mxu0 %v352
      %872 = vmatprep.subr.mxu0 0.0
      %873 = vmatpush1.msra.mxu0 %v353
      %874 = vmatprep.subr.mxu0 0.0
      %875 = vmatpush1.msra.mxu0 %v354
      %876 = vmatprep.subr.mxu0 0.0
      %877 = vmatpush1.msra.mxu0 %v355
      %878 = vmatprep.subr.mxu0 0.0
      %879 = vmatpush1.msra.mxu0 %v356
      %880 = vmatprep.subr.mxu0 0.0
      %881 = vmatpush1.msra.mxu0 %v357
      %882 = vmatprep.subr.mxu0 0.0
      %883 = vmatpush1.msra.mxu0 %v358
      %884 = vmatprep.subr.mxu0 0.0
      %885 = vmatpush1.msra.mxu0 %v359
      %886 = vmatprep.subr.mxu0 0.0
      %887 = vmatpush1.msra.mxu0 %v360
      %888 = vmatprep.subr.mxu0 0.0
      %889 = vmatpush1.msra.mxu0 %v361
      %890 = vmatprep.subr.mxu0 0.0
      %891 = vmatpush1.msra.mxu0 0.0
      %892 = vmatprep.subr.mxu0 0.0
      %893 = vmatpush1.msra.mxu0 0.0
      %894 = vmatprep.subr.mxu0 0.0
      %895 = vmatpush1.msra.mxu0 0.0
      %896 = vmatprep.subr.mxu0 0.0
      %897 = vmatpush1.msra.mxu0 0.0
      %898 = vmatprep.subr.mxu0 0.0
      %899 = vmatpush1.msra.mxu0 0.0
      %900 = vmatprep.subr.mxu0 0.0
      %901 = vmatpush1.msra.mxu0 0.0
      %902 = vmatprep.subr.mxu0 0.0
      %903 = vmatpush1.msra.mxu0 0.0
      %904 = vmatprep.subr.mxu0 0.0
      %905 = vmatpush1.msra.mxu0 0.0
      %906 = vmatprep.subr.mxu0 0.0
      %907 = vmatpush1.msra.mxu0 0.0
      %908 = vmatprep.subr.mxu0 0.0
      %909 = vmatpush1.msra.mxu0 0.0
      %910 = vmatprep.subr.mxu0 0.0
      %911 = vmatpush1.msra.mxu0 0.0
      %912 = vmatprep.subr.mxu0 0.0
      %913 = vmatpush1.msra.mxu0 0.0
      %914 = vmatprep.subr.mxu0 0.0
      %915 = vmatpush1.msra.mxu0 0.0
      %916 = vmatprep.subr.mxu0 0.0
      %917 = vmatpush1.msra.mxu0 0.0
      %918 = vmatprep.subr.mxu0 0.0
      %919 = vmatpush1.msra.mxu0 0.0
      %920 = vmatprep.subr.mxu0 0.0
      %921 = vmatpush1.msra.mxu0 0.0
      %922 = vmatprep.mubr.f32.mxu0 0.0
      %923 = vmatmul.mubr.f32.gmra.mrb[0].mxu0 %v314
      %v924 = vpop.f32.mrb[0].mxu0
      %v925 = vadd.f32 0.0, %v924
      %v926 = vpop.f32.mrb[0].mxu0
      %927 = vdwg.mxu0
      %928 = vmatprep.subr.mxu0 0.0
      %929 = vmatpush1.msra.mxu0 %v362
      %930 = vmatprep.subr.mxu0 0.0
      %931 = vmatpush1.msra.mxu0 %v363
      %932 = vmatprep.subr.mxu0 0.0
      %933 = vmatpush1.msra.mxu0 %v364
      %934 = vmatprep.subr.mxu0 0.0
      %935 = vmatpush1.msra.mxu0 %v365
      %936 = vmatprep.subr.mxu0 0.0
      %937 = vmatpush1.msra.mxu0 %v366
      %938 = vmatprep.subr.mxu0 0.0
      %939 = vmatpush1.msra.mxu0 %v367
      %940 = vmatprep.subr.mxu0 0.0
      %941 = vmatpush1.msra.mxu0 %v368
      %942 = vmatprep.subr.mxu0 0.0
      %943 = vmatpush1.msra.mxu0 %v369
      %944 = vmatprep.subr.mxu0 0.0
      %945 = vmatpush1.msra.mxu0 %v370
      %946 = vmatprep.subr.mxu0 0.0
      %947 = vmatpush1.msra.mxu0 %v371
      %948 = vmatprep.subr.mxu0 0.0
      %949 = vmatpush1.msra.mxu0 %v372
      %950 = vmatprep.subr.mxu0 0.0
      %951 = vmatpush1.msra.mxu0 %v373
      %952 = vmatprep.subr.mxu0 0.0
      %953 = vmatpush1.msra.mxu0 %v374
      %954 = vmatprep.subr.mxu0 0.0
      %955 = vmatpush1.msra.mxu0 %v375
      %956 = vmatprep.subr.mxu0 0.0
      %957 = vmatpush1.msra.mxu0 %v376
      %958 = vmatprep.subr.mxu0 0.0
      %959 = vmatpush1.msra.mxu0 %v377
      %960 = vmatprep.subr.mxu0 0.0
      %961 = vmatpush1.msra.mxu0 0.0
      %962 = vmatprep.subr.mxu0 0.0
      %963 = vmatpush1.msra.mxu0 0.0
      %964 = vmatprep.subr.mxu0 0.0
      %965 = vmatpush1.msra.mxu0 0.0
      %966 = vmatprep.subr.mxu0 0.0
      %967 = vmatpush1.msra.mxu0 0.0
      %968 = vmatprep.subr.mxu0 0.0
      %969 = vmatpush1.msra.mxu0 0.0
      %970 = vmatprep.subr.mxu0 0.0
      %971 = vmatpush1.msra.mxu0 0.0
      %972 = vmatprep.subr.mxu0 0.0
      %973 = vmatpush1.msra.mxu0 0.0
      %974 = vmatprep.subr.mxu0 0.0
      %975 = vmatpush1.msra.mxu0 0.0
      %976 = vmatprep.subr.mxu0 0.0
      %977 = vmatpush1.msra.mxu0 0.0
      %978 = vmatprep.subr.mxu0 0.0
      %979 = vmatpush1.msra.mxu0 0.0
      %980 = vmatprep.subr.mxu0 0.0
      %981 = vmatpush1.msra.mxu0 0.0
      %982 = vmatprep.subr.mxu0 0.0
      %983 = vmatpush1.msra.mxu0 0.0
      %984 = vmatprep.subr.mxu0 0.0
      %985 = vmatpush1.msra.mxu0 0.0
      %986 = vmatprep.subr.mxu0 0.0
      %987 = vmatpush1.msra.mxu0 0.0
      %988 = vmatprep.subr.mxu0 0.0
      %989 = vmatpush1.msra.mxu0 0.0
      %990 = vmatprep.subr.mxu0 0.0
      %991 = vmatpush1.msra.mxu0 0.0
      %992 = vmatprep.mubr.f32.mxu0 0.0
      %993 = vmatmul.mubr.f32.gmra.mrb[0].mxu0 %v315
      %v994 = vpop.f32.mrb[0].mxu0
      %v995 = vadd.f32 0.0, %v994
      %v996 = vpop.f32.mrb[0].mxu0
      %997 = vdwg.mxu0
      %998 = vmatprep.subr.mxu0 0.0
      %999 = vmatpush1.msra.mxu0 %v378
      %1000 = vmatprep.subr.mxu0 0.0
      %1001 = vmatpush1.msra.mxu0 %v379
      %1002 = vmatprep.subr.mxu0 0.0
      %1003 = vmatpush1.msra.mxu0 %v380
      %1004 = vmatprep.subr.mxu0 0.0
      %1005 = vmatpush1.msra.mxu0 %v381
      %1006 = vmatprep.subr.mxu0 0.0
      %1007 = vmatpush1.msra.mxu0 %v382
      %1008 = vmatprep.subr.mxu0 0.0
      %1009 = vmatpush1.msra.mxu0 %v383
      %1010 = vmatprep.subr.mxu0 0.0
      %1011 = vmatpush1.msra.mxu0 %v384
      %1012 = vmatprep.subr.mxu0 0.0
      %1013 = vmatpush1.msra.mxu0 %v385
      %1014 = vmatprep.subr.mxu0 0.0
      %1015 = vmatpush1.msra.mxu0 %v386
      %1016 = vmatprep.subr.mxu0 0.0
      %1017 = vmatpush1.msra.mxu0 %v387
      %1018 = vmatprep.subr.mxu0 0.0
      %1019 = vmatpush1.msra.mxu0 %v388
      %1020 = vmatprep.subr.mxu0 0.0
      %1021 = vmatpush1.msra.mxu0 %v389
      %1022 = vmatprep.subr.mxu0 0.0
      %1023 = vmatpush1.msra.mxu0 %v390
      %1024 = vmatprep.subr.mxu0 0.0
      %1025 = vmatpush1.msra.mxu0 %v391
      %1026 = vmatprep.subr.mxu0 0.0
      %1027 = vmatpush1.msra.mxu0 %v392
      %1028 = vmatprep.subr.mxu0 0.0
      %1029 = vmatpush1.msra.mxu0 %v393
      %1030 = vmatprep.subr.mxu0 0.0
      %1031 = vmatpush1.msra.mxu0 0.0
      %1032 = vmatprep.subr.mxu0 0.0
      %1033 = vmatpush1.msra.mxu0 0.0
      %1034 = vmatprep.subr.mxu0 0.0
      %1035 = vmatpush1.msra.mxu0 0.0
      %1036 = vmatprep.subr.mxu0 0.0
      %1037 = vmatpush1.msra.mxu0 0.0
      %1038 = vmatprep.subr.mxu0 0.0
      %1039 = vmatpush1.msra.mxu0 0.0
      %1040 = vmatprep.subr.mxu0 0.0
      %1041 = vmatpush1.msra.mxu0 0.0
      %1042 = vmatprep.subr.mxu0 0.0
      %1043 = vmatpush1.msra.mxu0 0.0
      %1044 = vmatprep.subr.mxu0 0.0
      %1045 = vmatpush1.msra.mxu0 0.0
      %1046 = vmatprep.subr.mxu0 0.0
      %1047 = vmatpush1.msra.mxu0 0.0
      %1048 = vmatprep.subr.mxu0 0.0
      %1049 = vmatpush1.msra.mxu0 0.0
      %1050 = vmatprep.subr.mxu0 0.0
      %1051 = vmatpush1.msra.mxu0 0.0
      %1052 = vmatprep.subr.mxu0 0.0
      %1053 = vmatpush1.msra.mxu0 0.0
      %1054 = vmatprep.subr.mxu0 0.0
      %1055 = vmatpush1.msra.mxu0 0.0
      %1056 = vmatprep.subr.mxu0 0.0
      %1057 = vmatpush1.msra.mxu0 0.0
      %1058 = vmatprep.subr.mxu0 0.0
      %1059 = vmatpush1.msra.mxu0 0.0
      %1060 = vmatprep.subr.mxu0 0.0
      %1061 = vmatpush1.msra.mxu0 0.0
      %1062 = vmatprep.mubr.f32.mxu0 0.0
      %1063 = vmatmul.mubr.f32.gmra.mrb[0].mxu0 %v316
      %v1064 = vpop.f32.mrb[0].mxu0
      %v1065 = vadd.f32 0.0, %v1064
      %v1066 = vpop.f32.mrb[0].mxu0
      %1067 = vdwg.mxu0
      %1068 = vmatprep.subr.mxu0 0.0
      %1069 = vmatpush1.msra.mxu0 %v394
      %1070 = vmatprep.subr.mxu0 0.0
      %1071 = vmatpush1.msra.mxu0 %v395
      %1072 = vmatprep.subr.mxu0 0.0
      %1073 = vmatpush1.msra.mxu0 %v396
      %1074 = vmatprep.subr.mxu0 0.0
      %1075 = vmatpush1.msra.mxu0 %v397
      %1076 = vmatprep.subr.mxu0 0.0
      %1077 = vmatpush1.msra.mxu0 %v398
      %1078 = vmatprep.subr.mxu0 0.0
      %1079 = vmatpush1.msra.mxu0 %v399
      %1080 = vmatprep.subr.mxu0 0.0
      %1081 = vmatpush1.msra.mxu0 %v400
      %1082 = vmatprep.subr.mxu0 0.0
      %1083 = vmatpush1.msra.mxu0 %v401
      %1084 = vmatprep.subr.mxu0 0.0
      %1085 = vmatpush1.msra.mxu0 %v402
      %1086 = vmatprep.subr.mxu0 0.0
      %1087 = vmatpush1.msra.mxu0 %v403
      %1088 = vmatprep.subr.mxu0 0.0
      %1089 = vmatpush1.msra.mxu0 %v404
      %1090 = vmatprep.subr.mxu0 0.0
      %1091 = vmatpush1.msra.mxu0 %v405
      %1092 = vmatprep.subr.mxu0 0.0
      %1093 = vmatpush1.msra.mxu0 %v406
      %1094 = vmatprep.subr.mxu0 0.0
      %1095 = vmatpush1.msra.mxu0 %v407
      %1096 = vmatprep.subr.mxu0 0.0
      %1097 = vmatpush1.msra.mxu0 %v408
      %1098 = vmatprep.subr.mxu0 0.0
      %1099 = vmatpush1.msra.mxu0 %v409
      %1100 = vmatprep.subr.mxu0 0.0
      %1101 = vmatpush1.msra.mxu0 0.0
      %1102 = vmatprep.subr.mxu0 0.0
      %1103 = vmatpush1.msra.mxu0 0.0
      %1104 = vmatprep.subr.mxu0 0.0
      %1105 = vmatpush1.msra.mxu0 0.0
      %1106 = vmatprep.subr.mxu0 0.0
      %1107 = vmatpush1.msra.mxu0 0.0
      %1108 = vmatprep.subr.mxu0 0.0
      %1109 = vmatpush1.msra.mxu0 0.0
      %1110 = vmatprep.subr.mxu0 0.0
      %1111 = vmatpush1.msra.mxu0 0.0
      %1112 = vmatprep.subr.mxu0 0.0
      %1113 = vmatpush1.msra.mxu0 0.0
      %1114 = vmatprep.subr.mxu0 0.0
      %1115 = vmatpush1.msra.mxu0 0.0
      %1116 = vmatprep.subr.mxu0 0.0
      %1117 = vmatpush1.msra.mxu0 0.0
      %1118 = vmatprep.subr.mxu0 0.0
      %1119 = vmatpush1.msra.mxu0 0.0
      %1120 = vmatprep.subr.mxu0 0.0
      %1121 = vmatpush1.msra.mxu0 0.0
      %1122 = vmatprep.subr.mxu0 0.0
      %1123 = vmatpush1.msra.mxu0 0.0
      %1124 = vmatprep.subr.mxu0 0.0
      %1125 = vmatpush1.msra.mxu0 0.0
      %1126 = vmatprep.subr.mxu0 0.0
      %1127 = vmatpush1.msra.mxu0 0.0
      %1128 = vmatprep.subr.mxu0 0.0
      %1129 = vmatpush1.msra.mxu0 0.0
      %1130 = vmatprep.subr.mxu0 0.0
      %1131 = vmatpush1.msra.mxu0 0.0
      %1132 = vmatprep.mubr.f32.mxu0 0.0
      %1133 = vmatmul.mubr.f32.gmra.mrb[0].mxu0 %v317
      %v1134 = vpop.f32.mrb[0].mxu0
      %v1135 = vadd.f32 0.0, %v1134
      %v1136 = vpop.f32.mrb[0].mxu0
      %1137 = vdwg.mxu0
      %1138 = vmatprep.subr.mxu0 0.0
      %1139 = vmatpush1.msra.mxu0 %v410
      %1140 = vmatprep.subr.mxu0 0.0
      %1141 = vmatpush1.msra.mxu0 %v411
      %1142 = vmatprep.subr.mxu0 0.0
      %1143 = vmatpush1.msra.mxu0 %v412
      %1144 = vmatprep.subr.mxu0 0.0
      %1145 = vmatpush1.msra.mxu0 %v413
      %1146 = vmatprep.subr.mxu0 0.0
      %1147 = vmatpush1.msra.mxu0 %v414
      %1148 = vmatprep.subr.mxu0 0.0
      %1149 = vmatpush1.msra.mxu0 %v415
      %1150 = vmatprep.subr.mxu0 0.0
      %1151 = vmatpush1.msra.mxu0 %v416
      %1152 = vmatprep.subr.mxu0 0.0
      %1153 = vmatpush1.msra.mxu0 %v417
      %1154 = vmatprep.subr.mxu0 0.0
      %1155 = vmatpush1.msra.mxu0 %v418
      %1156 = vmatprep.subr.mxu0 0.0
      %1157 = vmatpush1.msra.mxu0 %v419
      %1158 = vmatprep.subr.mxu0 0.0
      %1159 = vmatpush1.msra.mxu0 %v420
      %1160 = vmatprep.subr.mxu0 0.0
      %1161 = vmatpush1.msra.mxu0 %v421
      %1162 = vmatprep.subr.mxu0 0.0
      %1163 = vmatpush1.msra.mxu0 %v422
      %1164 = vmatprep.subr.mxu0 0.0
      %1165 = vmatpush1.msra.mxu0 %v423
      %1166 = vmatprep.subr.mxu0 0.0
      %1167 = vmatpush1.msra.mxu0 %v424
      %1168 = vmatprep.subr.mxu0 0.0
      %1169 = vmatpush1.msra.mxu0 %v425
      %1170 = vmatprep.subr.mxu0 0.0
      %1171 = vmatpush1.msra.mxu0 0.0
      %1172 = vmatprep.subr.mxu0 0.0
      %1173 = vmatpush1.msra.mxu0 0.0
      %1174 = vmatprep.subr.mxu0 0.0
      %1175 = vmatpush1.msra.mxu0 0.0
      %1176 = vmatprep.subr.mxu0 0.0
      %1177 = vmatpush1.msra.mxu0 0.0
      %1178 = vmatprep.subr.mxu0 0.0
      %1179 = vmatpush1.msra.mxu0 0.0
      %1180 = vmatprep.subr.mxu0 0.0
      %1181 = vmatpush1.msra.mxu0 0.0
      %1182 = vmatprep.subr.mxu0 0.0
      %1183 = vmatpush1.msra.mxu0 0.0
      %1184 = vmatprep.subr.mxu0 0.0
      %1185 = vmatpush1.msra.mxu0 0.0
      %1186 = vmatprep.subr.mxu0 0.0
      %1187 = vmatpush1.msra.mxu0 0.0
      %1188 = vmatprep.subr.mxu0 0.0
      %1189 = vmatpush1.msra.mxu0 0.0
      %1190 = vmatprep.subr.mxu0 0.0
      %1191 = vmatpush1.msra.mxu0 0.0
      %1192 = vmatprep.subr.mxu0 0.0
      %1193 = vmatpush1.msra.mxu0 0.0
      %1194 = vmatprep.subr.mxu0 0.0
      %1195 = vmatpush1.msra.mxu0 0.0
      %1196 = vmatprep.subr.mxu0 0.0
      %1197 = vmatpush1.msra.mxu0 0.0
      %1198 = vmatprep.subr.mxu0 0.0
      %1199 = vmatpush1.msra.mxu0 0.0
      %1200 = vmatprep.subr.mxu0 0.0
      %1201 = vmatpush1.msra.mxu0 0.0
      %1202 = vmatprep.mubr.f32.mxu0 0.0
      %1203 = vmatmul.mubr.f32.gmra.mrb[0].mxu0 %v318
      %v1204 = vpop.f32.mrb[0].mxu0
      %v1205 = vadd.f32 0.0, %v1204
      %v1206 = vpop.f32.mrb[0].mxu0
      %1207 = vdwg.mxu0
      %1208 = vmatprep.subr.mxu0 0.0
      %1209 = vmatpush1.msra.mxu0 %v426
      %1210 = vmatprep.subr.mxu0 0.0
      %1211 = vmatpush1.msra.mxu0 %v427
      %1212 = vmatprep.subr.mxu0 0.0
      %1213 = vmatpush1.msra.mxu0 %v428
      %1214 = vmatprep.subr.mxu0 0.0
      %1215 = vmatpush1.msra.mxu0 %v429
      %1216 = vmatprep.subr.mxu0 0.0
      %1217 = vmatpush1.msra.mxu0 %v430
      %1218 = vmatprep.subr.mxu0 0.0
      %1219 = vmatpush1.msra.mxu0 %v431
      %1220 = vmatprep.subr.mxu0 0.0
      %1221 = vmatpush1.msra.mxu0 %v432
      %1222 = vmatprep.subr.mxu0 0.0
      %1223 = vmatpush1.msra.mxu0 %v433
      %1224 = vmatprep.subr.mxu0 0.0
      %1225 = vmatpush1.msra.mxu0 %v434
      %1226 = vmatprep.subr.mxu0 0.0
      %1227 = vmatpush1.msra.mxu0 %v435
      %1228 = vmatprep.subr.mxu0 0.0
      %1229 = vmatpush1.msra.mxu0 %v436
      %1230 = vmatprep.subr.mxu0 0.0
      %1231 = vmatpush1.msra.mxu0 %v437
      %1232 = vmatprep.subr.mxu0 0.0
      %1233 = vmatpush1.msra.mxu0 %v438
      %1234 = vmatprep.subr.mxu0 0.0
      %1235 = vmatpush1.msra.mxu0 %v439
      %1236 = vmatprep.subr.mxu0 0.0
      %1237 = vmatpush1.msra.mxu0 %v440
      %1238 = vmatprep.subr.mxu0 0.0
      %1239 = vmatpush1.msra.mxu0 %v441
      %1240 = vmatprep.subr.mxu0 0.0
      %1241 = vmatpush1.msra.mxu0 0.0
      %1242 = vmatprep.subr.mxu0 0.0
      %1243 = vmatpush1.msra.mxu0 0.0
      %1244 = vmatprep.subr.mxu0 0.0
      %1245 = vmatpush1.msra.mxu0 0.0
      %1246 = vmatprep.subr.mxu0 0.0
      %1247 = vmatpush1.msra.mxu0 0.0
      %1248 = vmatprep.subr.mxu0 0.0
      %1249 = vmatpush1.msra.mxu0 0.0
      %1250 = vmatprep.subr.mxu0 0.0
      %1251 = vmatpush1.msra.mxu0 0.0
      %1252 = vmatprep.subr.mxu0 0.0
      %1253 = vmatpush1.msra.mxu0 0.0
      %1254 = vmatprep.subr.mxu0 0.0
      %1255 = vmatpush1.msra.mxu0 0.0
      %1256 = vmatprep.subr.mxu0 0.0
      %1257 = vmatpush1.msra.mxu0 0.0
      %1258 = vmatprep.subr.mxu0 0.0
      %1259 = vmatpush1.msra.mxu0 0.0
      %1260 = vmatprep.subr.mxu0 0.0
      %1261 = vmatpush1.msra.mxu0 0.0
      %1262 = vmatprep.subr.mxu0 0.0
      %1263 = vmatpush1.msra.mxu0 0.0
      %1264 = vmatprep.subr.mxu0 0.0
      %1265 = vmatpush1.msra.mxu0 0.0
      %1266 = vmatprep.subr.mxu0 0.0
      %1267 = vmatpush1.msra.mxu0 0.0
      %1268 = vmatprep.subr.mxu0 0.0
      %1269 = vmatpush1.msra.mxu0 0.0
      %1270 = vmatprep.subr.mxu0 0.0
      %1271 = vmatpush1.msra.mxu0 0.0
      %1272 = vmatprep.mubr.f32.mxu0 0.0
      %1273 = vmatmul.mubr.f32.gmra.mrb[0].mxu0 %v319
      %v1274 = vpop.f32.mrb[0].mxu0
      %v1275 = vadd.f32 0.0, %v1274
      %v1276 = vpop.f32.mrb[0].mxu0
      %1277 = vdwg.mxu0
      %1278 = vmatprep.subr.mxu0 0.0
      %1279 = vmatpush1.msra.mxu0 %v442
      %1280 = vmatprep.subr.mxu0 0.0
      %1281 = vmatpush1.msra.mxu0 %v443
      %1282 = vmatprep.subr.mxu0 0.0
      %1283 = vmatpush1.msra.mxu0 %v444
      %1284 = vmatprep.subr.mxu0 0.0
      %1285 = vmatpush1.msra.mxu0 %v445
      %1286 = vmatprep.subr.mxu0 0.0
      %1287 = vmatpush1.msra.mxu0 %v446
      %1288 = vmatprep.subr.mxu0 0.0
      %1289 = vmatpush1.msra.mxu0 %v447
      %1290 = vmatprep.subr.mxu0 0.0
      %1291 = vmatpush1.msra.mxu0 %v448
      %1292 = vmatprep.subr.mxu0 0.0
      %1293 = vmatpush1.msra.mxu0 %v449
      %1294 = vmatprep.subr.mxu0 0.0
      %1295 = vmatpush1.msra.mxu0 %v450
      %1296 = vmatprep.subr.mxu0 0.0
      %1297 = vmatpush1.msra.mxu0 %v451
      %1298 = vmatprep.subr.mxu0 0.0
      %1299 = vmatpush1.msra.mxu0 %v452
      %1300 = vmatprep.subr.mxu0 0.0
      %1301 = vmatpush1.msra.mxu0 %v453
      %1302 = vmatprep.subr.mxu0 0.0
      %1303 = vmatpush1.msra.mxu0 %v454
      %1304 = vmatprep.subr.mxu0 0.0
      %1305 = vmatpush1.msra.mxu0 %v455
      %1306 = vmatprep.subr.mxu0 0.0
      %1307 = vmatpush1.msra.mxu0 %v456
      %1308 = vmatprep.subr.mxu0 0.0
      %1309 = vmatpush1.msra.mxu0 %v457
      %1310 = vmatprep.subr.mxu0 0.0
      %1311 = vmatpush1.msra.mxu0 0.0
      %1312 = vmatprep.subr.mxu0 0.0
      %1313 = vmatpush1.msra.mxu0 0.0
      %1314 = vmatprep.subr.mxu0 0.0
      %1315 = vmatpush1.msra.mxu0 0.0
      %1316 = vmatprep.subr.mxu0 0.0
      %1317 = vmatpush1.msra.mxu0 0.0
      %1318 = vmatprep.subr.mxu0 0.0
      %1319 = vmatpush1.msra.mxu0 0.0
      %1320 = vmatprep.subr.mxu0 0.0
      %1321 = vmatpush1.msra.mxu0 0.0
      %1322 = vmatprep.subr.mxu0 0.0
      %1323 = vmatpush1.msra.mxu0 0.0
      %1324 = vmatprep.subr.mxu0 0.0
      %1325 = vmatpush1.msra.mxu0 0.0
      %1326 = vmatprep.subr.mxu0 0.0
      %1327 = vmatpush1.msra.mxu0 0.0
      %1328 = vmatprep.subr.mxu0 0.0
      %1329 = vmatpush1.msra.mxu0 0.0
      %1330 = vmatprep.subr.mxu0 0.0
      %1331 = vmatpush1.msra.mxu0 0.0
      %1332 = vmatprep.subr.mxu0 0.0
      %1333 = vmatpush1.msra.mxu0 0.0
      %1334 = vmatprep.subr.mxu0 0.0
      %1335 = vmatpush1.msra.mxu0 0.0
      %1336 = vmatprep.subr.mxu0 0.0
      %1337 = vmatpush1.msra.mxu0 0.0
      %1338 = vmatprep.subr.mxu0 0.0
      %1339 = vmatpush1.msra.mxu0 0.0
      %1340 = vmatprep.subr.mxu0 0.0
      %1341 = vmatpush1.msra.mxu0 0.0
      %1342 = vmatprep.mubr.f32.mxu0 0.0
      %1343 = vmatmul.mubr.f32.gmra.mrb[0].mxu0 %v320
      %v1344 = vpop.f32.mrb[0].mxu0
      %v1345 = vadd.f32 0.0, %v1344
      %v1346 = vpop.f32.mrb[0].mxu0
      %1347 = vdwg.mxu0
      %1348 = vmatprep.subr.mxu0 0.0
      %1349 = vmatpush1.msra.mxu0 %v458
      %1350 = vmatprep.subr.mxu0 0.0
      %1351 = vmatpush1.msra.mxu0 %v459
      %1352 = vmatprep.subr.mxu0 0.0
      %1353 = vmatpush1.msra.mxu0 %v460
      %1354 = vmatprep.subr.mxu0 0.0
      %1355 = vmatpush1.msra.mxu0 %v461
      %1356 = vmatprep.subr.mxu0 0.0
      %1357 = vmatpush1.msra.mxu0 %v462
      %1358 = vmatprep.subr.mxu0 0.0
      %1359 = vmatpush1.msra.mxu0 %v463
      %1360 = vmatprep.subr.mxu0 0.0
      %1361 = vmatpush1.msra.mxu0 %v464
      %1362 = vmatprep.subr.mxu0 0.0
      %1363 = vmatpush1.msra.mxu0 %v465
      %1364 = vmatprep.subr.mxu0 0.0
      %1365 = vmatpush1.msra.mxu0 %v466
      %1366 = vmatprep.subr.mxu0 0.0
      %1367 = vmatpush1.msra.mxu0 %v467
      %1368 = vmatprep.subr.mxu0 0.0
      %1369 = vmatpush1.msra.mxu0 %v468
      %1370 = vmatprep.subr.mxu0 0.0
      %1371 = vmatpush1.msra.mxu0 %v469
      %1372 = vmatprep.subr.mxu0 0.0
      %1373 = vmatpush1.msra.mxu0 %v470
      %1374 = vmatprep.subr.mxu0 0.0
      %1375 = vmatpush1.msra.mxu0 %v471
      %1376 = vmatprep.subr.mxu0 0.0
      %1377 = vmatpush1.msra.mxu0 %v472
      %1378 = vmatprep.subr.mxu0 0.0
      %1379 = vmatpush1.msra.mxu0 %v473
      %1380 = vmatprep.subr.mxu0 0.0
      %1381 = vmatpush1.msra.mxu0 0.0
      %1382 = vmatprep.subr.mxu0 0.0
      %1383 = vmatpush1.msra.mxu0 0.0
      %1384 = vmatprep.subr.mxu0 0.0
      %1385 = vmatpush1.msra.mxu0 0.0
      %1386 = vmatprep.subr.mxu0 0.0
      %1387 = vmatpush1.msra.mxu0 0.0
      %1388 = vmatprep.subr.mxu0 0.0
      %1389 = vmatpush1.msra.mxu0 0.0
      %1390 = vmatprep.subr.mxu0 0.0
      %1391 = vmatpush1.msra.mxu0 0.0
      %1392 = vmatprep.subr.mxu0 0.0
      %1393 = vmatpush1.msra.mxu0 0.0
      %1394 = vmatprep.subr.mxu0 0.0
      %1395 = vmatpush1.msra.mxu0 0.0
      %1396 = vmatprep.subr.mxu0 0.0
      %1397 = vmatpush1.msra.mxu0 0.0
      %1398 = vmatprep.subr.mxu0 0.0
      %1399 = vmatpush1.msra.mxu0 0.0
      %1400 = vmatprep.subr.mxu0 0.0
      %1401 = vmatpush1.msra.mxu0 0.0
      %1402 = vmatprep.subr.mxu0 0.0
      %1403 = vmatpush1.msra.mxu0 0.0
      %1404 = vmatprep.subr.mxu0 0.0
      %1405 = vmatpush1.msra.mxu0 0.0
      %1406 = vmatprep.subr.mxu0 0.0
      %1407 = vmatpush1.msra.mxu0 0.0
      %1408 = vmatprep.subr.mxu0 0.0
      %1409 = vmatpush1.msra.mxu0 0.0
      %1410 = vmatprep.subr.mxu0 0.0
      %1411 = vmatpush1.msra.mxu0 0.0
      %1412 = vmatprep.mubr.f32.mxu0 0.0
      %1413 = vmatmul.mubr.f32.gmra.mrb[0].mxu0 %v321
      %v1414 = vpop.f32.mrb[0].mxu0
      %v1415 = vadd.f32 0.0, %v1414
      %v1416 = vpop.f32.mrb[0].mxu0
      %1417 = vdwg.mxu0
      %1418 = vmatprep.subr.mxu0 0.0
      %1419 = vmatpush1.msra.mxu0 %v474
      %1420 = vmatprep.subr.mxu0 0.0
      %1421 = vmatpush1.msra.mxu0 %v475
      %1422 = vmatprep.subr.mxu0 0.0
      %1423 = vmatpush1.msra.mxu0 %v476
      %1424 = vmatprep.subr.mxu0 0.0
      %1425 = vmatpush1.msra.mxu0 %v477
      %1426 = vmatprep.subr.mxu0 0.0
      %1427 = vmatpush1.msra.mxu0 %v478
      %1428 = vmatprep.subr.mxu0 0.0
      %1429 = vmatpush1.msra.mxu0 %v479
      %1430 = vmatprep.subr.mxu0 0.0
      %1431 = vmatpush1.msra.mxu0 %v480
      %1432 = vmatprep.subr.mxu0 0.0
      %1433 = vmatpush1.msra.mxu0 %v481
      %1434 = vmatprep.subr.mxu0 0.0
      %1435 = vmatpush1.msra.mxu0 %v482
      %1436 = vmatprep.subr.mxu0 0.0
      %1437 = vmatpush1.msra.mxu0 %v483
      %1438 = vmatprep.subr.mxu0 0.0
      %1439 = vmatpush1.msra.mxu0 %v484
      %1440 = vmatprep.subr.mxu0 0.0
      %1441 = vmatpush1.msra.mxu0 %v485
      %1442 = vmatprep.subr.mxu0 0.0
      %1443 = vmatpush1.msra.mxu0 %v486
      %1444 = vmatprep.subr.mxu0 0.0
      %1445 = vmatpush1.msra.mxu0 %v487
      %1446 = vmatprep.subr.mxu0 0.0
      %1447 = vmatpush1.msra.mxu0 %v488
      %1448 = vmatprep.subr.mxu0 0.0
      %1449 = vmatpush1.msra.mxu0 %v489
      %1450 = vmatprep.subr.mxu0 0.0
      %1451 = vmatpush1.msra.mxu0 0.0
      %1452 = vmatprep.subr.mxu0 0.0
      %1453 = vmatpush1.msra.mxu0 0.0
      %1454 = vmatprep.subr.mxu0 0.0
      %1455 = vmatpush1.msra.mxu0 0.0
      %1456 = vmatprep.subr.mxu0 0.0
      %1457 = vmatpush1.msra.mxu0 0.0
      %1458 = vmatprep.subr.mxu0 0.0
      %1459 = vmatpush1.msra.mxu0 0.0
      %1460 = vmatprep.subr.mxu0 0.0
      %1461 = vmatpush1.msra.mxu0 0.0
      %1462 = vmatprep.subr.mxu0 0.0
      %1463 = vmatpush1.msra.mxu0 0.0
      %1464 = vmatprep.subr.mxu0 0.0
      %1465 = vmatpush1.msra.mxu0 0.0
      %1466 = vmatprep.subr.mxu0 0.0
      %1467 = vmatpush1.msra.mxu0 0.0
      %1468 = vmatprep.subr.mxu0 0.0
      %1469 = vmatpush1.msra.mxu0 0.0
      %1470 = vmatprep.subr.mxu0 0.0
      %1471 = vmatpush1.msra.mxu0 0.0
      %1472 = vmatprep.subr.mxu0 0.0
      %1473 = vmatpush1.msra.mxu0 0.0
      %1474 = vmatprep.subr.mxu0 0.0
      %1475 = vmatpush1.msra.mxu0 0.0
      %1476 = vmatprep.subr.mxu0 0.0
      %1477 = vmatpush1.msra.mxu0 0.0
      %1478 = vmatprep.subr.mxu0 0.0
      %1479 = vmatpush1.msra.mxu0 0.0
      %1480 = vmatprep.subr.mxu0 0.0
      %1481 = vmatpush1.msra.mxu0 0.0
      %1482 = vmatprep.mubr.f32.mxu0 0.0
      %1483 = vmatmul.mubr.f32.gmra.mrb[0].mxu0 %v322
      %v1484 = vpop.f32.mrb[0].mxu0
      %v1485 = vadd.f32 0.0, %v1484
      %v1486 = vpop.f32.mrb[0].mxu0
      %1487 = vdwg.mxu0
      %1488 = vmatprep.subr.mxu0 0.0
      %1489 = vmatpush1.msra.mxu0 %v490
      %1490 = vmatprep.subr.mxu0 0.0
      %1491 = vmatpush1.msra.mxu0 %v491
      %1492 = vmatprep.subr.mxu0 0.0
      %1493 = vmatpush1.msra.mxu0 %v492
      %1494 = vmatprep.subr.mxu0 0.0
      %1495 = vmatpush1.msra.mxu0 %v493
      %1496 = vmatprep.subr.mxu0 0.0
      %1497 = vmatpush1.msra.mxu0 %v494
      %1498 = vmatprep.subr.mxu0 0.0
      %1499 = vmatpush1.msra.mxu0 %v495
      %1500 = vmatprep.subr.mxu0 0.0
      %1501 = vmatpush1.msra.mxu0 %v496
      %1502 = vmatprep.subr.mxu0 0.0
      %1503 = vmatpush1.msra.mxu0 %v497
      %1504 = vmatprep.subr.mxu0 0.0
      %1505 = vmatpush1.msra.mxu0 %v498
      %1506 = vmatprep.subr.mxu0 0.0
      %1507 = vmatpush1.msra.mxu0 %v499
      %1508 = vmatprep.subr.mxu0 0.0
      %1509 = vmatpush1.msra.mxu0 %v500
      %1510 = vmatprep.subr.mxu0 0.0
      %1511 = vmatpush1.msra.mxu0 %v501
      %1512 = vmatprep.subr.mxu0 0.0
      %1513 = vmatpush1.msra.mxu0 %v502
      %1514 = vmatprep.subr.mxu0 0.0
      %1515 = vmatpush1.msra.mxu0 %v503
      %1516 = vmatprep.subr.mxu0 0.0
      %1517 = vmatpush1.msra.mxu0 %v504
      %1518 = vmatprep.subr.mxu0 0.0
      %1519 = vmatpush1.msra.mxu0 %v505
      %1520 = vmatprep.subr.mxu0 0.0
      %1521 = vmatpush1.msra.mxu0 0.0
      %1522 = vmatprep.subr.mxu0 0.0
      %1523 = vmatpush1.msra.mxu0 0.0
      %1524 = vmatprep.subr.mxu0 0.0
      %1525 = vmatpush1.msra.mxu0 0.0
      %1526 = vmatprep.subr.mxu0 0.0
      %1527 = vmatpush1.msra.mxu0 0.0
      %1528 = vmatprep.subr.mxu0 0.0
      %1529 = vmatpush1.msra.mxu0 0.0
      %1530 = vmatprep.subr.mxu0 0.0
      %1531 = vmatpush1.msra.mxu0 0.0
      %1532 = vmatprep.subr.mxu0 0.0
      %1533 = vmatpush1.msra.mxu0 0.0
      %1534 = vmatprep.subr.mxu0 0.0
      %1535 = vmatpush1.msra.mxu0 0.0
      %1536 = vmatprep.subr.mxu0 0.0
      %1537 = vmatpush1.msra.mxu0 0.0
      %1538 = vmatprep.subr.mxu0 0.0
      %1539 = vmatpush1.msra.mxu0 0.0
      %1540 = vmatprep.subr.mxu0 0.0
      %1541 = vmatpush1.msra.mxu0 0.0
      %1542 = vmatprep.subr.mxu0 0.0
      %1543 = vmatpush1.msra.mxu0 0.0
      %1544 = vmatprep.subr.mxu0 0.0
      %1545 = vmatpush1.msra.mxu0 0.0
      %1546 = vmatprep.subr.mxu0 0.0
      %1547 = vmatpush1.msra.mxu0 0.0
      %1548 = vmatprep.subr.mxu0 0.0
      %1549 = vmatpush1.msra.mxu0 0.0
      %1550 = vmatprep.subr.mxu0 0.0
      %1551 = vmatpush1.msra.mxu0 0.0
      %1552 = vmatprep.mubr.f32.mxu0 0.0
      %1553 = vmatmul.mubr.f32.gmra.mrb[0].mxu0 %v323
      %v1554 = vpop.f32.mrb[0].mxu0
      %v1555 = vadd.f32 0.0, %v1554
      %v1556 = vpop.f32.mrb[0].mxu0
      %1557 = vdwg.mxu0
      %1558 = vmatprep.subr.mxu0 0.0
      %1559 = vmatpush1.msra.mxu0 %v506
      %1560 = vmatprep.subr.mxu0 0.0
      %1561 = vmatpush1.msra.mxu0 %v507
      %1562 = vmatprep.subr.mxu0 0.0
      %1563 = vmatpush1.msra.mxu0 %v508
      %1564 = vmatprep.subr.mxu0 0.0
      %1565 = vmatpush1.msra.mxu0 %v509
      %1566 = vmatprep.subr.mxu0 0.0
      %1567 = vmatpush1.msra.mxu0 %v510
      %1568 = vmatprep.subr.mxu0 0.0
      %1569 = vmatpush1.msra.mxu0 %v511
      %1570 = vmatprep.subr.mxu0 0.0
      %1571 = vmatpush1.msra.mxu0 %v512
      %1572 = vmatprep.subr.mxu0 0.0
      %1573 = vmatpush1.msra.mxu0 %v513
      %1574 = vmatprep.subr.mxu0 0.0
      %1575 = vmatpush1.msra.mxu0 %v514
      %1576 = vmatprep.subr.mxu0 0.0
      %1577 = vmatpush1.msra.mxu0 %v515
      %1578 = vmatprep.subr.mxu0 0.0
      %1579 = vmatpush1.msra.mxu0 %v516
      %1580 = vmatprep.subr.mxu0 0.0
      %1581 = vmatpush1.msra.mxu0 %v517
      %1582 = vmatprep.subr.mxu0 0.0
      %1583 = vmatpush1.msra.mxu0 %v518
      %1584 = vmatprep.subr.mxu0 0.0
      %1585 = vmatpush1.msra.mxu0 %v519
      %1586 = vmatprep.subr.mxu0 0.0
      %1587 = vmatpush1.msra.mxu0 %v520
      %1588 = vmatprep.subr.mxu0 0.0
      %1589 = vmatpush1.msra.mxu0 %v521
      %1590 = vmatprep.subr.mxu0 0.0
      %1591 = vmatpush1.msra.mxu0 0.0
      %1592 = vmatprep.subr.mxu0 0.0
      %1593 = vmatpush1.msra.mxu0 0.0
      %1594 = vmatprep.subr.mxu0 0.0
      %1595 = vmatpush1.msra.mxu0 0.0
      %1596 = vmatprep.subr.mxu0 0.0
      %1597 = vmatpush1.msra.mxu0 0.0
      %1598 = vmatprep.subr.mxu0 0.0
      %1599 = vmatpush1.msra.mxu0 0.0
      %1600 = vmatprep.subr.mxu0 0.0
      %1601 = vmatpush1.msra.mxu0 0.0
      %1602 = vmatprep.subr.mxu0 0.0
      %1603 = vmatpush1.msra.mxu0 0.0
      %1604 = vmatprep.subr.mxu0 0.0
      %1605 = vmatpush1.msra.mxu0 0.0
      %1606 = vmatprep.subr.mxu0 0.0
      %1607 = vmatpush1.msra.mxu0 0.0
      %1608 = vmatprep.subr.mxu0 0.0
      %1609 = vmatpush1.msra.mxu0 0.0
      %1610 = vmatprep.subr.mxu0 0.0
      %1611 = vmatpush1.msra.mxu0 0.0
      %1612 = vmatprep.subr.mxu0 0.0
      %1613 = vmatpush1.msra.mxu0 0.0
      %1614 = vmatprep.subr.mxu0 0.0
      %1615 = vmatpush1.msra.mxu0 0.0
      %1616 = vmatprep.subr.mxu0 0.0
      %1617 = vmatpush1.msra.mxu0 0.0
      %1618 = vmatprep.subr.mxu0 0.0
      %1619 = vmatpush1.msra.mxu0 0.0
      %1620 = vmatprep.subr.mxu0 0.0
      %1621 = vmatpush1.msra.mxu0 0.0
      %1622 = vmatprep.mubr.f32.mxu0 0.0
      %1623 = vmatmul.mubr.f32.gmra.mrb[0].mxu0 %v324
      %v1624 = vpop.f32.mrb[0].mxu0
      %v1625 = vadd.f32 0.0, %v1624
      %v1626 = vpop.f32.mrb[0].mxu0
      %1627 = vdwg.mxu0
      %1628 = vmatprep.subr.mxu0 0.0
      %1629 = vmatpush1.msra.mxu0 %v522
      %1630 = vmatprep.subr.mxu0 0.0
      %1631 = vmatpush1.msra.mxu0 %v523
      %1632 = vmatprep.subr.mxu0 0.0
      %1633 = vmatpush1.msra.mxu0 %v524
      %1634 = vmatprep.subr.mxu0 0.0
      %1635 = vmatpush1.msra.mxu0 %v525
      %1636 = vmatprep.subr.mxu0 0.0
      %1637 = vmatpush1.msra.mxu0 %v526
      %1638 = vmatprep.subr.mxu0 0.0
      %1639 = vmatpush1.msra.mxu0 %v527
      %1640 = vmatprep.subr.mxu0 0.0
      %1641 = vmatpush1.msra.mxu0 %v528
      %1642 = vmatprep.subr.mxu0 0.0
      %1643 = vmatpush1.msra.mxu0 %v529
      %1644 = vmatprep.subr.mxu0 0.0
      %1645 = vmatpush1.msra.mxu0 %v530
      %1646 = vmatprep.subr.mxu0 0.0
      %1647 = vmatpush1.msra.mxu0 %v531
      %1648 = vmatprep.subr.mxu0 0.0
      %1649 = vmatpush1.msra.mxu0 %v532
      %1650 = vmatprep.subr.mxu0 0.0
      %1651 = vmatpush1.msra.mxu0 %v533
      %1652 = vmatprep.subr.mxu0 0.0
      %1653 = vmatpush1.msra.mxu0 %v534
      %1654 = vmatprep.subr.mxu0 0.0
      %1655 = vmatpush1.msra.mxu0 %v535
      %1656 = vmatprep.subr.mxu0 0.0
      %1657 = vmatpush1.msra.mxu0 %v536
      %1658 = vmatprep.subr.mxu0 0.0
      %1659 = vmatpush1.msra.mxu0 %v537
      %1660 = vmatprep.subr.mxu0 0.0
      %1661 = vmatpush1.msra.mxu0 0.0
      %1662 = vmatprep.subr.mxu0 0.0
      %1663 = vmatpush1.msra.mxu0 0.0
      %1664 = vmatprep.subr.mxu0 0.0
      %1665 = vmatpush1.msra.mxu0 0.0
      %1666 = vmatprep.subr.mxu0 0.0
      %1667 = vmatpush1.msra.mxu0 0.0
      %1668 = vmatprep.subr.mxu0 0.0
      %1669 = vmatpush1.msra.mxu0 0.0
      %1670 = vmatprep.subr.mxu0 0.0
      %1671 = vmatpush1.msra.mxu0 0.0
      %1672 = vmatprep.subr.mxu0 0.0
      %1673 = vmatpush1.msra.mxu0 0.0
      %1674 = vmatprep.subr.mxu0 0.0
      %1675 = vmatpush1.msra.mxu0 0.0
      %1676 = vmatprep.subr.mxu0 0.0
      %1677 = vmatpush1.msra.mxu0 0.0
      %1678 = vmatprep.subr.mxu0 0.0
      %1679 = vmatpush1.msra.mxu0 0.0
      %1680 = vmatprep.subr.mxu0 0.0
      %1681 = vmatpush1.msra.mxu0 0.0
      %1682 = vmatprep.subr.mxu0 0.0
      %1683 = vmatpush1.msra.mxu0 0.0
      %1684 = vmatprep.subr.mxu0 0.0
      %1685 = vmatpush1.msra.mxu0 0.0
      %1686 = vmatprep.subr.mxu0 0.0
      %1687 = vmatpush1.msra.mxu0 0.0
      %1688 = vmatprep.subr.mxu0 0.0
      %1689 = vmatpush1.msra.mxu0 0.0
      %1690 = vmatprep.subr.mxu0 0.0
      %1691 = vmatpush1.msra.mxu0 0.0
      %1692 = vmatprep.mubr.f32.mxu0 0.0
      %1693 = vmatmul.mubr.f32.gmra.mrb[0].mxu0 %v325
      %v1694 = vpop.f32.mrb[0].mxu0
      %v1695 = vadd.f32 0.0, %v1694
      %v1696 = vpop.f32.mrb[0].mxu0
      %1697 = vdwg.mxu0
      %1698 = vmatprep.subr.mxu0 0.0
      %1699 = vmatpush1.msra.mxu0 %v538
      %1700 = vmatprep.subr.mxu0 0.0
      %1701 = vmatpush1.msra.mxu0 %v539
      %1702 = vmatprep.subr.mxu0 0.0
      %1703 = vmatpush1.msra.mxu0 %v540
      %1704 = vmatprep.subr.mxu0 0.0
      %1705 = vmatpush1.msra.mxu0 %v541
      %1706 = vmatprep.subr.mxu0 0.0
      %1707 = vmatpush1.msra.mxu0 %v542
      %1708 = vmatprep.subr.mxu0 0.0
      %1709 = vmatpush1.msra.mxu0 %v543
      %1710 = vmatprep.subr.mxu0 0.0
      %1711 = vmatpush1.msra.mxu0 %v544
      %1712 = vmatprep.subr.mxu0 0.0
      %1713 = vmatpush1.msra.mxu0 %v545
      %1714 = vmatprep.subr.mxu0 0.0
      %1715 = vmatpush1.msra.mxu0 %v546
      %1716 = vmatprep.subr.mxu0 0.0
      %1717 = vmatpush1.msra.mxu0 %v547
      %1718 = vmatprep.subr.mxu0 0.0
      %1719 = vmatpush1.msra.mxu0 %v548
      %1720 = vmatprep.subr.mxu0 0.0
      %1721 = vmatpush1.msra.mxu0 %v549
      %1722 = vmatprep.subr.mxu0 0.0
      %1723 = vmatpush1.msra.mxu0 %v550
      %1724 = vmatprep.subr.mxu0 0.0
      %1725 = vmatpush1.msra.mxu0 %v551
      %1726 = vmatprep.subr.mxu0 0.0
      %1727 = vmatpush1.msra.mxu0 %v552
      %1728 = vmatprep.subr.mxu0 0.0
      %1729 = vmatpush1.msra.mxu0 %v553
      %1730 = vmatprep.subr.mxu0 0.0
      %1731 = vmatpush1.msra.mxu0 0.0
      %1732 = vmatprep.subr.mxu0 0.0
      %1733 = vmatpush1.msra.mxu0 0.0
      %1734 = vmatprep.subr.mxu0 0.0
      %1735 = vmatpush1.msra.mxu0 0.0
      %1736 = vmatprep.subr.mxu0 0.0
      %1737 = vmatpush1.msra.mxu0 0.0
      %1738 = vmatprep.subr.mxu0 0.0
      %1739 = vmatpush1.msra.mxu0 0.0
      %1740 = vmatprep.subr.mxu0 0.0
      %1741 = vmatpush1.msra.mxu0 0.0
      %1742 = vmatprep.subr.mxu0 0.0
      %1743 = vmatpush1.msra.mxu0 0.0
      %1744 = vmatprep.subr.mxu0 0.0
      %1745 = vmatpush1.msra.mxu0 0.0
      %1746 = vmatprep.subr.mxu0 0.0
      %1747 = vmatpush1.msra.mxu0 0.0
      %1748 = vmatprep.subr.mxu0 0.0
      %1749 = vmatpush1.msra.mxu0 0.0
      %1750 = vmatprep.subr.mxu0 0.0
      %1751 = vmatpush1.msra.mxu0 0.0
      %1752 = vmatprep.subr.mxu0 0.0
      %1753 = vmatpush1.msra.mxu0 0.0
      %1754 = vmatprep.subr.mxu0 0.0
      %1755 = vmatpush1.msra.mxu0 0.0
      %1756 = vmatprep.subr.mxu0 0.0
      %1757 = vmatpush1.msra.mxu0 0.0
      %1758 = vmatprep.subr.mxu0 0.0
      %1759 = vmatpush1.msra.mxu0 0.0
      %1760 = vmatprep.subr.mxu0 0.0
      %1761 = vmatpush1.msra.mxu0 0.0
      %1762 = vmatprep.mubr.f32.mxu0 0.0
      %1763 = vmatmul.mubr.f32.gmra.mrb[0].mxu0 %v326
      %v1764 = vpop.f32.mrb[0].mxu0
      %v1765 = vadd.f32 0.0, %v1764
      %v1766 = vpop.f32.mrb[0].mxu0
      %1767 = vdwg.mxu0
      %1768 = vmatprep.subr.mxu0 0.0
      %1769 = vmatpush1.msra.mxu0 %v554
      %1770 = vmatprep.subr.mxu0 0.0
      %1771 = vmatpush1.msra.mxu0 %v555
      %1772 = vmatprep.subr.mxu0 0.0
      %1773 = vmatpush1.msra.mxu0 %v556
      %1774 = vmatprep.subr.mxu0 0.0
      %1775 = vmatpush1.msra.mxu0 %v557
      %1776 = vmatprep.subr.mxu0 0.0
      %1777 = vmatpush1.msra.mxu0 %v558
      %1778 = vmatprep.subr.mxu0 0.0
      %1779 = vmatpush1.msra.mxu0 %v559
      %1780 = vmatprep.subr.mxu0 0.0
      %1781 = vmatpush1.msra.mxu0 %v560
      %1782 = vmatprep.subr.mxu0 0.0
      %1783 = vmatpush1.msra.mxu0 %v561
      %1784 = vmatprep.subr.mxu0 0.0
      %1785 = vmatpush1.msra.mxu0 %v562
      %1786 = vmatprep.subr.mxu0 0.0
      %1787 = vmatpush1.msra.mxu0 %v563
      %1788 = vmatprep.subr.mxu0 0.0
      %1789 = vmatpush1.msra.mxu0 %v564
      %1790 = vmatprep.subr.mxu0 0.0
      %1791 = vmatpush1.msra.mxu0 %v565
      %1792 = vmatprep.subr.mxu0 0.0
      %1793 = vmatpush1.msra.mxu0 %v566
      %1794 = vmatprep.subr.mxu0 0.0
      %1795 = vmatpush1.msra.mxu0 %v567
      %1796 = vmatprep.subr.mxu0 0.0
      %1797 = vmatpush1.msra.mxu0 %v568
      %1798 = vmatprep.subr.mxu0 0.0
      %1799 = vmatpush1.msra.mxu0 %v569
      %1800 = vmatprep.subr.mxu0 0.0
      %1801 = vmatpush1.msra.mxu0 0.0
      %1802 = vmatprep.subr.mxu0 0.0
      %1803 = vmatpush1.msra.mxu0 0.0
      %1804 = vmatprep.subr.mxu0 0.0
      %1805 = vmatpush1.msra.mxu0 0.0
      %1806 = vmatprep.subr.mxu0 0.0
      %1807 = vmatpush1.msra.mxu0 0.0
      %1808 = vmatprep.subr.mxu0 0.0
      %1809 = vmatpush1.msra.mxu0 0.0
      %1810 = vmatprep.subr.mxu0 0.0
      %1811 = vmatpush1.msra.mxu0 0.0
      %1812 = vmatprep.subr.mxu0 0.0
      %1813 = vmatpush1.msra.mxu0 0.0
      %1814 = vmatprep.subr.mxu0 0.0
      %1815 = vmatpush1.msra.mxu0 0.0
      %1816 = vmatprep.subr.mxu0 0.0
      %1817 = vmatpush1.msra.mxu0 0.0
      %1818 = vmatprep.subr.mxu0 0.0
      %1819 = vmatpush1.msra.mxu0 0.0
      %1820 = vmatprep.subr.mxu0 0.0
      %1821 = vmatpush1.msra.mxu0 0.0
      %1822 = vmatprep.subr.mxu0 0.0
      %1823 = vmatpush1.msra.mxu0 0.0
      %1824 = vmatprep.subr.mxu0 0.0
      %1825 = vmatpush1.msra.mxu0 0.0
      %1826 = vmatprep.subr.mxu0 0.0
      %1827 = vmatpush1.msra.mxu0 0.0
      %1828 = vmatprep.subr.mxu0 0.0
      %1829 = vmatpush1.msra.mxu0 0.0
      %1830 = vmatprep.subr.mxu0 0.0
      %1831 = vmatpush1.msra.mxu0 0.0
      %1832 = vmatprep.mubr.f32.mxu0 0.0
      %1833 = vmatmul.mubr.f32.gmra.mrb[0].mxu0 %v327
      %v1834 = vpop.f32.mrb[0].mxu0
      %v1835 = vadd.f32 0.0, %v1834
      %v1836 = vpop.f32.mrb[0].mxu0
      %1837 = vdwg.mxu0
      %1838 = vmatprep.subr.mxu0 0.0
      %1839 = vmatpush1.msra.mxu0 %v570
      %1840 = vmatprep.subr.mxu0 0.0
      %1841 = vmatpush1.msra.mxu0 %v571
      %1842 = vmatprep.subr.mxu0 0.0
      %1843 = vmatpush1.msra.mxu0 %v572
      %1844 = vmatprep.subr.mxu0 0.0
      %1845 = vmatpush1.msra.mxu0 %v573
      %1846 = vmatprep.subr.mxu0 0.0
      %1847 = vmatpush1.msra.mxu0 %v574
      %1848 = vmatprep.subr.mxu0 0.0
      %1849 = vmatpush1.msra.mxu0 %v575
      %1850 = vmatprep.subr.mxu0 0.0
      %1851 = vmatpush1.msra.mxu0 %v576
      %1852 = vmatprep.subr.mxu0 0.0
      %1853 = vmatpush1.msra.mxu0 %v577
      %1854 = vmatprep.subr.mxu0 0.0
      %1855 = vmatpush1.msra.mxu0 %v578
      %1856 = vmatprep.subr.mxu0 0.0
      %1857 = vmatpush1.msra.mxu0 %v579
      %1858 = vmatprep.subr.mxu0 0.0
      %1859 = vmatpush1.msra.mxu0 %v580
      %1860 = vmatprep.subr.mxu0 0.0
      %1861 = vmatpush1.msra.mxu0 %v581
      %1862 = vmatprep.subr.mxu0 0.0
      %1863 = vmatpush1.msra.mxu0 %v582
      %1864 = vmatprep.subr.mxu0 0.0
      %1865 = vmatpush1.msra.mxu0 %v583
      %1866 = vmatprep.subr.mxu0 0.0
      %1867 = vmatpush1.msra.mxu0 %v584
      %1868 = vmatprep.subr.mxu0 0.0
      %1869 = vmatpush1.msra.mxu0 %v585
      %1870 = vmatprep.subr.mxu0 0.0
      %1871 = vmatpush1.msra.mxu0 0.0
      %1872 = vmatprep.subr.mxu0 0.0
      %1873 = vmatpush1.msra.mxu0 0.0
      %1874 = vmatprep.subr.mxu0 0.0
      %1875 = vmatpush1.msra.mxu0 0.0
      %1876 = vmatprep.subr.mxu0 0.0
      %1877 = vmatpush1.msra.mxu0 0.0
      %1878 = vmatprep.subr.mxu0 0.0
      %1879 = vmatpush1.msra.mxu0 0.0
      %1880 = vmatprep.subr.mxu0 0.0
      %1881 = vmatpush1.msra.mxu0 0.0
      %1882 = vmatprep.subr.mxu0 0.0
      %1883 = vmatpush1.msra.mxu0 0.0
      %1884 = vmatprep.subr.mxu0 0.0
      %1885 = vmatpush1.msra.mxu0 0.0
      %1886 = vmatprep.subr.mxu0 0.0
      %1887 = vmatpush1.msra.mxu0 0.0
      %1888 = vmatprep.subr.mxu0 0.0
      %1889 = vmatpush1.msra.mxu0 0.0
      %1890 = vmatprep.subr.mxu0 0.0
      %1891 = vmatpush1.msra.mxu0 0.0
      %1892 = vmatprep.subr.mxu0 0.0
      %1893 = vmatpush1.msra.mxu0 0.0
      %1894 = vmatprep.subr.mxu0 0.0
      %1895 = vmatpush1.msra.mxu0 0.0
      %1896 = vmatprep.subr.mxu0 0.0
      %1897 = vmatpush1.msra.mxu0 0.0
      %1898 = vmatprep.subr.mxu0 0.0
      %1899 = vmatpush1.msra.mxu0 0.0
      %1900 = vmatprep.subr.mxu0 0.0
      %1901 = vmatpush1.msra.mxu0 0.0
      %1902 = vmatprep.mubr.f32.mxu0 0.0
      %1903 = vmatmul.mubr.f32.gmra.mrb[0].mxu0 %v328
      %v1904 = vpop.f32.mrb[0].mxu0
      %v1905 = vadd.f32 0.0, %v1904
      %v1906 = vpop.f32.mrb[0].mxu0
      %1907 = vdwg.mxu0
      %1908 = vmatprep.subr.mxu0 0.0
      %1909 = vmatpush1.msra.mxu0 %v586
      %1910 = vmatprep.subr.mxu0 0.0
      %1911 = vmatpush1.msra.mxu0 %v587
      %1912 = vmatprep.subr.mxu0 0.0
      %1913 = vmatpush1.msra.mxu0 %v588
      %1914 = vmatprep.subr.mxu0 0.0
      %1915 = vmatpush1.msra.mxu0 %v589
      %1916 = vmatprep.subr.mxu0 0.0
      %1917 = vmatpush1.msra.mxu0 %v590
      %1918 = vmatprep.subr.mxu0 0.0
      %1919 = vmatpush1.msra.mxu0 %v591
      %1920 = vmatprep.subr.mxu0 0.0
      %1921 = vmatpush1.msra.mxu0 %v592
      %1922 = vmatprep.subr.mxu0 0.0
      %1923 = vmatpush1.msra.mxu0 %v593
      %1924 = vmatprep.subr.mxu0 0.0
      %1925 = vmatpush1.msra.mxu0 %v594
      %1926 = vmatprep.subr.mxu0 0.0
      %1927 = vmatpush1.msra.mxu0 %v595
      %1928 = vmatprep.subr.mxu0 0.0
      %1929 = vmatpush1.msra.mxu0 %v596
      %1930 = vmatprep.subr.mxu0 0.0
      %1931 = vmatpush1.msra.mxu0 %v597
      %1932 = vmatprep.subr.mxu0 0.0
      %1933 = vmatpush1.msra.mxu0 %v598
      %1934 = vmatprep.subr.mxu0 0.0
      %1935 = vmatpush1.msra.mxu0 %v599
      %1936 = vmatprep.subr.mxu0 0.0
      %1937 = vmatpush1.msra.mxu0 %v600
      %1938 = vmatprep.subr.mxu0 0.0
      %1939 = vmatpush1.msra.mxu0 %v601
      %1940 = vmatprep.subr.mxu0 0.0
      %1941 = vmatpush1.msra.mxu0 0.0
      %1942 = vmatprep.subr.mxu0 0.0
      %1943 = vmatpush1.msra.mxu0 0.0
      %1944 = vmatprep.subr.mxu0 0.0
      %1945 = vmatpush1.msra.mxu0 0.0
      %1946 = vmatprep.subr.mxu0 0.0
      %1947 = vmatpush1.msra.mxu0 0.0
      %1948 = vmatprep.subr.mxu0 0.0
      %1949 = vmatpush1.msra.mxu0 0.0
      %1950 = vmatprep.subr.mxu0 0.0
      %1951 = vmatpush1.msra.mxu0 0.0
      %1952 = vmatprep.subr.mxu0 0.0
      %1953 = vmatpush1.msra.mxu0 0.0
      %1954 = vmatprep.subr.mxu0 0.0
      %1955 = vmatpush1.msra.mxu0 0.0
      %1956 = vmatprep.subr.mxu0 0.0
      %1957 = vmatpush1.msra.mxu0 0.0
      %1958 = vmatprep.subr.mxu0 0.0
      %1959 = vmatpush1.msra.mxu0 0.0
      %1960 = vmatprep.subr.mxu0 0.0
      %1961 = vmatpush1.msra.mxu0 0.0
      %1962 = vmatprep.subr.mxu0 0.0
      %1963 = vmatpush1.msra.mxu0 0.0
      %1964 = vmatprep.subr.mxu0 0.0
      %1965 = vmatpush1.msra.mxu0 0.0
      %1966 = vmatprep.subr.mxu0 0.0
      %1967 = vmatpush1.msra.mxu0 0.0
      %1968 = vmatprep.subr.mxu0 0.0
      %1969 = vmatpush1.msra.mxu0 0.0
      %1970 = vmatprep.subr.mxu0 0.0
      %1971 = vmatpush1.msra.mxu0 0.0
      %1972 = vmatprep.mubr.f32.mxu0 0.0
      %1973 = vmatmul.mubr.f32.gmra.mrb[0].mxu0 %v329
      %v1974 = vpop.f32.mrb[0].mxu0
      %v1975 = vadd.f32 0.0, %v1974
      %v1976 = vpop.f32.mrb[0].mxu0
      %1977 = vdwg.mxu0
      %1978 = vmatprep.subr.mxu0 0.0
      %1979 = vmatpush1.msra.mxu0 %v602
      %1980 = vmatprep.subr.mxu0 0.0
      %1981 = vmatpush1.msra.mxu0 %v603
      %1982 = vmatprep.subr.mxu0 0.0
      %1983 = vmatpush1.msra.mxu0 %v604
      %1984 = vmatprep.subr.mxu0 0.0
      %1985 = vmatpush1.msra.mxu0 %v605
      %1986 = vmatprep.subr.mxu0 0.0
      %1987 = vmatpush1.msra.mxu0 %v606
      %1988 = vmatprep.subr.mxu0 0.0
      %1989 = vmatpush1.msra.mxu0 %v607
      %1990 = vmatprep.subr.mxu0 0.0
      %1991 = vmatpush1.msra.mxu0 %v608
      %1992 = vmatprep.subr.mxu0 0.0
      %1993 = vmatpush1.msra.mxu0 %v609
      %1994 = vmatprep.subr.mxu0 0.0
      %1995 = vmatpush1.msra.mxu0 %v610
      %1996 = vmatprep.subr.mxu0 0.0
      %1997 = vmatpush1.msra.mxu0 %v611
      %1998 = vmatprep.subr.mxu0 0.0
      %1999 = vmatpush1.msra.mxu0 %v612
      %2000 = vmatprep.subr.mxu0 0.0
      %2001 = vmatpush1.msra.mxu0 %v613
      %2002 = vmatprep.subr.mxu0 0.0
      %2003 = vmatpush1.msra.mxu0 %v614
      %2004 = vmatprep.subr.mxu0 0.0
      %2005 = vmatpush1.msra.mxu0 %v615
      %2006 = vmatprep.subr.mxu0 0.0
      %2007 = vmatpush1.msra.mxu0 %v616
      %2008 = vmatprep.subr.mxu0 0.0
      %2009 = vmatpush1.msra.mxu0 %v617
      %2010 = vmatprep.subr.mxu0 0.0
      %2011 = vmatpush1.msra.mxu0 0.0
      %2012 = vmatprep.subr.mxu0 0.0
      %2013 = vmatpush1.msra.mxu0 0.0
      %2014 = vmatprep.subr.mxu0 0.0
      %2015 = vmatpush1.msra.mxu0 0.0
      %2016 = vmatprep.subr.mxu0 0.0
      %2017 = vmatpush1.msra.mxu0 0.0
      %2018 = vmatprep.subr.mxu0 0.0
      %2019 = vmatpush1.msra.mxu0 0.0
      %2020 = vmatprep.subr.mxu0 0.0
      %2021 = vmatpush1.msra.mxu0 0.0
      %2022 = vmatprep.subr.mxu0 0.0
      %2023 = vmatpush1.msra.mxu0 0.0
      %2024 = vmatprep.subr.mxu0 0.0
      %2025 = vmatpush1.msra.mxu0 0.0
      %2026 = vmatprep.subr.mxu0 0.0
      %2027 = vmatpush1.msra.mxu0 0.0
      %2028 = vmatprep.subr.mxu0 0.0
      %2029 = vmatpush1.msra.mxu0 0.0
      %2030 = vmatprep.subr.mxu0 0.0
      %2031 = vmatpush1.msra.mxu0 0.0
      %2032 = vmatprep.subr.mxu0 0.0
      %2033 = vmatpush1.msra.mxu0 0.0
      %2034 = vmatprep.subr.mxu0 0.0
      %2035 = vmatpush1.msra.mxu0 0.0
      %2036 = vmatprep.subr.mxu0 0.0
      %2037 = vmatpush1.msra.mxu0 0.0
      %2038 = vmatprep.subr.mxu0 0.0
      %2039 = vmatpush1.msra.mxu0 0.0
      %2040 = vmatprep.subr.mxu0 0.0
      %2041 = vmatpush1.msra.mxu0 0.0
      %2042 = vmatprep.mubr.f32.mxu0 0.0
      %2043 = vmatmul.mubr.f32.gmra.mrb[0].mxu0 %v330
      %v2044 = vpop.f32.mrb[0].mxu0
      %v2045 = vadd.f32 0.0, %v2044
      %v2046 = vpop.f32.mrb[0].mxu0
      %2047 = vdwg.mxu0
      %2048 = vmatprep.subr.mxu0 0.0
      %2049 = vmatpush1.msra.mxu0 %v618
      %2050 = vmatprep.subr.mxu0 0.0
      %2051 = vmatpush1.msra.mxu0 %v619
      %2052 = vmatprep.subr.mxu0 0.0
      %2053 = vmatpush1.msra.mxu0 %v620
      %2054 = vmatprep.subr.mxu0 0.0
      %2055 = vmatpush1.msra.mxu0 %v621
      %2056 = vmatprep.subr.mxu0 0.0
      %2057 = vmatpush1.msra.mxu0 %v622
      %2058 = vmatprep.subr.mxu0 0.0
      %2059 = vmatpush1.msra.mxu0 %v623
      %2060 = vmatprep.subr.mxu0 0.0
      %2061 = vmatpush1.msra.mxu0 %v624
      %2062 = vmatprep.subr.mxu0 0.0
      %2063 = vmatpush1.msra.mxu0 %v625
      %2064 = vmatprep.subr.mxu0 0.0
      %2065 = vmatpush1.msra.mxu0 %v626
      %2066 = vmatprep.subr.mxu0 0.0
      %2067 = vmatpush1.msra.mxu0 %v627
      %2068 = vmatprep.subr.mxu0 0.0
      %2069 = vmatpush1.msra.mxu0 %v628
      %2070 = vmatprep.subr.mxu0 0.0
      %2071 = vmatpush1.msra.mxu0 %v629
      %2072 = vmatprep.subr.mxu0 0.0
      %2073 = vmatpush1.msra.mxu0 %v630
      %2074 = vmatprep.subr.mxu0 0.0
      %2075 = vmatpush1.msra.mxu0 %v631
      %2076 = vmatprep.subr.mxu0 0.0
      %2077 = vmatpush1.msra.mxu0 %v632
      %2078 = vmatprep.subr.mxu0 0.0
      %2079 = vmatpush1.msra.mxu0 %v633
      %2080 = vmatprep.subr.mxu0 0.0
      %2081 = vmatpush1.msra.mxu0 0.0
      %2082 = vmatprep.subr.mxu0 0.0
      %2083 = vmatpush1.msra.mxu0 0.0
      %2084 = vmatprep.subr.mxu0 0.0
      %2085 = vmatpush1.msra.mxu0 0.0
      %2086 = vmatprep.subr.mxu0 0.0
      %2087 = vmatpush1.msra.mxu0 0.0
      %2088 = vmatprep.subr.mxu0 0.0
      %2089 = vmatpush1.msra.mxu0 0.0
      %2090 = vmatprep.subr.mxu0 0.0
      %2091 = vmatpush1.msra.mxu0 0.0
      %2092 = vmatprep.subr.mxu0 0.0
      %2093 = vmatpush1.msra.mxu0 0.0
      %2094 = vmatprep.subr.mxu0 0.0
      %2095 = vmatpush1.msra.mxu0 0.0
      %2096 = vmatprep.subr.mxu0 0.0
      %2097 = vmatpush1.msra.mxu0 0.0
      %2098 = vmatprep.subr.mxu0 0.0
      %2099 = vmatpush1.msra.mxu0 0.0
      %2100 = vmatprep.subr.mxu0 0.0
      %2101 = vmatpush1.msra.mxu0 0.0
      %2102 = vmatprep.subr.mxu0 0.0
      %2103 = vmatpush1.msra.mxu0 0.0
      %2104 = vmatprep.subr.mxu0 0.0
      %2105 = vmatpush1.msra.mxu0 0.0
      %2106 = vmatprep.subr.mxu0 0.0
      %2107 = vmatpush1.msra.mxu0 0.0
      %2108 = vmatprep.subr.mxu0 0.0
      %2109 = vmatpush1.msra.mxu0 0.0
      %2110 = vmatprep.subr.mxu0 0.0
      %2111 = vmatpush1.msra.mxu0 0.0
      %2112 = vmatprep.mubr.f32.mxu0 0.0
      %2113 = vmatmul.mubr.f32.gmra.mrb[0].mxu0 %v331
      %v2114 = vpop.f32.mrb[0].mxu0
      %v2115 = vadd.f32 0.0, %v2114
      %v2116 = vpop.f32.mrb[0].mxu0
      %2117 = vdwg.mxu0
      %2118 = vmatprep.subr.mxu0 0.0
      %2119 = vmatpush1.msra.mxu0 %v634
      %2120 = vmatprep.subr.mxu0 0.0
      %2121 = vmatpush1.msra.mxu0 %v635
      %2122 = vmatprep.subr.mxu0 0.0
      %2123 = vmatpush1.msra.mxu0 %v636
      %2124 = vmatprep.subr.mxu0 0.0
      %2125 = vmatpush1.msra.mxu0 %v637
      %2126 = vmatprep.subr.mxu0 0.0
      %2127 = vmatpush1.msra.mxu0 %v638
      %2128 = vmatprep.subr.mxu0 0.0
      %2129 = vmatpush1.msra.mxu0 %v639
      %2130 = vmatprep.subr.mxu0 0.0
      %2131 = vmatpush1.msra.mxu0 %v640
      %2132 = vmatprep.subr.mxu0 0.0
      %2133 = vmatpush1.msra.mxu0 %v641
      %2134 = vmatprep.subr.mxu0 0.0
      %2135 = vmatpush1.msra.mxu0 %v642
      %2136 = vmatprep.subr.mxu0 0.0
      %2137 = vmatpush1.msra.mxu0 %v643
      %2138 = vmatprep.subr.mxu0 0.0
      %2139 = vmatpush1.msra.mxu0 %v644
      %2140 = vmatprep.subr.mxu0 0.0
      %2141 = vmatpush1.msra.mxu0 %v645
      %2142 = vmatprep.subr.mxu0 0.0
      %2143 = vmatpush1.msra.mxu0 %v646
      %2144 = vmatprep.subr.mxu0 0.0
      %2145 = vmatpush1.msra.mxu0 %v647
      %2146 = vmatprep.subr.mxu0 0.0
      %2147 = vmatpush1.msra.mxu0 %v648
      %2148 = vmatprep.subr.mxu0 0.0
      %2149 = vmatpush1.msra.mxu0 %v649
      %2150 = vmatprep.subr.mxu0 0.0
      %2151 = vmatpush1.msra.mxu0 0.0
      %2152 = vmatprep.subr.mxu0 0.0
      %2153 = vmatpush1.msra.mxu0 0.0
      %2154 = vmatprep.subr.mxu0 0.0
      %2155 = vmatpush1.msra.mxu0 0.0
      %2156 = vmatprep.subr.mxu0 0.0
      %2157 = vmatpush1.msra.mxu0 0.0
      %2158 = vmatprep.subr.mxu0 0.0
      %2159 = vmatpush1.msra.mxu0 0.0
      %2160 = vmatprep.subr.mxu0 0.0
      %2161 = vmatpush1.msra.mxu0 0.0
      %2162 = vmatprep.subr.mxu0 0.0
      %2163 = vmatpush1.msra.mxu0 0.0
      %2164 = vmatprep.subr.mxu0 0.0
      %2165 = vmatpush1.msra.mxu0 0.0
      %2166 = vmatprep.subr.mxu0 0.0
      %2167 = vmatpush1.msra.mxu0 0.0
      %2168 = vmatprep.subr.mxu0 0.0
      %2169 = vmatpush1.msra.mxu0 0.0
      %2170 = vmatprep.subr.mxu0 0.0
      %2171 = vmatpush1.msra.mxu0 0.0
      %2172 = vmatprep.subr.mxu0 0.0
      %2173 = vmatpush1.msra.mxu0 0.0
      %2174 = vmatprep.subr.mxu0 0.0
      %2175 = vmatpush1.msra.mxu0 0.0
      %2176 = vmatprep.subr.mxu0 0.0
      %2177 = vmatpush1.msra.mxu0 0.0
      %2178 = vmatprep.subr.mxu0 0.0
      %2179 = vmatpush1.msra.mxu0 0.0
      %2180 = vmatprep.subr.mxu0 0.0
      %2181 = vmatpush1.msra.mxu0 0.0
      %2182 = vmatprep.mubr.f32.mxu0 0.0
      %2183 = vmatmul.mubr.f32.gmra.mrb[0].mxu0 %v332
      %v2184 = vpop.f32.mrb[0].mxu0
      %v2185 = vadd.f32 0.0, %v2184
      %v2186 = vpop.f32.mrb[0].mxu0
      %2187 = vdwg.mxu0
      %2188 = vmatprep.subr.mxu0 0.0
      %2189 = vmatpush1.msra.mxu0 %v650
      %2190 = vmatprep.subr.mxu0 0.0
      %2191 = vmatpush1.msra.mxu0 %v651
      %2192 = vmatprep.subr.mxu0 0.0
      %2193 = vmatpush1.msra.mxu0 %v652
      %2194 = vmatprep.subr.mxu0 0.0
      %2195 = vmatpush1.msra.mxu0 %v653
      %2196 = vmatprep.subr.mxu0 0.0
      %2197 = vmatpush1.msra.mxu0 %v654
      %2198 = vmatprep.subr.mxu0 0.0
      %2199 = vmatpush1.msra.mxu0 %v655
      %2200 = vmatprep.subr.mxu0 0.0
      %2201 = vmatpush1.msra.mxu0 %v656
      %2202 = vmatprep.subr.mxu0 0.0
      %2203 = vmatpush1.msra.mxu0 %v657
      %2204 = vmatprep.subr.mxu0 0.0
      %2205 = vmatpush1.msra.mxu0 %v658
      %2206 = vmatprep.subr.mxu0 0.0
      %2207 = vmatpush1.msra.mxu0 %v659
      %2208 = vmatprep.subr.mxu0 0.0
      %2209 = vmatpush1.msra.mxu0 %v660
      %2210 = vmatprep.subr.mxu0 0.0
      %2211 = vmatpush1.msra.mxu0 %v661
      %2212 = vmatprep.subr.mxu0 0.0
      %2213 = vmatpush1.msra.mxu0 %v662
      %2214 = vmatprep.subr.mxu0 0.0
      %2215 = vmatpush1.msra.mxu0 %v663
      %2216 = vmatprep.subr.mxu0 0.0
      %2217 = vmatpush1.msra.mxu0 %v664
      %2218 = vmatprep.subr.mxu0 0.0
      %2219 = vmatpush1.msra.mxu0 %v665
      %2220 = vmatprep.subr.mxu0 0.0
      %2221 = vmatpush1.msra.mxu0 0.0
      %2222 = vmatprep.subr.mxu0 0.0
      %2223 = vmatpush1.msra.mxu0 0.0
      %2224 = vmatprep.subr.mxu0 0.0
      %2225 = vmatpush1.msra.mxu0 0.0
      %2226 = vmatprep.subr.mxu0 0.0
      %2227 = vmatpush1.msra.mxu0 0.0
      %2228 = vmatprep.subr.mxu0 0.0
      %2229 = vmatpush1.msra.mxu0 0.0
      %2230 = vmatprep.subr.mxu0 0.0
      %2231 = vmatpush1.msra.mxu0 0.0
      %2232 = vmatprep.subr.mxu0 0.0
      %2233 = vmatpush1.msra.mxu0 0.0
      %2234 = vmatprep.subr.mxu0 0.0
      %2235 = vmatpush1.msra.mxu0 0.0
      %2236 = vmatprep.subr.mxu0 0.0
      %2237 = vmatpush1.msra.mxu0 0.0
      %2238 = vmatprep.subr.mxu0 0.0
      %2239 = vmatpush1.msra.mxu0 0.0
      %2240 = vmatprep.subr.mxu0 0.0
      %2241 = vmatpush1.msra.mxu0 0.0
      %2242 = vmatprep.subr.mxu0 0.0
      %2243 = vmatpush1.msra.mxu0 0.0
      %2244 = vmatprep.subr.mxu0 0.0
      %2245 = vmatpush1.msra.mxu0 0.0
      %2246 = vmatprep.subr.mxu0 0.0
      %2247 = vmatpush1.msra.mxu0 0.0
      %2248 = vmatprep.subr.mxu0 0.0
      %2249 = vmatpush1.msra.mxu0 0.0
      %2250 = vmatprep.subr.mxu0 0.0
      %2251 = vmatpush1.msra.mxu0 0.0
      %2252 = vmatprep.mubr.f32.mxu0 0.0
      %2253 = vmatmul.mubr.f32.gmra.mrb[0].mxu0 %v333
      %v2254 = vpop.f32.mrb[0].mxu0
      %v2255 = vadd.f32 0.0, %v2254
      %v2256 = vpop.f32.mrb[0].mxu0
      %2257 = vdwg.mxu0
      %2258 = vmatprep.subr.mxu0 0.0
      %2259 = vmatpush1.msra.mxu0 %v666
      %2260 = vmatprep.subr.mxu0 0.0
      %2261 = vmatpush1.msra.mxu0 %v667
      %2262 = vmatprep.subr.mxu0 0.0
      %2263 = vmatpush1.msra.mxu0 %v668
      %2264 = vmatprep.subr.mxu0 0.0
      %2265 = vmatpush1.msra.mxu0 %v669
      %2266 = vmatprep.subr.mxu0 0.0
      %2267 = vmatpush1.msra.mxu0 %v670
      %2268 = vmatprep.subr.mxu0 0.0
      %2269 = vmatpush1.msra.mxu0 %v671
      %2270 = vmatprep.subr.mxu0 0.0
      %2271 = vmatpush1.msra.mxu0 %v672
      %2272 = vmatprep.subr.mxu0 0.0
      %2273 = vmatpush1.msra.mxu0 %v673
      %2274 = vmatprep.subr.mxu0 0.0
      %2275 = vmatpush1.msra.mxu0 %v674
      %2276 = vmatprep.subr.mxu0 0.0
      %2277 = vmatpush1.msra.mxu0 %v675
      %2278 = vmatprep.subr.mxu0 0.0
      %2279 = vmatpush1.msra.mxu0 %v676
      %2280 = vmatprep.subr.mxu0 0.0
      %2281 = vmatpush1.msra.mxu0 %v677
      %2282 = vmatprep.subr.mxu0 0.0
      %2283 = vmatpush1.msra.mxu0 %v678
      %2284 = vmatprep.subr.mxu0 0.0
      %2285 = vmatpush1.msra.mxu0 %v679
      %2286 = vmatprep.subr.mxu0 0.0
      %2287 = vmatpush1.msra.mxu0 %v680
      %2288 = vmatprep.subr.mxu0 0.0
      %2289 = vmatpush1.msra.mxu0 %v681
      %2290 = vmatprep.subr.mxu0 0.0
      %2291 = vmatpush1.msra.mxu0 0.0
      %2292 = vmatprep.subr.mxu0 0.0
      %2293 = vmatpush1.msra.mxu0 0.0
      %2294 = vmatprep.subr.mxu0 0.0
      %2295 = vmatpush1.msra.mxu0 0.0
      %2296 = vmatprep.subr.mxu0 0.0
      %2297 = vmatpush1.msra.mxu0 0.0
      %2298 = vmatprep.subr.mxu0 0.0
      %2299 = vmatpush1.msra.mxu0 0.0
      %2300 = vmatprep.subr.mxu0 0.0
      %2301 = vmatpush1.msra.mxu0 0.0
      %2302 = vmatprep.subr.mxu0 0.0
      %2303 = vmatpush1.msra.mxu0 0.0
      %2304 = vmatprep.subr.mxu0 0.0
      %2305 = vmatpush1.msra.mxu0 0.0
      %2306 = vmatprep.subr.mxu0 0.0
      %2307 = vmatpush1.msra.mxu0 0.0
      %2308 = vmatprep.subr.mxu0 0.0
      %2309 = vmatpush1.msra.mxu0 0.0
      %2310 = vmatprep.subr.mxu0 0.0
      %2311 = vmatpush1.msra.mxu0 0.0
      %2312 = vmatprep.subr.mxu0 0.0
      %2313 = vmatpush1.msra.mxu0 0.0
      %2314 = vmatprep.subr.mxu0 0.0
      %2315 = vmatpush1.msra.mxu0 0.0
      %2316 = vmatprep.subr.mxu0 0.0
      %2317 = vmatpush1.msra.mxu0 0.0
      %2318 = vmatprep.subr.mxu0 0.0
      %2319 = vmatpush1.msra.mxu0 0.0
      %2320 = vmatprep.subr.mxu0 0.0
      %2321 = vmatpush1.msra.mxu0 0.0
      %2322 = vmatprep.mubr.f32.mxu0 0.0
      %2323 = vmatmul.mubr.f32.gmra.mrb[0].mxu0 %v334
      %v2324 = vpop.f32.mrb[0].mxu0
      %v2325 = vadd.f32 0.0, %v2324
      %v2326 = vpop.f32.mrb[0].mxu0
      %2327 = vdwg.mxu0
      %2328 = vmatprep.subr.mxu0 0.0
      %2329 = vmatpush1.msra.mxu0 %v682
      %2330 = vmatprep.subr.mxu0 0.0
      %2331 = vmatpush1.msra.mxu0 %v683
      %2332 = vmatprep.subr.mxu0 0.0
      %2333 = vmatpush1.msra.mxu0 %v684
      %2334 = vmatprep.subr.mxu0 0.0
      %2335 = vmatpush1.msra.mxu0 %v685
      %2336 = vmatprep.subr.mxu0 0.0
      %2337 = vmatpush1.msra.mxu0 %v686
      %2338 = vmatprep.subr.mxu0 0.0
      %2339 = vmatpush1.msra.mxu0 %v687
      %2340 = vmatprep.subr.mxu0 0.0
      %2341 = vmatpush1.msra.mxu0 %v688
      %2342 = vmatprep.subr.mxu0 0.0
      %2343 = vmatpush1.msra.mxu0 %v689
      %2344 = vmatprep.subr.mxu0 0.0
      %2345 = vmatpush1.msra.mxu0 %v690
      %2346 = vmatprep.subr.mxu0 0.0
      %2347 = vmatpush1.msra.mxu0 %v691
      %2348 = vmatprep.subr.mxu0 0.0
      %2349 = vmatpush1.msra.mxu0 %v692
      %2350 = vmatprep.subr.mxu0 0.0
      %2351 = vmatpush1.msra.mxu0 %v693
      %2352 = vmatprep.subr.mxu0 0.0
      %2353 = vmatpush1.msra.mxu0 %v694
      %2354 = vmatprep.subr.mxu0 0.0
      %2355 = vmatpush1.msra.mxu0 %v695
      %2356 = vmatprep.subr.mxu0 0.0
      %2357 = vmatpush1.msra.mxu0 %v696
      %2358 = vmatprep.subr.mxu0 0.0
      %2359 = vmatpush1.msra.mxu0 %v697
      %2360 = vmatprep.subr.mxu0 0.0
      %2361 = vmatpush1.msra.mxu0 0.0
      %2362 = vmatprep.subr.mxu0 0.0
      %2363 = vmatpush1.msra.mxu0 0.0
      %2364 = vmatprep.subr.mxu0 0.0
      %2365 = vmatpush1.msra.mxu0 0.0
      %2366 = vmatprep.subr.mxu0 0.0
      %2367 = vmatpush1.msra.mxu0 0.0
      %2368 = vmatprep.subr.mxu0 0.0
      %2369 = vmatpush1.msra.mxu0 0.0
      %2370 = vmatprep.subr.mxu0 0.0
      %2371 = vmatpush1.msra.mxu0 0.0
      %2372 = vmatprep.subr.mxu0 0.0
      %2373 = vmatpush1.msra.mxu0 0.0
      %2374 = vmatprep.subr.mxu0 0.0
      %2375 = vmatpush1.msra.mxu0 0.0
      %2376 = vmatprep.subr.mxu0 0.0
      %2377 = vmatpush1.msra.mxu0 0.0
      %2378 = vmatprep.subr.mxu0 0.0
      %2379 = vmatpush1.msra.mxu0 0.0
      %2380 = vmatprep.subr.mxu0 0.0
      %2381 = vmatpush1.msra.mxu0 0.0
      %2382 = vmatprep.subr.mxu0 0.0
      %2383 = vmatpush1.msra.mxu0 0.0
      %2384 = vmatprep.subr.mxu0 0.0
      %2385 = vmatpush1.msra.mxu0 0.0
      %2386 = vmatprep.subr.mxu0 0.0
      %2387 = vmatpush1.msra.mxu0 0.0
      %2388 = vmatprep.subr.mxu0 0.0
      %2389 = vmatpush1.msra.mxu0 0.0
      %2390 = vmatprep.subr.mxu0 0.0
      %2391 = vmatpush1.msra.mxu0 0.0
      %2392 = vmatprep.mubr.f32.mxu0 0.0
      %2393 = vmatmul.mubr.f32.gmra.mrb[0].mxu0 %v335
      %v2394 = vpop.f32.mrb[0].mxu0
      %v2395 = vadd.f32 0.0, %v2394
      %v2396 = vpop.f32.mrb[0].mxu0
      %2397 = vdwg.mxu0
      %2398 = vmatprep.subr.mxu0 0.0
      %2399 = vmatpush1.msra.mxu0 %v698
      %2400 = vmatprep.subr.mxu0 0.0
      %2401 = vmatpush1.msra.mxu0 %v699
      %2402 = vmatprep.subr.mxu0 0.0
      %2403 = vmatpush1.msra.mxu0 %v700
      %2404 = vmatprep.subr.mxu0 0.0
      %2405 = vmatpush1.msra.mxu0 %v701
      %2406 = vmatprep.subr.mxu0 0.0
      %2407 = vmatpush1.msra.mxu0 %v702
      %2408 = vmatprep.subr.mxu0 0.0
      %2409 = vmatpush1.msra.mxu0 %v703
      %2410 = vmatprep.subr.mxu0 0.0
      %2411 = vmatpush1.msra.mxu0 %v704
      %2412 = vmatprep.subr.mxu0 0.0
      %2413 = vmatpush1.msra.mxu0 %v705
      %2414 = vmatprep.subr.mxu0 0.0
      %2415 = vmatpush1.msra.mxu0 %v706
      %2416 = vmatprep.subr.mxu0 0.0
      %2417 = vmatpush1.msra.mxu0 %v707
      %2418 = vmatprep.subr.mxu0 0.0
      %2419 = vmatpush1.msra.mxu0 %v708
      %2420 = vmatprep.subr.mxu0 0.0
      %2421 = vmatpush1.msra.mxu0 %v709
      %2422 = vmatprep.subr.mxu0 0.0
      %2423 = vmatpush1.msra.mxu0 %v710
      %2424 = vmatprep.subr.mxu0 0.0
      %2425 = vmatpush1.msra.mxu0 %v711
      %2426 = vmatprep.subr.mxu0 0.0
      %2427 = vmatpush1.msra.mxu0 %v712
      %2428 = vmatprep.subr.mxu0 0.0
      %2429 = vmatpush1.msra.mxu0 %v713
      %2430 = vmatprep.subr.mxu0 0.0
      %2431 = vmatpush1.msra.mxu0 0.0
      %2432 = vmatprep.subr.mxu0 0.0
      %2433 = vmatpush1.msra.mxu0 0.0
      %2434 = vmatprep.subr.mxu0 0.0
      %2435 = vmatpush1.msra.mxu0 0.0
      %2436 = vmatprep.subr.mxu0 0.0
      %2437 = vmatpush1.msra.mxu0 0.0
      %2438 = vmatprep.subr.mxu0 0.0
      %2439 = vmatpush1.msra.mxu0 0.0
      %2440 = vmatprep.subr.mxu0 0.0
      %2441 = vmatpush1.msra.mxu0 0.0
      %2442 = vmatprep.subr.mxu0 0.0
      %2443 = vmatpush1.msra.mxu0 0.0
      %2444 = vmatprep.subr.mxu0 0.0
      %2445 = vmatpush1.msra.mxu0 0.0
      %2446 = vmatprep.subr.mxu0 0.0
      %2447 = vmatpush1.msra.mxu0 0.0
      %2448 = vmatprep.subr.mxu0 0.0
      %2449 = vmatpush1.msra.mxu0 0.0
      %2450 = vmatprep.subr.mxu0 0.0
      %2451 = vmatpush1.msra.mxu0 0.0
      %2452 = vmatprep.subr.mxu0 0.0
      %2453 = vmatpush1.msra.mxu0 0.0
      %2454 = vmatprep.subr.mxu0 0.0
      %2455 = vmatpush1.msra.mxu0 0.0
      %2456 = vmatprep.subr.mxu0 0.0
      %2457 = vmatpush1.msra.mxu0 0.0
      %2458 = vmatprep.subr.mxu0 0.0
      %2459 = vmatpush1.msra.mxu0 0.0
      %2460 = vmatprep.subr.mxu0 0.0
      %2461 = vmatpush1.msra.mxu0 0.0
      %2462 = vmatprep.mubr.f32.mxu0 0.0
      %2463 = vmatmul.mubr.f32.gmra.mrb[0].mxu0 %v336
      %v2464 = vpop.f32.mrb[0].mxu0
      %v2465 = vadd.f32 0.0, %v2464
      %v2466 = vpop.f32.mrb[0].mxu0
      %2467 = vdwg.mxu0
      %2468 = vmatprep.subr.mxu0 0.0
      %2469 = vmatpush1.msra.mxu0 %v714
      %2470 = vmatprep.subr.mxu0 0.0
      %2471 = vmatpush1.msra.mxu0 %v715
      %2472 = vmatprep.subr.mxu0 0.0
      %2473 = vmatpush1.msra.mxu0 %v716
      %2474 = vmatprep.subr.mxu0 0.0
      %2475 = vmatpush1.msra.mxu0 %v717
      %2476 = vmatprep.subr.mxu0 0.0
      %2477 = vmatpush1.msra.mxu0 %v718
      %2478 = vmatprep.subr.mxu0 0.0
      %2479 = vmatpush1.msra.mxu0 %v719
      %2480 = vmatprep.subr.mxu0 0.0
      %2481 = vmatpush1.msra.mxu0 %v720
      %2482 = vmatprep.subr.mxu0 0.0
      %2483 = vmatpush1.msra.mxu0 %v721
      %2484 = vmatprep.subr.mxu0 0.0
      %2485 = vmatpush1.msra.mxu0 %v722
      %2486 = vmatprep.subr.mxu0 0.0
      %2487 = vmatpush1.msra.mxu0 %v723
      %2488 = vmatprep.subr.mxu0 0.0
      %2489 = vmatpush1.msra.mxu0 %v724
      %2490 = vmatprep.subr.mxu0 0.0
      %2491 = vmatpush1.msra.mxu0 %v725
      %2492 = vmatprep.subr.mxu0 0.0
      %2493 = vmatpush1.msra.mxu0 %v726
      %2494 = vmatprep.subr.mxu0 0.0
      %2495 = vmatpush1.msra.mxu0 %v727
      %2496 = vmatprep.subr.mxu0 0.0
      %2497 = vmatpush1.msra.mxu0 %v728
      %2498 = vmatprep.subr.mxu0 0.0
      %2499 = vmatpush1.msra.mxu0 %v729
      %2500 = vmatprep.subr.mxu0 0.0
      %2501 = vmatpush1.msra.mxu0 0.0
      %2502 = vmatprep.subr.mxu0 0.0
      %2503 = vmatpush1.msra.mxu0 0.0
      %2504 = vmatprep.subr.mxu0 0.0
      %2505 = vmatpush1.msra.mxu0 0.0
      %2506 = vmatprep.subr.mxu0 0.0
      %2507 = vmatpush1.msra.mxu0 0.0
      %2508 = vmatprep.subr.mxu0 0.0
      %2509 = vmatpush1.msra.mxu0 0.0
      %2510 = vmatprep.subr.mxu0 0.0
      %2511 = vmatpush1.msra.mxu0 0.0
      %2512 = vmatprep.subr.mxu0 0.0
      %2513 = vmatpush1.msra.mxu0 0.0
      %2514 = vmatprep.subr.mxu0 0.0
      %2515 = vmatpush1.msra.mxu0 0.0
      %2516 = vmatprep.subr.mxu0 0.0
      %2517 = vmatpush1.msra.mxu0 0.0
      %2518 = vmatprep.subr.mxu0 0.0
      %2519 = vmatpush1.msra.mxu0 0.0
      %2520 = vmatprep.subr.mxu0 0.0
      %2521 = vmatpush1.msra.mxu0 0.0
      %2522 = vmatprep.subr.mxu0 0.0
      %2523 = vmatpush1.msra.mxu0 0.0
      %2524 = vmatprep.subr.mxu0 0.0
      %2525 = vmatpush1.msra.mxu0 0.0
      %2526 = vmatprep.subr.mxu0 0.0
      %2527 = vmatpush1.msra.mxu0 0.0
      %2528 = vmatprep.subr.mxu0 0.0
      %2529 = vmatpush1.msra.mxu0 0.0
      %2530 = vmatprep.subr.mxu0 0.0
      %2531 = vmatpush1.msra.mxu0 0.0
      %2532 = vmatprep.mubr.f32.mxu0 0.0
      %2533 = vmatmul.mubr.f32.gmra.mrb[0].mxu0 %v337
      %v2534 = vpop.f32.mrb[0].mxu0
      %v2535 = vadd.f32 0.0, %v2534
      %v2536 = vpop.f32.mrb[0].mxu0
      %2537 = vdwg.mxu0
      %2538 = vmatprep.subr.mxu0 0.0
      %2539 = vmatpush1.msra.mxu0 %v730
      %2540 = vmatprep.subr.mxu0 0.0
      %2541 = vmatpush1.msra.mxu0 %v731
      %2542 = vmatprep.subr.mxu0 0.0
      %2543 = vmatpush1.msra.mxu0 %v732
      %2544 = vmatprep.subr.mxu0 0.0
      %2545 = vmatpush1.msra.mxu0 %v733
      %2546 = vmatprep.subr.mxu0 0.0
      %2547 = vmatpush1.msra.mxu0 %v734
      %2548 = vmatprep.subr.mxu0 0.0
      %2549 = vmatpush1.msra.mxu0 %v735
      %2550 = vmatprep.subr.mxu0 0.0
      %2551 = vmatpush1.msra.mxu0 %v736
      %2552 = vmatprep.subr.mxu0 0.0
      %2553 = vmatpush1.msra.mxu0 %v737
      %2554 = vmatprep.subr.mxu0 0.0
      %2555 = vmatpush1.msra.mxu0 %v738
      %2556 = vmatprep.subr.mxu0 0.0
      %2557 = vmatpush1.msra.mxu0 %v739
      %2558 = vmatprep.subr.mxu0 0.0
      %2559 = vmatpush1.msra.mxu0 %v740
      %2560 = vmatprep.subr.mxu0 0.0
      %2561 = vmatpush1.msra.mxu0 %v741
      %2562 = vmatprep.subr.mxu0 0.0
      %2563 = vmatpush1.msra.mxu0 %v742
      %2564 = vmatprep.subr.mxu0 0.0
      %2565 = vmatpush1.msra.mxu0 %v743
      %2566 = vmatprep.subr.mxu0 0.0
      %2567 = vmatpush1.msra.mxu0 %v744
      %2568 = vmatprep.subr.mxu0 0.0
      %2569 = vmatpush1.msra.mxu0 %v745
      %2570 = vmatprep.subr.mxu0 0.0
      %2571 = vmatpush1.msra.mxu0 0.0
      %2572 = vmatprep.subr.mxu0 0.0
      %2573 = vmatpush1.msra.mxu0 0.0
      %2574 = vmatprep.subr.mxu0 0.0
      %2575 = vmatpush1.msra.mxu0 0.0
      %2576 = vmatprep.subr.mxu0 0.0
      %2577 = vmatpush1.msra.mxu0 0.0
      %2578 = vmatprep.subr.mxu0 0.0
      %2579 = vmatpush1.msra.mxu0 0.0
      %2580 = vmatprep.subr.mxu0 0.0
      %2581 = vmatpush1.msra.mxu0 0.0
      %2582 = vmatprep.subr.mxu0 0.0
      %2583 = vmatpush1.msra.mxu0 0.0
      %2584 = vmatprep.subr.mxu0 0.0
      %2585 = vmatpush1.msra.mxu0 0.0
      %2586 = vmatprep.subr.mxu0 0.0
      %2587 = vmatpush1.msra.mxu0 0.0
      %2588 = vmatprep.subr.mxu0 0.0
      %2589 = vmatpush1.msra.mxu0 0.0
      %2590 = vmatprep.subr.mxu0 0.0
      %2591 = vmatpush1.msra.mxu0 0.0
      %2592 = vmatprep.subr.mxu0 0.0
      %2593 = vmatpush1.msra.mxu0 0.0
      %2594 = vmatprep.subr.mxu0 0.0
      %2595 = vmatpush1.msra.mxu0 0.0
      %2596 = vmatprep.subr.mxu0 0.0
      %2597 = vmatpush1.msra.mxu0 0.0
      %2598 = vmatprep.subr.mxu0 0.0
      %2599 = vmatpush1.msra.mxu0 0.0
      %2600 = vmatprep.subr.mxu0 0.0
      %2601 = vmatpush1.msra.mxu0 0.0
      %2602 = vmatprep.mubr.f32.mxu0 0.0
      %2603 = vmatmul.mubr.f32.gmra.mrb[0].mxu0 %v338
      %v2604 = vpop.f32.mrb[0].mxu0
      %v2605 = vadd.f32 0.0, %v2604
      %v2606 = vpop.f32.mrb[0].mxu0
      %2607 = vdwg.mxu0
      %2608 = vmatprep.subr.mxu0 0.0
      %2609 = vmatpush1.msra.mxu0 %v746
      %2610 = vmatprep.subr.mxu0 0.0
      %2611 = vmatpush1.msra.mxu0 %v747
      %2612 = vmatprep.subr.mxu0 0.0
      %2613 = vmatpush1.msra.mxu0 %v748
      %2614 = vmatprep.subr.mxu0 0.0
      %2615 = vmatpush1.msra.mxu0 %v749
      %2616 = vmatprep.subr.mxu0 0.0
      %2617 = vmatpush1.msra.mxu0 %v750
      %2618 = vmatprep.subr.mxu0 0.0
      %2619 = vmatpush1.msra.mxu0 %v751
      %2620 = vmatprep.subr.mxu0 0.0
      %2621 = vmatpush1.msra.mxu0 %v752
      %2622 = vmatprep.subr.mxu0 0.0
      %2623 = vmatpush1.msra.mxu0 %v753
      %2624 = vmatprep.subr.mxu0 0.0
      %2625 = vmatpush1.msra.mxu0 %v754
      %2626 = vmatprep.subr.mxu0 0.0
      %2627 = vmatpush1.msra.mxu0 %v755
      %2628 = vmatprep.subr.mxu0 0.0
      %2629 = vmatpush1.msra.mxu0 %v756
      %2630 = vmatprep.subr.mxu0 0.0
      %2631 = vmatpush1.msra.mxu0 %v757
      %2632 = vmatprep.subr.mxu0 0.0
      %2633 = vmatpush1.msra.mxu0 %v758
      %2634 = vmatprep.subr.mxu0 0.0
      %2635 = vmatpush1.msra.mxu0 %v759
      %2636 = vmatprep.subr.mxu0 0.0
      %2637 = vmatpush1.msra.mxu0 %v760
      %2638 = vmatprep.subr.mxu0 0.0
      %2639 = vmatpush1.msra.mxu0 %v761
      %2640 = vmatprep.subr.mxu0 0.0
      %2641 = vmatpush1.msra.mxu0 0.0
      %2642 = vmatprep.subr.mxu0 0.0
      %2643 = vmatpush1.msra.mxu0 0.0
      %2644 = vmatprep.subr.mxu0 0.0
      %2645 = vmatpush1.msra.mxu0 0.0
      %2646 = vmatprep.subr.mxu0 0.0
      %2647 = vmatpush1.msra.mxu0 0.0
      %2648 = vmatprep.subr.mxu0 0.0
      %2649 = vmatpush1.msra.mxu0 0.0
      %2650 = vmatprep.subr.mxu0 0.0
      %2651 = vmatpush1.msra.mxu0 0.0
      %2652 = vmatprep.subr.mxu0 0.0
      %2653 = vmatpush1.msra.mxu0 0.0
      %2654 = vmatprep.subr.mxu0 0.0
      %2655 = vmatpush1.msra.mxu0 0.0
      %2656 = vmatprep.subr.mxu0 0.0
      %2657 = vmatpush1.msra.mxu0 0.0
      %2658 = vmatprep.subr.mxu0 0.0
      %2659 = vmatpush1.msra.mxu0 0.0
      %2660 = vmatprep.subr.mxu0 0.0
      %2661 = vmatpush1.msra.mxu0 0.0
      %2662 = vmatprep.subr.mxu0 0.0
      %2663 = vmatpush1.msra.mxu0 0.0
      %2664 = vmatprep.subr.mxu0 0.0
      %2665 = vmatpush1.msra.mxu0 0.0
      %2666 = vmatprep.subr.mxu0 0.0
      %2667 = vmatpush1.msra.mxu0 0.0
      %2668 = vmatprep.subr.mxu0 0.0
      %2669 = vmatpush1.msra.mxu0 0.0
      %2670 = vmatprep.subr.mxu0 0.0
      %2671 = vmatpush1.msra.mxu0 0.0
      %2672 = vmatprep.mubr.f32.mxu0 0.0
      %2673 = vmatmul.mubr.f32.gmra.mrb[0].mxu0 %v339
      %v2674 = vpop.f32.mrb[0].mxu0
      %v2675 = vadd.f32 0.0, %v2674
      %v2676 = vpop.f32.mrb[0].mxu0
      %2677 = vdwg.mxu0
      %2678 = vmatprep.subr.mxu0 0.0
      %2679 = vmatpush1.msra.mxu0 %v762
      %2680 = vmatprep.subr.mxu0 0.0
      %2681 = vmatpush1.msra.mxu0 %v763
      %2682 = vmatprep.subr.mxu0 0.0
      %2683 = vmatpush1.msra.mxu0 %v764
      %2684 = vmatprep.subr.mxu0 0.0
      %2685 = vmatpush1.msra.mxu0 %v765
      %2686 = vmatprep.subr.mxu0 0.0
      %2687 = vmatpush1.msra.mxu0 %v766
      %2688 = vmatprep.subr.mxu0 0.0
      %2689 = vmatpush1.msra.mxu0 %v767
      %2690 = vmatprep.subr.mxu0 0.0
      %2691 = vmatpush1.msra.mxu0 %v768
      %2692 = vmatprep.subr.mxu0 0.0
      %2693 = vmatpush1.msra.mxu0 %v769
      %2694 = vmatprep.subr.mxu0 0.0
      %2695 = vmatpush1.msra.mxu0 %v770
      %2696 = vmatprep.subr.mxu0 0.0
      %2697 = vmatpush1.msra.mxu0 %v771
      %2698 = vmatprep.subr.mxu0 0.0
      %2699 = vmatpush1.msra.mxu0 %v772
      %2700 = vmatprep.subr.mxu0 0.0
      %2701 = vmatpush1.msra.mxu0 %v773
      %2702 = vmatprep.subr.mxu0 0.0
      %2703 = vmatpush1.msra.mxu0 %v774
      %2704 = vmatprep.subr.mxu0 0.0
      %2705 = vmatpush1.msra.mxu0 %v775
      %2706 = vmatprep.subr.mxu0 0.0
      %2707 = vmatpush1.msra.mxu0 %v776
      %2708 = vmatprep.subr.mxu0 0.0
      %2709 = vmatpush1.msra.mxu0 %v777
      %2710 = vmatprep.subr.mxu0 0.0
      %2711 = vmatpush1.msra.mxu0 0.0
      %2712 = vmatprep.subr.mxu0 0.0
      %2713 = vmatpush1.msra.mxu0 0.0
      %2714 = vmatprep.subr.mxu0 0.0
      %2715 = vmatpush1.msra.mxu0 0.0
      %2716 = vmatprep.subr.mxu0 0.0
      %2717 = vmatpush1.msra.mxu0 0.0
      %2718 = vmatprep.subr.mxu0 0.0
      %2719 = vmatpush1.msra.mxu0 0.0
      %2720 = vmatprep.subr.mxu0 0.0
      %2721 = vmatpush1.msra.mxu0 0.0
      %2722 = vmatprep.subr.mxu0 0.0
      %2723 = vmatpush1.msra.mxu0 0.0
      %2724 = vmatprep.subr.mxu0 0.0
      %2725 = vmatpush1.msra.mxu0 0.0
      %2726 = vmatprep.subr.mxu0 0.0
      %2727 = vmatpush1.msra.mxu0 0.0
      %2728 = vmatprep.subr.mxu0 0.0
      %2729 = vmatpush1.msra.mxu0 0.0
      %2730 = vmatprep.subr.mxu0 0.0
      %2731 = vmatpush1.msra.mxu0 0.0
      %2732 = vmatprep.subr.mxu0 0.0
      %2733 = vmatpush1.msra.mxu0 0.0
      %2734 = vmatprep.subr.mxu0 0.0
      %2735 = vmatpush1.msra.mxu0 0.0
      %2736 = vmatprep.subr.mxu0 0.0
      %2737 = vmatpush1.msra.mxu0 0.0
      %2738 = vmatprep.subr.mxu0 0.0
      %2739 = vmatpush1.msra.mxu0 0.0
      %2740 = vmatprep.subr.mxu0 0.0
      %2741 = vmatpush1.msra.mxu0 0.0
      %2742 = vmatprep.mubr.f32.mxu0 0.0
      %2743 = vmatmul.mubr.f32.gmra.mrb[0].mxu0 %v340
      %v2744 = vpop.f32.mrb[0].mxu0
      %v2745 = vadd.f32 0.0, %v2744
      %v2746 = vpop.f32.mrb[0].mxu0
      %2747 = vdwg.mxu0
      %2748 = vmatprep.subr.mxu0 0.0
      %2749 = vmatpush1.msra.mxu0 %v778
      %2750 = vmatprep.subr.mxu0 0.0
      %2751 = vmatpush1.msra.mxu0 %v779
      %2752 = vmatprep.subr.mxu0 0.0
      %2753 = vmatpush1.msra.mxu0 %v780
      %2754 = vmatprep.subr.mxu0 0.0
      %2755 = vmatpush1.msra.mxu0 %v781
      %2756 = vmatprep.subr.mxu0 0.0
      %2757 = vmatpush1.msra.mxu0 %v782
      %2758 = vmatprep.subr.mxu0 0.0
      %2759 = vmatpush1.msra.mxu0 %v783
      %2760 = vmatprep.subr.mxu0 0.0
      %2761 = vmatpush1.msra.mxu0 %v784
      %2762 = vmatprep.subr.mxu0 0.0
      %2763 = vmatpush1.msra.mxu0 %v785
      %2764 = vmatprep.subr.mxu0 0.0
      %2765 = vmatpush1.msra.mxu0 %v786
      %2766 = vmatprep.subr.mxu0 0.0
      %2767 = vmatpush1.msra.mxu0 %v787
      %2768 = vmatprep.subr.mxu0 0.0
      %2769 = vmatpush1.msra.mxu0 %v788
      %2770 = vmatprep.subr.mxu0 0.0
      %2771 = vmatpush1.msra.mxu0 %v789
      %2772 = vmatprep.subr.mxu0 0.0
      %2773 = vmatpush1.msra.mxu0 %v790
      %2774 = vmatprep.subr.mxu0 0.0
      %2775 = vmatpush1.msra.mxu0 %v791
      %2776 = vmatprep.subr.mxu0 0.0
      %2777 = vmatpush1.msra.mxu0 %v792
      %2778 = vmatprep.subr.mxu0 0.0
      %2779 = vmatpush1.msra.mxu0 %v793
      %2780 = vmatprep.subr.mxu0 0.0
      %2781 = vmatpush1.msra.mxu0 0.0
      %2782 = vmatprep.subr.mxu0 0.0
      %2783 = vmatpush1.msra.mxu0 0.0
      %2784 = vmatprep.subr.mxu0 0.0
      %2785 = vmatpush1.msra.mxu0 0.0
      %2786 = vmatprep.subr.mxu0 0.0
      %2787 = vmatpush1.msra.mxu0 0.0
      %2788 = vmatprep.subr.mxu0 0.0
      %2789 = vmatpush1.msra.mxu0 0.0
      %2790 = vmatprep.subr.mxu0 0.0
      %2791 = vmatpush1.msra.mxu0 0.0
      %2792 = vmatprep.subr.mxu0 0.0
      %2793 = vmatpush1.msra.mxu0 0.0
      %2794 = vmatprep.subr.mxu0 0.0
      %2795 = vmatpush1.msra.mxu0 0.0
      %2796 = vmatprep.subr.mxu0 0.0
      %2797 = vmatpush1.msra.mxu0 0.0
      %2798 = vmatprep.subr.mxu0 0.0
      %2799 = vmatpush1.msra.mxu0 0.0
      %2800 = vmatprep.subr.mxu0 0.0
      %2801 = vmatpush1.msra.mxu0 0.0
      %2802 = vmatprep.subr.mxu0 0.0
      %2803 = vmatpush1.msra.mxu0 0.0
      %2804 = vmatprep.subr.mxu0 0.0
      %2805 = vmatpush1.msra.mxu0 0.0
      %2806 = vmatprep.subr.mxu0 0.0
      %2807 = vmatpush1.msra.mxu0 0.0
      %2808 = vmatprep.subr.mxu0 0.0
      %2809 = vmatpush1.msra.mxu0 0.0
      %2810 = vmatprep.subr.mxu0 0.0
      %2811 = vmatpush1.msra.mxu0 0.0
      %2812 = vmatprep.mubr.f32.mxu0 0.0
      %2813 = vmatmul.mubr.f32.gmra.mrb[0].mxu0 %v341
      %v2814 = vpop.f32.mrb[0].mxu0
      %v2815 = vadd.f32 0.0, %v2814
      %v2816 = vpop.f32.mrb[0].mxu0
      %2817 = vdwg.mxu0
      %2818 = vmatprep.subr.mxu0 0.0
      %2819 = vmatpush1.msra.mxu0 %v794
      %2820 = vmatprep.subr.mxu0 0.0
      %2821 = vmatpush1.msra.mxu0 %v795
      %2822 = vmatprep.subr.mxu0 0.0
      %2823 = vmatpush1.msra.mxu0 %v796
      %2824 = vmatprep.subr.mxu0 0.0
      %2825 = vmatpush1.msra.mxu0 %v797
      %2826 = vmatprep.subr.mxu0 0.0
      %2827 = vmatpush1.msra.mxu0 %v798
      %2828 = vmatprep.subr.mxu0 0.0
      %2829 = vmatpush1.msra.mxu0 %v799
      %2830 = vmatprep.subr.mxu0 0.0
      %2831 = vmatpush1.msra.mxu0 %v800
      %2832 = vmatprep.subr.mxu0 0.0
      %2833 = vmatpush1.msra.mxu0 %v801
      %2834 = vmatprep.subr.mxu0 0.0
      %2835 = vmatpush1.msra.mxu0 %v802
      %2836 = vmatprep.subr.mxu0 0.0
      %2837 = vmatpush1.msra.mxu0 %v803
      %2838 = vmatprep.subr.mxu0 0.0
      %2839 = vmatpush1.msra.mxu0 %v804
      %2840 = vmatprep.subr.mxu0 0.0
      %2841 = vmatpush1.msra.mxu0 %v805
      %2842 = vmatprep.subr.mxu0 0.0
      %2843 = vmatpush1.msra.mxu0 %v806
      %2844 = vmatprep.subr.mxu0 0.0
      %2845 = vmatpush1.msra.mxu0 %v807
      %2846 = vmatprep.subr.mxu0 0.0
      %2847 = vmatpush1.msra.mxu0 %v808
      %2848 = vmatprep.subr.mxu0 0.0
      %2849 = vmatpush1.msra.mxu0 %v809
      %2850 = vmatprep.subr.mxu0 0.0
      %2851 = vmatpush1.msra.mxu0 0.0
      %2852 = vmatprep.subr.mxu0 0.0
      %2853 = vmatpush1.msra.mxu0 0.0
      %2854 = vmatprep.subr.mxu0 0.0
      %2855 = vmatpush1.msra.mxu0 0.0
      %2856 = vmatprep.subr.mxu0 0.0
      %2857 = vmatpush1.msra.mxu0 0.0
      %2858 = vmatprep.subr.mxu0 0.0
      %2859 = vmatpush1.msra.mxu0 0.0
      %2860 = vmatprep.subr.mxu0 0.0
      %2861 = vmatpush1.msra.mxu0 0.0
      %2862 = vmatprep.subr.mxu0 0.0
      %2863 = vmatpush1.msra.mxu0 0.0
      %2864 = vmatprep.subr.mxu0 0.0
      %2865 = vmatpush1.msra.mxu0 0.0
      %2866 = vmatprep.subr.mxu0 0.0
      %2867 = vmatpush1.msra.mxu0 0.0
      %2868 = vmatprep.subr.mxu0 0.0
      %2869 = vmatpush1.msra.mxu0 0.0
      %2870 = vmatprep.subr.mxu0 0.0
      %2871 = vmatpush1.msra.mxu0 0.0
      %2872 = vmatprep.subr.mxu0 0.0
      %2873 = vmatpush1.msra.mxu0 0.0
      %2874 = vmatprep.subr.mxu0 0.0
      %2875 = vmatpush1.msra.mxu0 0.0
      %2876 = vmatprep.subr.mxu0 0.0
      %2877 = vmatpush1.msra.mxu0 0.0
      %2878 = vmatprep.subr.mxu0 0.0
      %2879 = vmatpush1.msra.mxu0 0.0
      %2880 = vmatprep.subr.mxu0 0.0
      %2881 = vmatpush1.msra.mxu0 0.0
      %2882 = vmatprep.mubr.f32.mxu0 0.0
      %2883 = vmatmul.mubr.f32.gmra.mrb[0].mxu0 %v342
      %v2884 = vpop.f32.mrb[0].mxu0
      %v2885 = vadd.f32 0.0, %v2884
      %v2886 = vpop.f32.mrb[0].mxu0
      %2887 = vdwg.mxu0
      %2888 = vmatprep.subr.mxu0 0.0
      %2889 = vmatpush1.msra.mxu0 %v810
      %2890 = vmatprep.subr.mxu0 0.0
      %2891 = vmatpush1.msra.mxu0 %v811
      %2892 = vmatprep.subr.mxu0 0.0
      %2893 = vmatpush1.msra.mxu0 %v812
      %2894 = vmatprep.subr.mxu0 0.0
      %2895 = vmatpush1.msra.mxu0 %v813
      %2896 = vmatprep.subr.mxu0 0.0
      %2897 = vmatpush1.msra.mxu0 %v814
      %2898 = vmatprep.subr.mxu0 0.0
      %2899 = vmatpush1.msra.mxu0 %v815
      %2900 = vmatprep.subr.mxu0 0.0
      %2901 = vmatpush1.msra.mxu0 %v816
      %2902 = vmatprep.subr.mxu0 0.0
      %2903 = vmatpush1.msra.mxu0 %v817
      %2904 = vmatprep.subr.mxu0 0.0
      %2905 = vmatpush1.msra.mxu0 %v818
      %2906 = vmatprep.subr.mxu0 0.0
      %2907 = vmatpush1.msra.mxu0 %v819
      %2908 = vmatprep.subr.mxu0 0.0
      %2909 = vmatpush1.msra.mxu0 %v820
      %2910 = vmatprep.subr.mxu0 0.0
      %2911 = vmatpush1.msra.mxu0 %v821
      %2912 = vmatprep.subr.mxu0 0.0
      %2913 = vmatpush1.msra.mxu0 %v822
      %2914 = vmatprep.subr.mxu0 0.0
      %2915 = vmatpush1.msra.mxu0 %v823
      %2916 = vmatprep.subr.mxu0 0.0
      %2917 = vmatpush1.msra.mxu0 %v824
      %2918 = vmatprep.subr.mxu0 0.0
      %2919 = vmatpush1.msra.mxu0 %v825
      %2920 = vmatprep.subr.mxu0 0.0
      %2921 = vmatpush1.msra.mxu0 0.0
      %2922 = vmatprep.subr.mxu0 0.0
      %2923 = vmatpush1.msra.mxu0 0.0
      %2924 = vmatprep.subr.mxu0 0.0
      %2925 = vmatpush1.msra.mxu0 0.0
      %2926 = vmatprep.subr.mxu0 0.0
      %2927 = vmatpush1.msra.mxu0 0.0
      %2928 = vmatprep.subr.mxu0 0.0
      %2929 = vmatpush1.msra.mxu0 0.0
      %2930 = vmatprep.subr.mxu0 0.0
      %2931 = vmatpush1.msra.mxu0 0.0
      %2932 = vmatprep.subr.mxu0 0.0
      %2933 = vmatpush1.msra.mxu0 0.0
      %2934 = vmatprep.subr.mxu0 0.0
      %2935 = vmatpush1.msra.mxu0 0.0
      %2936 = vmatprep.subr.mxu0 0.0
      %2937 = vmatpush1.msra.mxu0 0.0
      %2938 = vmatprep.subr.mxu0 0.0
      %2939 = vmatpush1.msra.mxu0 0.0
      %2940 = vmatprep.subr.mxu0 0.0
      %2941 = vmatpush1.msra.mxu0 0.0
      %2942 = vmatprep.subr.mxu0 0.0
      %2943 = vmatpush1.msra.mxu0 0.0
      %2944 = vmatprep.subr.mxu0 0.0
      %2945 = vmatpush1.msra.mxu0 0.0
      %2946 = vmatprep.subr.mxu0 0.0
      %2947 = vmatpush1.msra.mxu0 0.0
      %2948 = vmatprep.subr.mxu0 0.0
      %2949 = vmatpush1.msra.mxu0 0.0
      %2950 = vmatprep.subr.mxu0 0.0
      %2951 = vmatpush1.msra.mxu0 0.0
      %2952 = vmatprep.mubr.f32.mxu0 0.0
      %2953 = vmatmul.mubr.f32.gmra.mrb[0].mxu0 %v343
      %v2954 = vpop.f32.mrb[0].mxu0
      %v2955 = vadd.f32 0.0, %v2954
      %v2956 = vpop.f32.mrb[0].mxu0
      %2957 = vdwg.mxu0
      %2958 = vmatprep.subr.mxu0 0.0
      %2959 = vmatpush1.msra.mxu0 %v826
      %2960 = vmatprep.subr.mxu0 0.0
      %2961 = vmatpush1.msra.mxu0 %v827
      %2962 = vmatprep.subr.mxu0 0.0
      %2963 = vmatpush1.msra.mxu0 %v828
      %2964 = vmatprep.subr.mxu0 0.0
      %2965 = vmatpush1.msra.mxu0 %v829
      %2966 = vmatprep.subr.mxu0 0.0
      %2967 = vmatpush1.msra.mxu0 %v830
      %2968 = vmatprep.subr.mxu0 0.0
      %2969 = vmatpush1.msra.mxu0 %v831
      %2970 = vmatprep.subr.mxu0 0.0
      %2971 = vmatpush1.msra.mxu0 %v832
      %2972 = vmatprep.subr.mxu0 0.0
      %2973 = vmatpush1.msra.mxu0 %v833
      %2974 = vmatprep.subr.mxu0 0.0
      %2975 = vmatpush1.msra.mxu0 %v834
      %2976 = vmatprep.subr.mxu0 0.0
      %2977 = vmatpush1.msra.mxu0 %v835
      %2978 = vmatprep.subr.mxu0 0.0
      %2979 = vmatpush1.msra.mxu0 %v836
      %2980 = vmatprep.subr.mxu0 0.0
      %2981 = vmatpush1.msra.mxu0 %v837
      %2982 = vmatprep.subr.mxu0 0.0
      %2983 = vmatpush1.msra.mxu0 %v838
      %2984 = vmatprep.subr.mxu0 0.0
      %2985 = vmatpush1.msra.mxu0 %v839
      %2986 = vmatprep.subr.mxu0 0.0
      %2987 = vmatpush1.msra.mxu0 %v840
      %2988 = vmatprep.subr.mxu0 0.0
      %2989 = vmatpush1.msra.mxu0 %v841
      %2990 = vmatprep.subr.mxu0 0.0
      %2991 = vmatpush1.msra.mxu0 0.0
      %2992 = vmatprep.subr.mxu0 0.0
      %2993 = vmatpush1.msra.mxu0 0.0
      %2994 = vmatprep.subr.mxu0 0.0
      %2995 = vmatpush1.msra.mxu0 0.0
      %2996 = vmatprep.subr.mxu0 0.0
      %2997 = vmatpush1.msra.mxu0 0.0
      %2998 = vmatprep.subr.mxu0 0.0
      %2999 = vmatpush1.msra.mxu0 0.0
      %3000 = vmatprep.subr.mxu0 0.0
      %3001 = vmatpush1.msra.mxu0 0.0
      %3002 = vmatprep.subr.mxu0 0.0
      %3003 = vmatpush1.msra.mxu0 0.0
      %3004 = vmatprep.subr.mxu0 0.0
      %3005 = vmatpush1.msra.mxu0 0.0
      %3006 = vmatprep.subr.mxu0 0.0
      %3007 = vmatpush1.msra.mxu0 0.0
      %3008 = vmatprep.subr.mxu0 0.0
      %3009 = vmatpush1.msra.mxu0 0.0
      %3010 = vmatprep.subr.mxu0 0.0
      %3011 = vmatpush1.msra.mxu0 0.0
      %3012 = vmatprep.subr.mxu0 0.0
      %3013 = vmatpush1.msra.mxu0 0.0
      %3014 = vmatprep.subr.mxu0 0.0
      %3015 = vmatpush1.msra.mxu0 0.0
      %3016 = vmatprep.subr.mxu0 0.0
      %3017 = vmatpush1.msra.mxu0 0.0
      %3018 = vmatprep.subr.mxu0 0.0
      %3019 = vmatpush1.msra.mxu0 0.0
      %3020 = vmatprep.subr.mxu0 0.0
      %3021 = vmatpush1.msra.mxu0 0.0
      %3022 = vmatprep.mubr.f32.mxu0 0.0
      %3023 = vmatmul.mubr.f32.gmra.mrb[0].mxu0 %v344
      %v3024 = vpop.f32.mrb[0].mxu0
      %v3025 = vadd.f32 0.0, %v3024
      %v3026 = vpop.f32.mrb[0].mxu0
      %3027 = vdwg.mxu0
      %3028 = vmatprep.subr.mxu0 0.0
      %3029 = vmatpush1.msra.mxu0 %v842
      %3030 = vmatprep.subr.mxu0 0.0
      %3031 = vmatpush1.msra.mxu0 %v843
      %3032 = vmatprep.subr.mxu0 0.0
      %3033 = vmatpush1.msra.mxu0 %v844
      %3034 = vmatprep.subr.mxu0 0.0
      %3035 = vmatpush1.msra.mxu0 %v845
      %3036 = vmatprep.subr.mxu0 0.0
      %3037 = vmatpush1.msra.mxu0 %v846
      %3038 = vmatprep.subr.mxu0 0.0
      %3039 = vmatpush1.msra.mxu0 %v847
      %3040 = vmatprep.subr.mxu0 0.0
      %3041 = vmatpush1.msra.mxu0 %v848
      %3042 = vmatprep.subr.mxu0 0.0
      %3043 = vmatpush1.msra.mxu0 %v849
      %3044 = vmatprep.subr.mxu0 0.0
      %3045 = vmatpush1.msra.mxu0 %v850
      %3046 = vmatprep.subr.mxu0 0.0
      %3047 = vmatpush1.msra.mxu0 %v851
      %3048 = vmatprep.subr.mxu0 0.0
      %3049 = vmatpush1.msra.mxu0 %v852
      %3050 = vmatprep.subr.mxu0 0.0
      %3051 = vmatpush1.msra.mxu0 %v853
      %3052 = vmatprep.subr.mxu0 0.0
      %3053 = vmatpush1.msra.mxu0 %v854
      %3054 = vmatprep.subr.mxu0 0.0
      %3055 = vmatpush1.msra.mxu0 %v855
      %3056 = vmatprep.subr.mxu0 0.0
      %3057 = vmatpush1.msra.mxu0 %v856
      %3058 = vmatprep.subr.mxu0 0.0
      %3059 = vmatpush1.msra.mxu0 %v857
      %3060 = vmatprep.subr.mxu0 0.0
      %3061 = vmatpush1.msra.mxu0 0.0
      %3062 = vmatprep.subr.mxu0 0.0
      %3063 = vmatpush1.msra.mxu0 0.0
      %3064 = vmatprep.subr.mxu0 0.0
      %3065 = vmatpush1.msra.mxu0 0.0
      %3066 = vmatprep.subr.mxu0 0.0
      %3067 = vmatpush1.msra.mxu0 0.0
      %3068 = vmatprep.subr.mxu0 0.0
      %3069 = vmatpush1.msra.mxu0 0.0
      %3070 = vmatprep.subr.mxu0 0.0
      %3071 = vmatpush1.msra.mxu0 0.0
      %3072 = vmatprep.subr.mxu0 0.0
      %3073 = vmatpush1.msra.mxu0 0.0
      %3074 = vmatprep.subr.mxu0 0.0
      %3075 = vmatpush1.msra.mxu0 0.0
      %3076 = vmatprep.subr.mxu0 0.0
      %3077 = vmatpush1.msra.mxu0 0.0
      %3078 = vmatprep.subr.mxu0 0.0
      %3079 = vmatpush1.msra.mxu0 0.0
      %3080 = vmatprep.subr.mxu0 0.0
      %3081 = vmatpush1.msra.mxu0 0.0
      %3082 = vmatprep.subr.mxu0 0.0
      %3083 = vmatpush1.msra.mxu0 0.0
      %3084 = vmatprep.subr.mxu0 0.0
      %3085 = vmatpush1.msra.mxu0 0.0
      %3086 = vmatprep.subr.mxu0 0.0
      %3087 = vmatpush1.msra.mxu0 0.0
      %3088 = vmatprep.subr.mxu0 0.0
      %3089 = vmatpush1.msra.mxu0 0.0
      %3090 = vmatprep.subr.mxu0 0.0
      %3091 = vmatpush1.msra.mxu0 0.0
      %3092 = vmatprep.mubr.f32.mxu0 0.0
      %3093 = vmatmul.mubr.f32.gmra.mrb[0].mxu0 %v345
      %v3094 = vpop.f32.mrb[0].mxu0
      %v3095 = vadd.f32 0.0, %v3094
      %v3096 = vpop.f32.mrb[0].mxu0
      %3097 = vdwg.mxu0
      %v3098 = vadd.f32 %v314, %v330
      %v3099 = vadd.f32 %v315, %v331
      %v3100 = vadd.f32 %v316, %v332
      %v3101 = vadd.f32 %v317, %v333
      %v3102 = vadd.f32 %v318, %v334
      %v3103 = vadd.f32 %v319, %v335
      %v3104 = vadd.f32 %v320, %v336
      %v3105 = vadd.f32 %v321, %v337
      %v3106 = vadd.f32 %v322, %v338
      %v3107 = vadd.f32 %v323, %v339
      %v3108 = vadd.f32 %v324, %v340
      %v3109 = vadd.f32 %v325, %v341
      %v3110 = vadd.f32 %v326, %v342
      %v3111 = vadd.f32 %v327, %v343
      %v3112 = vadd.f32 %v328, %v344
      %v3113 = vadd.f32 %v329, %v345
      %v3114 = vadd.f32 %v346, %v602
      %v3115 = vadd.f32 %v347, %v603
      %v3116 = vadd.f32 %v348, %v604
      %v3117 = vadd.f32 %v349, %v605
      %v3118 = vadd.f32 %v350, %v606
      %v3119 = vadd.f32 %v351, %v607
      %v3120 = vadd.f32 %v352, %v608
      %v3121 = vadd.f32 %v353, %v609
      %v3122 = vadd.f32 %v354, %v610
      %v3123 = vadd.f32 %v355, %v611
      %v3124 = vadd.f32 %v356, %v612
      %v3125 = vadd.f32 %v357, %v613
      %v3126 = vadd.f32 %v358, %v614
      %v3127 = vadd.f32 %v359, %v615
      %v3128 = vadd.f32 %v360, %v616
      %v3129 = vadd.f32 %v361, %v617
      %v3130 = vadd.f32 %v362, %v618
      %v3131 = vadd.f32 %v363, %v619
      %v3132 = vadd.f32 %v364, %v620
      %v3133 = vadd.f32 %v365, %v621
      %v3134 = vadd.f32 %v366, %v622
      %v3135 = vadd.f32 %v367, %v623
      %v3136 = vadd.f32 %v368, %v624
      %v3137 = vadd.f32 %v369, %v625
      %v3138 = vadd.f32 %v370, %v626
      %v3139 = vadd.f32 %v371, %v627
      %v3140 = vadd.f32 %v372, %v628
      %v3141 = vadd.f32 %v373, %v629
      %v3142 = vadd.f32 %v374, %v630
      %v3143 = vadd.f32 %v375, %v631
      %v3144 = vadd.f32 %v376, %v632
      %v3145 = vadd.f32 %v377, %v633
      %v3146 = vadd.f32 %v378, %v634
      %v3147 = vadd.f32 %v379, %v635
      %v3148 = vadd.f32 %v380, %v636
      %v3149 = vadd.f32 %v381, %v637
      %v3150 = vadd.f32 %v382, %v638
      %v3151 = vadd.f32 %v383, %v639
      %v3152 = vadd.f32 %v384, %v640
      %v3153 = vadd.f32 %v385, %v641
      %v3154 = vadd.f32 %v386, %v642
      %v3155 = vadd.f32 %v387, %v643
      %v3156 = vadd.f32 %v388, %v644
      %v3157 = vadd.f32 %v389, %v645
      %v3158 = vadd.f32 %v390, %v646
      %v3159 = vadd.f32 %v391, %v647
      %v3160 = vadd.f32 %v392, %v648
      %v3161 = vadd.f32 %v393, %v649
      %v3162 = vadd.f32 %v394, %v650
      %v3163 = vadd.f32 %v395, %v651
      %v3164 = vadd.f32 %v396, %v652
      %v3165 = vadd.f32 %v397, %v653
      %v3166 = vadd.f32 %v398, %v654
      %v3167 = vadd.f32 %v399, %v655
      %v3168 = vadd.f32 %v400, %v656
      %v3169 = vadd.f32 %v401, %v657
      %v3170 = vadd.f32 %v402, %v658
      %v3171 = vadd.f32 %v403, %v659
      %v3172 = vadd.f32 %v404, %v660
      %v3173 = vadd.f32 %v405, %v661
      %v3174 = vadd.f32 %v406, %v662
      %v3175 = vadd.f32 %v407, %v663
      %v3176 = vadd.f32 %v408, %v664
      %v3177 = vadd.f32 %v409, %v665
      %v3178 = vadd.f32 %v410, %v666
      %v3179 = vadd.f32 %v411, %v667
      %v3180 = vadd.f32 %v412, %v668
      %v3181 = vadd.f32 %v413, %v669
      %v3182 = vadd.f32 %v414, %v670
      %v3183 = vadd.f32 %v415, %v671
      %v3184 = vadd.f32 %v416, %v672
      %v3185 = vadd.f32 %v417, %v673
      %v3186 = vadd.f32 %v418, %v674
      %v3187 = vadd.f32 %v419, %v675
      %v3188 = vadd.f32 %v420, %v676
      %v3189 = vadd.f32 %v421, %v677
      %v3190 = vadd.f32 %v422, %v678
      %v3191 = vadd.f32 %v423, %v679
      %v3192 = vadd.f32 %v424, %v680
      %v3193 = vadd.f32 %v425, %v681
      %v3194 = vadd.f32 %v426, %v682
      %v3195 = vadd.f32 %v427, %v683
      %v3196 = vadd.f32 %v428, %v684
      %v3197 = vadd.f32 %v429, %v685
      %v3198 = vadd.f32 %v430, %v686
      %v3199 = vadd.f32 %v431, %v687
      %v3200 = vadd.f32 %v432, %v688
      %v3201 = vadd.f32 %v433, %v689
      %v3202 = vadd.f32 %v434, %v690
      %v3203 = vadd.f32 %v435, %v691
      %v3204 = vadd.f32 %v436, %v692
      %v3205 = vadd.f32 %v437, %v693
      %v3206 = vadd.f32 %v438, %v694
      %v3207 = vadd.f32 %v439, %v695
      %v3208 = vadd.f32 %v440, %v696
      %v3209 = vadd.f32 %v441, %v697
      %v3210 = vadd.f32 %v442, %v698
      %v3211 = vadd.f32 %v443, %v699
      %v3212 = vadd.f32 %v444, %v700
      %v3213 = vadd.f32 %v445, %v701
      %v3214 = vadd.f32 %v446, %v702
      %v3215 = vadd.f32 %v447, %v703
      %v3216 = vadd.f32 %v448, %v704
      %v3217 = vadd.f32 %v449, %v705
      %v3218 = vadd.f32 %v450, %v706
      %v3219 = vadd.f32 %v451, %v707
      %v3220 = vadd.f32 %v452, %v708
      %v3221 = vadd.f32 %v453, %v709
      %v3222 = vadd.f32 %v454, %v710
      %v3223 = vadd.f32 %v455, %v711
      %v3224 = vadd.f32 %v456, %v712
      %v3225 = vadd.f32 %v457, %v713
      %v3226 = vadd.f32 %v458, %v714
      %v3227 = vadd.f32 %v459, %v715
      %v3228 = vadd.f32 %v460, %v716
      %v3229 = vadd.f32 %v461, %v717
      %v3230 = vadd.f32 %v462, %v718
      %v3231 = vadd.f32 %v463, %v719
      %v3232 = vadd.f32 %v464, %v720
      %v3233 = vadd.f32 %v465, %v721
      %v3234 = vadd.f32 %v466, %v722
      %v3235 = vadd.f32 %v467, %v723
      %v3236 = vadd.f32 %v468, %v724
      %v3237 = vadd.f32 %v469, %v725
      %v3238 = vadd.f32 %v470, %v726
      %v3239 = vadd.f32 %v471, %v727
      %v3240 = vadd.f32 %v472, %v728
      %v3241 = vadd.f32 %v473, %v729
      %v3242 = vadd.f32 %v474, %v730
      %v3243 = vadd.f32 %v475, %v731
      %v3244 = vadd.f32 %v476, %v732
      %v3245 = vadd.f32 %v477, %v733
      %v3246 = vadd.f32 %v478, %v734
      %v3247 = vadd.f32 %v479, %v735
      %v3248 = vadd.f32 %v480, %v736
      %v3249 = vadd.f32 %v481, %v737
      %v3250 = vadd.f32 %v482, %v738
      %v3251 = vadd.f32 %v483, %v739
      %v3252 = vadd.f32 %v484, %v740
      %v3253 = vadd.f32 %v485, %v741
      %v3254 = vadd.f32 %v486, %v742
      %v3255 = vadd.f32 %v487, %v743
      %v3256 = vadd.f32 %v488, %v744
      %v3257 = vadd.f32 %v489, %v745
      %v3258 = vadd.f32 %v490, %v746
      %v3259 = vadd.f32 %v491, %v747
      %v3260 = vadd.f32 %v492, %v748
      %v3261 = vadd.f32 %v493, %v749
      %v3262 = vadd.f32 %v494, %v750
      %v3263 = vadd.f32 %v495, %v751
      %v3264 = vadd.f32 %v496, %v752
      %v3265 = vadd.f32 %v497, %v753
      %v3266 = vadd.f32 %v498, %v754
      %v3267 = vadd.f32 %v499, %v755
      %v3268 = vadd.f32 %v500, %v756
      %v3269 = vadd.f32 %v501, %v757
      %v3270 = vadd.f32 %v502, %v758
      %v3271 = vadd.f32 %v503, %v759
      %v3272 = vadd.f32 %v504, %v760
      %v3273 = vadd.f32 %v505, %v761
      %v3274 = vadd.f32 %v506, %v762
      %v3275 = vadd.f32 %v507, %v763
      %v3276 = vadd.f32 %v508, %v764
      %v3277 = vadd.f32 %v509, %v765
      %v3278 = vadd.f32 %v510, %v766
      %v3279 = vadd.f32 %v511, %v767
      %v3280 = vadd.f32 %v512, %v768
      %v3281 = vadd.f32 %v513, %v769
      %v3282 = vadd.f32 %v514, %v770
      %v3283 = vadd.f32 %v515, %v771
      %v3284 = vadd.f32 %v516, %v772
      %v3285 = vadd.f32 %v517, %v773
      %v3286 = vadd.f32 %v518, %v774
      %v3287 = vadd.f32 %v519, %v775
      %v3288 = vadd.f32 %v520, %v776
      %v3289 = vadd.f32 %v521, %v777
      %v3290 = vadd.f32 %v522, %v778
      %v3291 = vadd.f32 %v523, %v779
      %v3292 = vadd.f32 %v524, %v780
      %v3293 = vadd.f32 %v525, %v781
      %v3294 = vadd.f32 %v526, %v782
      %v3295 = vadd.f32 %v527, %v783
      %v3296 = vadd.f32 %v528, %v784
      %v3297 = vadd.f32 %v529, %v785
      %v3298 = vadd.f32 %v530, %v786
      %v3299 = vadd.f32 %v531, %v787
      %v3300 = vadd.f32 %v532, %v788
      %v3301 = vadd.f32 %v533, %v789
      %v3302 = vadd.f32 %v534, %v790
      %v3303 = vadd.f32 %v535, %v791
      %v3304 = vadd.f32 %v536, %v792
      %v3305 = vadd.f32 %v537, %v793
      %v3306 = vadd.f32 %v538, %v794
      %v3307 = vadd.f32 %v539, %v795
      %v3308 = vadd.f32 %v540, %v796
      %v3309 = vadd.f32 %v541, %v797
      %v3310 = vadd.f32 %v542, %v798
      %v3311 = vadd.f32 %v543, %v799
      %v3312 = vadd.f32 %v544, %v800
      %v3313 = vadd.f32 %v545, %v801
      %v3314 = vadd.f32 %v546, %v802
      %v3315 = vadd.f32 %v547, %v803
      %v3316 = vadd.f32 %v548, %v804
      %v3317 = vadd.f32 %v549, %v805
      %v3318 = vadd.f32 %v550, %v806
      %v3319 = vadd.f32 %v551, %v807
      %v3320 = vadd.f32 %v552, %v808
      %v3321 = vadd.f32 %v553, %v809
      %v3322 = vadd.f32 %v554, %v810
      %v3323 = vadd.f32 %v555, %v811
      %v3324 = vadd.f32 %v556, %v812
      %v3325 = vadd.f32 %v557, %v813
      %v3326 = vadd.f32 %v558, %v814
      %v3327 = vadd.f32 %v559, %v815
      %v3328 = vadd.f32 %v560, %v816
      %v3329 = vadd.f32 %v561, %v817
      %v3330 = vadd.f32 %v562, %v818
      %v3331 = vadd.f32 %v563, %v819
      %v3332 = vadd.f32 %v564, %v820
      %v3333 = vadd.f32 %v565, %v821
      %v3334 = vadd.f32 %v566, %v822
      %v3335 = vadd.f32 %v567, %v823
      %v3336 = vadd.f32 %v568, %v824
      %v3337 = vadd.f32 %v569, %v825
      %v3338 = vadd.f32 %v570, %v826
      %v3339 = vadd.f32 %v571, %v827
      %v3340 = vadd.f32 %v572, %v828
      %v3341 = vadd.f32 %v573, %v829
      %v3342 = vadd.f32 %v574, %v830
      %v3343 = vadd.f32 %v575, %v831
      %v3344 = vadd.f32 %v576, %v832
      %v3345 = vadd.f32 %v577, %v833
      %v3346 = vadd.f32 %v578, %v834
      %v3347 = vadd.f32 %v579, %v835
      %v3348 = vadd.f32 %v580, %v836
      %v3349 = vadd.f32 %v581, %v837
      %v3350 = vadd.f32 %v582, %v838
      %v3351 = vadd.f32 %v583, %v839
      %v3352 = vadd.f32 %v584, %v840
      %v3353 = vadd.f32 %v585, %v841
      %v3354 = vadd.f32 %v586, %v842
      %v3355 = vadd.f32 %v587, %v843
      %v3356 = vadd.f32 %v588, %v844
      %v3357 = vadd.f32 %v589, %v845
      %v3358 = vadd.f32 %v590, %v846
      %v3359 = vadd.f32 %v591, %v847
      %v3360 = vadd.f32 %v592, %v848
      %v3361 = vadd.f32 %v593, %v849
      %v3362 = vadd.f32 %v594, %v850
      %v3363 = vadd.f32 %v595, %v851
      %v3364 = vadd.f32 %v596, %v852
      %v3365 = vadd.f32 %v597, %v853
      %v3366 = vadd.f32 %v598, %v854
      %v3367 = vadd.f32 %v599, %v855
      %v3368 = vadd.f32 %v600, %v856
      %v3369 = vadd.f32 %v601, %v857
      %3370 = vmatprep.subr.mxu0 0.0
      %3371 = vmatpush1.msra.mxu0 %v3114
      %3372 = vmatprep.subr.mxu0 0.0
      %3373 = vmatpush1.msra.mxu0 %v3115
      %3374 = vmatprep.subr.mxu0 0.0
      %3375 = vmatpush1.msra.mxu0 %v3116
      %3376 = vmatprep.subr.mxu0 0.0
      %3377 = vmatpush1.msra.mxu0 %v3117
      %3378 = vmatprep.subr.mxu0 0.0
      %3379 = vmatpush1.msra.mxu0 %v3118
      %3380 = vmatprep.subr.mxu0 0.0
      %3381 = vmatpush1.msra.mxu0 %v3119
      %3382 = vmatprep.subr.mxu0 0.0
      %3383 = vmatpush1.msra.mxu0 %v3120
      %3384 = vmatprep.subr.mxu0 0.0
      %3385 = vmatpush1.msra.mxu0 %v3121
      %3386 = vmatprep.subr.mxu0 0.0
      %3387 = vmatpush1.msra.mxu0 %v3122
      %3388 = vmatprep.subr.mxu0 0.0
      %3389 = vmatpush1.msra.mxu0 %v3123
      %3390 = vmatprep.subr.mxu0 0.0
      %3391 = vmatpush1.msra.mxu0 %v3124
      %3392 = vmatprep.subr.mxu0 0.0
      %3393 = vmatpush1.msra.mxu0 %v3125
      %3394 = vmatprep.subr.mxu0 0.0
      %3395 = vmatpush1.msra.mxu0 %v3126
      %3396 = vmatprep.subr.mxu0 0.0
      %3397 = vmatpush1.msra.mxu0 %v3127
      %3398 = vmatprep.subr.mxu0 0.0
      %3399 = vmatpush1.msra.mxu0 %v3128
      %3400 = vmatprep.subr.mxu0 0.0
      %3401 = vmatpush1.msra.mxu0 %v3129
      %3402 = vmatprep.subr.mxu0 0.0
      %3403 = vmatpush1.msra.mxu0 0.0
      %3404 = vmatprep.subr.mxu0 0.0
      %3405 = vmatpush1.msra.mxu0 0.0
      %3406 = vmatprep.subr.mxu0 0.0
      %3407 = vmatpush1.msra.mxu0 0.0
      %3408 = vmatprep.subr.mxu0 0.0
      %3409 = vmatpush1.msra.mxu0 0.0
      %3410 = vmatprep.subr.mxu0 0.0
      %3411 = vmatpush1.msra.mxu0 0.0
      %3412 = vmatprep.subr.mxu0 0.0
      %3413 = vmatpush1.msra.mxu0 0.0
      %3414 = vmatprep.subr.mxu0 0.0
      %3415 = vmatpush1.msra.mxu0 0.0
      %3416 = vmatprep.subr.mxu0 0.0
      %3417 = vmatpush1.msra.mxu0 0.0
      %3418 = vmatprep.subr.mxu0 0.0
      %3419 = vmatpush1.msra.mxu0 0.0
      %3420 = vmatprep.subr.mxu0 0.0
      %3421 = vmatpush1.msra.mxu0 0.0
      %3422 = vmatprep.subr.mxu0 0.0
      %3423 = vmatpush1.msra.mxu0 0.0
      %3424 = vmatprep.subr.mxu0 0.0
      %3425 = vmatpush1.msra.mxu0 0.0
      %3426 = vmatprep.subr.mxu0 0.0
      %3427 = vmatpush1.msra.mxu0 0.0
      %3428 = vmatprep.subr.mxu0 0.0
      %3429 = vmatpush1.msra.mxu0 0.0
      %3430 = vmatprep.subr.mxu0 0.0
      %3431 = vmatpush1.msra.mxu0 0.0
      %3432 = vmatprep.subr.mxu0 0.0
      %3433 = vmatpush1.msra.mxu0 0.0
      %3434 = vmatprep.mubr.f32.mxu0 0.0
      %3435 = vmatmul.mubr.f32.gmra.mrb[0].mxu0 %v3098
      %v3436 = vpop.f32.mrb[0].mxu0
      %v3437 = vadd.f32 0.0, %v3436
      %v3438 = vpop.f32.mrb[0].mxu0
      %3439 = vdwg.mxu0
      %3440 = vmatprep.subr.mxu0 0.0
      %3441 = vmatpush1.msra.mxu0 %v3130
      %3442 = vmatprep.subr.mxu0 0.0
      %3443 = vmatpush1.msra.mxu0 %v3131
      %3444 = vmatprep.subr.mxu0 0.0
      %3445 = vmatpush1.msra.mxu0 %v3132
      %3446 = vmatprep.subr.mxu0 0.0
      %3447 = vmatpush1.msra.mxu0 %v3133
      %3448 = vmatprep.subr.mxu0 0.0
      %3449 = vmatpush1.msra.mxu0 %v3134
      %3450 = vmatprep.subr.mxu0 0.0
      %3451 = vmatpush1.msra.mxu0 %v3135
      %3452 = vmatprep.subr.mxu0 0.0
      %3453 = vmatpush1.msra.mxu0 %v3136
      %3454 = vmatprep.subr.mxu0 0.0
      %3455 = vmatpush1.msra.mxu0 %v3137
      %3456 = vmatprep.subr.mxu0 0.0
      %3457 = vmatpush1.msra.mxu0 %v3138
      %3458 = vmatprep.subr.mxu0 0.0
      %3459 = vmatpush1.msra.mxu0 %v3139
      %3460 = vmatprep.subr.mxu0 0.0
      %3461 = vmatpush1.msra.mxu0 %v3140
      %3462 = vmatprep.subr.mxu0 0.0
      %3463 = vmatpush1.msra.mxu0 %v3141
      %3464 = vmatprep.subr.mxu0 0.0
      %3465 = vmatpush1.msra.mxu0 %v3142
      %3466 = vmatprep.subr.mxu0 0.0
      %3467 = vmatpush1.msra.mxu0 %v3143
      %3468 = vmatprep.subr.mxu0 0.0
      %3469 = vmatpush1.msra.mxu0 %v3144
      %3470 = vmatprep.subr.mxu0 0.0
      %3471 = vmatpush1.msra.mxu0 %v3145
      %3472 = vmatprep.subr.mxu0 0.0
      %3473 = vmatpush1.msra.mxu0 0.0
      %3474 = vmatprep.subr.mxu0 0.0
      %3475 = vmatpush1.msra.mxu0 0.0
      %3476 = vmatprep.subr.mxu0 0.0
      %3477 = vmatpush1.msra.mxu0 0.0
      %3478 = vmatprep.subr.mxu0 0.0
      %3479 = vmatpush1.msra.mxu0 0.0
      %3480 = vmatprep.subr.mxu0 0.0
      %3481 = vmatpush1.msra.mxu0 0.0
      %3482 = vmatprep.subr.mxu0 0.0
      %3483 = vmatpush1.msra.mxu0 0.0
      %3484 = vmatprep.subr.mxu0 0.0
      %3485 = vmatpush1.msra.mxu0 0.0
      %3486 = vmatprep.subr.mxu0 0.0
      %3487 = vmatpush1.msra.mxu0 0.0
      %3488 = vmatprep.subr.mxu0 0.0
      %3489 = vmatpush1.msra.mxu0 0.0
      %3490 = vmatprep.subr.mxu0 0.0
      %3491 = vmatpush1.msra.mxu0 0.0
      %3492 = vmatprep.subr.mxu0 0.0
      %3493 = vmatpush1.msra.mxu0 0.0
      %3494 = vmatprep.subr.mxu0 0.0
      %3495 = vmatpush1.msra.mxu0 0.0
      %3496 = vmatprep.subr.mxu0 0.0
      %3497 = vmatpush1.msra.mxu0 0.0
      %3498 = vmatprep.subr.mxu0 0.0
      %3499 = vmatpush1.msra.mxu0 0.0
      %3500 = vmatprep.subr.mxu0 0.0
      %3501 = vmatpush1.msra.mxu0 0.0
      %3502 = vmatprep.subr.mxu0 0.0
      %3503 = vmatpush1.msra.mxu0 0.0
      %3504 = vmatprep.mubr.f32.mxu0 0.0
      %3505 = vmatmul.mubr.f32.gmra.mrb[0].mxu0 %v3099
      %v3506 = vpop.f32.mrb[0].mxu0
      %v3507 = vadd.f32 0.0, %v3506
      %v3508 = vpop.f32.mrb[0].mxu0
      %3509 = vdwg.mxu0
      %3510 = vmatprep.subr.mxu0 0.0
      %3511 = vmatpush1.msra.mxu0 %v3146
      %3512 = vmatprep.subr.mxu0 0.0
      %3513 = vmatpush1.msra.mxu0 %v3147
      %3514 = vmatprep.subr.mxu0 0.0
      %3515 = vmatpush1.msra.mxu0 %v3148
      %3516 = vmatprep.subr.mxu0 0.0
      %3517 = vmatpush1.msra.mxu0 %v3149
      %3518 = vmatprep.subr.mxu0 0.0
      %3519 = vmatpush1.msra.mxu0 %v3150
      %3520 = vmatprep.subr.mxu0 0.0
      %3521 = vmatpush1.msra.mxu0 %v3151
      %3522 = vmatprep.subr.mxu0 0.0
      %3523 = vmatpush1.msra.mxu0 %v3152
      %3524 = vmatprep.subr.mxu0 0.0
      %3525 = vmatpush1.msra.mxu0 %v3153
      %3526 = vmatprep.subr.mxu0 0.0
      %3527 = vmatpush1.msra.mxu0 %v3154
      %3528 = vmatprep.subr.mxu0 0.0
      %3529 = vmatpush1.msra.mxu0 %v3155
      %3530 = vmatprep.subr.mxu0 0.0
      %3531 = vmatpush1.msra.mxu0 %v3156
      %3532 = vmatprep.subr.mxu0 0.0
      %3533 = vmatpush1.msra.mxu0 %v3157
      %3534 = vmatprep.subr.mxu0 0.0
      %3535 = vmatpush1.msra.mxu0 %v3158
      %3536 = vmatprep.subr.mxu0 0.0
      %3537 = vmatpush1.msra.mxu0 %v3159
      %3538 = vmatprep.subr.mxu0 0.0
      %3539 = vmatpush1.msra.mxu0 %v3160
      %3540 = vmatprep.subr.mxu0 0.0
      %3541 = vmatpush1.msra.mxu0 %v3161
      %3542 = vmatprep.subr.mxu0 0.0
      %3543 = vmatpush1.msra.mxu0 0.0
      %3544 = vmatprep.subr.mxu0 0.0
      %3545 = vmatpush1.msra.mxu0 0.0
      %3546 = vmatprep.subr.mxu0 0.0
      %3547 = vmatpush1.msra.mxu0 0.0
      %3548 = vmatprep.subr.mxu0 0.0
      %3549 = vmatpush1.msra.mxu0 0.0
      %3550 = vmatprep.subr.mxu0 0.0
      %3551 = vmatpush1.msra.mxu0 0.0
      %3552 = vmatprep.subr.mxu0 0.0
      %3553 = vmatpush1.msra.mxu0 0.0
      %3554 = vmatprep.subr.mxu0 0.0
      %3555 = vmatpush1.msra.mxu0 0.0
      %3556 = vmatprep.subr.mxu0 0.0
      %3557 = vmatpush1.msra.mxu0 0.0
      %3558 = vmatprep.subr.mxu0 0.0
      %3559 = vmatpush1.msra.mxu0 0.0
      %3560 = vmatprep.subr.mxu0 0.0
      %3561 = vmatpush1.msra.mxu0 0.0
      %3562 = vmatprep.subr.mxu0 0.0
      %3563 = vmatpush1.msra.mxu0 0.0
      %3564 = vmatprep.subr.mxu0 0.0
      %3565 = vmatpush1.msra.mxu0 0.0
      %3566 = vmatprep.subr.mxu0 0.0
      %3567 = vmatpush1.msra.mxu0 0.0
      %3568 = vmatprep.subr.mxu0 0.0
      %3569 = vmatpush1.msra.mxu0 0.0
      %3570 = vmatprep.subr.mxu0 0.0
      %3571 = vmatpush1.msra.mxu0 0.0
      %3572 = vmatprep.subr.mxu0 0.0
      %3573 = vmatpush1.msra.mxu0 0.0
      %3574 = vmatprep.mubr.f32.mxu0 0.0
      %3575 = vmatmul.mubr.f32.gmra.mrb[0].mxu0 %v3100
      %v3576 = vpop.f32.mrb[0].mxu0
      %v3577 = vadd.f32 0.0, %v3576
      %v3578 = vpop.f32.mrb[0].mxu0
      %3579 = vdwg.mxu0
      %3580 = vmatprep.subr.mxu0 0.0
      %3581 = vmatpush1.msra.mxu0 %v3162
      %3582 = vmatprep.subr.mxu0 0.0
      %3583 = vmatpush1.msra.mxu0 %v3163
      %3584 = vmatprep.subr.mxu0 0.0
      %3585 = vmatpush1.msra.mxu0 %v3164
      %3586 = vmatprep.subr.mxu0 0.0
      %3587 = vmatpush1.msra.mxu0 %v3165
      %3588 = vmatprep.subr.mxu0 0.0
      %3589 = vmatpush1.msra.mxu0 %v3166
      %3590 = vmatprep.subr.mxu0 0.0
      %3591 = vmatpush1.msra.mxu0 %v3167
      %3592 = vmatprep.subr.mxu0 0.0
      %3593 = vmatpush1.msra.mxu0 %v3168
      %3594 = vmatprep.subr.mxu0 0.0
      %3595 = vmatpush1.msra.mxu0 %v3169
      %3596 = vmatprep.subr.mxu0 0.0
      %3597 = vmatpush1.msra.mxu0 %v3170
      %3598 = vmatprep.subr.mxu0 0.0
      %3599 = vmatpush1.msra.mxu0 %v3171
      %3600 = vmatprep.subr.mxu0 0.0
      %3601 = vmatpush1.msra.mxu0 %v3172
      %3602 = vmatprep.subr.mxu0 0.0
      %3603 = vmatpush1.msra.mxu0 %v3173
      %3604 = vmatprep.subr.mxu0 0.0
      %3605 = vmatpush1.msra.mxu0 %v3174
      %3606 = vmatprep.subr.mxu0 0.0
      %3607 = vmatpush1.msra.mxu0 %v3175
      %3608 = vmatprep.subr.mxu0 0.0
      %3609 = vmatpush1.msra.mxu0 %v3176
      %3610 = vmatprep.subr.mxu0 0.0
      %3611 = vmatpush1.msra.mxu0 %v3177
      %3612 = vmatprep.subr.mxu0 0.0
      %3613 = vmatpush1.msra.mxu0 0.0
      %3614 = vmatprep.subr.mxu0 0.0
      %3615 = vmatpush1.msra.mxu0 0.0
      %3616 = vmatprep.subr.mxu0 0.0
      %3617 = vmatpush1.msra.mxu0 0.0
      %3618 = vmatprep.subr.mxu0 0.0
      %3619 = vmatpush1.msra.mxu0 0.0
      %3620 = vmatprep.subr.mxu0 0.0
      %3621 = vmatpush1.msra.mxu0 0.0
      %3622 = vmatprep.subr.mxu0 0.0
      %3623 = vmatpush1.msra.mxu0 0.0
      %3624 = vmatprep.subr.mxu0 0.0
      %3625 = vmatpush1.msra.mxu0 0.0
      %3626 = vmatprep.subr.mxu0 0.0
      %3627 = vmatpush1.msra.mxu0 0.0
      %3628 = vmatprep.subr.mxu0 0.0
      %3629 = vmatpush1.msra.mxu0 0.0
      %3630 = vmatprep.subr.mxu0 0.0
      %3631 = vmatpush1.msra.mxu0 0.0
      %3632 = vmatprep.subr.mxu0 0.0
      %3633 = vmatpush1.msra.mxu0 0.0
      %3634 = vmatprep.subr.mxu0 0.0
      %3635 = vmatpush1.msra.mxu0 0.0
      %3636 = vmatprep.subr.mxu0 0.0
      %3637 = vmatpush1.msra.mxu0 0.0
      %3638 = vmatprep.subr.mxu0 0.0
      %3639 = vmatpush1.msra.mxu0 0.0
      %3640 = vmatprep.subr.mxu0 0.0
      %3641 = vmatpush1.msra.mxu0 0.0
      %3642 = vmatprep.subr.mxu0 0.0
      %3643 = vmatpush1.msra.mxu0 0.0
      %3644 = vmatprep.mubr.f32.mxu0 0.0
      %3645 = vmatmul.mubr.f32.gmra.mrb[0].mxu0 %v3101
      %v3646 = vpop.f32.mrb[0].mxu0
      %v3647 = vadd.f32 0.0, %v3646
      %v3648 = vpop.f32.mrb[0].mxu0
      %3649 = vdwg.mxu0
      %3650 = vmatprep.subr.mxu0 0.0
      %3651 = vmatpush1.msra.mxu0 %v3178
      %3652 = vmatprep.subr.mxu0 0.0
      %3653 = vmatpush1.msra.mxu0 %v3179
      %3654 = vmatprep.subr.mxu0 0.0
      %3655 = vmatpush1.msra.mxu0 %v3180
      %3656 = vmatprep.subr.mxu0 0.0
      %3657 = vmatpush1.msra.mxu0 %v3181
      %3658 = vmatprep.subr.mxu0 0.0
      %3659 = vmatpush1.msra.mxu0 %v3182
      %3660 = vmatprep.subr.mxu0 0.0
      %3661 = vmatpush1.msra.mxu0 %v3183
      %3662 = vmatprep.subr.mxu0 0.0
      %3663 = vmatpush1.msra.mxu0 %v3184
      %3664 = vmatprep.subr.mxu0 0.0
      %3665 = vmatpush1.msra.mxu0 %v3185
      %3666 = vmatprep.subr.mxu0 0.0
      %3667 = vmatpush1.msra.mxu0 %v3186
      %3668 = vmatprep.subr.mxu0 0.0
      %3669 = vmatpush1.msra.mxu0 %v3187
      %3670 = vmatprep.subr.mxu0 0.0
      %3671 = vmatpush1.msra.mxu0 %v3188
      %3672 = vmatprep.subr.mxu0 0.0
      %3673 = vmatpush1.msra.mxu0 %v3189
      %3674 = vmatprep.subr.mxu0 0.0
      %3675 = vmatpush1.msra.mxu0 %v3190
      %3676 = vmatprep.subr.mxu0 0.0
      %3677 = vmatpush1.msra.mxu0 %v3191
      %3678 = vmatprep.subr.mxu0 0.0
      %3679 = vmatpush1.msra.mxu0 %v3192
      %3680 = vmatprep.subr.mxu0 0.0
      %3681 = vmatpush1.msra.mxu0 %v3193
      %3682 = vmatprep.subr.mxu0 0.0
      %3683 = vmatpush1.msra.mxu0 0.0
      %3684 = vmatprep.subr.mxu0 0.0
      %3685 = vmatpush1.msra.mxu0 0.0
      %3686 = vmatprep.subr.mxu0 0.0
      %3687 = vmatpush1.msra.mxu0 0.0
      %3688 = vmatprep.subr.mxu0 0.0
      %3689 = vmatpush1.msra.mxu0 0.0
      %3690 = vmatprep.subr.mxu0 0.0
      %3691 = vmatpush1.msra.mxu0 0.0
      %3692 = vmatprep.subr.mxu0 0.0
      %3693 = vmatpush1.msra.mxu0 0.0
      %3694 = vmatprep.subr.mxu0 0.0
      %3695 = vmatpush1.msra.mxu0 0.0
      %3696 = vmatprep.subr.mxu0 0.0
      %3697 = vmatpush1.msra.mxu0 0.0
      %3698 = vmatprep.subr.mxu0 0.0
      %3699 = vmatpush1.msra.mxu0 0.0
      %3700 = vmatprep.subr.mxu0 0.0
      %3701 = vmatpush1.msra.mxu0 0.0
      %3702 = vmatprep.subr.mxu0 0.0
      %3703 = vmatpush1.msra.mxu0 0.0
      %3704 = vmatprep.subr.mxu0 0.0
      %3705 = vmatpush1.msra.mxu0 0.0
      %3706 = vmatprep.subr.mxu0 0.0
      %3707 = vmatpush1.msra.mxu0 0.0
      %3708 = vmatprep.subr.mxu0 0.0
      %3709 = vmatpush1.msra.mxu0 0.0
      %3710 = vmatprep.subr.mxu0 0.0
      %3711 = vmatpush1.msra.mxu0 0.0
      %3712 = vmatprep.subr.mxu0 0.0
      %3713 = vmatpush1.msra.mxu0 0.0
      %3714 = vmatprep.mubr.f32.mxu0 0.0
      %3715 = vmatmul.mubr.f32.gmra.mrb[0].mxu0 %v3102
      %v3716 = vpop.f32.mrb[0].mxu0
      %v3717 = vadd.f32 0.0, %v3716
      %v3718 = vpop.f32.mrb[0].mxu0
      %3719 = vdwg.mxu0
      %3720 = vmatprep.subr.mxu0 0.0
      %3721 = vmatpush1.msra.mxu0 %v3194
      %3722 = vmatprep.subr.mxu0 0.0
      %3723 = vmatpush1.msra.mxu0 %v3195
      %3724 = vmatprep.subr.mxu0 0.0
      %3725 = vmatpush1.msra.mxu0 %v3196
      %3726 = vmatprep.subr.mxu0 0.0
      %3727 = vmatpush1.msra.mxu0 %v3197
      %3728 = vmatprep.subr.mxu0 0.0
      %3729 = vmatpush1.msra.mxu0 %v3198
      %3730 = vmatprep.subr.mxu0 0.0
      %3731 = vmatpush1.msra.mxu0 %v3199
      %3732 = vmatprep.subr.mxu0 0.0
      %3733 = vmatpush1.msra.mxu0 %v3200
      %3734 = vmatprep.subr.mxu0 0.0
      %3735 = vmatpush1.msra.mxu0 %v3201
      %3736 = vmatprep.subr.mxu0 0.0
      %3737 = vmatpush1.msra.mxu0 %v3202
      %3738 = vmatprep.subr.mxu0 0.0
      %3739 = vmatpush1.msra.mxu0 %v3203
      %3740 = vmatprep.subr.mxu0 0.0
      %3741 = vmatpush1.msra.mxu0 %v3204
      %3742 = vmatprep.subr.mxu0 0.0
      %3743 = vmatpush1.msra.mxu0 %v3205
      %3744 = vmatprep.subr.mxu0 0.0
      %3745 = vmatpush1.msra.mxu0 %v3206
      %3746 = vmatprep.subr.mxu0 0.0
      %3747 = vmatpush1.msra.mxu0 %v3207
      %3748 = vmatprep.subr.mxu0 0.0
      %3749 = vmatpush1.msra.mxu0 %v3208
      %3750 = vmatprep.subr.mxu0 0.0
      %3751 = vmatpush1.msra.mxu0 %v3209
      %3752 = vmatprep.subr.mxu0 0.0
      %3753 = vmatpush1.msra.mxu0 0.0
      %3754 = vmatprep.subr.mxu0 0.0
      %3755 = vmatpush1.msra.mxu0 0.0
      %3756 = vmatprep.subr.mxu0 0.0
      %3757 = vmatpush1.msra.mxu0 0.0
      %3758 = vmatprep.subr.mxu0 0.0
      %3759 = vmatpush1.msra.mxu0 0.0
      %3760 = vmatprep.subr.mxu0 0.0
      %3761 = vmatpush1.msra.mxu0 0.0
      %3762 = vmatprep.subr.mxu0 0.0
      %3763 = vmatpush1.msra.mxu0 0.0
      %3764 = vmatprep.subr.mxu0 0.0
      %3765 = vmatpush1.msra.mxu0 0.0
      %3766 = vmatprep.subr.mxu0 0.0
      %3767 = vmatpush1.msra.mxu0 0.0
      %3768 = vmatprep.subr.mxu0 0.0
      %3769 = vmatpush1.msra.mxu0 0.0
      %3770 = vmatprep.subr.mxu0 0.0
      %3771 = vmatpush1.msra.mxu0 0.0
      %3772 = vmatprep.subr.mxu0 0.0
      %3773 = vmatpush1.msra.mxu0 0.0
      %3774 = vmatprep.subr.mxu0 0.0
      %3775 = vmatpush1.msra.mxu0 0.0
      %3776 = vmatprep.subr.mxu0 0.0
      %3777 = vmatpush1.msra.mxu0 0.0
      %3778 = vmatprep.subr.mxu0 0.0
      %3779 = vmatpush1.msra.mxu0 0.0
      %3780 = vmatprep.subr.mxu0 0.0
      %3781 = vmatpush1.msra.mxu0 0.0
      %3782 = vmatprep.subr.mxu0 0.0
      %3783 = vmatpush1.msra.mxu0 0.0
      %3784 = vmatprep.mubr.f32.mxu0 0.0
      %3785 = vmatmul.mubr.f32.gmra.mrb[0].mxu0 %v3103
      %v3786 = vpop.f32.mrb[0].mxu0
      %v3787 = vadd.f32 0.0, %v3786
      %v3788 = vpop.f32.mrb[0].mxu0
      %3789 = vdwg.mxu0
      %3790 = vmatprep.subr.mxu0 0.0
      %3791 = vmatpush1.msra.mxu0 %v3210
      %3792 = vmatprep.subr.mxu0 0.0
      %3793 = vmatpush1.msra.mxu0 %v3211
      %3794 = vmatprep.subr.mxu0 0.0
      %3795 = vmatpush1.msra.mxu0 %v3212
      %3796 = vmatprep.subr.mxu0 0.0
      %3797 = vmatpush1.msra.mxu0 %v3213
      %3798 = vmatprep.subr.mxu0 0.0
      %3799 = vmatpush1.msra.mxu0 %v3214
      %3800 = vmatprep.subr.mxu0 0.0
      %3801 = vmatpush1.msra.mxu0 %v3215
      %3802 = vmatprep.subr.mxu0 0.0
      %3803 = vmatpush1.msra.mxu0 %v3216
      %3804 = vmatprep.subr.mxu0 0.0
      %3805 = vmatpush1.msra.mxu0 %v3217
      %3806 = vmatprep.subr.mxu0 0.0
      %3807 = vmatpush1.msra.mxu0 %v3218
      %3808 = vmatprep.subr.mxu0 0.0
      %3809 = vmatpush1.msra.mxu0 %v3219
      %3810 = vmatprep.subr.mxu0 0.0
      %3811 = vmatpush1.msra.mxu0 %v3220
      %3812 = vmatprep.subr.mxu0 0.0
      %3813 = vmatpush1.msra.mxu0 %v3221
      %3814 = vmatprep.subr.mxu0 0.0
      %3815 = vmatpush1.msra.mxu0 %v3222
      %3816 = vmatprep.subr.mxu0 0.0
      %3817 = vmatpush1.msra.mxu0 %v3223
      %3818 = vmatprep.subr.mxu0 0.0
      %3819 = vmatpush1.msra.mxu0 %v3224
      %3820 = vmatprep.subr.mxu0 0.0
      %3821 = vmatpush1.msra.mxu0 %v3225
      %3822 = vmatprep.subr.mxu0 0.0
      %3823 = vmatpush1.msra.mxu0 0.0
      %3824 = vmatprep.subr.mxu0 0.0
      %3825 = vmatpush1.msra.mxu0 0.0
      %3826 = vmatprep.subr.mxu0 0.0
      %3827 = vmatpush1.msra.mxu0 0.0
      %3828 = vmatprep.subr.mxu0 0.0
      %3829 = vmatpush1.msra.mxu0 0.0
      %3830 = vmatprep.subr.mxu0 0.0
      %3831 = vmatpush1.msra.mxu0 0.0
      %3832 = vmatprep.subr.mxu0 0.0
      %3833 = vmatpush1.msra.mxu0 0.0
      %3834 = vmatprep.subr.mxu0 0.0
      %3835 = vmatpush1.msra.mxu0 0.0
      %3836 = vmatprep.subr.mxu0 0.0
      %3837 = vmatpush1.msra.mxu0 0.0
      %3838 = vmatprep.subr.mxu0 0.0
      %3839 = vmatpush1.msra.mxu0 0.0
      %3840 = vmatprep.subr.mxu0 0.0
      %3841 = vmatpush1.msra.mxu0 0.0
      %3842 = vmatprep.subr.mxu0 0.0
      %3843 = vmatpush1.msra.mxu0 0.0
      %3844 = vmatprep.subr.mxu0 0.0
      %3845 = vmatpush1.msra.mxu0 0.0
      %3846 = vmatprep.subr.mxu0 0.0
      %3847 = vmatpush1.msra.mxu0 0.0
      %3848 = vmatprep.subr.mxu0 0.0
      %3849 = vmatpush1.msra.mxu0 0.0
      %3850 = vmatprep.subr.mxu0 0.0
      %3851 = vmatpush1.msra.mxu0 0.0
      %3852 = vmatprep.subr.mxu0 0.0
      %3853 = vmatpush1.msra.mxu0 0.0
      %3854 = vmatprep.mubr.f32.mxu0 0.0
      %3855 = vmatmul.mubr.f32.gmra.mrb[0].mxu0 %v3104
      %v3856 = vpop.f32.mrb[0].mxu0
      %v3857 = vadd.f32 0.0, %v3856
      %v3858 = vpop.f32.mrb[0].mxu0
      %3859 = vdwg.mxu0
      %3860 = vmatprep.subr.mxu0 0.0
      %3861 = vmatpush1.msra.mxu0 %v3226
      %3862 = vmatprep.subr.mxu0 0.0
      %3863 = vmatpush1.msra.mxu0 %v3227
      %3864 = vmatprep.subr.mxu0 0.0
      %3865 = vmatpush1.msra.mxu0 %v3228
      %3866 = vmatprep.subr.mxu0 0.0
      %3867 = vmatpush1.msra.mxu0 %v3229
      %3868 = vmatprep.subr.mxu0 0.0
      %3869 = vmatpush1.msra.mxu0 %v3230
      %3870 = vmatprep.subr.mxu0 0.0
      %3871 = vmatpush1.msra.mxu0 %v3231
      %3872 = vmatprep.subr.mxu0 0.0
      %3873 = vmatpush1.msra.mxu0 %v3232
      %3874 = vmatprep.subr.mxu0 0.0
      %3875 = vmatpush1.msra.mxu0 %v3233
      %3876 = vmatprep.subr.mxu0 0.0
      %3877 = vmatpush1.msra.mxu0 %v3234
      %3878 = vmatprep.subr.mxu0 0.0
      %3879 = vmatpush1.msra.mxu0 %v3235
      %3880 = vmatprep.subr.mxu0 0.0
      %3881 = vmatpush1.msra.mxu0 %v3236
      %3882 = vmatprep.subr.mxu0 0.0
      %3883 = vmatpush1.msra.mxu0 %v3237
      %3884 = vmatprep.subr.mxu0 0.0
      %3885 = vmatpush1.msra.mxu0 %v3238
      %3886 = vmatprep.subr.mxu0 0.0
      %3887 = vmatpush1.msra.mxu0 %v3239
      %3888 = vmatprep.subr.mxu0 0.0
      %3889 = vmatpush1.msra.mxu0 %v3240
      %3890 = vmatprep.subr.mxu0 0.0
      %3891 = vmatpush1.msra.mxu0 %v3241
      %3892 = vmatprep.subr.mxu0 0.0
      %3893 = vmatpush1.msra.mxu0 0.0
      %3894 = vmatprep.subr.mxu0 0.0
      %3895 = vmatpush1.msra.mxu0 0.0
      %3896 = vmatprep.subr.mxu0 0.0
      %3897 = vmatpush1.msra.mxu0 0.0
      %3898 = vmatprep.subr.mxu0 0.0
      %3899 = vmatpush1.msra.mxu0 0.0
      %3900 = vmatprep.subr.mxu0 0.0
      %3901 = vmatpush1.msra.mxu0 0.0
      %3902 = vmatprep.subr.mxu0 0.0
      %3903 = vmatpush1.msra.mxu0 0.0
      %3904 = vmatprep.subr.mxu0 0.0
      %3905 = vmatpush1.msra.mxu0 0.0
      %3906 = vmatprep.subr.mxu0 0.0
      %3907 = vmatpush1.msra.mxu0 0.0
      %3908 = vmatprep.subr.mxu0 0.0
      %3909 = vmatpush1.msra.mxu0 0.0
      %3910 = vmatprep.subr.mxu0 0.0
      %3911 = vmatpush1.msra.mxu0 0.0
      %3912 = vmatprep.subr.mxu0 0.0
      %3913 = vmatpush1.msra.mxu0 0.0
      %3914 = vmatprep.subr.mxu0 0.0
      %3915 = vmatpush1.msra.mxu0 0.0
      %3916 = vmatprep.subr.mxu0 0.0
      %3917 = vmatpush1.msra.mxu0 0.0
      %3918 = vmatprep.subr.mxu0 0.0
      %3919 = vmatpush1.msra.mxu0 0.0
      %3920 = vmatprep.subr.mxu0 0.0
      %3921 = vmatpush1.msra.mxu0 0.0
      %3922 = vmatprep.subr.mxu0 0.0
      %3923 = vmatpush1.msra.mxu0 0.0
      %3924 = vmatprep.mubr.f32.mxu0 0.0
      %3925 = vmatmul.mubr.f32.gmra.mrb[0].mxu0 %v3105
      %v3926 = vpop.f32.mrb[0].mxu0
      %v3927 = vadd.f32 0.0, %v3926
      %v3928 = vpop.f32.mrb[0].mxu0
      %3929 = vdwg.mxu0
      %3930 = vmatprep.subr.mxu0 0.0
      %3931 = vmatpush1.msra.mxu0 %v3242
      %3932 = vmatprep.subr.mxu0 0.0
      %3933 = vmatpush1.msra.mxu0 %v3243
      %3934 = vmatprep.subr.mxu0 0.0
      %3935 = vmatpush1.msra.mxu0 %v3244
      %3936 = vmatprep.subr.mxu0 0.0
      %3937 = vmatpush1.msra.mxu0 %v3245
      %3938 = vmatprep.subr.mxu0 0.0
      %3939 = vmatpush1.msra.mxu0 %v3246
      %3940 = vmatprep.subr.mxu0 0.0
      %3941 = vmatpush1.msra.mxu0 %v3247
      %3942 = vmatprep.subr.mxu0 0.0
      %3943 = vmatpush1.msra.mxu0 %v3248
      %3944 = vmatprep.subr.mxu0 0.0
      %3945 = vmatpush1.msra.mxu0 %v3249
      %3946 = vmatprep.subr.mxu0 0.0
      %3947 = vmatpush1.msra.mxu0 %v3250
      %3948 = vmatprep.subr.mxu0 0.0
      %3949 = vmatpush1.msra.mxu0 %v3251
      %3950 = vmatprep.subr.mxu0 0.0
      %3951 = vmatpush1.msra.mxu0 %v3252
      %3952 = vmatprep.subr.mxu0 0.0
      %3953 = vmatpush1.msra.mxu0 %v3253
      %3954 = vmatprep.subr.mxu0 0.0
      %3955 = vmatpush1.msra.mxu0 %v3254
      %3956 = vmatprep.subr.mxu0 0.0
      %3957 = vmatpush1.msra.mxu0 %v3255
      %3958 = vmatprep.subr.mxu0 0.0
      %3959 = vmatpush1.msra.mxu0 %v3256
      %3960 = vmatprep.subr.mxu0 0.0
      %3961 = vmatpush1.msra.mxu0 %v3257
      %3962 = vmatprep.subr.mxu0 0.0
      %3963 = vmatpush1.msra.mxu0 0.0
      %3964 = vmatprep.subr.mxu0 0.0
      %3965 = vmatpush1.msra.mxu0 0.0
      %3966 = vmatprep.subr.mxu0 0.0
      %3967 = vmatpush1.msra.mxu0 0.0
      %3968 = vmatprep.subr.mxu0 0.0
      %3969 = vmatpush1.msra.mxu0 0.0
      %3970 = vmatprep.subr.mxu0 0.0
      %3971 = vmatpush1.msra.mxu0 0.0
      %3972 = vmatprep.subr.mxu0 0.0
      %3973 = vmatpush1.msra.mxu0 0.0
      %3974 = vmatprep.subr.mxu0 0.0
      %3975 = vmatpush1.msra.mxu0 0.0
      %3976 = vmatprep.subr.mxu0 0.0
      %3977 = vmatpush1.msra.mxu0 0.0
      %3978 = vmatprep.subr.mxu0 0.0
      %3979 = vmatpush1.msra.mxu0 0.0
      %3980 = vmatprep.subr.mxu0 0.0
      %3981 = vmatpush1.msra.mxu0 0.0
      %3982 = vmatprep.subr.mxu0 0.0
      %3983 = vmatpush1.msra.mxu0 0.0
      %3984 = vmatprep.subr.mxu0 0.0
      %3985 = vmatpush1.msra.mxu0 0.0
      %3986 = vmatprep.subr.mxu0 0.0
      %3987 = vmatpush1.msra.mxu0 0.0
      %3988 = vmatprep.subr.mxu0 0.0
      %3989 = vmatpush1.msra.mxu0 0.0
      %3990 = vmatprep.subr.mxu0 0.0
      %3991 = vmatpush1.msra.mxu0 0.0
      %3992 = vmatprep.subr.mxu0 0.0
      %3993 = vmatpush1.msra.mxu0 0.0
      %3994 = vmatprep.mubr.f32.mxu0 0.0
      %3995 = vmatmul.mubr.f32.gmra.mrb[0].mxu0 %v3106
      %v3996 = vpop.f32.mrb[0].mxu0
      %v3997 = vadd.f32 0.0, %v3996
      %v3998 = vpop.f32.mrb[0].mxu0
      %3999 = vdwg.mxu0
      %4000 = vmatprep.subr.mxu0 0.0
      %4001 = vmatpush1.msra.mxu0 %v3258
      %4002 = vmatprep.subr.mxu0 0.0
      %4003 = vmatpush1.msra.mxu0 %v3259
      %4004 = vmatprep.subr.mxu0 0.0
      %4005 = vmatpush1.msra.mxu0 %v3260
      %4006 = vmatprep.subr.mxu0 0.0
      %4007 = vmatpush1.msra.mxu0 %v3261
      %4008 = vmatprep.subr.mxu0 0.0
      %4009 = vmatpush1.msra.mxu0 %v3262
      %4010 = vmatprep.subr.mxu0 0.0
      %4011 = vmatpush1.msra.mxu0 %v3263
      %4012 = vmatprep.subr.mxu0 0.0
      %4013 = vmatpush1.msra.mxu0 %v3264
      %4014 = vmatprep.subr.mxu0 0.0
      %4015 = vmatpush1.msra.mxu0 %v3265
      %4016 = vmatprep.subr.mxu0 0.0
      %4017 = vmatpush1.msra.mxu0 %v3266
      %4018 = vmatprep.subr.mxu0 0.0
      %4019 = vmatpush1.msra.mxu0 %v3267
      %4020 = vmatprep.subr.mxu0 0.0
      %4021 = vmatpush1.msra.mxu0 %v3268
      %4022 = vmatprep.subr.mxu0 0.0
      %4023 = vmatpush1.msra.mxu0 %v3269
      %4024 = vmatprep.subr.mxu0 0.0
      %4025 = vmatpush1.msra.mxu0 %v3270
      %4026 = vmatprep.subr.mxu0 0.0
      %4027 = vmatpush1.msra.mxu0 %v3271
      %4028 = vmatprep.subr.mxu0 0.0
      %4029 = vmatpush1.msra.mxu0 %v3272
      %4030 = vmatprep.subr.mxu0 0.0
      %4031 = vmatpush1.msra.mxu0 %v3273
      %4032 = vmatprep.subr.mxu0 0.0
      %4033 = vmatpush1.msra.mxu0 0.0
      %4034 = vmatprep.subr.mxu0 0.0
      %4035 = vmatpush1.msra.mxu0 0.0
      %4036 = vmatprep.subr.mxu0 0.0
      %4037 = vmatpush1.msra.mxu0 0.0
      %4038 = vmatprep.subr.mxu0 0.0
      %4039 = vmatpush1.msra.mxu0 0.0
      %4040 = vmatprep.subr.mxu0 0.0
      %4041 = vmatpush1.msra.mxu0 0.0
      %4042 = vmatprep.subr.mxu0 0.0
      %4043 = vmatpush1.msra.mxu0 0.0
      %4044 = vmatprep.subr.mxu0 0.0
      %4045 = vmatpush1.msra.mxu0 0.0
      %4046 = vmatprep.subr.mxu0 0.0
      %4047 = vmatpush1.msra.mxu0 0.0
      %4048 = vmatprep.subr.mxu0 0.0
      %4049 = vmatpush1.msra.mxu0 0.0
      %4050 = vmatprep.subr.mxu0 0.0
      %4051 = vmatpush1.msra.mxu0 0.0
      %4052 = vmatprep.subr.mxu0 0.0
      %4053 = vmatpush1.msra.mxu0 0.0
      %4054 = vmatprep.subr.mxu0 0.0
      %4055 = vmatpush1.msra.mxu0 0.0
      %4056 = vmatprep.subr.mxu0 0.0
      %4057 = vmatpush1.msra.mxu0 0.0
      %4058 = vmatprep.subr.mxu0 0.0
      %4059 = vmatpush1.msra.mxu0 0.0
      %4060 = vmatprep.subr.mxu0 0.0
      %4061 = vmatpush1.msra.mxu0 0.0
      %4062 = vmatprep.subr.mxu0 0.0
      %4063 = vmatpush1.msra.mxu0 0.0
      %4064 = vmatprep.mubr.f32.mxu0 0.0
      %4065 = vmatmul.mubr.f32.gmra.mrb[0].mxu0 %v3107
      %v4066 = vpop.f32.mrb[0].mxu0
      %v4067 = vadd.f32 0.0, %v4066
      %v4068 = vpop.f32.mrb[0].mxu0
      %4069 = vdwg.mxu0
      %4070 = vmatprep.subr.mxu0 0.0
      %4071 = vmatpush1.msra.mxu0 %v3274
      %4072 = vmatprep.subr.mxu0 0.0
      %4073 = vmatpush1.msra.mxu0 %v3275
      %4074 = vmatprep.subr.mxu0 0.0
      %4075 = vmatpush1.msra.mxu0 %v3276
      %4076 = vmatprep.subr.mxu0 0.0
      %4077 = vmatpush1.msra.mxu0 %v3277
      %4078 = vmatprep.subr.mxu0 0.0
      %4079 = vmatpush1.msra.mxu0 %v3278
      %4080 = vmatprep.subr.mxu0 0.0
      %4081 = vmatpush1.msra.mxu0 %v3279
      %4082 = vmatprep.subr.mxu0 0.0
      %4083 = vmatpush1.msra.mxu0 %v3280
      %4084 = vmatprep.subr.mxu0 0.0
      %4085 = vmatpush1.msra.mxu0 %v3281
      %4086 = vmatprep.subr.mxu0 0.0
      %4087 = vmatpush1.msra.mxu0 %v3282
      %4088 = vmatprep.subr.mxu0 0.0
      %4089 = vmatpush1.msra.mxu0 %v3283
      %4090 = vmatprep.subr.mxu0 0.0
      %4091 = vmatpush1.msra.mxu0 %v3284
      %4092 = vmatprep.subr.mxu0 0.0
      %4093 = vmatpush1.msra.mxu0 %v3285
      %4094 = vmatprep.subr.mxu0 0.0
      %4095 = vmatpush1.msra.mxu0 %v3286
      %4096 = vmatprep.subr.mxu0 0.0
      %4097 = vmatpush1.msra.mxu0 %v3287
      %4098 = vmatprep.subr.mxu0 0.0
      %4099 = vmatpush1.msra.mxu0 %v3288
      %4100 = vmatprep.subr.mxu0 0.0
      %4101 = vmatpush1.msra.mxu0 %v3289
      %4102 = vmatprep.subr.mxu0 0.0
      %4103 = vmatpush1.msra.mxu0 0.0
      %4104 = vmatprep.subr.mxu0 0.0
      %4105 = vmatpush1.msra.mxu0 0.0
      %4106 = vmatprep.subr.mxu0 0.0
      %4107 = vmatpush1.msra.mxu0 0.0
      %4108 = vmatprep.subr.mxu0 0.0
      %4109 = vmatpush1.msra.mxu0 0.0
      %4110 = vmatprep.subr.mxu0 0.0
      %4111 = vmatpush1.msra.mxu0 0.0
      %4112 = vmatprep.subr.mxu0 0.0
      %4113 = vmatpush1.msra.mxu0 0.0
      %4114 = vmatprep.subr.mxu0 0.0
      %4115 = vmatpush1.msra.mxu0 0.0
      %4116 = vmatprep.subr.mxu0 0.0
      %4117 = vmatpush1.msra.mxu0 0.0
      %4118 = vmatprep.subr.mxu0 0.0
      %4119 = vmatpush1.msra.mxu0 0.0
      %4120 = vmatprep.subr.mxu0 0.0
      %4121 = vmatpush1.msra.mxu0 0.0
      %4122 = vmatprep.subr.mxu0 0.0
      %4123 = vmatpush1.msra.mxu0 0.0
      %4124 = vmatprep.subr.mxu0 0.0
      %4125 = vmatpush1.msra.mxu0 0.0
      %4126 = vmatprep.subr.mxu0 0.0
      %4127 = vmatpush1.msra.mxu0 0.0
      %4128 = vmatprep.subr.mxu0 0.0
      %4129 = vmatpush1.msra.mxu0 0.0
      %4130 = vmatprep.subr.mxu0 0.0
      %4131 = vmatpush1.msra.mxu0 0.0
      %4132 = vmatprep.subr.mxu0 0.0
      %4133 = vmatpush1.msra.mxu0 0.0
      %4134 = vmatprep.mubr.f32.mxu0 0.0
      %4135 = vmatmul.mubr.f32.gmra.mrb[0].mxu0 %v3108
      %v4136 = vpop.f32.mrb[0].mxu0
      %v4137 = vadd.f32 0.0, %v4136
      %v4138 = vpop.f32.mrb[0].mxu0
      %4139 = vdwg.mxu0
      %4140 = vmatprep.subr.mxu0 0.0
      %4141 = vmatpush1.msra.mxu0 %v3290
      %4142 = vmatprep.subr.mxu0 0.0
      %4143 = vmatpush1.msra.mxu0 %v3291
      %4144 = vmatprep.subr.mxu0 0.0
      %4145 = vmatpush1.msra.mxu0 %v3292
      %4146 = vmatprep.subr.mxu0 0.0
      %4147 = vmatpush1.msra.mxu0 %v3293
      %4148 = vmatprep.subr.mxu0 0.0
      %4149 = vmatpush1.msra.mxu0 %v3294
      %4150 = vmatprep.subr.mxu0 0.0
      %4151 = vmatpush1.msra.mxu0 %v3295
      %4152 = vmatprep.subr.mxu0 0.0
      %4153 = vmatpush1.msra.mxu0 %v3296
      %4154 = vmatprep.subr.mxu0 0.0
      %4155 = vmatpush1.msra.mxu0 %v3297
      %4156 = vmatprep.subr.mxu0 0.0
      %4157 = vmatpush1.msra.mxu0 %v3298
      %4158 = vmatprep.subr.mxu0 0.0
      %4159 = vmatpush1.msra.mxu0 %v3299
      %4160 = vmatprep.subr.mxu0 0.0
      %4161 = vmatpush1.msra.mxu0 %v3300
      %4162 = vmatprep.subr.mxu0 0.0
      %4163 = vmatpush1.msra.mxu0 %v3301
      %4164 = vmatprep.subr.mxu0 0.0
      %4165 = vmatpush1.msra.mxu0 %v3302
      %4166 = vmatprep.subr.mxu0 0.0
      %4167 = vmatpush1.msra.mxu0 %v3303
      %4168 = vmatprep.subr.mxu0 0.0
      %4169 = vmatpush1.msra.mxu0 %v3304
      %4170 = vmatprep.subr.mxu0 0.0
      %4171 = vmatpush1.msra.mxu0 %v3305
      %4172 = vmatprep.subr.mxu0 0.0
      %4173 = vmatpush1.msra.mxu0 0.0
      %4174 = vmatprep.subr.mxu0 0.0
      %4175 = vmatpush1.msra.mxu0 0.0
      %4176 = vmatprep.subr.mxu0 0.0
      %4177 = vmatpush1.msra.mxu0 0.0
      %4178 = vmatprep.subr.mxu0 0.0
      %4179 = vmatpush1.msra.mxu0 0.0
      %4180 = vmatprep.subr.mxu0 0.0
      %4181 = vmatpush1.msra.mxu0 0.0
      %4182 = vmatprep.subr.mxu0 0.0
      %4183 = vmatpush1.msra.mxu0 0.0
      %4184 = vmatprep.subr.mxu0 0.0
      %4185 = vmatpush1.msra.mxu0 0.0
      %4186 = vmatprep.subr.mxu0 0.0
      %4187 = vmatpush1.msra.mxu0 0.0
      %4188 = vmatprep.subr.mxu0 0.0
      %4189 = vmatpush1.msra.mxu0 0.0
      %4190 = vmatprep.subr.mxu0 0.0
      %4191 = vmatpush1.msra.mxu0 0.0
      %4192 = vmatprep.subr.mxu0 0.0
      %4193 = vmatpush1.msra.mxu0 0.0
      %4194 = vmatprep.subr.mxu0 0.0
      %4195 = vmatpush1.msra.mxu0 0.0
      %4196 = vmatprep.subr.mxu0 0.0
      %4197 = vmatpush1.msra.mxu0 0.0
      %4198 = vmatprep.subr.mxu0 0.0
      %4199 = vmatpush1.msra.mxu0 0.0
      %4200 = vmatprep.subr.mxu0 0.0
      %4201 = vmatpush1.msra.mxu0 0.0
      %4202 = vmatprep.subr.mxu0 0.0
      %4203 = vmatpush1.msra.mxu0 0.0
      %4204 = vmatprep.mubr.f32.mxu0 0.0
      %4205 = vmatmul.mubr.f32.gmra.mrb[0].mxu0 %v3109
      %v4206 = vpop.f32.mrb[0].mxu0
      %v4207 = vadd.f32 0.0, %v4206
      %v4208 = vpop.f32.mrb[0].mxu0
      %4209 = vdwg.mxu0
      %4210 = vmatprep.subr.mxu0 0.0
      %4211 = vmatpush1.msra.mxu0 %v3306
      %4212 = vmatprep.subr.mxu0 0.0
      %4213 = vmatpush1.msra.mxu0 %v3307
      %4214 = vmatprep.subr.mxu0 0.0
      %4215 = vmatpush1.msra.mxu0 %v3308
      %4216 = vmatprep.subr.mxu0 0.0
      %4217 = vmatpush1.msra.mxu0 %v3309
      %4218 = vmatprep.subr.mxu0 0.0
      %4219 = vmatpush1.msra.mxu0 %v3310
      %4220 = vmatprep.subr.mxu0 0.0
      %4221 = vmatpush1.msra.mxu0 %v3311
      %4222 = vmatprep.subr.mxu0 0.0
      %4223 = vmatpush1.msra.mxu0 %v3312
      %4224 = vmatprep.subr.mxu0 0.0
      %4225 = vmatpush1.msra.mxu0 %v3313
      %4226 = vmatprep.subr.mxu0 0.0
      %4227 = vmatpush1.msra.mxu0 %v3314
      %4228 = vmatprep.subr.mxu0 0.0
      %4229 = vmatpush1.msra.mxu0 %v3315
      %4230 = vmatprep.subr.mxu0 0.0
      %4231 = vmatpush1.msra.mxu0 %v3316
      %4232 = vmatprep.subr.mxu0 0.0
      %4233 = vmatpush1.msra.mxu0 %v3317
      %4234 = vmatprep.subr.mxu0 0.0
      %4235 = vmatpush1.msra.mxu0 %v3318
      %4236 = vmatprep.subr.mxu0 0.0
      %4237 = vmatpush1.msra.mxu0 %v3319
      %4238 = vmatprep.subr.mxu0 0.0
      %4239 = vmatpush1.msra.mxu0 %v3320
      %4240 = vmatprep.subr.mxu0 0.0
      %4241 = vmatpush1.msra.mxu0 %v3321
      %4242 = vmatprep.subr.mxu0 0.0
      %4243 = vmatpush1.msra.mxu0 0.0
      %4244 = vmatprep.subr.mxu0 0.0
      %4245 = vmatpush1.msra.mxu0 0.0
      %4246 = vmatprep.subr.mxu0 0.0
      %4247 = vmatpush1.msra.mxu0 0.0
      %4248 = vmatprep.subr.mxu0 0.0
      %4249 = vmatpush1.msra.mxu0 0.0
      %4250 = vmatprep.subr.mxu0 0.0
      %4251 = vmatpush1.msra.mxu0 0.0
      %4252 = vmatprep.subr.mxu0 0.0
      %4253 = vmatpush1.msra.mxu0 0.0
      %4254 = vmatprep.subr.mxu0 0.0
      %4255 = vmatpush1.msra.mxu0 0.0
      %4256 = vmatprep.subr.mxu0 0.0
      %4257 = vmatpush1.msra.mxu0 0.0
      %4258 = vmatprep.subr.mxu0 0.0
      %4259 = vmatpush1.msra.mxu0 0.0
      %4260 = vmatprep.subr.mxu0 0.0
      %4261 = vmatpush1.msra.mxu0 0.0
      %4262 = vmatprep.subr.mxu0 0.0
      %4263 = vmatpush1.msra.mxu0 0.0
      %4264 = vmatprep.subr.mxu0 0.0
      %4265 = vmatpush1.msra.mxu0 0.0
      %4266 = vmatprep.subr.mxu0 0.0
      %4267 = vmatpush1.msra.mxu0 0.0
      %4268 = vmatprep.subr.mxu0 0.0
      %4269 = vmatpush1.msra.mxu0 0.0
      %4270 = vmatprep.subr.mxu0 0.0
      %4271 = vmatpush1.msra.mxu0 0.0
      %4272 = vmatprep.subr.mxu0 0.0
      %4273 = vmatpush1.msra.mxu0 0.0
      %4274 = vmatprep.mubr.f32.mxu0 0.0
      %4275 = vmatmul.mubr.f32.gmra.mrb[0].mxu0 %v3110
      %v4276 = vpop.f32.mrb[0].mxu0
      %v4277 = vadd.f32 0.0, %v4276
      %v4278 = vpop.f32.mrb[0].mxu0
      %4279 = vdwg.mxu0
      %4280 = vmatprep.subr.mxu0 0.0
      %4281 = vmatpush1.msra.mxu0 %v3322
      %4282 = vmatprep.subr.mxu0 0.0
      %4283 = vmatpush1.msra.mxu0 %v3323
      %4284 = vmatprep.subr.mxu0 0.0
      %4285 = vmatpush1.msra.mxu0 %v3324
      %4286 = vmatprep.subr.mxu0 0.0
      %4287 = vmatpush1.msra.mxu0 %v3325
      %4288 = vmatprep.subr.mxu0 0.0
      %4289 = vmatpush1.msra.mxu0 %v3326
      %4290 = vmatprep.subr.mxu0 0.0
      %4291 = vmatpush1.msra.mxu0 %v3327
      %4292 = vmatprep.subr.mxu0 0.0
      %4293 = vmatpush1.msra.mxu0 %v3328
      %4294 = vmatprep.subr.mxu0 0.0
      %4295 = vmatpush1.msra.mxu0 %v3329
      %4296 = vmatprep.subr.mxu0 0.0
      %4297 = vmatpush1.msra.mxu0 %v3330
      %4298 = vmatprep.subr.mxu0 0.0
      %4299 = vmatpush1.msra.mxu0 %v3331
      %4300 = vmatprep.subr.mxu0 0.0
      %4301 = vmatpush1.msra.mxu0 %v3332
      %4302 = vmatprep.subr.mxu0 0.0
      %4303 = vmatpush1.msra.mxu0 %v3333
      %4304 = vmatprep.subr.mxu0 0.0
      %4305 = vmatpush1.msra.mxu0 %v3334
      %4306 = vmatprep.subr.mxu0 0.0
      %4307 = vmatpush1.msra.mxu0 %v3335
      %4308 = vmatprep.subr.mxu0 0.0
      %4309 = vmatpush1.msra.mxu0 %v3336
      %4310 = vmatprep.subr.mxu0 0.0
      %4311 = vmatpush1.msra.mxu0 %v3337
      %4312 = vmatprep.subr.mxu0 0.0
      %4313 = vmatpush1.msra.mxu0 0.0
      %4314 = vmatprep.subr.mxu0 0.0
      %4315 = vmatpush1.msra.mxu0 0.0
      %4316 = vmatprep.subr.mxu0 0.0
      %4317 = vmatpush1.msra.mxu0 0.0
      %4318 = vmatprep.subr.mxu0 0.0
      %4319 = vmatpush1.msra.mxu0 0.0
      %4320 = vmatprep.subr.mxu0 0.0
      %4321 = vmatpush1.msra.mxu0 0.0
      %4322 = vmatprep.subr.mxu0 0.0
      %4323 = vmatpush1.msra.mxu0 0.0
      %4324 = vmatprep.subr.mxu0 0.0
      %4325 = vmatpush1.msra.mxu0 0.0
      %4326 = vmatprep.subr.mxu0 0.0
      %4327 = vmatpush1.msra.mxu0 0.0
      %4328 = vmatprep.subr.mxu0 0.0
      %4329 = vmatpush1.msra.mxu0 0.0
      %4330 = vmatprep.subr.mxu0 0.0
      %4331 = vmatpush1.msra.mxu0 0.0
      %4332 = vmatprep.subr.mxu0 0.0
      %4333 = vmatpush1.msra.mxu0 0.0
      %4334 = vmatprep.subr.mxu0 0.0
      %4335 = vmatpush1.msra.mxu0 0.0
      %4336 = vmatprep.subr.mxu0 0.0
      %4337 = vmatpush1.msra.mxu0 0.0
      %4338 = vmatprep.subr.mxu0 0.0
      %4339 = vmatpush1.msra.mxu0 0.0
      %4340 = vmatprep.subr.mxu0 0.0
      %4341 = vmatpush1.msra.mxu0 0.0
      %4342 = vmatprep.subr.mxu0 0.0
      %4343 = vmatpush1.msra.mxu0 0.0
      %4344 = vmatprep.mubr.f32.mxu0 0.0
      %4345 = vmatmul.mubr.f32.gmra.mrb[0].mxu0 %v3111
      %v4346 = vpop.f32.mrb[0].mxu0
      %v4347 = vadd.f32 0.0, %v4346
      %v4348 = vpop.f32.mrb[0].mxu0
      %4349 = vdwg.mxu0
      %4350 = vmatprep.subr.mxu0 0.0
      %4351 = vmatpush1.msra.mxu0 %v3338
      %4352 = vmatprep.subr.mxu0 0.0
      %4353 = vmatpush1.msra.mxu0 %v3339
      %4354 = vmatprep.subr.mxu0 0.0
      %4355 = vmatpush1.msra.mxu0 %v3340
      %4356 = vmatprep.subr.mxu0 0.0
      %4357 = vmatpush1.msra.mxu0 %v3341
      %4358 = vmatprep.subr.mxu0 0.0
      %4359 = vmatpush1.msra.mxu0 %v3342
      %4360 = vmatprep.subr.mxu0 0.0
      %4361 = vmatpush1.msra.mxu0 %v3343
      %4362 = vmatprep.subr.mxu0 0.0
      %4363 = vmatpush1.msra.mxu0 %v3344
      %4364 = vmatprep.subr.mxu0 0.0
      %4365 = vmatpush1.msra.mxu0 %v3345
      %4366 = vmatprep.subr.mxu0 0.0
      %4367 = vmatpush1.msra.mxu0 %v3346
      %4368 = vmatprep.subr.mxu0 0.0
      %4369 = vmatpush1.msra.mxu0 %v3347
      %4370 = vmatprep.subr.mxu0 0.0
      %4371 = vmatpush1.msra.mxu0 %v3348
      %4372 = vmatprep.subr.mxu0 0.0
      %4373 = vmatpush1.msra.mxu0 %v3349
      %4374 = vmatprep.subr.mxu0 0.0
      %4375 = vmatpush1.msra.mxu0 %v3350
      %4376 = vmatprep.subr.mxu0 0.0
      %4377 = vmatpush1.msra.mxu0 %v3351
      %4378 = vmatprep.subr.mxu0 0.0
      %4379 = vmatpush1.msra.mxu0 %v3352
      %4380 = vmatprep.subr.mxu0 0.0
      %4381 = vmatpush1.msra.mxu0 %v3353
      %4382 = vmatprep.subr.mxu0 0.0
      %4383 = vmatpush1.msra.mxu0 0.0
      %4384 = vmatprep.subr.mxu0 0.0
      %4385 = vmatpush1.msra.mxu0 0.0
      %4386 = vmatprep.subr.mxu0 0.0
      %4387 = vmatpush1.msra.mxu0 0.0
      %4388 = vmatprep.subr.mxu0 0.0
      %4389 = vmatpush1.msra.mxu0 0.0
      %4390 = vmatprep.subr.mxu0 0.0
      %4391 = vmatpush1.msra.mxu0 0.0
      %4392 = vmatprep.subr.mxu0 0.0
      %4393 = vmatpush1.msra.mxu0 0.0
      %4394 = vmatprep.subr.mxu0 0.0
      %4395 = vmatpush1.msra.mxu0 0.0
      %4396 = vmatprep.subr.mxu0 0.0
      %4397 = vmatpush1.msra.mxu0 0.0
      %4398 = vmatprep.subr.mxu0 0.0
      %4399 = vmatpush1.msra.mxu0 0.0
      %4400 = vmatprep.subr.mxu0 0.0
      %4401 = vmatpush1.msra.mxu0 0.0
      %4402 = vmatprep.subr.mxu0 0.0
      %4403 = vmatpush1.msra.mxu0 0.0
      %4404 = vmatprep.subr.mxu0 0.0
      %4405 = vmatpush1.msra.mxu0 0.0
      %4406 = vmatprep.subr.mxu0 0.0
      %4407 = vmatpush1.msra.mxu0 0.0
      %4408 = vmatprep.subr.mxu0 0.0
      %4409 = vmatpush1.msra.mxu0 0.0
      %4410 = vmatprep.subr.mxu0 0.0
      %4411 = vmatpush1.msra.mxu0 0.0
      %4412 = vmatprep.subr.mxu0 0.0
      %4413 = vmatpush1.msra.mxu0 0.0
      %4414 = vmatprep.mubr.f32.mxu0 0.0
      %4415 = vmatmul.mubr.f32.gmra.mrb[0].mxu0 %v3112
      %v4416 = vpop.f32.mrb[0].mxu0
      %v4417 = vadd.f32 0.0, %v4416
      %v4418 = vpop.f32.mrb[0].mxu0
      %4419 = vdwg.mxu0
      %4420 = vmatprep.subr.mxu0 0.0
      %4421 = vmatpush1.msra.mxu0 %v3354
      %4422 = vmatprep.subr.mxu0 0.0
      %4423 = vmatpush1.msra.mxu0 %v3355
      %4424 = vmatprep.subr.mxu0 0.0
      %4425 = vmatpush1.msra.mxu0 %v3356
      %4426 = vmatprep.subr.mxu0 0.0
      %4427 = vmatpush1.msra.mxu0 %v3357
      %4428 = vmatprep.subr.mxu0 0.0
      %4429 = vmatpush1.msra.mxu0 %v3358
      %4430 = vmatprep.subr.mxu0 0.0
      %4431 = vmatpush1.msra.mxu0 %v3359
      %4432 = vmatprep.subr.mxu0 0.0
      %4433 = vmatpush1.msra.mxu0 %v3360
      %4434 = vmatprep.subr.mxu0 0.0
      %4435 = vmatpush1.msra.mxu0 %v3361
      %4436 = vmatprep.subr.mxu0 0.0
      %4437 = vmatpush1.msra.mxu0 %v3362
      %4438 = vmatprep.subr.mxu0 0.0
      %4439 = vmatpush1.msra.mxu0 %v3363
      %4440 = vmatprep.subr.mxu0 0.0
      %4441 = vmatpush1.msra.mxu0 %v3364
      %4442 = vmatprep.subr.mxu0 0.0
      %4443 = vmatpush1.msra.mxu0 %v3365
      %4444 = vmatprep.subr.mxu0 0.0
      %4445 = vmatpush1.msra.mxu0 %v3366
      %4446 = vmatprep.subr.mxu0 0.0
      %4447 = vmatpush1.msra.mxu0 %v3367
      %4448 = vmatprep.subr.mxu0 0.0
      %4449 = vmatpush1.msra.mxu0 %v3368
      %4450 = vmatprep.subr.mxu0 0.0
      %4451 = vmatpush1.msra.mxu0 %v3369
      %4452 = vmatprep.subr.mxu0 0.0
      %4453 = vmatpush1.msra.mxu0 0.0
      %4454 = vmatprep.subr.mxu0 0.0
      %4455 = vmatpush1.msra.mxu0 0.0
      %4456 = vmatprep.subr.mxu0 0.0
      %4457 = vmatpush1.msra.mxu0 0.0
      %4458 = vmatprep.subr.mxu0 0.0
      %4459 = vmatpush1.msra.mxu0 0.0
      %4460 = vmatprep.subr.mxu0 0.0
      %4461 = vmatpush1.msra.mxu0 0.0
      %4462 = vmatprep.subr.mxu0 0.0
      %4463 = vmatpush1.msra.mxu0 0.0
      %4464 = vmatprep.subr.mxu0 0.0
      %4465 = vmatpush1.msra.mxu0 0.0
      %4466 = vmatprep.subr.mxu0 0.0
      %4467 = vmatpush1.msra.mxu0 0.0
      %4468 = vmatprep.subr.mxu0 0.0
      %4469 = vmatpush1.msra.mxu0 0.0
      %4470 = vmatprep.subr.mxu0 0.0
      %4471 = vmatpush1.msra.mxu0 0.0
      %4472 = vmatprep.subr.mxu0 0.0
      %4473 = vmatpush1.msra.mxu0 0.0
      %4474 = vmatprep.subr.mxu0 0.0
      %4475 = vmatpush1.msra.mxu0 0.0
      %4476 = vmatprep.subr.mxu0 0.0
      %4477 = vmatpush1.msra.mxu0 0.0
      %4478 = vmatprep.subr.mxu0 0.0
      %4479 = vmatpush1.msra.mxu0 0.0
      %4480 = vmatprep.subr.mxu0 0.0
      %4481 = vmatpush1.msra.mxu0 0.0
      %4482 = vmatprep.subr.mxu0 0.0
      %4483 = vmatpush1.msra.mxu0 0.0
      %4484 = vmatprep.mubr.f32.mxu0 0.0
      %4485 = vmatmul.mubr.f32.gmra.mrb[0].mxu0 %v3113
      %v4486 = vpop.f32.mrb[0].mxu0
      %v4487 = vadd.f32 0.0, %v4486
      %v4488 = vpop.f32.mrb[0].mxu0
      %4489 = vdwg.mxu0
      %v4490 = vsub.f32 %v925, %v2045
      %v4491 = vsub.f32 %v995, %v2115
      %v4492 = vsub.f32 %v1065, %v2185
      %v4493 = vsub.f32 %v1135, %v2255
      %v4494 = vsub.f32 %v1205, %v2325
      %v4495 = vsub.f32 %v1275, %v2395
      %v4496 = vsub.f32 %v1345, %v2465
      %v4497 = vsub.f32 %v1415, %v2535
      %v4498 = vsub.f32 %v1485, %v2605
      %v4499 = vsub.f32 %v1555, %v2675
      %v4500 = vsub.f32 %v1625, %v2745
      %v4501 = vsub.f32 %v1695, %v2815
      %v4502 = vsub.f32 %v1765, %v2885
      %v4503 = vsub.f32 %v1835, %v2955
      %v4504 = vsub.f32 %v1905, %v3025
      %v4505 = vsub.f32 %v1975, %v3095
      %4506 = vst [vmem:[%s306] sm:$0x3] %v4490
      %4507 = vst [vmem:[%s306 + $0x2] sm:$0x3] %v4491
      %4508 = vst [vmem:[%s306 + $0x4] sm:$0x3] %v4492
      %4509 = vst [vmem:[%s306 + $0x6] sm:$0x3] %v4493
      %4510 = vst [vmem:[%s306 + $0x8] sm:$0x3] %v4494
      %4511 = vst [vmem:[%s306 + $0xa] sm:$0x3] %v4495
      %4512 = vst [vmem:[%s306 + $0xc] sm:$0x3] %v4496
      %4513 = vst [vmem:[%s306 + $0xe] sm:$0x3] %v4497
      %4514 = vst [vmem:[%s306 + $0x10] sm:$0x3] %v4498
      %4515 = vst [vmem:[%s306 + $0x12] sm:$0x3] %v4499
      %4516 = vst [vmem:[%s306 + $0x14] sm:$0x3] %v4500
      %4517 = vst [vmem:[%s306 + $0x16] sm:$0x3] %v4501
      %4518 = vst [vmem:[%s306 + $0x18] sm:$0x3] %v4502
      %4519 = vst [vmem:[%s306 + $0x1a] sm:$0x3] %v4503
      %4520 = vst [vmem:[%s306 + $0x1c] sm:$0x3] %v4504
      %4521 = vst [vmem:[%s306 + $0x1e] sm:$0x3] %v4505
      %v4522 = vsub.f32 %v3437, %v925
      %v4523 = vsub.f32 %v3507, %v995
      %v4524 = vsub.f32 %v3577, %v1065
      %v4525 = vsub.f32 %v3647, %v1135
      %v4526 = vsub.f32 %v3717, %v1205
      %v4527 = vsub.f32 %v3787, %v1275
      %v4528 = vsub.f32 %v3857, %v1345
      %v4529 = vsub.f32 %v3927, %v1415
      %v4530 = vsub.f32 %v3997, %v1485
      %v4531 = vsub.f32 %v4067, %v1555
      %v4532 = vsub.f32 %v4137, %v1625
      %v4533 = vsub.f32 %v4207, %v1695
      %v4534 = vsub.f32 %v4277, %v1765
      %v4535 = vsub.f32 %v4347, %v1835
      %v4536 = vsub.f32 %v4417, %v1905
      %v4537 = vsub.f32 %v4487, %v1975
      %v4538 = vsub.f32 %v4522, %v2045
      %v4539 = vsub.f32 %v4523, %v2115
      %v4540 = vsub.f32 %v4524, %v2185
      %v4541 = vsub.f32 %v4525, %v2255
      %v4542 = vsub.f32 %v4526, %v2325
      %v4543 = vsub.f32 %v4527, %v2395
      %v4544 = vsub.f32 %v4528, %v2465
      %v4545 = vsub.f32 %v4529, %v2535
      %v4546 = vsub.f32 %v4530, %v2605
      %v4547 = vsub.f32 %v4531, %v2675
      %v4548 = vsub.f32 %v4532, %v2745
      %v4549 = vsub.f32 %v4533, %v2815
      %v4550 = vsub.f32 %v4534, %v2885
      %v4551 = vsub.f32 %v4535, %v2955
      %v4552 = vsub.f32 %v4536, %v3025
      %v4553 = vsub.f32 %v4537, %v3095
      %4554 = vst [vmem:[%s312] sm:$0x3] %v4538
      %4555 = vst [vmem:[%s312 + $0x2] sm:$0x3] %v4539
      %4556 = vst [vmem:[%s312 + $0x4] sm:$0x3] %v4540
      %4557 = vst [vmem:[%s312 + $0x6] sm:$0x3] %v4541
      %4558 = vst [vmem:[%s312 + $0x8] sm:$0x3] %v4542
      %4559 = vst [vmem:[%s312 + $0xa] sm:$0x3] %v4543
      %4560 = vst [vmem:[%s312 + $0xc] sm:$0x3] %v4544
      %4561 = vst [vmem:[%s312 + $0xe] sm:$0x3] %v4545
      %4562 = vst [vmem:[%s312 + $0x10] sm:$0x3] %v4546
      %4563 = vst [vmem:[%s312 + $0x12] sm:$0x3] %v4547
      %4564 = vst [vmem:[%s312 + $0x14] sm:$0x3] %v4548
      %4565 = vst [vmem:[%s312 + $0x16] sm:$0x3] %v4549
      %4566 = vst [vmem:[%s312 + $0x18] sm:$0x3] %v4550
      %4567 = vst [vmem:[%s312 + $0x1a] sm:$0x3] %v4551
      %4568 = vst [vmem:[%s312 + $0x1c] sm:$0x3] %v4552
      %4569 = vst [vmem:[%s312 + $0x1e] sm:$0x3] %v4553
      %s4570 = smul.u32 16, %s17
      %p4571 = scmp.lt.s32.totalorder %s4570, 31
      %s4572 = scalar_select %p4571, %s4570, 31
      %s4573 = smul.addr %s4572, 2
      %s4574 = scalar_lea.vmem %s4, %s4573
      %s4575 = smul.u32 16, %s17
      %p4576 = scmp.lt.s32.totalorder %s4575, 31
      %s4577 = scalar_select %p4576, %s4575, 31
      %s4578 = smul.addr %s4577, 2
      %s4579 = scalar_lea.vmem %s5, %s4578
      // Predicated region
      $region37: #{fno3d_forward.7} parent=35 // pred_check
        %p4580 = pneg %p139
      $region38: #{fno3d_forward.7} parent=35 // pred_check_branch
        %4582 = sbr.rel (%p4580) target = $region40
      $region39: #{fno3d_forward.7} parent=35 // pred_region
        %s4583 = smul.u32 16, %s17
      $region40: #{fno3d_forward.7} parent=35 // pred_fallthru
        _
      // Predicated region
      $region41: #{fno3d_forward.7} parent=35 // pred_check
        %p4584 = pneg %p165
      $region42: #{fno3d_forward.7} parent=35 // pred_check_branch
        %4586 = sbr.rel (%p4584) target = $region44
      $region43: #{fno3d_forward.7} parent=35 // pred_region
        %s4587 = smul.u32 16, %s17
      $region44: #{fno3d_forward.7} parent=35 // pred_fallthru
        _
    $region36: #{fno3d_forward.7} parent=5 // pred_fallthru
      _
    %p4588 = scmp.le.s32.totalorder 2, %s12
    // Predicated region
    $region45: #{fno3d_forward.7} parent=5 // pred_check
      %p4589 = pneg %p4588
    $region46: #{fno3d_forward.7} parent=5 // pred_check_branch
      %4591 = sbr.rel (%p4589) target = $region48
    $region47: #{fno3d_forward.7} parent=5 // pred_region
      %s4592 = ssub.s32 %s12, 2
      // Predicated region
      $region49: #{fno3d_forward.7} parent=47 // pred_check
        %p4593 = pneg %p145
      $region50: #{fno3d_forward.7} parent=47 // pred_check_branch
        %4595 = sbr.rel (%p4593) target = $region52
      $region51: #{fno3d_forward.7} parent=47 // pred_region
        %s4596 = smul.u32 16, %s18
        %p4597 = scmp.lt.s32.totalorder %s4596, 31
        %s4598 = scalar_select %p4597, %s4596, 31
        %s4599 = smul.addr %s4598, 2
        %s4600 = scalar_lea.vmem %s4, %s4599
      $region52: #{fno3d_forward.7} parent=47 // pred_fallthru
        _
      // Predicated region
      $region53: #{fno3d_forward.7} parent=47 // pred_check
        %p4601 = pneg %p171
      $region54: #{fno3d_forward.7} parent=47 // pred_check_branch
        %4603 = sbr.rel (%p4601) target = $region56
      $region55: #{fno3d_forward.7} parent=47 // pred_region
        %s4604 = smul.u32 16, %s18
        %p4605 = scmp.lt.s32.totalorder %s4604, 31
        %s4606 = scalar_select %p4605, %s4604, 31
        %s4607 = smul.addr %s4606, 2
        %s4608 = scalar_lea.vmem %s5, %s4607
      $region56: #{fno3d_forward.7} parent=47 // pred_fallthru
        _
    $region48: #{fno3d_forward.7} parent=5 // pred_fallthru
      _
  $region6: #{fno3d_forward.7} parent=0 // loop_footer
    %s16 = sadd.s32 1, %s12
  $region7: #{fno3d_forward.7} parent=0 // loop_footer_branch
    %11 = sbr.rel target = $region3
  $region8: #{fno3d_forward.7} parent=0 // loop_exit
    _

// kernel: reverse.4
$region0: #{reverse.4}
  #allocation0 [shape = 's32[1]{0}', space=sflag, size = 0x4, scoped, tag = 'scoped memory for reverse.4']
  %s0 = inlined_call_operand.vmem [shape: f32[2,16,8,8,3], index: 0, kind: input, shape index: {}]
  %s1 = inlined_call_operand.vmem [shape: f32[2,16,8,8,3], index: 1, kind: output, shape index: {}]
  %s2 = scalar_lea.vmem %s0, 128
  %v3 = vld [vmem:[%s2] sm:$0xff]
  %4 = vst [vmem:[%s1] sm:$0xff] %v3
  %s5 = scalar_lea.vmem %s0, 320
  %v6 = vld [vmem:[%s5] sm:$0xff]
  %s7 = scalar_lea.vmem %s1, 192
  %8 = vst [vmem:[%s7] sm:$0xff] %v6
  %s9 = scalar_lea.vmem %s0, 64
  %v10 = vld [vmem:[%s9] sm:$0xff]
  %s11 = scalar_lea.vmem %s1, 64
  %12 = vst [vmem:[%s11] sm:$0xff] %v10
  %s13 = scalar_lea.vmem %s0, 256
  %v14 = vld [vmem:[%s13] sm:$0xff]
  %s15 = scalar_lea.vmem %s1, 256
  %16 = vst [vmem:[%s15] sm:$0xff] %v14
  %v17 = vld [vmem:[%s0] sm:$0xff]
  %s18 = scalar_lea.vmem %s1, 128
  %19 = vst [vmem:[%s18] sm:$0xff] %v17
  %s20 = scalar_lea.vmem %s0, 192
  %v21 = vld [vmem:[%s20] sm:$0xff]
  %s22 = scalar_lea.vmem %s1, 320
  %23 = vst [vmem:[%s22] sm:$0xff] %v21
  %s24 = scalar_lea.vmem %s0, 136
  %v25 = vld [vmem:[%s24] sm:$0xff]
  %s26 = scalar_lea.vmem %s1, 8
  %27 = vst [vmem:[%s26] sm:$0xff] %v25
  %s28 = scalar_lea.vmem %s0, 328
  %v29 = vld [vmem:[%s28] sm:$0xff]
  %s30 = scalar_lea.vmem %s1, 200
  %31 = vst [vmem:[%s30] sm:$0xff] %v29
  %s32 = scalar_lea.vmem %s0, 72
  %v33 = vld [vmem:[%s32] sm:$0xff]
  %s34 = scalar_lea.vmem %s1, 72
  %35 = vst [vmem:[%s34] sm:$0xff] %v33
  %s36 = scalar_lea.vmem %s0, 264
  %v37 = vld [vmem:[%s36] sm:$0xff]
  %s38 = scalar_lea.vmem %s1, 264
  %39 = vst [vmem:[%s38] sm:$0xff] %v37
  %s40 = scalar_lea.vmem %s0, 8
  %v41 = vld [vmem:[%s40] sm:$0xff]
  %s42 = scalar_lea.vmem %s1, 136
  %43 = vst [vmem:[%s42] sm:$0xff] %v41
  %s44 = scalar_lea.vmem %s0, 200
  %v45 = vld [vmem:[%s44] sm:$0xff]
  %s46 = scalar_lea.vmem %s1, 328
  %47 = vst [vmem:[%s46] sm:$0xff] %v45
  %s48 = scalar_lea.vmem %s0, 144
  %v49 = vld [vmem:[%s48] sm:$0xff]
  %s50 = scalar_lea.vmem %s1, 16
  %51 = vst [vmem:[%s50] sm:$0xff] %v49
  %s52 = scalar_lea.vmem %s0, 336
  %v53 = vld [vmem:[%s52] sm:$0xff]
  %s54 = scalar_lea.vmem %s1, 208
  %55 = vst [vmem:[%s54] sm:$0xff] %v53
  %s56 = scalar_lea.vmem %s0, 80
  %v57 = vld [vmem:[%s56] sm:$0xff]
  %s58 = scalar_lea.vmem %s1, 80
  %59 = vst [vmem:[%s58] sm:$0xff] %v57
  %s60 = scalar_lea.vmem %s0, 272
  %v61 = vld [vmem:[%s60] sm:$0xff]
  %s62 = scalar_lea.vmem %s1, 272
  %63 = vst [vmem:[%s62] sm:$0xff] %v61
  %s64 = scalar_lea.vmem %s0, 16
  %v65 = vld [vmem:[%s64] sm:$0xff]
  %s66 = scalar_lea.vmem %s1, 144
  %67 = vst [vmem:[%s66] sm:$0xff] %v65
  %s68 = scalar_lea.vmem %s0, 208
  %v69 = vld [vmem:[%s68] sm:$0xff]
  %s70 = scalar_lea.vmem %s1, 336
  %71 = vst [vmem:[%s70] sm:$0xff] %v69
  %s72 = scalar_lea.vmem %s0, 152
  %v73 = vld [vmem:[%s72] sm:$0xff]
  %s74 = scalar_lea.vmem %s1, 24
  %75 = vst [vmem:[%s74] sm:$0xff] %v73
  %s76 = scalar_lea.vmem %s0, 344
  %v77 = vld [vmem:[%s76] sm:$0xff]
  %s78 = scalar_lea.vmem %s1, 216
  %79 = vst [vmem:[%s78] sm:$0xff] %v77
  %s80 = scalar_lea.vmem %s0, 88
  %v81 = vld [vmem:[%s80] sm:$0xff]
  %s82 = scalar_lea.vmem %s1, 88
  %83 = vst [vmem:[%s82] sm:$0xff] %v81
  %s84 = scalar_lea.vmem %s0, 280
  %v85 = vld [vmem:[%s84] sm:$0xff]
  %s86 = scalar_lea.vmem %s1, 280
  %87 = vst [vmem:[%s86] sm:$0xff] %v85
  %s88 = scalar_lea.vmem %s0, 24
  %v89 = vld [vmem:[%s88] sm:$0xff]
  %s90 = scalar_lea.vmem %s1, 152
  %91 = vst [vmem:[%s90] sm:$0xff] %v89
  %s92 = scalar_lea.vmem %s0, 216
  %v93 = vld [vmem:[%s92] sm:$0xff]
  %s94 = scalar_lea.vmem %s1, 344
  %95 = vst [vmem:[%s94] sm:$0xff] %v93
  %s96 = scalar_lea.vmem %s0, 160
  %v97 = vld [vmem:[%s96] sm:$0xff]
  %s98 = scalar_lea.vmem %s1, 32
  %99 = vst [vmem:[%s98] sm:$0xff] %v97
  %s100 = scalar_lea.vmem %s0, 352
  %v101 = vld [vmem:[%s100] sm:$0xff]
  %s102 = scalar_lea.vmem %s1, 224
  %103 = vst [vmem:[%s102] sm:$0xff] %v101
  %s104 = scalar_lea.vmem %s0, 96
  %v105 = vld [vmem:[%s104] sm:$0xff]
  %s106 = scalar_lea.vmem %s1, 96
  %107 = vst [vmem:[%s106] sm:$0xff] %v105
  %s108 = scalar_lea.vmem %s0, 288
  %v109 = vld [vmem:[%s108] sm:$0xff]
  %s110 = scalar_lea.vmem %s1, 288
  %111 = vst [vmem:[%s110] sm:$0xff] %v109
  %s112 = scalar_lea.vmem %s0, 32
  %v113 = vld [vmem:[%s112] sm:$0xff]
  %s114 = scalar_lea.vmem %s1, 160
  %115 = vst [vmem:[%s114] sm:$0xff] %v113
  %s116 = scalar_lea.vmem %s0, 224
  %v117 = vld [vmem:[%s116] sm:$0xff]
  %s118 = scalar_lea.vmem %s1, 352
  %119 = vst [vmem:[%s118] sm:$0xff] %v117
  %s120 = scalar_lea.vmem %s0, 168
  %v121 = vld [vmem:[%s120] sm:$0xff]
  %s122 = scalar_lea.vmem %s1, 40
  %123 = vst [vmem:[%s122] sm:$0xff] %v121
  %s124 = scalar_lea.vmem %s0, 360
  %v125 = vld [vmem:[%s124] sm:$0xff]
  %s126 = scalar_lea.vmem %s1, 232
  %127 = vst [vmem:[%s126] sm:$0xff] %v125
  %s128 = scalar_lea.vmem %s0, 104
  %v129 = vld [vmem:[%s128] sm:$0xff]
  %s130 = scalar_lea.vmem %s1, 104
  %131 = vst [vmem:[%s130] sm:$0xff] %v129
  %s132 = scalar_lea.vmem %s0, 296
  %v133 = vld [vmem:[%s132] sm:$0xff]
  %s134 = scalar_lea.vmem %s1, 296
  %135 = vst [vmem:[%s134] sm:$0xff] %v133
  %s136 = scalar_lea.vmem %s0, 40
  %v137 = vld [vmem:[%s136] sm:$0xff]
  %s138 = scalar_lea.vmem %s1, 168
  %139 = vst [vmem:[%s138] sm:$0xff] %v137
  %s140 = scalar_lea.vmem %s0, 232
  %v141 = vld [vmem:[%s140] sm:$0xff]
  %s142 = scalar_lea.vmem %s1, 360
  %143 = vst [vmem:[%s142] sm:$0xff] %v141
  %s144 = scalar_lea.vmem %s0, 176
  %v145 = vld [vmem:[%s144] sm:$0xff]
  %s146 = scalar_lea.vmem %s1, 48
  %147 = vst [vmem:[%s146] sm:$0xff] %v145
  %s148 = scalar_lea.vmem %s0, 368
  %v149 = vld [vmem:[%s148] sm:$0xff]
  %s150 = scalar_lea.vmem %s1, 240
  %151 = vst [vmem:[%s150] sm:$0xff] %v149
  %s152 = scalar_lea.vmem %s0, 112
  %v153 = vld [vmem:[%s152] sm:$0xff]
  %s154 = scalar_lea.vmem %s1, 112
  %155 = vst [vmem:[%s154] sm:$0xff] %v153
  %s156 = scalar_lea.vmem %s0, 304
  %v157 = vld [vmem:[%s156] sm:$0xff]
  %s158 = scalar_lea.vmem %s1, 304
  %159 = vst [vmem:[%s158] sm:$0xff] %v157
  %s160 = scalar_lea.vmem %s0, 48
  %v161 = vld [vmem:[%s160] sm:$0xff]
  %s162 = scalar_lea.vmem %s1, 176
  %163 = vst [vmem:[%s162] sm:$0xff] %v161
  %s164 = scalar_lea.vmem %s0, 240
  %v165 = vld [vmem:[%s164] sm:$0xff]
  %s166 = scalar_lea.vmem %s1, 368
  %167 = vst [vmem:[%s166] sm:$0xff] %v165
  %s168 = scalar_lea.vmem %s0, 184
  %v169 = vld [vmem:[%s168] sm:$0xff]
  %s170 = scalar_lea.vmem %s1, 56
  %171 = vst [vmem:[%s170] sm:$0xff] %v169
  %s172 = scalar_lea.vmem %s0, 376
  %v173 = vld [vmem:[%s172] sm:$0xff]
  %s174 = scalar_lea.vmem %s1, 248
  %175 = vst [vmem:[%s174] sm:$0xff] %v173
  %s176 = scalar_lea.vmem %s0, 120
  %v177 = vld [vmem:[%s176] sm:$0xff]
  %s178 = scalar_lea.vmem %s1, 120
  %179 = vst [vmem:[%s178] sm:$0xff] %v177
  %s180 = scalar_lea.vmem %s0, 312
  %v181 = vld [vmem:[%s180] sm:$0xff]
  %s182 = scalar_lea.vmem %s1, 312
  %183 = vst [vmem:[%s182] sm:$0xff] %v181
  %s184 = scalar_lea.vmem %s0, 56
  %v185 = vld [vmem:[%s184] sm:$0xff]
  %s186 = scalar_lea.vmem %s1, 184
  %187 = vst [vmem:[%s186] sm:$0xff] %v185
  %s188 = scalar_lea.vmem %s0, 248
  %v189 = vld [vmem:[%s188] sm:$0xff]
  %s190 = scalar_lea.vmem %s1, 376
  %191 = vst [vmem:[%s190] sm:$0xff] %v189

// kernel: tile.30
$region0: #{tile.30}
  #allocation0 [shape = 's32[1]{0}', space=sflag, size = 0x4, scoped, tag = 'scoped memory for tile.30']
  %s0 = inlined_call_operand.vmem [shape: f32[16], index: 0, kind: input, shape index: {}]
  %s1 = inlined_call_operand.vmem [shape: f32[8,16], index: 1, kind: output, shape index: {}]
  // Predicated region
  $region2: #{tile.30} parent=0 // pred_check
    _
  $region3: #{tile.30} parent=0 // pred_check_branch
    %3 = sbr.rel (0) target = $region5
  $region4: #{tile.30} parent=0 // pred_region
    _
  $region5: #{tile.30} parent=0 // pred_fallthru
    _
  %v4 = vld [vmem:[%s0] ss:$0 sm:$0xff]
  %5 = vst [vmem:[%s1] sm:$0xff] %v4

// kernel: fno3d_forward.8
$region0: #{fno3d_forward.8}
  #allocation0 [shape = 'u32[]', space=smem, size = 0x4, offset = 0x4, fixed_abs, tag = 'smem constant byte address 0x4 - core index']
  #allocation1 [shape = 'u32[144,128]{1,0:T(1,128)}', space=vmem, size = 0x12000, scoped, tag = 'internal scratch']
  %s0 = inlined_call_operand.vmem [shape: f32[128,128], index: 0, kind: input, shape index: {}]
  %s1 = inlined_call_operand.vmem [shape: f32[128,128], index: 1, kind: input, shape index: {}]
  %s2 = inlined_call_operand.vmem [shape: f32[1,128], index: 2, kind: input, shape index: {}]
  %s3 = inlined_call_operand.vmem [shape: f32[128,128], index: 3, kind: input, shape index: {}]
  %s4 = inlined_call_operand.vmem [shape: f32[128,128], index: 4, kind: output, shape index: {}]
  %s5 = sld [smem:[#allocation0]]
  $region49: #{fno3d_forward.8} parent=0
    _
  %s7 = ssub.s32 1, %s5
  %s8 = scalar_select 0, %s7, %s5
  loop: start=0, step=1, limit=4
  $region2: #{fno3d_forward.8} parent=0 // loop_pre_header
    _
  $region3: #{fno3d_forward.8} parent=0 // loop_header
    %s10 = sphi 0, %s14
    %p11 = scmp.ge.s32.totalorder %s10, 4
    %s20 = sphi 0, %s22
    %s23 = sphi 0, %s20
    %s24 = sphi 0, %s23
    %s40 = sphi 0, %s24
    %s44 = sphi 0, %s44
    %s46 = sphi 0, %s44
    %s47 = sphi 0, %s46
    %s61 = sphi 0, %s47
    %s65 = sphi 0, %s65
    %s67 = sphi 0, %s65
    %s68 = sphi 0, %s67
    %s82 = sphi 0, %s68
    %s88 = sphi 0, %s90
    %s91 = sphi 0, %s88
    %s92 = sphi 0, %s91
    %s108 = sphi 0, %s92
    %s114 = sphi 0, %s116
    %s117 = sphi 0, %s114
    %s118 = sphi 0, %s117
    %s134 = sphi 0, %s118
  $region4: #{fno3d_forward.8} parent=0 // loop_header_branch
    %13 = sbr.rel (%p11) target = $region8
  $region5: #{fno3d_forward.8} parent=0 // loop_body
    %s15 = ssub.s32 %s10, 1
    %s16 = ssub.s32 %s10, 2
    %s17 = sadd.s32 %s10, 1
    %s18 = ssub.s32 %s10, %s17
    %p19 = scmp.eq.s32.totalorder %s18, 0
    %s21 = sadd.s32 %s20, 1
    %s22 = scalar_select %p19, %s20, %s21
    %p25 = pneg %p19
    %p26 = scmp.eq.s32.totalorder %s10, 1
    %p27 = por %p25, %p26
    %p28 = scmp.ne.s32.totalorder %s20, %s23
    %p29 = scmp.eq.s32.totalorder %s10, 0
    %p30 = por %p28, %p29
    %p31 = scmp.ne.s32.totalorder %s20, %s23
    %p32 = scmp.eq.s32.totalorder %s15, 1
    %p33 = por %p31, %p32
    %p34 = scmp.ne.s32.totalorder %s23, %s24
    %p35 = scmp.eq.s32.totalorder %s15, 0
    %p36 = por %p34, %p35
    %p37 = scmp.ne.s32.totalorder %s23, %s24
    %p38 = scmp.eq.s32.totalorder %s16, 1
    %p39 = por %p37, %p38
    %p41 = scmp.ne.s32.totalorder %s24, %s40
    %p42 = scmp.eq.s32.totalorder %s16, 0
    %p43 = por %p41, %p42
    %s45 = sadd.s32 %s44, 1
    %p48 = scmp.eq.s32.totalorder %s10, 1
    %p49 = scmp.ne.s32.totalorder %s44, %s46
    %p50 = scmp.eq.s32.totalorder %s10, 0
    %p51 = por %p49, %p50
    %p52 = scmp.ne.s32.totalorder %s44, %s46
    %p53 = scmp.eq.s32.totalorder %s15, 1
    %p54 = por %p52, %p53
    %p55 = scmp.ne.s32.totalorder %s46, %s47
    %p56 = scmp.eq.s32.totalorder %s15, 0
    %p57 = por %p55, %p56
    %p58 = scmp.ne.s32.totalorder %s46, %s47
    %p59 = scmp.eq.s32.totalorder %s16, 1
    %p60 = por %p58, %p59
    %p62 = scmp.ne.s32.totalorder %s47, %s61
    %p63 = scmp.eq.s32.totalorder %s16, 0
    %p64 = por %p62, %p63
    %s66 = sadd.s32 %s65, 1
    %p69 = scmp.eq.s32.totalorder %s10, 1
    %p70 = scmp.ne.s32.totalorder %s65, %s67
    %p71 = scmp.eq.s32.totalorder %s10, 0
    %p72 = por %p70, %p71
    %p73 = scmp.ne.s32.totalorder %s65, %s67
    %p74 = scmp.eq.s32.totalorder %s15, 1
    %p75 = por %p73, %p74
    %p76 = scmp.ne.s32.totalorder %s67, %s68
    %p77 = scmp.eq.s32.totalorder %s15, 0
    %p78 = por %p76, %p77
    %p79 = scmp.ne.s32.totalorder %s67, %s68
    %p80 = scmp.eq.s32.totalorder %s16, 1
    %p81 = por %p79, %p80
    %p83 = scmp.ne.s32.totalorder %s68, %s82
    %p84 = scmp.eq.s32.totalorder %s16, 0
    %p85 = por %p83, %p84
    %s86 = ssub.s32 %s10, %s17
    %p87 = scmp.eq.s32.totalorder %s86, 0
    %s89 = sadd.s32 %s88, 1
    %s90 = scalar_select %p87, %s88, %s89
    %p93 = pneg %p87
    %p94 = scmp.eq.s32.totalorder %s10, 1
    %p95 = por %p93, %p94
    %p96 = scmp.ne.s32.totalorder %s88, %s91
    %p97 = scmp.eq.s32.totalorder %s10, 0
    %p98 = por %p96, %p97
    %p99 = scmp.ne.s32.totalorder %s88, %s91
    %p100 = scmp.eq.s32.totalorder %s15, 1
    %p101 = por %p99, %p100
    %p102 = scmp.ne.s32.totalorder %s91, %s92
    %p103 = scmp.eq.s32.totalorder %s15, 0
    %p104 = por %p102, %p103
    %p105 = scmp.ne.s32.totalorder %s91, %s92
    %p106 = scmp.eq.s32.totalorder %s16, 1
    %p107 = por %p105, %p106
    %p109 = scmp.ne.s32.totalorder %s92, %s108
    %p110 = scmp.eq.s32.totalorder %s16, 0
    %p111 = por %p109, %p110
    %s112 = ssub.s32 %s10, %s17
    %p113 = scmp.eq.s32.totalorder %s112, 0
    %s115 = sadd.s32 %s114, 1
    %s116 = scalar_select %p113, %s114, %s115
    %p119 = pneg %p113
    %p120 = scmp.eq.s32.totalorder %s10, 1
    %p121 = por %p119, %p120
    %p122 = scmp.ne.s32.totalorder %s114, %s117
    %p123 = scmp.eq.s32.totalorder %s10, 0
    %p124 = por %p122, %p123
    %p125 = scmp.ne.s32.totalorder %s114, %s117
    %p126 = scmp.eq.s32.totalorder %s15, 1
    %p127 = por %p125, %p126
    %p128 = scmp.ne.s32.totalorder %s117, %s118
    %p129 = scmp.eq.s32.totalorder %s15, 0
    %p130 = por %p128, %p129
    %p131 = scmp.ne.s32.totalorder %s117, %s118
    %p132 = scmp.eq.s32.totalorder %s16, 1
    %p133 = por %p131, %p132
    %p135 = scmp.ne.s32.totalorder %s118, %s134
    %p136 = scmp.eq.s32.totalorder %s16, 0
    %p137 = por %p135, %p136
    %p138 = scmp.le.s32.totalorder 1, %s10
    %p139 = scmp.lt.s32.totalorder %s10, 3
    %p140 = pnand %p138, %p139
    %p141 = pneg %p140
    // Predicated region
    $region9: #{fno3d_forward.8} parent=5 // pred_check
      _
    $region10: #{fno3d_forward.8} parent=5 // pred_check_branch
      %143 = sbr.rel (%p140) target = $region12
    $region11: #{fno3d_forward.8} parent=5 // pred_region
      %s144 = ssub.s32 %s10, 1
      // Predicated region
      $region13: #{fno3d_forward.8} parent=11 // pred_check
        %p145 = pneg %p57
      $region14: #{fno3d_forward.8} parent=11 // pred_check_branch
        %147 = sbr.rel (%p145) target = $region16
      $region15: #{fno3d_forward.8} parent=11 // pred_region
        _
      $region16: #{fno3d_forward.8} parent=11 // pred_fallthru
        _
      // Predicated region
      $region17: #{fno3d_forward.8} parent=11 // pred_check
        %p148 = pneg %p78
      $region18: #{fno3d_forward.8} parent=11 // pred_check_branch
        %150 = sbr.rel (%p148) target = $region20
      $region19: #{fno3d_forward.8} parent=11 // pred_region
        _
      $region20: #{fno3d_forward.8} parent=11 // pred_fallthru
        _
    $region12: #{fno3d_forward.8} parent=5 // pred_fallthru
      _
    %p151 = scmp.lt.s32.totalorder %s10, 2
    // Predicated region
    $region21: #{fno3d_forward.8} parent=5 // pred_check
      %p152 = pneg %p151
    $region22: #{fno3d_forward.8} parent=5 // pred_check_branch
      %154 = sbr.rel (%p152) target = $region24
    $region23: #{fno3d_forward.8} parent=5 // pred_region
      // Predicated region
      $region25: #{fno3d_forward.8} parent=23 // pred_check
        %p155 = pneg %p30
      $region26: #{fno3d_forward.8} parent=23 // pred_check_branch
        %157 = sbr.rel (%p155) target = $region28
      $region27: #{fno3d_forward.8} parent=23 // pred_region
        %s158 = smul.u32 8, %s10
        %p159 = scmp.lt.s32.totalorder %s158, 15
        %s160 = scalar_select %p159, %s158, 15
        %s161 = smul.addr %s160, 8
        %s162 = scalar_lea.vmem %s0, %s161
        %s163 = smul.u32 8, %s10
      $region28: #{fno3d_forward.8} parent=23 // pred_fallthru
        _
      // Predicated region
      $region29: #{fno3d_forward.8} parent=23 // pred_check
        %p164 = pneg %p98
      $region30: #{fno3d_forward.8} parent=23 // pred_check_branch
        %166 = sbr.rel (%p164) target = $region32
      $region31: #{fno3d_forward.8} parent=23 // pred_region
        %s167 = smul.u32 8, %s10
        %p168 = scmp.lt.s32.totalorder %s167, 15
        %s169 = scalar_select %p168, %s167, 15
        %s170 = smul.addr %s169, 8
        %s171 = scalar_lea.vmem %s3, %s170
        %s172 = smul.u32 8, %s10
      $region32: #{fno3d_forward.8} parent=23 // pred_fallthru
        _
    $region24: #{fno3d_forward.8} parent=5 // pred_fallthru
      _
    %p173 = scmp.le.s32.totalorder 1, %s10
    %p174 = scmp.lt.s32.totalorder %s10, 3
    %p175 = pnand %p173, %p174
    %p176 = pneg %p175
    // Predicated region
    $region33: #{fno3d_forward.8} parent=5 // pred_check
      _
    $region34: #{fno3d_forward.8} parent=5 // pred_check_branch
      %178 = sbr.rel (%p175) target = $region36
    $region35: #{fno3d_forward.8} parent=5 // pred_region
      %s179 = ssub.s32 %s10, 1
      %s180 = smul.u32 8, %s15
      %p181 = scmp.lt.s32.totalorder %s180, 15
      %s182 = scalar_select %p181, %s180, 15
      %s183 = smul.addr %s182, 8
      %s184 = scalar_lea.vmem %s0, %s183
      %p185 = pneg %p36
      %p186 = pneg %p33
      %p187 = pneg %p57
      %p188 = pneg %p54
      %p189 = pneg %p78
      %p190 = pneg %p75
      %s191 = smul.u32 8, %s15
      %p192 = scmp.lt.s32.totalorder %s191, 15
      %s193 = scalar_select %p192, %s191, 15
      %s194 = smul.addr %s193, 8
      %s195 = scalar_lea.vmem %s3, %s194
      %p196 = pneg %p104
      %p197 = pneg %p101
      %p198 = pneg %p130
      %p199 = pneg %p127
      %s200 = smul.u32 8, %s15
      %p201 = scmp.lt.s32.totalorder %s200, 15
      %s202 = scalar_select %p201, %s200, 15
      %s203 = smul.addr %s202, 8
      %s204 = scalar_lea.vmem %s4, %s203
      %s205 = smul.u32 8, %s15
      %p206 = scmp.lt.s32.totalorder %s205, 15
      %s207 = scalar_select %p206, %s205, 15
      %s208 = smul.addr %s207, 8
      %s209 = scalar_lea.vmem %s0, %s208
      %s210 = smul.u32 8, %s15
      %s211 = smul.u32 8, %s15
      %p212 = scmp.lt.s32.totalorder %s211, 15
      %s213 = scalar_select %p212, %s211, 15
      %s214 = smul.addr %s213, 8
      %s215 = scalar_lea.vmem %s3, %s214
      %s216 = smul.u32 8, %s15
      %s217 = smul.u32 8, %s15
      %p218 = scmp.lt.s32.totalorder %s217, 15
      %s219 = scalar_select %p218, %s217, 15
      %s220 = smul.addr %s219, 8
      %s221 = scalar_lea.vmem %s4, %s220
      %s222 = smul.u32 8, %s15
      %v223 = vld [vmem:[%s209] sm:$0xff]
      %v224 = vld [vmem:[%s209 + $0x8] sm:$0xff]
      %v225 = vld [vmem:[%s209 + $0x10] sm:$0xff]
      %v226 = vld [vmem:[%s209 + $0x18] sm:$0xff]
      %v227 = vld [vmem:[%s209 + $0x20] sm:$0xff]
      %v228 = vld [vmem:[%s209 + $0x28] sm:$0xff]
      %v229 = vld [vmem:[%s209 + $0x30] sm:$0xff]
      %v230 = vld [vmem:[%s209 + $0x38] sm:$0xff]
      %v231 = vld [vmem:[%s1] sm:$0xff]
      %v232 = vld [vmem:[%s1 + $0x8] sm:$0xff]
      %v233 = vld [vmem:[%s1 + $0x10] sm:$0xff]
      %v234 = vld [vmem:[%s1 + $0x18] sm:$0xff]
      %v235 = vld [vmem:[%s1 + $0x20] sm:$0xff]
      %v236 = vld [vmem:[%s1 + $0x28] sm:$0xff]
      %v237 = vld [vmem:[%s1 + $0x30] sm:$0xff]
      %v238 = vld [vmem:[%s1 + $0x38] sm:$0xff]
      %v239 = vld [vmem:[%s1 + $0x40] sm:$0xff]
      %v240 = vld [vmem:[%s1 + $0x48] sm:$0xff]
      %v241 = vld [vmem:[%s1 + $0x50] sm:$0xff]
      %v242 = vld [vmem:[%s1 + $0x58] sm:$0xff]
      %v243 = vld [vmem:[%s1 + $0x60] sm:$0xff]
      %v244 = vld [vmem:[%s1 + $0x68] sm:$0xff]
      %v245 = vld [vmem:[%s1 + $0x70] sm:$0xff]
      %v246 = vld [vmem:[%s1 + $0x78] sm:$0xff]
      %v247 = vld [vmem:[%s2] sm:$0x1]
      %v249 = vlaneseq
      %v250 = vshrl.u32 %v249, 7
      %v251 = vsub.s32 0, %v250
      %v252 = vrot.slane %v247, %v251
      %254 = vmatprep.subr.mxu0 0.0
      %255 = vmatpush1.msra.mxu0 %v231
      %256 = vmatprep.subr.mxu0 0.0
      %257 = vmatpush1.msra.mxu0 %v232
      %258 = vmatprep.subr.mxu0 0.0
      %259 = vmatpush1.msra.mxu0 %v233
      %260 = vmatprep.subr.mxu0 0.0
      %261 = vmatpush1.msra.mxu0 %v234
      %262 = vmatprep.subr.mxu0 0.0
      %263 = vmatpush1.msra.mxu0 %v235
      %264 = vmatprep.subr.mxu0 0.0
      %265 = vmatpush1.msra.mxu0 %v236
      %266 = vmatprep.subr.mxu0 0.0
      %267 = vmatpush1.msra.mxu0 %v237
      %268 = vmatprep.subr.mxu0 0.0
      %269 = vmatpush1.msra.mxu0 %v238
      %270 = vmatprep.subr.mxu0 0.0
      %271 = vmatpush1.msra.mxu0 %v239
      %272 = vmatprep.subr.mxu0 0.0
      %273 = vmatpush1.msra.mxu0 %v240
      %274 = vmatprep.subr.mxu0 0.0
      %275 = vmatpush1.msra.mxu0 %v241
      %276 = vmatprep.subr.mxu0 0.0
      %277 = vmatpush1.msra.mxu0 %v242
      %278 = vmatprep.subr.mxu0 0.0
      %279 = vmatpush1.msra.mxu0 %v243
      %280 = vmatprep.subr.mxu0 0.0
      %281 = vmatpush1.msra.mxu0 %v244
      %282 = vmatprep.subr.mxu0 0.0
      %283 = vmatpush1.msra.mxu0 %v245
      %284 = vmatprep.subr.mxu0 0.0
      %285 = vmatpush1.msra.mxu0 %v246
      %286 = vmatprep.subr.mxu0 0.0
      %287 = vmatpush1.msra.mxu0 0.0
      %288 = vmatprep.subr.mxu0 0.0
      %289 = vmatpush1.msra.mxu0 0.0
      %290 = vmatprep.subr.mxu0 0.0
      %291 = vmatpush1.msra.mxu0 0.0
      %292 = vmatprep.subr.mxu0 0.0
      %293 = vmatpush1.msra.mxu0 0.0
      %294 = vmatprep.subr.mxu0 0.0
      %295 = vmatpush1.msra.mxu0 0.0
      %296 = vmatprep.subr.mxu0 0.0
      %297 = vmatpush1.msra.mxu0 0.0
      %298 = vmatprep.subr.mxu0 0.0
      %299 = vmatpush1.msra.mxu0 0.0
      %300 = vmatprep.subr.mxu0 0.0
      %301 = vmatpush1.msra.mxu0 0.0
      %302 = vmatprep.subr.mxu0 0.0
      %303 = vmatpush1.msra.mxu0 0.0
      %304 = vmatprep.subr.mxu0 0.0
      %305 = vmatpush1.msra.mxu0 0.0
      %306 = vmatprep.subr.mxu0 0.0
      %307 = vmatpush1.msra.mxu0 0.0
      %308 = vmatprep.subr.mxu0 0.0
      %309 = vmatpush1.msra.mxu0 0.0
      %310 = vmatprep.subr.mxu0 0.0
      %311 = vmatpush1.msra.mxu0 0.0
      %312 = vmatprep.subr.mxu0 0.0
      %313 = vmatpush1.msra.mxu0 0.0
      %314 = vmatprep.subr.mxu0 0.0
      %315 = vmatpush1.msra.mxu0 0.0
      %316 = vmatprep.subr.mxu0 0.0
      %317 = vmatpush1.msra.mxu0 0.0
      %318 = vmatprep.mubr.f32.mxu0 0.0
      %319 = vmatmul.mubr.f32.gmra.mrb[0].mxu0 %v223
      %v320 = vpop.f32.mrb[0].mxu0
      %v321 = vadd.f32 %v252, %v320
      %v322 = vpop.f32.mrb[0].mxu0
      %323 = vmatprep.mubr.f32.mxu0 0.0
      %324 = vmatmul.mubr.f32.gmra.mrb[0].mxu0 %v224
      %v325 = vpop.f32.mrb[0].mxu0
      %v326 = vadd.f32 %v252, %v325
      %v327 = vpop.f32.mrb[0].mxu0
      %328 = vmatprep.mubr.f32.mxu0 0.0
      %329 = vmatmul.mubr.f32.gmra.mrb[0].mxu0 %v225
      %v330 = vpop.f32.mrb[0].mxu0
      %v331 = vadd.f32 %v252, %v330
      %v332 = vpop.f32.mrb[0].mxu0
      %333 = vmatprep.mubr.f32.mxu0 0.0
      %334 = vmatmul.mubr.f32.gmra.mrb[0].mxu0 %v226
      %v335 = vpop.f32.mrb[0].mxu0
      %v336 = vadd.f32 %v252, %v335
      %v337 = vpop.f32.mrb[0].mxu0
      %338 = vmatprep.mubr.f32.mxu0 0.0
      %339 = vmatmul.mubr.f32.gmra.mrb[0].mxu0 %v227
      %v340 = vpop.f32.mrb[0].mxu0
      %v341 = vadd.f32 %v252, %v340
      %v342 = vpop.f32.mrb[0].mxu0
      %343 = vmatprep.mubr.f32.mxu0 0.0
      %344 = vmatmul.mubr.f32.gmra.mrb[0].mxu0 %v228
      %v345 = vpop.f32.mrb[0].mxu0
      %v346 = vadd.f32 %v252, %v345
      %v347 = vpop.f32.mrb[0].mxu0
      %348 = vmatprep.mubr.f32.mxu0 0.0
      %349 = vmatmul.mubr.f32.gmra.mrb[0].mxu0 %v229
      %v350 = vpop.f32.mrb[0].mxu0
      %v351 = vadd.f32 %v252, %v350
      %v352 = vpop.f32.mrb[0].mxu0
      %353 = vmatprep.mubr.f32.mxu0 0.0
      %354 = vmatmul.mubr.f32.gmra.mrb[0].mxu0 %v230
      %v355 = vpop.f32.mrb[0].mxu0
      %v356 = vadd.f32 %v252, %v355
      %v357 = vpop.f32.mrb[0].mxu0
      %358 = vdwg.mxu0
      %v359 = vld [vmem:[%s215] sm:$0xff]
      %v360 = vld [vmem:[%s215 + $0x8] sm:$0xff]
      %v361 = vld [vmem:[%s215 + $0x10] sm:$0xff]
      %v362 = vld [vmem:[%s215 + $0x18] sm:$0xff]
      %v363 = vld [vmem:[%s215 + $0x20] sm:$0xff]
      %v364 = vld [vmem:[%s215 + $0x28] sm:$0xff]
      %v365 = vld [vmem:[%s215 + $0x30] sm:$0xff]
      %v366 = vld [vmem:[%s215 + $0x38] sm:$0xff]
      %v367 = vadd.f32 %v321, %v359
      %v368 = vadd.f32 %v326, %v360
      %v369 = vadd.f32 %v331, %v361
      %v370 = vadd.f32 %v336, %v362
      %v371 = vadd.f32 %v341, %v363
      %v372 = vadd.f32 %v346, %v364
      %v373 = vadd.f32 %v351, %v365
      %v374 = vadd.f32 %v356, %v366
      %v375 = vmul.f32 %v367, 0.5
      %v376 = vmul.f32 %v368, 0.5
      %v377 = vmul.f32 %v369, 0.5
      %v378 = vmul.f32 %v370, 0.5
      %v379 = vmul.f32 %v371, 0.5
      %v380 = vmul.f32 %v372, 0.5
      %v381 = vmul.f32 %v373, 0.5
      %v382 = vmul.f32 %v374, 0.5
      %v383 = vmul.f32 %v367, 0.70710677
      %v384 = vmul.f32 %v368, 0.70710677
      %v385 = vmul.f32 %v369, 0.70710677
      %v386 = vmul.f32 %v370, 0.70710677
      %v387 = vmul.f32 %v371, 0.70710677
      %v388 = vmul.f32 %v372, 0.70710677
      %v389 = vmul.f32 %v373, 0.70710677
      %v390 = vmul.f32 %v374, 0.70710677
      %v391 = verf.f32.pop %v383
      %v392 = verf.f32.pop %v384
      %v393 = verf.f32.pop %v385
      %v394 = verf.f32.pop %v386
      %v395 = verf.f32.pop %v387
      %v396 = verf.f32.pop %v388
      %v397 = verf.f32.pop %v389
      %v398 = verf.f32.pop %v390
      %v399 = vadd.f32 %v391, 1.0
      %v400 = vadd.f32 %v392, 1.0
      %v401 = vadd.f32 %v393, 1.0
      %v402 = vadd.f32 %v394, 1.0
      %v403 = vadd.f32 %v395, 1.0
      %v404 = vadd.f32 %v396, 1.0
      %v405 = vadd.f32 %v397, 1.0
      %v406 = vadd.f32 %v398, 1.0
      %v407 = vmul.f32 %v375, %v399
      %v408 = vmul.f32 %v376, %v400
      %v409 = vmul.f32 %v377, %v401
      %v410 = vmul.f32 %v378, %v402
      %v411 = vmul.f32 %v379, %v403
      %v412 = vmul.f32 %v380, %v404
      %v413 = vmul.f32 %v381, %v405
      %v414 = vmul.f32 %v382, %v406
      %415 = vst [vmem:[%s221] sm:$0xff] %v407
      %416 = vst [vmem:[%s221 + $0x8] sm:$0xff] %v408
      %417 = vst [vmem:[%s221 + $0x10] sm:$0xff] %v409
      %418 = vst [vmem:[%s221 + $0x18] sm:$0xff] %v410
      %419 = vst [vmem:[%s221 + $0x20] sm:$0xff] %v411
      %420 = vst [vmem:[%s221 + $0x28] sm:$0xff] %v412
      %421 = vst [vmem:[%s221 + $0x30] sm:$0xff] %v413
      %422 = vst [vmem:[%s221 + $0x38] sm:$0xff] %v414
      %s423 = smul.u32 8, %s15
      %p424 = scmp.lt.s32.totalorder %s423, 15
      %s425 = scalar_select %p424, %s423, 15
      %s426 = smul.addr %s425, 8
      %s427 = scalar_lea.vmem %s4, %s426
      // Predicated region
      $region37: #{fno3d_forward.8} parent=35 // pred_check
        %p428 = pneg %p127
      $region38: #{fno3d_forward.8} parent=35 // pred_check_branch
        %430 = sbr.rel (%p428) target = $region40
      $region39: #{fno3d_forward.8} parent=35 // pred_region
        %s431 = smul.u32 8, %s15
      $region40: #{fno3d_forward.8} parent=35 // pred_fallthru
        _
    $region36: #{fno3d_forward.8} parent=5 // pred_fallthru
      _
    %p432 = scmp.le.s32.totalorder 2, %s10
    // Predicated region
    $region41: #{fno3d_forward.8} parent=5 // pred_check
      %p433 = pneg %p432
    $region42: #{fno3d_forward.8} parent=5 // pred_check_branch
      %435 = sbr.rel (%p433) target = $region44
    $region43: #{fno3d_forward.8} parent=5 // pred_region
      %s436 = ssub.s32 %s10, 2
      // Predicated region
      $region45: #{fno3d_forward.8} parent=43 // pred_check
        %p437 = pneg %p133
      $region46: #{fno3d_forward.8} parent=43 // pred_check_branch
        %439 = sbr.rel (%p437) target = $region48
      $region47: #{fno3d_forward.8} parent=43 // pred_region
        %s440 = smul.u32 8, %s16
        %p441 = scmp.lt.s32.totalorder %s440, 15
        %s442 = scalar_select %p441, %s440, 15
        %s443 = smul.addr %s442, 8
        %s444 = scalar_lea.vmem %s4, %s443
      $region48: #{fno3d_forward.8} parent=43 // pred_fallthru
        _
    $region44: #{fno3d_forward.8} parent=5 // pred_fallthru
      _
  $region6: #{fno3d_forward.8} parent=0 // loop_footer
    %s14 = sadd.s32 1, %s10
  $region7: #{fno3d_forward.8} parent=0 // loop_footer_branch
    %9 = sbr.rel target = $region3
  $region8: #{fno3d_forward.8} parent=0 // loop_exit
    _

// kernel: fno3d_forward.10
$region0: #{fno3d_forward.10}
  #allocation0 [shape = 'u32[]', space=smem, size = 0x4, offset = 0x4, fixed_abs, tag = 'smem constant byte address 0x4 - core index']
  #allocation1 [shape = 'u32[144,128]{1,0:T(1,128)}', space=vmem, size = 0x12000, scoped, tag = 'internal scratch']
  %s0 = inlined_call_operand.vmem [shape: f32[128,128], index: 0, kind: input, shape index: {}]
  %s1 = inlined_call_operand.vmem [shape: f32[128,128], index: 1, kind: input, shape index: {}]
  %s2 = inlined_call_operand.vmem [shape: f32[1,128], index: 2, kind: input, shape index: {}]
  %s3 = inlined_call_operand.vmem [shape: f32[128,128], index: 3, kind: input, shape index: {}]
  %s4 = inlined_call_operand.vmem [shape: f32[128,128], index: 4, kind: output, shape index: {}]
  %s5 = sld [smem:[#allocation0]]
  $region49: #{fno3d_forward.10} parent=0
    _
  %s7 = ssub.s32 1, %s5
  %s8 = scalar_select 0, %s7, %s5
  loop: start=0, step=1, limit=4
  $region2: #{fno3d_forward.10} parent=0 // loop_pre_header
    _
  $region3: #{fno3d_forward.10} parent=0 // loop_header
    %s10 = sphi 0, %s14
    %p11 = scmp.ge.s32.totalorder %s10, 4
    %s20 = sphi 0, %s22
    %s23 = sphi 0, %s20
    %s24 = sphi 0, %s23
    %s40 = sphi 0, %s24
    %s44 = sphi 0, %s44
    %s46 = sphi 0, %s44
    %s47 = sphi 0, %s46
    %s61 = sphi 0, %s47
    %s65 = sphi 0, %s65
    %s67 = sphi 0, %s65
    %s68 = sphi 0, %s67
    %s82 = sphi 0, %s68
    %s88 = sphi 0, %s90
    %s91 = sphi 0, %s88
    %s92 = sphi 0, %s91
    %s108 = sphi 0, %s92
    %s114 = sphi 0, %s116
    %s117 = sphi 0, %s114
    %s118 = sphi 0, %s117
    %s134 = sphi 0, %s118
  $region4: #{fno3d_forward.10} parent=0 // loop_header_branch
    %13 = sbr.rel (%p11) target = $region8
  $region5: #{fno3d_forward.10} parent=0 // loop_body
    %s15 = ssub.s32 %s10, 1
    %s16 = ssub.s32 %s10, 2
    %s17 = sadd.s32 %s10, 1
    %s18 = ssub.s32 %s10, %s17
    %p19 = scmp.eq.s32.totalorder %s18, 0
    %s21 = sadd.s32 %s20, 1
    %s22 = scalar_select %p19, %s20, %s21
    %p25 = pneg %p19
    %p26 = scmp.eq.s32.totalorder %s10, 1
    %p27 = por %p25, %p26
    %p28 = scmp.ne.s32.totalorder %s20, %s23
    %p29 = scmp.eq.s32.totalorder %s10, 0
    %p30 = por %p28, %p29
    %p31 = scmp.ne.s32.totalorder %s20, %s23
    %p32 = scmp.eq.s32.totalorder %s15, 1
    %p33 = por %p31, %p32
    %p34 = scmp.ne.s32.totalorder %s23, %s24
    %p35 = scmp.eq.s32.totalorder %s15, 0
    %p36 = por %p34, %p35
    %p37 = scmp.ne.s32.totalorder %s23, %s24
    %p38 = scmp.eq.s32.totalorder %s16, 1
    %p39 = por %p37, %p38
    %p41 = scmp.ne.s32.totalorder %s24, %s40
    %p42 = scmp.eq.s32.totalorder %s16, 0
    %p43 = por %p41, %p42
    %s45 = sadd.s32 %s44, 1
    %p48 = scmp.eq.s32.totalorder %s10, 1
    %p49 = scmp.ne.s32.totalorder %s44, %s46
    %p50 = scmp.eq.s32.totalorder %s10, 0
    %p51 = por %p49, %p50
    %p52 = scmp.ne.s32.totalorder %s44, %s46
    %p53 = scmp.eq.s32.totalorder %s15, 1
    %p54 = por %p52, %p53
    %p55 = scmp.ne.s32.totalorder %s46, %s47
    %p56 = scmp.eq.s32.totalorder %s15, 0
    %p57 = por %p55, %p56
    %p58 = scmp.ne.s32.totalorder %s46, %s47
    %p59 = scmp.eq.s32.totalorder %s16, 1
    %p60 = por %p58, %p59
    %p62 = scmp.ne.s32.totalorder %s47, %s61
    %p63 = scmp.eq.s32.totalorder %s16, 0
    %p64 = por %p62, %p63
    %s66 = sadd.s32 %s65, 1
    %p69 = scmp.eq.s32.totalorder %s10, 1
    %p70 = scmp.ne.s32.totalorder %s65, %s67
    %p71 = scmp.eq.s32.totalorder %s10, 0
    %p72 = por %p70, %p71
    %p73 = scmp.ne.s32.totalorder %s65, %s67
    %p74 = scmp.eq.s32.totalorder %s15, 1
    %p75 = por %p73, %p74
    %p76 = scmp.ne.s32.totalorder %s67, %s68
    %p77 = scmp.eq.s32.totalorder %s15, 0
    %p78 = por %p76, %p77
    %p79 = scmp.ne.s32.totalorder %s67, %s68
    %p80 = scmp.eq.s32.totalorder %s16, 1
    %p81 = por %p79, %p80
    %p83 = scmp.ne.s32.totalorder %s68, %s82
    %p84 = scmp.eq.s32.totalorder %s16, 0
    %p85 = por %p83, %p84
    %s86 = ssub.s32 %s10, %s17
    %p87 = scmp.eq.s32.totalorder %s86, 0
    %s89 = sadd.s32 %s88, 1
    %s90 = scalar_select %p87, %s88, %s89
    %p93 = pneg %p87
    %p94 = scmp.eq.s32.totalorder %s10, 1
    %p95 = por %p93, %p94
    %p96 = scmp.ne.s32.totalorder %s88, %s91
    %p97 = scmp.eq.s32.totalorder %s10, 0
    %p98 = por %p96, %p97
    %p99 = scmp.ne.s32.totalorder %s88, %s91
    %p100 = scmp.eq.s32.totalorder %s15, 1
    %p101 = por %p99, %p100
    %p102 = scmp.ne.s32.totalorder %s91, %s92
    %p103 = scmp.eq.s32.totalorder %s15, 0
    %p104 = por %p102, %p103
    %p105 = scmp.ne.s32.totalorder %s91, %s92
    %p106 = scmp.eq.s32.totalorder %s16, 1
    %p107 = por %p105, %p106
    %p109 = scmp.ne.s32.totalorder %s92, %s108
    %p110 = scmp.eq.s32.totalorder %s16, 0
    %p111 = por %p109, %p110
    %s112 = ssub.s32 %s10, %s17
    %p113 = scmp.eq.s32.totalorder %s112, 0
    %s115 = sadd.s32 %s114, 1
    %s116 = scalar_select %p113, %s114, %s115
    %p119 = pneg %p113
    %p120 = scmp.eq.s32.totalorder %s10, 1
    %p121 = por %p119, %p120
    %p122 = scmp.ne.s32.totalorder %s114, %s117
    %p123 = scmp.eq.s32.totalorder %s10, 0
    %p124 = por %p122, %p123
    %p125 = scmp.ne.s32.totalorder %s114, %s117
    %p126 = scmp.eq.s32.totalorder %s15, 1
    %p127 = por %p125, %p126
    %p128 = scmp.ne.s32.totalorder %s117, %s118
    %p129 = scmp.eq.s32.totalorder %s15, 0
    %p130 = por %p128, %p129
    %p131 = scmp.ne.s32.totalorder %s117, %s118
    %p132 = scmp.eq.s32.totalorder %s16, 1
    %p133 = por %p131, %p132
    %p135 = scmp.ne.s32.totalorder %s118, %s134
    %p136 = scmp.eq.s32.totalorder %s16, 0
    %p137 = por %p135, %p136
    %p138 = scmp.le.s32.totalorder 1, %s10
    %p139 = scmp.lt.s32.totalorder %s10, 3
    %p140 = pnand %p138, %p139
    %p141 = pneg %p140
    // Predicated region
    $region9: #{fno3d_forward.10} parent=5 // pred_check
      _
    $region10: #{fno3d_forward.10} parent=5 // pred_check_branch
      %143 = sbr.rel (%p140) target = $region12
    $region11: #{fno3d_forward.10} parent=5 // pred_region
      %s144 = ssub.s32 %s10, 1
      // Predicated region
      $region13: #{fno3d_forward.10} parent=11 // pred_check
        %p145 = pneg %p57
      $region14: #{fno3d_forward.10} parent=11 // pred_check_branch
        %147 = sbr.rel (%p145) target = $region16
      $region15: #{fno3d_forward.10} parent=11 // pred_region
        _
      $region16: #{fno3d_forward.10} parent=11 // pred_fallthru
        _
      // Predicated region
      $region17: #{fno3d_forward.10} parent=11 // pred_check
        %p148 = pneg %p78
      $region18: #{fno3d_forward.10} parent=11 // pred_check_branch
        %150 = sbr.rel (%p148) target = $region20
      $region19: #{fno3d_forward.10} parent=11 // pred_region
        _
      $region20: #{fno3d_forward.10} parent=11 // pred_fallthru
        _
    $region12: #{fno3d_forward.10} parent=5 // pred_fallthru
      _
    %p151 = scmp.lt.s32.totalorder %s10, 2
    // Predicated region
    $region21: #{fno3d_forward.10} parent=5 // pred_check
      %p152 = pneg %p151
    $region22: #{fno3d_forward.10} parent=5 // pred_check_branch
      %154 = sbr.rel (%p152) target = $region24
    $region23: #{fno3d_forward.10} parent=5 // pred_region
      // Predicated region
      $region25: #{fno3d_forward.10} parent=23 // pred_check
        %p155 = pneg %p30
      $region26: #{fno3d_forward.10} parent=23 // pred_check_branch
        %157 = sbr.rel (%p155) target = $region28
      $region27: #{fno3d_forward.10} parent=23 // pred_region
        %s158 = smul.u32 8, %s10
        %p159 = scmp.lt.s32.totalorder %s158, 15
        %s160 = scalar_select %p159, %s158, 15
        %s161 = smul.addr %s160, 8
        %s162 = scalar_lea.vmem %s0, %s161
        %s163 = smul.u32 8, %s10
      $region28: #{fno3d_forward.10} parent=23 // pred_fallthru
        _
      // Predicated region
      $region29: #{fno3d_forward.10} parent=23 // pred_check
        %p164 = pneg %p98
      $region30: #{fno3d_forward.10} parent=23 // pred_check_branch
        %166 = sbr.rel (%p164) target = $region32
      $region31: #{fno3d_forward.10} parent=23 // pred_region
        %s167 = smul.u32 8, %s10
        %p168 = scmp.lt.s32.totalorder %s167, 15
        %s169 = scalar_select %p168, %s167, 15
        %s170 = smul.addr %s169, 8
        %s171 = scalar_lea.vmem %s3, %s170
        %s172 = smul.u32 8, %s10
      $region32: #{fno3d_forward.10} parent=23 // pred_fallthru
        _
    $region24: #{fno3d_forward.10} parent=5 // pred_fallthru
      _
    %p173 = scmp.le.s32.totalorder 1, %s10
    %p174 = scmp.lt.s32.totalorder %s10, 3
    %p175 = pnand %p173, %p174
    %p176 = pneg %p175
    // Predicated region
    $region33: #{fno3d_forward.10} parent=5 // pred_check
      _
    $region34: #{fno3d_forward.10} parent=5 // pred_check_branch
      %178 = sbr.rel (%p175) target = $region36
    $region35: #{fno3d_forward.10} parent=5 // pred_region
      %s179 = ssub.s32 %s10, 1
      %s180 = smul.u32 8, %s15
      %p181 = scmp.lt.s32.totalorder %s180, 15
      %s182 = scalar_select %p181, %s180, 15
      %s183 = smul.addr %s182, 8
      %s184 = scalar_lea.vmem %s0, %s183
      %p185 = pneg %p36
      %p186 = pneg %p33
      %p187 = pneg %p57
      %p188 = pneg %p54
      %p189 = pneg %p78
      %p190 = pneg %p75
      %s191 = smul.u32 8, %s15
      %p192 = scmp.lt.s32.totalorder %s191, 15
      %s193 = scalar_select %p192, %s191, 15
      %s194 = smul.addr %s193, 8
      %s195 = scalar_lea.vmem %s3, %s194
      %p196 = pneg %p104
      %p197 = pneg %p101
      %p198 = pneg %p130
      %p199 = pneg %p127
      %s200 = smul.u32 8, %s15
      %p201 = scmp.lt.s32.totalorder %s200, 15
      %s202 = scalar_select %p201, %s200, 15
      %s203 = smul.addr %s202, 8
      %s204 = scalar_lea.vmem %s4, %s203
      %s205 = smul.u32 8, %s15
      %p206 = scmp.lt.s32.totalorder %s205, 15
      %s207 = scalar_select %p206, %s205, 15
      %s208 = smul.addr %s207, 8
      %s209 = scalar_lea.vmem %s0, %s208
      %s210 = smul.u32 8, %s15
      %s211 = smul.u32 8, %s15
      %p212 = scmp.lt.s32.totalorder %s211, 15
      %s213 = scalar_select %p212, %s211, 15
      %s214 = smul.addr %s213, 8
      %s215 = scalar_lea.vmem %s3, %s214
      %s216 = smul.u32 8, %s15
      %s217 = smul.u32 8, %s15
      %p218 = scmp.lt.s32.totalorder %s217, 15
      %s219 = scalar_select %p218, %s217, 15
      %s220 = smul.addr %s219, 8
      %s221 = scalar_lea.vmem %s4, %s220
      %s222 = smul.u32 8, %s15
      %v223 = vld [vmem:[%s209] sm:$0xff]
      %v224 = vld [vmem:[%s209 + $0x8] sm:$0xff]
      %v225 = vld [vmem:[%s209 + $0x10] sm:$0xff]
      %v226 = vld [vmem:[%s209 + $0x18] sm:$0xff]
      %v227 = vld [vmem:[%s209 + $0x20] sm:$0xff]
      %v228 = vld [vmem:[%s209 + $0x28] sm:$0xff]
      %v229 = vld [vmem:[%s209 + $0x30] sm:$0xff]
      %v230 = vld [vmem:[%s209 + $0x38] sm:$0xff]
      %v231 = vld [vmem:[%s1] sm:$0xff]
      %v232 = vld [vmem:[%s1 + $0x8] sm:$0xff]
      %v233 = vld [vmem:[%s1 + $0x10] sm:$0xff]
      %v234 = vld [vmem:[%s1 + $0x18] sm:$0xff]
      %v235 = vld [vmem:[%s1 + $0x20] sm:$0xff]
      %v236 = vld [vmem:[%s1 + $0x28] sm:$0xff]
      %v237 = vld [vmem:[%s1 + $0x30] sm:$0xff]
      %v238 = vld [vmem:[%s1 + $0x38] sm:$0xff]
      %v239 = vld [vmem:[%s1 + $0x40] sm:$0xff]
      %v240 = vld [vmem:[%s1 + $0x48] sm:$0xff]
      %v241 = vld [vmem:[%s1 + $0x50] sm:$0xff]
      %v242 = vld [vmem:[%s1 + $0x58] sm:$0xff]
      %v243 = vld [vmem:[%s1 + $0x60] sm:$0xff]
      %v244 = vld [vmem:[%s1 + $0x68] sm:$0xff]
      %v245 = vld [vmem:[%s1 + $0x70] sm:$0xff]
      %v246 = vld [vmem:[%s1 + $0x78] sm:$0xff]
      %v247 = vld [vmem:[%s2] sm:$0x1]
      %v249 = vlaneseq
      %v250 = vshrl.u32 %v249, 7
      %v251 = vsub.s32 0, %v250
      %v252 = vrot.slane %v247, %v251
      %254 = vmatprep.subr.mxu0 0.0
      %255 = vmatpush1.msra.mxu0 %v231
      %256 = vmatprep.subr.mxu0 0.0
      %257 = vmatpush1.msra.mxu0 %v232
      %258 = vmatprep.subr.mxu0 0.0
      %259 = vmatpush1.msra.mxu0 %v233
      %260 = vmatprep.subr.mxu0 0.0
      %261 = vmatpush1.msra.mxu0 %v234
      %262 = vmatprep.subr.mxu0 0.0
      %263 = vmatpush1.msra.mxu0 %v235
      %264 = vmatprep.subr.mxu0 0.0
      %265 = vmatpush1.msra.mxu0 %v236
      %266 = vmatprep.subr.mxu0 0.0
      %267 = vmatpush1.msra.mxu0 %v237
      %268 = vmatprep.subr.mxu0 0.0
      %269 = vmatpush1.msra.mxu0 %v238
      %270 = vmatprep.subr.mxu0 0.0
      %271 = vmatpush1.msra.mxu0 %v239
      %272 = vmatprep.subr.mxu0 0.0
      %273 = vmatpush1.msra.mxu0 %v240
      %274 = vmatprep.subr.mxu0 0.0
      %275 = vmatpush1.msra.mxu0 %v241
      %276 = vmatprep.subr.mxu0 0.0
      %277 = vmatpush1.msra.mxu0 %v242
      %278 = vmatprep.subr.mxu0 0.0
      %279 = vmatpush1.msra.mxu0 %v243
      %280 = vmatprep.subr.mxu0 0.0
      %281 = vmatpush1.msra.mxu0 %v244
      %282 = vmatprep.subr.mxu0 0.0
      %283 = vmatpush1.msra.mxu0 %v245
      %284 = vmatprep.subr.mxu0 0.0
      %285 = vmatpush1.msra.mxu0 %v246
      %286 = vmatprep.subr.mxu0 0.0
      %287 = vmatpush1.msra.mxu0 0.0
      %288 = vmatprep.subr.mxu0 0.0
      %289 = vmatpush1.msra.mxu0 0.0
      %290 = vmatprep.subr.mxu0 0.0
      %291 = vmatpush1.msra.mxu0 0.0
      %292 = vmatprep.subr.mxu0 0.0
      %293 = vmatpush1.msra.mxu0 0.0
      %294 = vmatprep.subr.mxu0 0.0
      %295 = vmatpush1.msra.mxu0 0.0
      %296 = vmatprep.subr.mxu0 0.0
      %297 = vmatpush1.msra.mxu0 0.0
      %298 = vmatprep.subr.mxu0 0.0
      %299 = vmatpush1.msra.mxu0 0.0
      %300 = vmatprep.subr.mxu0 0.0
      %301 = vmatpush1.msra.mxu0 0.0
      %302 = vmatprep.subr.mxu0 0.0
      %303 = vmatpush1.msra.mxu0 0.0
      %304 = vmatprep.subr.mxu0 0.0
      %305 = vmatpush1.msra.mxu0 0.0
      %306 = vmatprep.subr.mxu0 0.0
      %307 = vmatpush1.msra.mxu0 0.0
      %308 = vmatprep.subr.mxu0 0.0
      %309 = vmatpush1.msra.mxu0 0.0
      %310 = vmatprep.subr.mxu0 0.0
      %311 = vmatpush1.msra.mxu0 0.0
      %312 = vmatprep.subr.mxu0 0.0
      %313 = vmatpush1.msra.mxu0 0.0
      %314 = vmatprep.subr.mxu0 0.0
      %315 = vmatpush1.msra.mxu0 0.0
      %316 = vmatprep.subr.mxu0 0.0
      %317 = vmatpush1.msra.mxu0 0.0
      %318 = vmatprep.mubr.f32.mxu0 0.0
      %319 = vmatmul.mubr.f32.gmra.mrb[0].mxu0 %v223
      %v320 = vpop.f32.mrb[0].mxu0
      %v321 = vadd.f32 %v252, %v320
      %v322 = vpop.f32.mrb[0].mxu0
      %323 = vmatprep.mubr.f32.mxu0 0.0
      %324 = vmatmul.mubr.f32.gmra.mrb[0].mxu0 %v224
      %v325 = vpop.f32.mrb[0].mxu0
      %v326 = vadd.f32 %v252, %v325
      %v327 = vpop.f32.mrb[0].mxu0
      %328 = vmatprep.mubr.f32.mxu0 0.0
      %329 = vmatmul.mubr.f32.gmra.mrb[0].mxu0 %v225
      %v330 = vpop.f32.mrb[0].mxu0
      %v331 = vadd.f32 %v252, %v330
      %v332 = vpop.f32.mrb[0].mxu0
      %333 = vmatprep.mubr.f32.mxu0 0.0
      %334 = vmatmul.mubr.f32.gmra.mrb[0].mxu0 %v226
      %v335 = vpop.f32.mrb[0].mxu0
      %v336 = vadd.f32 %v252, %v335
      %v337 = vpop.f32.mrb[0].mxu0
      %338 = vmatprep.mubr.f32.mxu0 0.0
      %339 = vmatmul.mubr.f32.gmra.mrb[0].mxu0 %v227
      %v340 = vpop.f32.mrb[0].mxu0
      %v341 = vadd.f32 %v252, %v340
      %v342 = vpop.f32.mrb[0].mxu0
      %343 = vmatprep.mubr.f32.mxu0 0.0
      %344 = vmatmul.mubr.f32.gmra.mrb[0].mxu0 %v228
      %v345 = vpop.f32.mrb[0].mxu0
      %v346 = vadd.f32 %v252, %v345
      %v347 = vpop.f32.mrb[0].mxu0
      %348 = vmatprep.mubr.f32.mxu0 0.0
      %349 = vmatmul.mubr.f32.gmra.mrb[0].mxu0 %v229
      %v350 = vpop.f32.mrb[0].mxu0
      %v351 = vadd.f32 %v252, %v350
      %v352 = vpop.f32.mrb[0].mxu0
      %353 = vmatprep.mubr.f32.mxu0 0.0
      %354 = vmatmul.mubr.f32.gmra.mrb[0].mxu0 %v230
      %v355 = vpop.f32.mrb[0].mxu0
      %v356 = vadd.f32 %v252, %v355
      %v357 = vpop.f32.mrb[0].mxu0
      %358 = vdwg.mxu0
      %v359 = vld [vmem:[%s215] sm:$0xff]
      %v360 = vld [vmem:[%s215 + $0x8] sm:$0xff]
      %v361 = vld [vmem:[%s215 + $0x10] sm:$0xff]
      %v362 = vld [vmem:[%s215 + $0x18] sm:$0xff]
      %v363 = vld [vmem:[%s215 + $0x20] sm:$0xff]
      %v364 = vld [vmem:[%s215 + $0x28] sm:$0xff]
      %v365 = vld [vmem:[%s215 + $0x30] sm:$0xff]
      %v366 = vld [vmem:[%s215 + $0x38] sm:$0xff]
      %v367 = vadd.f32 %v321, %v359
      %v368 = vadd.f32 %v326, %v360
      %v369 = vadd.f32 %v331, %v361
      %v370 = vadd.f32 %v336, %v362
      %v371 = vadd.f32 %v341, %v363
      %v372 = vadd.f32 %v346, %v364
      %v373 = vadd.f32 %v351, %v365
      %v374 = vadd.f32 %v356, %v366
      %375 = vst [vmem:[%s221] sm:$0xff] %v367
      %376 = vst [vmem:[%s221 + $0x8] sm:$0xff] %v368
      %377 = vst [vmem:[%s221 + $0x10] sm:$0xff] %v369
      %378 = vst [vmem:[%s221 + $0x18] sm:$0xff] %v370
      %379 = vst [vmem:[%s221 + $0x20] sm:$0xff] %v371
      %380 = vst [vmem:[%s221 + $0x28] sm:$0xff] %v372
      %381 = vst [vmem:[%s221 + $0x30] sm:$0xff] %v373
      %382 = vst [vmem:[%s221 + $0x38] sm:$0xff] %v374
      %s383 = smul.u32 8, %s15
      %p384 = scmp.lt.s32.totalorder %s383, 15
      %s385 = scalar_select %p384, %s383, 15
      %s386 = smul.addr %s385, 8
      %s387 = scalar_lea.vmem %s4, %s386
      // Predicated region
      $region37: #{fno3d_forward.10} parent=35 // pred_check
        %p388 = pneg %p127
      $region38: #{fno3d_forward.10} parent=35 // pred_check_branch
        %390 = sbr.rel (%p388) target = $region40
      $region39: #{fno3d_forward.10} parent=35 // pred_region
        %s391 = smul.u32 8, %s15
      $region40: #{fno3d_forward.10} parent=35 // pred_fallthru
        _
    $region36: #{fno3d_forward.10} parent=5 // pred_fallthru
      _
    %p392 = scmp.le.s32.totalorder 2, %s10
    // Predicated region
    $region41: #{fno3d_forward.10} parent=5 // pred_check
      %p393 = pneg %p392
    $region42: #{fno3d_forward.10} parent=5 // pred_check_branch
      %395 = sbr.rel (%p393) target = $region44
    $region43: #{fno3d_forward.10} parent=5 // pred_region
      %s396 = ssub.s32 %s10, 2
      // Predicated region
      $region45: #{fno3d_forward.10} parent=43 // pred_check
        %p397 = pneg %p133
      $region46: #{fno3d_forward.10} parent=43 // pred_check_branch
        %399 = sbr.rel (%p397) target = $region48
      $region47: #{fno3d_forward.10} parent=43 // pred_region
        %s400 = smul.u32 8, %s16
        %p401 = scmp.lt.s32.totalorder %s400, 15
        %s402 = scalar_select %p401, %s400, 15
        %s403 = smul.addr %s402, 8
        %s404 = scalar_lea.vmem %s4, %s403
      $region48: #{fno3d_forward.10} parent=43 // pred_fallthru
        _
    $region44: #{fno3d_forward.10} parent=5 // pred_fallthru
      _
  $region6: #{fno3d_forward.10} parent=0 // loop_footer
    %s14 = sadd.s32 1, %s10
  $region7: #{fno3d_forward.10} parent=0 // loop_footer_branch
    %9 = sbr.rel target = $region3
  $region8: #{fno3d_forward.10} parent=0 // loop_exit
    _

// kernel: tile.40
$region0: #{tile.40}
  %s0 = inlined_call_operand.vmem [shape: f32[8,32], index: 0, kind: input, shape index: {}]
  %s1 = inlined_call_operand.vmem [shape: f32[1,256], index: 1, kind: output, shape index: {}]
  $region1: #{tile.40} parent=0
    #allocation0 [shape = 'u8[8192]{0}', space=vmem, size = 0x2000, scoped, tag = 'scoped mem for output reshape']
    %s2 = smov 3
    %v3 = vld [vmem:[%s0] ss:$4 sm:%s2]
    %vm4 = vcmask 261120
    %5 = vst.msk [vmem:[#allocation0] ss:$8 sm:$0x3] %vm4, %v3
    %s6 = scalar_lea.vmem %s0, 3
    %s7 = smov 3
    %v8 = vld [vmem:[%s6] ss:$4 sm:%s7]
    %9 = vrot.lane.b32.xlu0 %v8, 96
    %v10 = vpop.permute.xlu0 %9
    %vm11 = vcmask 1048320
    %12 = vst.msk [vmem:[#allocation0] ss:$8 sm:$0x3] %vm11, %v10
    %s13 = scalar_lea.vmem %s0, 2
    %s14 = smov 3
    %v15 = vld [vmem:[%s13] ss:$4 sm:%s14]
    %16 = vrot.lane.b32.xlu0 %v15, 64
    %v17 = vpop.permute.xlu0 %16
    %vm18 = vcmask 785920
    %19 = vst.msk [vmem:[#allocation0] ss:$8 sm:$0x3] %vm18, %v17
    %s20 = scalar_lea.vmem %s0, 1
    %s21 = smov 3
    %v22 = vld [vmem:[%s20] ss:$4 sm:%s21]
    %23 = vrot.lane.b32.xlu0 %v22, 32
    %v24 = vpop.permute.xlu0 %23
    %vm25 = vcmask 523520
    %26 = vst.msk [vmem:[#allocation0] ss:$8 sm:$0x3] %vm25, %v24
    %s28 = sshllo.u32 0, 1
    %v30 = vld [vmem:[#allocation0] sm:%s28]
    %s31 = sshllo.u32 0, 1
    %32 = vst [vmem:[%s1] sm:%s31] %v30
    %s33 = scalar_lea.vmem [#allocation0], 8
    %v34 = vld [vmem:[%s33] sm:%s28]
    %s35 = sshllo.u32 0, 1
    %s36 = scalar_lea.vmem %s1, 1
    %37 = vst [vmem:[%s36] sm:%s35] %v34

// kernel: fno3d_forward.11
$region0: #{fno3d_forward.11}
  #allocation0 [shape = 'u32[]', space=smem, size = 0x4, offset = 0x4, fixed_abs, tag = 'smem constant byte address 0x4 - core index']
  #allocation1 [shape = 'u32[144,128]{1,0:T(1,128)}', space=vmem, size = 0x12000, scoped, tag = 'internal scratch']
  %s0 = inlined_call_operand.vmem [shape: f32[128,128], index: 0, kind: input, shape index: {}]
  %s1 = inlined_call_operand.vmem [shape: f32[128,256], index: 1, kind: input, shape index: {}]
  %s2 = inlined_call_operand.vmem [shape: f32[1,256], index: 2, kind: input, shape index: {}]
  %s3 = inlined_call_operand.vmem [shape: f32[256,8], index: 3, kind: input, shape index: {}]
  %s4 = inlined_call_operand.vmem [shape: f32[1,8], index: 4, kind: input, shape index: {}]
  %s5 = inlined_call_operand.hbm [shape: f32[128,8], index: 5, kind: output, shape index: {}]
  %s6 = sld [smem:[#allocation0]]
  $region53: #{fno3d_forward.11} parent=0
    _
  %s8 = ssub.s32 1, %s6
  %s9 = scalar_select 0, %s8, %s6
  $region1: #{fno3d_forward.11} parent=0
    #allocation2 [shape = 'u8[65536]{0}', space=vmem, size = 0x10000, scoped, tag = 'output window, operand 0']
    #allocation3 [shape = 's32[2]{0}', space=sflag, size = 0x8, scoped, tag = 'scoped memory for fno3d_forward.11']
    %10 = vsyncpa [#allocation3], 0
    %s11 = scalar_lea.sflag [#allocation3], 1
    %12 = vsyncpa %s11, 0
    loop: start=0, step=1, limit=4
    $region2: #{fno3d_forward.11} parent=1 // loop_pre_header
      _
    $region3: #{fno3d_forward.11} parent=1 // loop_header
      %s14 = sphi 0, %s18
      %p15 = scmp.ge.s32.totalorder %s14, 4
      %s24 = sphi 0, %s26
      %s27 = sphi 0, %s24
      %s28 = sphi 0, %s27
      %s44 = sphi 0, %s28
      %s48 = sphi 0, %s48
      %s50 = sphi 0, %s48
      %s51 = sphi 0, %s50
      %s65 = sphi 0, %s51
      %s69 = sphi 0, %s69
      %s71 = sphi 0, %s69
      %s72 = sphi 0, %s71
      %s86 = sphi 0, %s72
      %s90 = sphi 0, %s90
      %s92 = sphi 0, %s90
      %s93 = sphi 0, %s92
      %s107 = sphi 0, %s93
      %s111 = sphi 0, %s111
      %s113 = sphi 0, %s111
      %s114 = sphi 0, %s113
      %s128 = sphi 0, %s114
      %s134 = sphi 0, %s136
      %s137 = sphi 0, %s134
      %s138 = sphi 0, %s137
      %s154 = sphi 0, %s138
    $region4: #{fno3d_forward.11} parent=1 // loop_header_branch
      %17 = sbr.rel (%p15) target = $region8
    $region5: #{fno3d_forward.11} parent=1 // loop_body
      %s19 = ssub.s32 %s14, 1
      %s20 = ssub.s32 %s14, 2
      %s21 = sadd.s32 %s14, 1
      %s22 = ssub.s32 %s14, %s21
      %p23 = scmp.eq.s32.totalorder %s22, 0
      %s25 = sadd.s32 %s24, 1
      %s26 = scalar_select %p23, %s24, %s25
      %p29 = pneg %p23
      %p30 = scmp.eq.s32.totalorder %s14, 1
      %p31 = por %p29, %p30
      %p32 = scmp.ne.s32.totalorder %s24, %s27
      %p33 = scmp.eq.s32.totalorder %s14, 0
      %p34 = por %p32, %p33
      %p35 = scmp.ne.s32.totalorder %s24, %s27
      %p36 = scmp.eq.s32.totalorder %s19, 1
      %p37 = por %p35, %p36
      %p38 = scmp.ne.s32.totalorder %s27, %s28
      %p39 = scmp.eq.s32.totalorder %s19, 0
      %p40 = por %p38, %p39
      %p41 = scmp.ne.s32.totalorder %s27, %s28
      %p42 = scmp.eq.s32.totalorder %s20, 1
      %p43 = por %p41, %p42
      %p45 = scmp.ne.s32.totalorder %s28, %s44
      %p46 = scmp.eq.s32.totalorder %s20, 0
      %p47 = por %p45, %p46
      %s49 = sadd.s32 %s48, 1
      %p52 = scmp.eq.s32.totalorder %s14, 1
      %p53 = scmp.ne.s32.totalorder %s48, %s50
      %p54 = scmp.eq.s32.totalorder %s14, 0
      %p55 = por %p53, %p54
      %p56 = scmp.ne.s32.totalorder %s48, %s50
      %p57 = scmp.eq.s32.totalorder %s19, 1
      %p58 = por %p56, %p57
      %p59 = scmp.ne.s32.totalorder %s50, %s51
      %p60 = scmp.eq.s32.totalorder %s19, 0
      %p61 = por %p59, %p60
      %p62 = scmp.ne.s32.totalorder %s50, %s51
      %p63 = scmp.eq.s32.totalorder %s20, 1
      %p64 = por %p62, %p63
      %p66 = scmp.ne.s32.totalorder %s51, %s65
      %p67 = scmp.eq.s32.totalorder %s20, 0
      %p68 = por %p66, %p67
      %s70 = sadd.s32 %s69, 1
      %p73 = scmp.eq.s32.totalorder %s14, 1
      %p74 = scmp.ne.s32.totalorder %s69, %s71
      %p75 = scmp.eq.s32.totalorder %s14, 0
      %p76 = por %p74, %p75
      %p77 = scmp.ne.s32.totalorder %s69, %s71
      %p78 = scmp.eq.s32.totalorder %s19, 1
      %p79 = por %p77, %p78
      %p80 = scmp.ne.s32.totalorder %s71, %s72
      %p81 = scmp.eq.s32.totalorder %s19, 0
      %p82 = por %p80, %p81
      %p83 = scmp.ne.s32.totalorder %s71, %s72
      %p84 = scmp.eq.s32.totalorder %s20, 1
      %p85 = por %p83, %p84
      %p87 = scmp.ne.s32.totalorder %s72, %s86
      %p88 = scmp.eq.s32.totalorder %s20, 0
      %p89 = por %p87, %p88
      %s91 = sadd.s32 %s90, 1
      %p94 = scmp.eq.s32.totalorder %s14, 1
      %p95 = scmp.ne.s32.totalorder %s90, %s92
      %p96 = scmp.eq.s32.totalorder %s14, 0
      %p97 = por %p95, %p96
      %p98 = scmp.ne.s32.totalorder %s90, %s92
      %p99 = scmp.eq.s32.totalorder %s19, 1
      %p100 = por %p98, %p99
      %p101 = scmp.ne.s32.totalorder %s92, %s93
      %p102 = scmp.eq.s32.totalorder %s19, 0
      %p103 = por %p101, %p102
      %p104 = scmp.ne.s32.totalorder %s92, %s93
      %p105 = scmp.eq.s32.totalorder %s20, 1
      %p106 = por %p104, %p105
      %p108 = scmp.ne.s32.totalorder %s93, %s107
      %p109 = scmp.eq.s32.totalorder %s20, 0
      %p110 = por %p108, %p109
      %s112 = sadd.s32 %s111, 1
      %p115 = scmp.eq.s32.totalorder %s14, 1
      %p116 = scmp.ne.s32.totalorder %s111, %s113
      %p117 = scmp.eq.s32.totalorder %s14, 0
      %p118 = por %p116, %p117
      %p119 = scmp.ne.s32.totalorder %s111, %s113
      %p120 = scmp.eq.s32.totalorder %s19, 1
      %p121 = por %p119, %p120
      %p122 = scmp.ne.s32.totalorder %s113, %s114
      %p123 = scmp.eq.s32.totalorder %s19, 0
      %p124 = por %p122, %p123
      %p125 = scmp.ne.s32.totalorder %s113, %s114
      %p126 = scmp.eq.s32.totalorder %s20, 1
      %p127 = por %p125, %p126
      %p129 = scmp.ne.s32.totalorder %s114, %s128
      %p130 = scmp.eq.s32.totalorder %s20, 0
      %p131 = por %p129, %p130
      %s132 = ssub.s32 %s14, %s21
      %p133 = scmp.eq.s32.totalorder %s132, 0
      %s135 = sadd.s32 %s134, 1
      %s136 = scalar_select %p133, %s134, %s135
      %p139 = pneg %p133
      %p140 = scmp.eq.s32.totalorder %s14, 1
      %p141 = por %p139, %p140
      %p142 = scmp.ne.s32.totalorder %s134, %s137
      %p143 = scmp.eq.s32.totalorder %s14, 0
      %p144 = por %p142, %p143
      %p145 = scmp.ne.s32.totalorder %s134, %s137
      %p146 = scmp.eq.s32.totalorder %s19, 1
      %p147 = por %p145, %p146
      %p148 = scmp.ne.s32.totalorder %s137, %s138
      %p149 = scmp.eq.s32.totalorder %s19, 0
      %p150 = por %p148, %p149
      %p151 = scmp.ne.s32.totalorder %s137, %s138
      %p152 = scmp.eq.s32.totalorder %s20, 1
      %p153 = por %p151, %p152
      %p155 = scmp.ne.s32.totalorder %s138, %s154
      %p156 = scmp.eq.s32.totalorder %s20, 0
      %p157 = por %p155, %p156
      %p158 = scmp.le.s32.totalorder 1, %s14
      %p159 = scmp.lt.s32.totalorder %s14, 3
      %p160 = pnand %p158, %p159
      %p161 = pneg %p160
      // Predicated region
      $region9: #{fno3d_forward.11} parent=5 // pred_check
        _
      $region10: #{fno3d_forward.11} parent=5 // pred_check_branch
        %163 = sbr.rel (%p160) target = $region12
      $region11: #{fno3d_forward.11} parent=5 // pred_region
        %s164 = ssub.s32 %s14, 1
        // Predicated region
        $region13: #{fno3d_forward.11} parent=11 // pred_check
          %p165 = pneg %p61
        $region14: #{fno3d_forward.11} parent=11 // pred_check_branch
          %167 = sbr.rel (%p165) target = $region16
        $region15: #{fno3d_forward.11} parent=11 // pred_region
          _
        $region16: #{fno3d_forward.11} parent=11 // pred_fallthru
          _
        // Predicated region
        $region17: #{fno3d_forward.11} parent=11 // pred_check
          %p168 = pneg %p82
        $region18: #{fno3d_forward.11} parent=11 // pred_check_branch
          %170 = sbr.rel (%p168) target = $region20
        $region19: #{fno3d_forward.11} parent=11 // pred_region
          _
        $region20: #{fno3d_forward.11} parent=11 // pred_fallthru
          _
        // Predicated region
        $region21: #{fno3d_forward.11} parent=11 // pred_check
          %p171 = pneg %p103
        $region22: #{fno3d_forward.11} parent=11 // pred_check_branch
          %173 = sbr.rel (%p171) target = $region24
        $region23: #{fno3d_forward.11} parent=11 // pred_region
          _
        $region24: #{fno3d_forward.11} parent=11 // pred_fallthru
          _
        // Predicated region
        $region25: #{fno3d_forward.11} parent=11 // pred_check
          %p174 = pneg %p124
        $region26: #{fno3d_forward.11} parent=11 // pred_check_branch
          %176 = sbr.rel (%p174) target = $region28
        $region27: #{fno3d_forward.11} parent=11 // pred_region
          _
        $region28: #{fno3d_forward.11} parent=11 // pred_fallthru
          _
      $region12: #{fno3d_forward.11} parent=5 // pred_fallthru
        _
      %p177 = scmp.lt.s32.totalorder %s14, 2
      // Predicated region
      $region29: #{fno3d_forward.11} parent=5 // pred_check
        %p178 = pneg %p177
      $region30: #{fno3d_forward.11} parent=5 // pred_check_branch
        %180 = sbr.rel (%p178) target = $region32
      $region31: #{fno3d_forward.11} parent=5 // pred_region
        // Predicated region
        $region33: #{fno3d_forward.11} parent=31 // pred_check
          %p181 = pneg %p34
        $region34: #{fno3d_forward.11} parent=31 // pred_check_branch
          %183 = sbr.rel (%p181) target = $region36
        $region35: #{fno3d_forward.11} parent=31 // pred_region
          %s184 = smul.u32 8, %s14
          %p185 = scmp.lt.s32.totalorder %s184, 15
          %s186 = scalar_select %p185, %s184, 15
          %s187 = smul.addr %s186, 8
          %s188 = scalar_lea.vmem %s0, %s187
          %s189 = smul.u32 8, %s14
        $region36: #{fno3d_forward.11} parent=31 // pred_fallthru
          _
      $region32: #{fno3d_forward.11} parent=5 // pred_fallthru
        _
      %p190 = scmp.le.s32.totalorder 1, %s14
      %p191 = scmp.lt.s32.totalorder %s14, 3
      %p192 = pnand %p190, %p191
      %p193 = pneg %p192
      // Predicated region
      $region37: #{fno3d_forward.11} parent=5 // pred_check
        _
      $region38: #{fno3d_forward.11} parent=5 // pred_check_branch
        %195 = sbr.rel (%p192) target = $region40
      $region39: #{fno3d_forward.11} parent=5 // pred_region
        %s196 = ssub.s32 %s14, 1
        %s197 = smul.u32 8, %s19
        %p198 = scmp.lt.s32.totalorder %s197, 15
        %s199 = scalar_select %p198, %s197, 15
        %s200 = smul.addr %s199, 8
        %s201 = scalar_lea.vmem %s0, %s200
        %p202 = pneg %p40
        %p203 = pneg %p37
        %p204 = pneg %p61
        %p205 = pneg %p58
        %p206 = pneg %p82
        %p207 = pneg %p79
        %p208 = pneg %p103
        %p209 = pneg %p100
        %p210 = pneg %p124
        %p211 = pneg %p121
        %p212 = pneg %p150
        %p213 = pneg %p147
        %s214 = sand.u32 %s137, 1
        %s215 = scalar_lea.sflag [#allocation3], %s214
        %s216 = sand.u32 %s137, 1
        %s217 = smul.addr %s216, 64
        %s218 = scalar_lea.vmem [#allocation2], %s217
        %s219 = smul.u32 8, %s19
        %p220 = scmp.lt.s32.totalorder %s219, 15
        %s221 = scalar_select %p220, %s219, 15
        %s222 = smul.addr %s221, 8
        %s223 = scalar_lea.vmem %s0, %s222
        %s224 = smul.u32 8, %s19
        %s225 = smul.u32 8, %s19
        %v226 = vld [vmem:[%s223] sm:$0xff]
        %v227 = vld [vmem:[%s223 + $0x8] sm:$0xff]
        %v228 = vld [vmem:[%s223 + $0x10] sm:$0xff]
        %v229 = vld [vmem:[%s223 + $0x18] sm:$0xff]
        %v230 = vld [vmem:[%s223 + $0x20] sm:$0xff]
        %v231 = vld [vmem:[%s223 + $0x28] sm:$0xff]
        %v232 = vld [vmem:[%s223 + $0x30] sm:$0xff]
        %v233 = vld [vmem:[%s223 + $0x38] sm:$0xff]
        %v234 = vld [vmem:[%s1] sm:$0xff]
        %v235 = vld [vmem:[%s1 + $0x8] sm:$0xff]
        %v236 = vld [vmem:[%s1 + $0x10] sm:$0xff]
        %v237 = vld [vmem:[%s1 + $0x18] sm:$0xff]
        %v238 = vld [vmem:[%s1 + $0x20] sm:$0xff]
        %v239 = vld [vmem:[%s1 + $0x28] sm:$0xff]
        %v240 = vld [vmem:[%s1 + $0x30] sm:$0xff]
        %v241 = vld [vmem:[%s1 + $0x38] sm:$0xff]
        %v242 = vld [vmem:[%s1 + $0x40] sm:$0xff]
        %v243 = vld [vmem:[%s1 + $0x48] sm:$0xff]
        %v244 = vld [vmem:[%s1 + $0x50] sm:$0xff]
        %v245 = vld [vmem:[%s1 + $0x58] sm:$0xff]
        %v246 = vld [vmem:[%s1 + $0x60] sm:$0xff]
        %v247 = vld [vmem:[%s1 + $0x68] sm:$0xff]
        %v248 = vld [vmem:[%s1 + $0x70] sm:$0xff]
        %v249 = vld [vmem:[%s1 + $0x78] sm:$0xff]
        %v250 = vld [vmem:[%s1 + $0x80] sm:$0xff]
        %v251 = vld [vmem:[%s1 + $0x88] sm:$0xff]
        %v252 = vld [vmem:[%s1 + $0x90] sm:$0xff]
        %v253 = vld [vmem:[%s1 + $0x98] sm:$0xff]
        %v254 = vld [vmem:[%s1 + $0xa0] sm:$0xff]
        %v255 = vld [vmem:[%s1 + $0xa8] sm:$0xff]
        %v256 = vld [vmem:[%s1 + $0xb0] sm:$0xff]
        %v257 = vld [vmem:[%s1 + $0xb8] sm:$0xff]
        %v258 = vld [vmem:[%s1 + $0xc0] sm:$0xff]
        %v259 = vld [vmem:[%s1 + $0xc8] sm:$0xff]
        %v260 = vld [vmem:[%s1 + $0xd0] sm:$0xff]
        %v261 = vld [vmem:[%s1 + $0xd8] sm:$0xff]
        %v262 = vld [vmem:[%s1 + $0xe0] sm:$0xff]
        %v263 = vld [vmem:[%s1 + $0xe8] sm:$0xff]
        %v264 = vld [vmem:[%s1 + $0xf0] sm:$0xff]
        %v265 = vld [vmem:[%s1 + $0xf8] sm:$0xff]
        %v266 = vld [vmem:[%s2] sm:$0x3]
        %v268 = vlaneseq
        %v269 = vshrl.u32 %v268, 7
        %v270 = vsub.s32 0, %v269
        %v271 = vrot.slane %v266, %v270
        %v272 = vlaneseq
        %v273 = vshrl.u32 %v272, 7
        %v274 = vsub.s32 1, %v273
        %v275 = vrot.slane %v266, %v274
        %278 = vmatprep.subr.mxu0 %v235
        %279 = vmatpush1.msra.mxu0 %v234
        %280 = vmatprep.subr.mxu0 %v237
        %281 = vmatpush1.msra.mxu0 %v236
        %282 = vmatprep.subr.mxu0 %v239
        %283 = vmatpush1.msra.mxu0 %v238
        %284 = vmatprep.subr.mxu0 %v241
        %285 = vmatpush1.msra.mxu0 %v240
        %286 = vmatprep.subr.mxu0 %v243
        %287 = vmatpush1.msra.mxu0 %v242
        %288 = vmatprep.subr.mxu0 %v245
        %289 = vmatpush1.msra.mxu0 %v244
        %290 = vmatprep.subr.mxu0 %v247
        %291 = vmatpush1.msra.mxu0 %v246
        %292 = vmatprep.subr.mxu0 %v249
        %293 = vmatpush1.msra.mxu0 %v248
        %294 = vmatprep.subr.mxu0 %v251
        %295 = vmatpush1.msra.mxu0 %v250
        %296 = vmatprep.subr.mxu0 %v253
        %297 = vmatpush1.msra.mxu0 %v252
        %298 = vmatprep.subr.mxu0 %v255
        %299 = vmatpush1.msra.mxu0 %v254
        %300 = vmatprep.subr.mxu0 %v257
        %301 = vmatpush1.msra.mxu0 %v256
        %302 = vmatprep.subr.mxu0 %v259
        %303 = vmatpush1.msra.mxu0 %v258
        %304 = vmatprep.subr.mxu0 %v261
        %305 = vmatpush1.msra.mxu0 %v260
        %306 = vmatprep.subr.mxu0 %v263
        %307 = vmatpush1.msra.mxu0 %v262
        %308 = vmatprep.subr.mxu0 %v265
        %309 = vmatpush1.msra.mxu0 %v264
        %310 = vmatprep.subr.mxu0 0.0
        %311 = vmatpush1.msra.mxu0 0.0
        %312 = vmatprep.subr.mxu0 0.0
        %313 = vmatpush1.msra.mxu0 0.0
        %314 = vmatprep.subr.mxu0 0.0
        %315 = vmatpush1.msra.mxu0 0.0
        %316 = vmatprep.subr.mxu0 0.0
        %317 = vmatpush1.msra.mxu0 0.0
        %318 = vmatprep.subr.mxu0 0.0
        %319 = vmatpush1.msra.mxu0 0.0
        %320 = vmatprep.subr.mxu0 0.0
        %321 = vmatpush1.msra.mxu0 0.0
        %322 = vmatprep.subr.mxu0 0.0
        %323 = vmatpush1.msra.mxu0 0.0
        %324 = vmatprep.subr.mxu0 0.0
        %325 = vmatpush1.msra.mxu0 0.0
        %326 = vmatprep.subr.mxu0 0.0
        %327 = vmatpush1.msra.mxu0 0.0
        %328 = vmatprep.subr.mxu0 0.0
        %329 = vmatpush1.msra.mxu0 0.0
        %330 = vmatprep.subr.mxu0 0.0
        %331 = vmatpush1.msra.mxu0 0.0
        %332 = vmatprep.subr.mxu0 0.0
        %333 = vmatpush1.msra.mxu0 0.0
        %334 = vmatprep.subr.mxu0 0.0
        %335 = vmatpush1.msra.mxu0 0.0
        %336 = vmatprep.subr.mxu0 0.0
        %337 = vmatpush1.msra.mxu0 0.0
        %338 = vmatprep.subr.mxu0 0.0
        %339 = vmatpush1.msra.mxu0 0.0
        %340 = vmatprep.subr.mxu0 0.0
        %341 = vmatpush1.msra.mxu0 0.0
        %342 = vmatprep.mubr.f32.mxu0 0.0
        %343 = vmatmul.mubr.f32.gmra.mrb[0].mxu0 %v226
        %v344 = vpop.f32.mrb[0].mxu0
        %v345 = vadd.f32 %v271, %v344
        %v346 = vpop.f32.mrb[0].mxu0
        %v347 = vadd.f32 %v275, %v346
        %348 = vmatprep.mubr.f32.mxu0 0.0
        %349 = vmatmul.mubr.f32.gmra.mrb[0].mxu0 %v227
        %v350 = vpop.f32.mrb[0].mxu0
        %v351 = vadd.f32 %v271, %v350
        %v352 = vpop.f32.mrb[0].mxu0
        %v353 = vadd.f32 %v275, %v352
        %354 = vmatprep.mubr.f32.mxu0 0.0
        %355 = vmatmul.mubr.f32.gmra.mrb[0].mxu0 %v228
        %v356 = vpop.f32.mrb[0].mxu0
        %v357 = vadd.f32 %v271, %v356
        %v358 = vpop.f32.mrb[0].mxu0
        %v359 = vadd.f32 %v275, %v358
        %360 = vmatprep.mubr.f32.mxu0 0.0
        %361 = vmatmul.mubr.f32.gmra.mrb[0].mxu0 %v229
        %v362 = vpop.f32.mrb[0].mxu0
        %v363 = vadd.f32 %v271, %v362
        %v364 = vpop.f32.mrb[0].mxu0
        %v365 = vadd.f32 %v275, %v364
        %366 = vmatprep.mubr.f32.mxu0 0.0
        %367 = vmatmul.mubr.f32.gmra.mrb[0].mxu0 %v230
        %v368 = vpop.f32.mrb[0].mxu0
        %v369 = vadd.f32 %v271, %v368
        %v370 = vpop.f32.mrb[0].mxu0
        %v371 = vadd.f32 %v275, %v370
        %372 = vmatprep.mubr.f32.mxu0 0.0
        %373 = vmatmul.mubr.f32.gmra.mrb[0].mxu0 %v231
        %v374 = vpop.f32.mrb[0].mxu0
        %v375 = vadd.f32 %v271, %v374
        %v376 = vpop.f32.mrb[0].mxu0
        %v377 = vadd.f32 %v275, %v376
        %378 = vmatprep.mubr.f32.mxu0 0.0
        %379 = vmatmul.mubr.f32.gmra.mrb[0].mxu0 %v232
        %v380 = vpop.f32.mrb[0].mxu0
        %v381 = vadd.f32 %v271, %v380
        %v382 = vpop.f32.mrb[0].mxu0
        %v383 = vadd.f32 %v275, %v382
        %384 = vmatprep.mubr.f32.mxu0 0.0
        %385 = vmatmul.mubr.f32.gmra.mrb[0].mxu0 %v233
        %v386 = vpop.f32.mrb[0].mxu0
        %v387 = vadd.f32 %v271, %v386
        %v388 = vpop.f32.mrb[0].mxu0
        %v389 = vadd.f32 %v275, %v388
        %390 = vdwg.mxu0
        %v391 = vmul.f32 %v345, 0.5
        %v392 = vmul.f32 %v347, 0.5
        %v393 = vmul.f32 %v351, 0.5
        %v394 = vmul.f32 %v353, 0.5
        %v395 = vmul.f32 %v357, 0.5
        %v396 = vmul.f32 %v359, 0.5
        %v397 = vmul.f32 %v363, 0.5
        %v398 = vmul.f32 %v365, 0.5
        %v399 = vmul.f32 %v369, 0.5
        %v400 = vmul.f32 %v371, 0.5
        %v401 = vmul.f32 %v375, 0.5
        %v402 = vmul.f32 %v377, 0.5
        %v403 = vmul.f32 %v381, 0.5
        %v404 = vmul.f32 %v383, 0.5
        %v405 = vmul.f32 %v387, 0.5
        %v406 = vmul.f32 %v389, 0.5
        %v407 = vmul.f32 %v345, 0.70710677
        %v408 = vmul.f32 %v347, 0.70710677
        %v409 = vmul.f32 %v351, 0.70710677
        %v410 = vmul.f32 %v353, 0.70710677
        %v411 = vmul.f32 %v357, 0.70710677
        %v412 = vmul.f32 %v359, 0.70710677
        %v413 = vmul.f32 %v363, 0.70710677
        %v414 = vmul.f32 %v365, 0.70710677
        %v415 = vmul.f32 %v369, 0.70710677
        %v416 = vmul.f32 %v371, 0.70710677
        %v417 = vmul.f32 %v375, 0.70710677
        %v418 = vmul.f32 %v377, 0.70710677
        %v419 = vmul.f32 %v381, 0.70710677
        %v420 = vmul.f32 %v383, 0.70710677
        %v421 = vmul.f32 %v387, 0.70710677
        %v422 = vmul.f32 %v389, 0.70710677
        %v423 = verf.f32.pop %v407
        %v424 = verf.f32.pop %v408
        %v425 = verf.f32.pop %v409
        %v426 = verf.f32.pop %v410
        %v427 = verf.f32.pop %v411
        %v428 = verf.f32.pop %v412
        %v429 = verf.f32.pop %v413
        %v430 = verf.f32.pop %v414
        %v431 = verf.f32.pop %v415
        %v432 = verf.f32.pop %v416
        %v433 = verf.f32.pop %v417
        %v434 = verf.f32.pop %v418
        %v435 = verf.f32.pop %v419
        %v436 = verf.f32.pop %v420
        %v437 = verf.f32.pop %v421
        %v438 = verf.f32.pop %v422
        %v439 = vadd.f32 %v423, 1.0
        %v440 = vadd.f32 %v424, 1.0
        %v441 = vadd.f32 %v425, 1.0
        %v442 = vadd.f32 %v426, 1.0
        %v443 = vadd.f32 %v427, 1.0
        %v444 = vadd.f32 %v428, 1.0
        %v445 = vadd.f32 %v429, 1.0
        %v446 = vadd.f32 %v430, 1.0
        %v447 = vadd.f32 %v431, 1.0
        %v448 = vadd.f32 %v432, 1.0
        %v449 = vadd.f32 %v433, 1.0
        %v450 = vadd.f32 %v434, 1.0
        %v451 = vadd.f32 %v435, 1.0
        %v452 = vadd.f32 %v436, 1.0
        %v453 = vadd.f32 %v437, 1.0
        %v454 = vadd.f32 %v438, 1.0
        %v455 = vmul.f32 %v391, %v439
        %v456 = vmul.f32 %v392, %v440
        %v457 = vmul.f32 %v393, %v441
        %v458 = vmul.f32 %v394, %v442
        %v459 = vmul.f32 %v395, %v443
        %v460 = vmul.f32 %v396, %v444
        %v461 = vmul.f32 %v397, %v445
        %v462 = vmul.f32 %v398, %v446
        %v463 = vmul.f32 %v399, %v447
        %v464 = vmul.f32 %v400, %v448
        %v465 = vmul.f32 %v401, %v449
        %v466 = vmul.f32 %v402, %v450
        %v467 = vmul.f32 %v403, %v451
        %v468 = vmul.f32 %v404, %v452
        %v469 = vmul.f32 %v405, %v453
        %v470 = vmul.f32 %v406, %v454
        %v471 = vld [vmem:[%s3] sm:$0xff]
        %v472 = vld [vmem:[%s3 + $0x8] sm:$0xff]
        %v473 = vld [vmem:[%s3 + $0x10] sm:$0xff]
        %v474 = vld [vmem:[%s3 + $0x18] sm:$0xff]
        %v475 = vld [vmem:[%s3 + $0x20] sm:$0xff]
        %v476 = vld [vmem:[%s3 + $0x28] sm:$0xff]
        %v477 = vld [vmem:[%s3 + $0x30] sm:$0xff]
        %v478 = vld [vmem:[%s3 + $0x38] sm:$0xff]
        %v479 = vld [vmem:[%s3 + $0x40] sm:$0xff]
        %v480 = vld [vmem:[%s3 + $0x48] sm:$0xff]
        %v481 = vld [vmem:[%s3 + $0x50] sm:$0xff]
        %v482 = vld [vmem:[%s3 + $0x58] sm:$0xff]
        %v483 = vld [vmem:[%s3 + $0x60] sm:$0xff]
        %v484 = vld [vmem:[%s3 + $0x68] sm:$0xff]
        %v485 = vld [vmem:[%s3 + $0x70] sm:$0xff]
        %v486 = vld [vmem:[%s3 + $0x78] sm:$0xff]
        %v487 = vld [vmem:[%s3 + $0x80] sm:$0xff]
        %v488 = vld [vmem:[%s3 + $0x88] sm:$0xff]
        %v489 = vld [vmem:[%s3 + $0x90] sm:$0xff]
        %v490 = vld [vmem:[%s3 + $0x98] sm:$0xff]
        %v491 = vld [vmem:[%s3 + $0xa0] sm:$0xff]
        %v492 = vld [vmem:[%s3 + $0xa8] sm:$0xff]
        %v493 = vld [vmem:[%s3 + $0xb0] sm:$0xff]
        %v494 = vld [vmem:[%s3 + $0xb8] sm:$0xff]
        %v495 = vld [vmem:[%s3 + $0xc0] sm:$0xff]
        %v496 = vld [vmem:[%s3 + $0xc8] sm:$0xff]
        %v497 = vld [vmem:[%s3 + $0xd0] sm:$0xff]
        %v498 = vld [vmem:[%s3 + $0xd8] sm:$0xff]
        %v499 = vld [vmem:[%s3 + $0xe0] sm:$0xff]
        %v500 = vld [vmem:[%s3 + $0xe8] sm:$0xff]
        %v501 = vld [vmem:[%s3 + $0xf0] sm:$0xff]
        %v502 = vld [vmem:[%s3 + $0xf8] sm:$0xff]
        %v503 = vld [vmem:[%s4] sm:$0x1]
        %v505 = vlaneseq
        %v506 = vshrl.u32 %v505, 7
        %v507 = vsub.s32 0, %v506
        %v508 = vrot.slane %v503, %v507
        %510 = vmatprep.subr.mxu0 0.0
        %511 = vmatpush1.msra.mxu0 %v471
        %512 = vmatprep.subr.mxu0 0.0
        %513 = vmatpush1.msra.mxu0 %v472
        %514 = vmatprep.subr.mxu0 0.0
        %515 = vmatpush1.msra.mxu0 %v473
        %516 = vmatprep.subr.mxu0 0.0
        %517 = vmatpush1.msra.mxu0 %v474
        %518 = vmatprep.subr.mxu0 0.0
        %519 = vmatpush1.msra.mxu0 %v475
        %520 = vmatprep.subr.mxu0 0.0
        %521 = vmatpush1.msra.mxu0 %v476
        %522 = vmatprep.subr.mxu0 0.0
        %523 = vmatpush1.msra.mxu0 %v477
        %524 = vmatprep.subr.mxu0 0.0
        %525 = vmatpush1.msra.mxu0 %v478
        %526 = vmatprep.subr.mxu0 0.0
        %527 = vmatpush1.msra.mxu0 %v479
        %528 = vmatprep.subr.mxu0 0.0
        %529 = vmatpush1.msra.mxu0 %v480
        %530 = vmatprep.subr.mxu0 0.0
        %531 = vmatpush1.msra.mxu0 %v481
        %532 = vmatprep.subr.mxu0 0.0
        %533 = vmatpush1.msra.mxu0 %v482
        %534 = vmatprep.subr.mxu0 0.0
        %535 = vmatpush1.msra.mxu0 %v483
        %536 = vmatprep.subr.mxu0 0.0
        %537 = vmatpush1.msra.mxu0 %v484
        %538 = vmatprep.subr.mxu0 0.0
        %539 = vmatpush1.msra.mxu0 %v485
        %540 = vmatprep.subr.mxu0 0.0
        %541 = vmatpush1.msra.mxu0 %v486
        %542 = vmatprep.subr.mxu0 0.0
        %543 = vmatpush1.msra.mxu0 %v487
        %544 = vmatprep.subr.mxu0 0.0
        %545 = vmatpush1.msra.mxu0 %v488
        %546 = vmatprep.subr.mxu0 0.0
        %547 = vmatpush1.msra.mxu0 %v489
        %548 = vmatprep.subr.mxu0 0.0
        %549 = vmatpush1.msra.mxu0 %v490
        %550 = vmatprep.subr.mxu0 0.0
        %551 = vmatpush1.msra.mxu0 %v491
        %552 = vmatprep.subr.mxu0 0.0
        %553 = vmatpush1.msra.mxu0 %v492
        %554 = vmatprep.subr.mxu0 0.0
        %555 = vmatpush1.msra.mxu0 %v493
        %556 = vmatprep.subr.mxu0 0.0
        %557 = vmatpush1.msra.mxu0 %v494
        %558 = vmatprep.subr.mxu0 0.0
        %559 = vmatpush1.msra.mxu0 %v495
        %560 = vmatprep.subr.mxu0 0.0
        %561 = vmatpush1.msra.mxu0 %v496
        %562 = vmatprep.subr.mxu0 0.0
        %563 = vmatpush1.msra.mxu0 %v497
        %564 = vmatprep.subr.mxu0 0.0
        %565 = vmatpush1.msra.mxu0 %v498
        %566 = vmatprep.subr.mxu0 0.0
        %567 = vmatpush1.msra.mxu0 %v499
        %568 = vmatprep.subr.mxu0 0.0
        %569 = vmatpush1.msra.mxu0 %v500
        %570 = vmatprep.subr.mxu0 0.0
        %571 = vmatpush1.msra.mxu0 %v501
        %572 = vmatprep.subr.mxu0 0.0
        %573 = vmatpush1.msra.mxu0 %v502
        %574 = vmatprep.mubr.f32.mxu0 %v456
        %575 = vmatmul.mubr.f32.gmra.mrb[0].mxu0 %v455
        %v576 = vpop.f32.mrb[0].mxu0
        %v577 = vadd.f32 %v508, %v576
        %v578 = vpop.f32.mrb[0].mxu0
        %579 = vmatprep.mubr.f32.mxu0 %v458
        %580 = vmatmul.mubr.f32.gmra.mrb[0].mxu0 %v457
        %v581 = vpop.f32.mrb[0].mxu0
        %v582 = vadd.f32 %v508, %v581
        %v583 = vpop.f32.mrb[0].mxu0
        %584 = vmatprep.mubr.f32.mxu0 %v460
        %585 = vmatmul.mubr.f32.gmra.mrb[0].mxu0 %v459
        %v586 = vpop.f32.mrb[0].mxu0
        %v587 = vadd.f32 %v508, %v586
        %v588 = vpop.f32.mrb[0].mxu0
        %589 = vmatprep.mubr.f32.mxu0 %v462
        %590 = vmatmul.mubr.f32.gmra.mrb[0].mxu0 %v461
        %v591 = vpop.f32.mrb[0].mxu0
        %v592 = vadd.f32 %v508, %v591
        %v593 = vpop.f32.mrb[0].mxu0
        %594 = vmatprep.mubr.f32.mxu0 %v464
        %595 = vmatmul.mubr.f32.gmra.mrb[0].mxu0 %v463
        %v596 = vpop.f32.mrb[0].mxu0
        %v597 = vadd.f32 %v508, %v596
        %v598 = vpop.f32.mrb[0].mxu0
        %599 = vmatprep.mubr.f32.mxu0 %v466
        %600 = vmatmul.mubr.f32.gmra.mrb[0].mxu0 %v465
        %v601 = vpop.f32.mrb[0].mxu0
        %v602 = vadd.f32 %v508, %v601
        %v603 = vpop.f32.mrb[0].mxu0
        %604 = vmatprep.mubr.f32.mxu0 %v468
        %605 = vmatmul.mubr.f32.gmra.mrb[0].mxu0 %v467
        %v606 = vpop.f32.mrb[0].mxu0
        %v607 = vadd.f32 %v508, %v606
        %v608 = vpop.f32.mrb[0].mxu0
        %609 = vmatprep.mubr.f32.mxu0 %v470
        %610 = vmatmul.mubr.f32.gmra.mrb[0].mxu0 %v469
        %v611 = vpop.f32.mrb[0].mxu0
        %v612 = vadd.f32 %v508, %v611
        %v613 = vpop.f32.mrb[0].mxu0
        %614 = vdwg.mxu0
        %vm615 = vcmask 64512
        %616 = vst.msk [vmem:[%s218] sm:$0xff] %vm615, %v577
        %617 = vst.msk [vmem:[%s218 + $0x8] sm:$0xff] %vm615, %v582
        %618 = vst.msk [vmem:[%s218 + $0x10] sm:$0xff] %vm615, %v587
        %619 = vst.msk [vmem:[%s218 + $0x18] sm:$0xff] %vm615, %v592
        %620 = vst.msk [vmem:[%s218 + $0x20] sm:$0xff] %vm615, %v597
        %621 = vst.msk [vmem:[%s218 + $0x28] sm:$0xff] %vm615, %v602
        %622 = vst.msk [vmem:[%s218 + $0x30] sm:$0xff] %vm615, %v607
        %623 = vst.msk [vmem:[%s218 + $0x38] sm:$0xff] %vm615, %v612
        %s624 = sand.u32 %s137, 1
        %s625 = scalar_lea.sflag [#allocation3], %s624
        %s626 = sand.u32 %s137, 1
        %s627 = smul.addr %s626, 64
        %s628 = scalar_lea.vmem [#allocation2], %s627
        // Predicated region
        $region41: #{fno3d_forward.11} parent=39 // pred_check
          %p629 = pneg %p147
        $region42: #{fno3d_forward.11} parent=39 // pred_check_branch
          %631 = sbr.rel (%p629) target = $region44
        $region43: #{fno3d_forward.11} parent=39 // pred_region
          %s632 = smul.u32 8, %s19
          %s634 = ssub.s32 1024, 1024
          %635 = vsyncadd %s625, %s634
          %s636 = smul.addr %s632, 128
          %s637 = scalar_lea.hbm %s5, %s636
          %s638 = sshll.u32 %s628, 4
          %s639 = int_to_ptr.vmem [resolvable:$true] %s638
          %644 = dma.vmem_to_hbm [thread:$0]  %s639, 1024, %s637, %s625, 128, 128, 8
        $region44: #{fno3d_forward.11} parent=39 // pred_fallthru
          _
      $region40: #{fno3d_forward.11} parent=5 // pred_fallthru
        _
      %p645 = scmp.le.s32.totalorder 2, %s14
      // Predicated region
      $region45: #{fno3d_forward.11} parent=5 // pred_check
        %p646 = pneg %p645
      $region46: #{fno3d_forward.11} parent=5 // pred_check_branch
        %648 = sbr.rel (%p646) target = $region48
      $region47: #{fno3d_forward.11} parent=5 // pred_region
        %s649 = ssub.s32 %s14, 2
        // Predicated region
        $region49: #{fno3d_forward.11} parent=47 // pred_check
          %p650 = pneg %p153
        $region50: #{fno3d_forward.11} parent=47 // pred_check_branch
          %652 = sbr.rel (%p650) target = $region52
        $region51: #{fno3d_forward.11} parent=47 // pred_region
          %s653 = sand.u32 %s138, 1
          %s654 = scalar_lea.sflag [#allocation3], %s653
          %s655 = sand.u32 %s138, 1
          %s656 = smul.addr %s655, 64
          %s657 = scalar_lea.vmem [#allocation2], %s656
          %658 = dma.done %s654, 1024
        $region52: #{fno3d_forward.11} parent=47 // pred_fallthru
          _
      $region48: #{fno3d_forward.11} parent=5 // pred_fallthru
        _
    $region6: #{fno3d_forward.11} parent=1 // loop_footer
      %s18 = sadd.s32 1, %s14
    $region7: #{fno3d_forward.11} parent=1 // loop_footer_branch
      %13 = sbr.rel target = $region3
    $region8: #{fno3d_forward.11} parent=1 // loop_exit
      _
    %659 = vsyncpa [#allocation3], 1
    %s660 = scalar_lea.sflag [#allocation3], 1
    %661 = vsyncpa %s660, 1

</llo_original>
